<compile_context>
chip_gen: v5e
topology: v5e:2x2
jax: 0.10.0
libtpu: 0.0.40
codegen_flags: <defaults>
</compile_context>

<pallas_src>
import jax
import jax.numpy as jnp
from jax.experimental import pallas as pl
from jax.experimental.pallas import tpu as pltpu

# ----------------------------- problem sizes (small, synthetic) -----------------------------
N = 16            # total nodes in the batch
G = 2             # number of graphs (pooling groups)
IN_CH = 48        # data.x feature dim
C = 128           # hidden_channels = hidden_size * 2 = out_channels = 128
PAD_IN = 128      # layer-0 input zero-padded 48 -> 128 so every layer shares one weight shape
EDGE_DIM = 4      # data.edge_attr feature dim
NUM_LAYERS = 6
ROW_CHUNK = 8     # attention computed 8 target rows at a time (vreg-pressure bound)
FC_HID = 64
N_OUT = 3

NEG_INF = -1e30   # plain python float -> no captured traced constant inside the kernel


# ------------------------------------ fused Pallas kernel -----------------------------------
def gnn_fused_kernel(x_ref, adj_ref, ea_ref, mask_ref, mask_t_ref, inv_cnt_ref,
                     wlr_ref, blr_ref, we_ref, att_ref, bias_ref, gamma_ref, beta_ref,
                     fcw_ref, fcb_ref, fc2w_ref, fc2b_ref,
                     out_ref, emb_ref, h_scr):
    """6 x GATv2Conv(+BN+leaky_relu) -> mean/max pool -> fc -> leaky_relu -> fc2, all in VMEM."""
    adj_mask = adj_ref[...] > 0                      # [N, N]
    h = x_ref[...]                                   # [N, PAD_IN]

    for l in range(NUM_LAYERS):
        # merged source/target node transform: one [N, 128] @ [128, 256] MXU matmul
        xlr = jnp.dot(h, wlr_ref[l], preferred_element_type=jnp.float32) + blr_ref[l]
        xl = xlr[:, 0:C]            # lin_l(x): source / message features
        xr = xlr[:, C:2 * C]        # lin_r(x): target features
        we_l = we_ref[l]            # [EDGE_DIM, C]
        att3 = att_ref[l].reshape(1, 1, C)
        bias_l = bias_ref[l]        # [1, C]

        # attention + aggregation, 8 target rows per slab (bounds the live [rows, N, C] tensor)
        for i0 in range(0, N, ROW_CHUNK):
            ea_chunk = ea_ref[i0 * N:(i0 + ROW_CHUNK) * N, :]                  # [RC*N, De]
            e = jnp.dot(ea_chunk, we_l, preferred_element_type=jnp.float32)    # [RC*N, C]
            pre = (xr[i0:i0 + ROW_CHUNK, None, :] + xl[None, :, :]
                   + e.reshape(ROW_CHUNK, N, C))                               # [RC, N, C]
            pre = jnp.where(pre > 0, pre, 0.2 * pre)                           # GATv2 slope 0.2
            s = jnp.sum(pre * att3, axis=-1)                                   # [RC, N]
            m = adj_mask[i0:i0 + ROW_CHUNK, :]
            s = jnp.where(m, s, NEG_INF)
            s = s - jnp.max(s, axis=1, keepdims=True)
            p = jnp.where(m, jnp.exp(s), 0.0)
            alpha = p * pl.reciprocal(jnp.sum(p, axis=1, keepdims=True), approx=True)
            h_scr[i0:i0 + ROW_CHUNK, :] = (
                jnp.dot(alpha, xl, preferred_element_type=jnp.float32) + bias_l)

        hn = h_scr[...]
        if l < NUM_LAYERS - 1:
            # BatchNorm1d over nodes (training-mode batch statistics, eps=1e-5) + leaky_relu(0.01)
            mu = jnp.mean(hn, axis=0, keepdims=True)
            var = jnp.mean((hn - mu) ** 2, axis=0, keepdims=True)
            hn = (hn - mu) * jax.lax.rsqrt(var + 1e-5)
            hn = hn * gamma_ref[l] + beta_ref[l]
            hn = jnp.where(hn > 0, hn, 0.01 * hn)
        h = hn

    # ------- head: global_mean_pool | global_max_pool -> cat -> fc -> leaky_relu -> fc2 -------
    mean = jnp.dot(mask_ref[...], h, preferred_element_type=jnp.float32) * inv_cnt_ref[...]
    mask_t = mask_t_ref[...]                                                   # [N, G]
    mx_rows = []
    for g in range(G):
        sel = jnp.where(mask_t[:, g:g + 1] > 0, h, NEG_INF)                    # [N, C]
        mx_rows.append(jnp.max(sel, axis=0, keepdims=True))                    # [1, C]
    mx = jnp.concatenate(mx_rows, axis=0)                                      # [G, C]

    emb_ref[:, 0:C] = mean
    emb_ref[:, C:2 * C] = mx

    z = (jnp.dot(mean, fcw_ref[0:C, :], preferred_element_type=jnp.float32)
         + jnp.dot(mx, fcw_ref[C:2 * C, :], preferred_element_type=jnp.float32)
         + fcb_ref[...])
    z = jnp.where(z > 0, z, 0.01 * z)
    out_ref[...] = (jnp.dot(z, fc2w_ref[...], preferred_element_type=jnp.float32)
                    + fc2b_ref[...])


# --------------------------------------- wrapper ---------------------------------------------
_VMEM = pl.BlockSpec(memory_space=pltpu.MemorySpace.VMEM)
_COST = pl.CostEstimate(flops=10_000_000, transcendentals=4_096, bytes_accessed=1_000_000)


@jax.jit
def forward(x, adj, ea2, stacked, head_params, mask, mask_t, inv_cnt):
    wlr, blr, we, att, bias, gamma, beta = stacked
    fcw, fcb, fc2w, fc2b = head_params
    x_pad = jnp.pad(x, ((0, 0), (0, PAD_IN - x.shape[1])))
    return pl.pallas_call(
        gnn_fused_kernel,
        out_shape=(jax.ShapeDtypeStruct((G, N_OUT), jnp.float32),
                   jax.ShapeDtypeStruct((G, 2 * C), jnp.float32)),
        in_specs=[_VMEM] * 17,
        out_specs=(_VMEM, _VMEM),
        scratch_shapes=[pltpu.VMEM((N, C), jnp.float32)],
        compiler_params=pltpu.CompilerParams(vmem_limit_bytes=16 * 1024 * 1024),
        cost_estimate=_COST,
    )(x_pad, adj, ea2, mask, mask_t, inv_cnt,
      wlr, blr, we, att, bias, gamma, beta,
      fcw, fcb, fc2w, fc2b)


def stack_layer_params(layer_params):
    """Stack per-layer params into [L, ...] arrays; merge wl|wr and zero-pad layer 0 to 128-in."""
    wlr, blr, we, att, bias, gamma, beta = [], [], [], [], [], [], []
    for (wl, bl, wr, br, we_l, att_l, b_l, g_l, be_l) in layer_params:
        w = jnp.concatenate([wl, wr], axis=1)                     # [fin, 2C]
        w = jnp.pad(w, ((0, PAD_IN - w.shape[0]), (0, 0)))        # [128, 2C]
        wlr.append(w)
        blr.append(jnp.concatenate([bl, br], axis=1))             # [1, 2C]
        we.append(we_l); att.append(att_l); bias.append(b_l); gamma.append(g_l); beta.append(be_l)
    return (jnp.stack(wlr), jnp.stack(blr), jnp.stack(we), jnp.stack(att),
            jnp.stack(bias), jnp.stack(gamma), jnp.stack(beta))


# ----------------------------------- pure-JAX reference --------------------------------------
def ref_gat_layer(x, adj, ea2, p, apply_bn_act):
    wl, bl, wr, br, we, att, bias, gamma, beta = p
    n = x.shape[0]
    xl = x @ wl + bl
    xr = x @ wr + br
    e = (ea2 @ we).reshape(n, n, -1)
    pre = xr[:, None, :] + xl[None, :, :] + e
    pre = jnp.where(pre > 0, pre, 0.2 * pre)
    s = jnp.sum(pre * att.reshape(1, 1, -1), axis=-1)
    s = jnp.where(adj > 0, s, NEG_INF)
    s = s - jnp.max(s, axis=1, keepdims=True)
    pr = jnp.where(adj > 0, jnp.exp(s), 0.0)
    alpha = pr / jnp.sum(pr, axis=1, keepdims=True)
    out = alpha @ xl + bias
    if apply_bn_act:
        mu = jnp.mean(out, axis=0, keepdims=True)
        var = jnp.mean((out - mu) ** 2, axis=0, keepdims=True)
        out = (out - mu) * jax.lax.rsqrt(var + 1e-5) * gamma + beta
        out = jnp.where(out > 0, out, 0.01 * out)
    return out


def ref_forward(x, adj, ea2, layer_params, head_params, mask, inv_cnt):
    h = x
    for li in range(NUM_LAYERS):
        h = ref_gat_layer(h, adj, ea2, layer_params[li], li < NUM_LAYERS - 1)
    fcw, fcb, fc2w, fc2b = head_params
    mean = (mask @ h) * inv_cnt
    mx = jnp.max(jnp.where(mask[:, :, None] > 0, h[None, :, :], NEG_INF), axis=1)
    emb = jnp.concatenate([mean, mx], axis=1)
    z = emb @ fcw + fcb
    z = jnp.where(z > 0, z, 0.01 * z)
    out = z @ fc2w + fc2b
    return out, emb


# ---------------------------------------- setup -----------------------------------------------
def glorot(key, shape):
    scale = jnp.sqrt(6.0 / (shape[0] + shape[1]))
    return jax.random.uniform(key, shape, jnp.float32, -scale, scale)


def make_params(key):
    layer_params = []
    for li in range(NUM_LAYERS):
        fin = IN_CH if li == 0 else C
        fout = C
        keys = jax.random.split(jax.random.fold_in(key, li), 6)
        wl = glorot(keys[0], (fin, fout))
        bl = jnp.zeros((1, fout), jnp.float32)
        wr = glorot(keys[1], (fin, fout))
        br = jnp.zeros((1, fout), jnp.float32)
        we = glorot(keys[2], (EDGE_DIM, fout))
        att = glorot(keys[3], (1, fout))
        bias = 0.01 * jax.random.normal(keys[4], (1, fout), jnp.float32)
        gamma = jnp.ones((1, fout), jnp.float32)
        beta = jnp.zeros((1, fout), jnp.float32)
        layer_params.append((wl, bl, wr, br, we, att, bias, gamma, beta))

    hkeys = jax.random.split(jax.random.fold_in(key, 1000), 4)
    fcw = glorot(hkeys[0], (2 * C, FC_HID))
    fcb = 0.01 * jax.random.normal(hkeys[1], (1, FC_HID), jnp.float32)
    fc2w = glorot(hkeys[2], (FC_HID, N_OUT))
    fc2b = 0.01 * jax.random.normal(hkeys[3], (1, N_OUT), jnp.float32)
    return layer_params, (fcw, fcb, fc2w, fc2b)


if __name__ == "__main__":
    key = jax.random.PRNGKey(0)
    kx, kadj, kea, kparams = jax.random.split(key, 4)

    # node features (data.x)
    x = jax.random.normal(kx, (N, IN_CH), jnp.float32)

    # block-diagonal random graph (2 graphs of 8 nodes) + self loops
    graph_id = jnp.repeat(jnp.arange(G), N // G)                       # batch vector
    same_graph = graph_id[:, None] == graph_id[None, :]
    rand_edges = jax.random.uniform(kadj, (N, N)) < 0.35
    eye = jnp.eye(N, dtype=bool)
    adj_noself = rand_edges & same_graph & (~eye)
    adj = (adj_noself | eye).astype(jnp.float32)                       # adj[i, j]: edge j -> i

    # dense edge attributes; self loops get the mean edge feature (PyG fill_value='mean')
    ea_raw = jax.random.normal(kea, (N, N, EDGE_DIM), jnp.float32)
    m = adj_noself.astype(jnp.float32)
    n_edges = jnp.maximum(jnp.sum(m), 1.0)
    mean_ea = jnp.sum(ea_raw * m[:, :, None], axis=(0, 1)) / n_edges
    ea = ea_raw * m[:, :, None] + eye[:, :, None].astype(jnp.float32) * mean_ea[None, None, :]
    ea2 = ea.reshape(N * N, EDGE_DIM)

    # pooling helpers built from the batch vector
    mask = (graph_id[None, :] == jnp.arange(G)[:, None]).astype(jnp.float32)   # [G, N]
    mask_t = mask.T                                                            # [N, G]
    inv_cnt = 1.0 / jnp.sum(mask, axis=1, keepdims=True)                       # [G, 1]

    layer_params, head_params = make_params(kparams)
    stacked = stack_layer_params(layer_params)

    out, emb = forward(x, adj, ea2, stacked, head_params, mask, mask_t, inv_cnt)
    out = jax.block_until_ready(out)
    emb = jax.block_until_ready(emb)

    out_ref, emb_ref = ref_forward(x, adj, ea2, layer_params, head_params, mask, inv_cnt)
    assert out.shape == (G, N_OUT) and emb.shape == (G, 2 * C)
    assert bool(jnp.allclose(out, out_ref, atol=2e-2, rtol=2e-2))
    assert bool(jnp.allclose(emb, emb_ref, atol=2e-2, rtol=2e-2))

    print("KERNEL_OK")
</pallas_src>

<mosaic_0001>
module attributes {stable_mosaic.version = 11 : i64} {
  func.func @gnn_fused_kernel(%arg0: memref<16x128xf32, #tpu.memory_space<vmem>>, %arg1: memref<16x16xf32, #tpu.memory_space<vmem>>, %arg2: memref<256x4xf32, #tpu.memory_space<vmem>>, %arg3: memref<2x16xf32, #tpu.memory_space<vmem>>, %arg4: memref<16x2xf32, #tpu.memory_space<vmem>>, %arg5: memref<2x1xf32, #tpu.memory_space<vmem>>, %arg6: memref<6x128x256xf32, #tpu.memory_space<vmem>>, %arg7: memref<6x1x256xf32, #tpu.memory_space<vmem>>, %arg8: memref<6x4x128xf32, #tpu.memory_space<vmem>>, %arg9: memref<6x1x128xf32, #tpu.memory_space<vmem>>, %arg10: memref<6x1x128xf32, #tpu.memory_space<vmem>>, %arg11: memref<6x1x128xf32, #tpu.memory_space<vmem>>, %arg12: memref<6x1x128xf32, #tpu.memory_space<vmem>>, %arg13: memref<256x64xf32, #tpu.memory_space<vmem>>, %arg14: memref<1x64xf32, #tpu.memory_space<vmem>>, %arg15: memref<64x3xf32, #tpu.memory_space<vmem>>, %arg16: memref<1x3xf32, #tpu.memory_space<vmem>>, %arg17: memref<2x3xf32, #tpu.memory_space<vmem>>, %arg18: memref<2x256xf32, #tpu.memory_space<vmem>>, %arg19: memref<16x128xf32, #tpu.memory_space<vmem>>) attributes {dimension_semantics = [], scalar_prefetch = 0 : i64, scratch_operands = 1 : i64, tpu.core_type = #tpu.core_type<tc>} {
    %c0 = arith.constant 0 : index
    %c0_0 = arith.constant 0 : index
    %0 = vector.load %arg1[%c0, %c0_0] : memref<16x16xf32, #tpu.memory_space<vmem>>, vector<16x16xf32>
    %cst = arith.constant 0.000000e+00 : f32
    %1 = vector.broadcast %cst : f32 to vector<16x16xf32>
    %2 = arith.cmpf ogt, %0, %1 : vector<16x16xf32>
    %c0_1 = arith.constant 0 : index
    %c0_2 = arith.constant 0 : index
    %3 = vector.load %arg0[%c0_1, %c0_2] : memref<16x128xf32, #tpu.memory_space<vmem>>, vector<16x128xf32>
    %c0_3 = arith.constant 0 : index
    %c0_4 = arith.constant 0 : index
    %c0_5 = arith.constant 0 : index
    %4 = vector.load %arg6[%c0_3, %c0_4, %c0_5] : memref<6x128x256xf32, #tpu.memory_space<vmem>>, vector<1x128x256xf32>
    %5 = vector.shape_cast %4 : vector<1x128x256xf32> to vector<128x256xf32>
    %cst_6 = arith.constant dense<0.000000e+00> : vector<16x256xf32>
    %6 = tpu.matmul %3, %5, %cst_6 {dimension_numbers = #tpu.dot_dimension_numbers<[1], [0], [0], [1], [0, 0, 1, 1], [], []>} : vector<16x128xf32>, vector<128x256xf32>, vector<16x256xf32> -> vector<16x256xf32>
    %c0_7 = arith.constant 0 : index
    %c0_8 = arith.constant 0 : index
    %c0_9 = arith.constant 0 : index
    %7 = vector.load %arg7[%c0_7, %c0_8, %c0_9] : memref<6x1x256xf32, #tpu.memory_space<vmem>>, vector<1x1x256xf32>
    %8 = vector.shape_cast %7 : vector<1x1x256xf32> to vector<1x256xf32>
    %9 = vector.broadcast %8 : vector<1x256xf32> to vector<16x256xf32>
    %10 = arith.addf %6, %9 : vector<16x256xf32>
    %11 = vector.extract_strided_slice %10 {offsets = [0, 0], sizes = [16, 128], strides = [1, 1]} : vector<16x256xf32> to vector<16x128xf32>
    %12 = vector.extract_strided_slice %10 {offsets = [0, 128], sizes = [16, 128], strides = [1, 1]} : vector<16x256xf32> to vector<16x128xf32>
    %c0_10 = arith.constant 0 : index
    %c0_11 = arith.constant 0 : index
    %c0_12 = arith.constant 0 : index
    %13 = vector.load %arg8[%c0_10, %c0_11, %c0_12] : memref<6x4x128xf32, #tpu.memory_space<vmem>>, vector<1x4x128xf32>
    %14 = vector.shape_cast %13 : vector<1x4x128xf32> to vector<4x128xf32>
    %c0_13 = arith.constant 0 : index
    %c0_14 = arith.constant 0 : index
    %c0_15 = arith.constant 0 : index
    %15 = vector.load %arg9[%c0_13, %c0_14, %c0_15] : memref<6x1x128xf32, #tpu.memory_space<vmem>>, vector<1x1x128xf32>
    %16 = vector.shape_cast %15 : vector<1x1x128xf32> to vector<1x128xf32>
    %17 = vector.shape_cast %16 : vector<1x128xf32> to vector<1x1x128xf32>
    %c0_16 = arith.constant 0 : index
    %c0_17 = arith.constant 0 : index
    %c0_18 = arith.constant 0 : index
    %18 = vector.load %arg10[%c0_16, %c0_17, %c0_18] : memref<6x1x128xf32, #tpu.memory_space<vmem>>, vector<1x1x128xf32>
    %19 = vector.shape_cast %18 : vector<1x1x128xf32> to vector<1x128xf32>
    %c0_19 = arith.constant 0 : index
    %c0_20 = arith.constant 0 : index
    %20 = vector.load %arg2[%c0_19, %c0_20] : memref<256x4xf32, #tpu.memory_space<vmem>>, vector<128x4xf32>
    %cst_21 = arith.constant dense<0.000000e+00> : vector<128x128xf32>
    %21 = tpu.matmul %20, %14, %cst_21 {dimension_numbers = #tpu.dot_dimension_numbers<[1], [0], [0], [1], [0, 0, 1, 1], [], []>} : vector<128x4xf32>, vector<4x128xf32>, vector<128x128xf32> -> vector<128x128xf32>
    %22 = vector.extract_strided_slice %12 {offsets = [0, 0], sizes = [8, 128], strides = [1, 1]} : vector<16x128xf32> to vector<8x128xf32>
    %23 = vector.shape_cast %22 : vector<8x128xf32> to vector<8x1x128xf32>
    %24 = vector.shape_cast %11 : vector<16x128xf32> to vector<1x16x128xf32>
    %25 = vector.broadcast %23 : vector<8x1x128xf32> to vector<8x16x128xf32>
    %26 = vector.broadcast %24 : vector<1x16x128xf32> to vector<8x16x128xf32>
    %27 = arith.addf %25, %26 : vector<8x16x128xf32>
    %28 = vector.shape_cast %21 : vector<128x128xf32> to vector<8x16x128xf32>
    %29 = arith.addf %27, %28 : vector<8x16x128xf32>
    %cst_22 = arith.constant 0.000000e+00 : f32
    %30 = vector.broadcast %cst_22 : f32 to vector<8x16x128xf32>
    %31 = arith.cmpf ogt, %29, %30 : vector<8x16x128xf32>
    %cst_23 = arith.constant 2.000000e-01 : f32
    %32 = vector.broadcast %cst_23 : f32 to vector<8x16x128xf32>
    %33 = arith.mulf %32, %29 : vector<8x16x128xf32>
    %34 = arith.select %31, %29, %33 : vector<8x16x128xi1>, vector<8x16x128xf32>
    %35 = vector.broadcast %17 : vector<1x1x128xf32> to vector<8x16x128xf32>
    %36 = arith.mulf %34, %35 : vector<8x16x128xf32>
    %cst_24 = arith.constant dense<0.000000e+00> : vector<8x16xf32>
    %37 = vector.multi_reduction <add>, %36, %cst_24 [2] : vector<8x16x128xf32> to vector<8x16xf32>
    %38 = vector.extract_strided_slice %2 {offsets = [0, 0], sizes = [8, 16], strides = [1, 1]} : vector<16x16xi1> to vector<8x16xi1>
    %cst_25 = arith.constant -1.000000e+30 : f32
    %39 = vector.broadcast %cst_25 : f32 to vector<8x16xf32>
    %40 = arith.select %38, %37, %39 : vector<8x16xi1>, vector<8x16xf32>
    %cst_26 = arith.constant dense<0xFF800000> : vector<8xf32>
    %41 = vector.multi_reduction <maximumf>, %40, %cst_26 [1] : vector<8x16xf32> to vector<8xf32>
    %42 = vector.shape_cast %41 : vector<8xf32> to vector<8x1xf32>
    %43 = vector.broadcast %42 : vector<8x1xf32> to vector<8x16xf32>
    %44 = arith.subf %40, %43 : vector<8x16xf32>
    %45 = math.exp %44 : vector<8x16xf32>
    %cst_27 = arith.constant 0.000000e+00 : f32
    %46 = vector.broadcast %cst_27 : f32 to vector<8x16xf32>
    %47 = arith.select %38, %45, %46 : vector<8x16xi1>, vector<8x16xf32>
    %cst_28 = arith.constant dense<0.000000e+00> : vector<8xf32>
    %48 = vector.multi_reduction <add>, %47, %cst_28 [1] : vector<8x16xf32> to vector<8xf32>
    %49 = vector.shape_cast %48 : vector<8xf32> to vector<8x1xf32>
    %50 = tpu.reciprocal %49 {approx = true} : vector<8x1xf32> -> vector<8x1xf32>
    %51 = vector.broadcast %50 : vector<8x1xf32> to vector<8x16xf32>
    %52 = arith.mulf %47, %51 : vector<8x16xf32>
    %cst_29 = arith.constant dense<0.000000e+00> : vector<8x128xf32>
    %53 = tpu.matmul %52, %11, %cst_29 {dimension_numbers = #tpu.dot_dimension_numbers<[1], [0], [0], [1], [0, 0, 1, 1], [], []>} : vector<8x16xf32>, vector<16x128xf32>, vector<8x128xf32> -> vector<8x128xf32>
    %54 = vector.broadcast %19 : vector<1x128xf32> to vector<8x128xf32>
    %55 = arith.addf %53, %54 : vector<8x128xf32>
    %c0_30 = arith.constant 0 : index
    %c0_31 = arith.constant 0 : index
    %56 = vector.load %arg19[%c0_30, %c0_31] : memref<16x128xf32, #tpu.memory_space<vmem>>, vector<8x128xf32>
    tpu.vector_store %arg19[%c0_30, %c0_31], %55 {strides = array<i32>} : memref<16x128xf32, #tpu.memory_space<vmem>>, vector<8x128xf32>,
    %c128 = arith.constant 128 : index
    %c0_32 = arith.constant 0 : index
    %57 = vector.load %arg2[%c128, %c0_32] : memref<256x4xf32, #tpu.memory_space<vmem>>, vector<128x4xf32>
    %cst_33 = arith.constant dense<0.000000e+00> : vector<128x128xf32>
    %58 = tpu.matmul %57, %14, %cst_33 {dimension_numbers = #tpu.dot_dimension_numbers<[1], [0], [0], [1], [0, 0, 1, 1], [], []>} : vector<128x4xf32>, vector<4x128xf32>, vector<128x128xf32> -> vector<128x128xf32>
    %59 = vector.extract_strided_slice %12 {offsets = [8, 0], sizes = [8, 128], strides = [1, 1]} : vector<16x128xf32> to vector<8x128xf32>
    %60 = vector.shape_cast %59 : vector<8x128xf32> to vector<8x1x128xf32>
    %61 = vector.shape_cast %11 : vector<16x128xf32> to vector<1x16x128xf32>
    %62 = vector.broadcast %60 : vector<8x1x128xf32> to vector<8x16x128xf32>
    %63 = vector.broadcast %61 : vector<1x16x128xf32> to vector<8x16x128xf32>
    %64 = arith.addf %62, %63 : vector<8x16x128xf32>
    %65 = vector.shape_cast %58 : vector<128x128xf32> to vector<8x16x128xf32>
    %66 = arith.addf %64, %65 : vector<8x16x128xf32>
    %cst_34 = arith.constant 0.000000e+00 : f32
    %67 = vector.broadcast %cst_34 : f32 to vector<8x16x128xf32>
    %68 = arith.cmpf ogt, %66, %67 : vector<8x16x128xf32>
    %cst_35 = arith.constant 2.000000e-01 : f32
    %69 = vector.broadcast %cst_35 : f32 to vector<8x16x128xf32>
    %70 = arith.mulf %69, %66 : vector<8x16x128xf32>
    %71 = arith.select %68, %66, %70 : vector<8x16x128xi1>, vector<8x16x128xf32>
    %72 = vector.broadcast %17 : vector<1x1x128xf32> to vector<8x16x128xf32>
    %73 = arith.mulf %71, %72 : vector<8x16x128xf32>
    %cst_36 = arith.constant dense<0.000000e+00> : vector<8x16xf32>
    %74 = vector.multi_reduction <add>, %73, %cst_36 [2] : vector<8x16x128xf32> to vector<8x16xf32>
    %75 = vector.extract_strided_slice %2 {offsets = [8, 0], sizes = [8, 16], strides = [1, 1]} : vector<16x16xi1> to vector<8x16xi1>
    %cst_37 = arith.constant -1.000000e+30 : f32
    %76 = vector.broadcast %cst_37 : f32 to vector<8x16xf32>
    %77 = arith.select %75, %74, %76 : vector<8x16xi1>, vector<8x16xf32>
    %cst_38 = arith.constant dense<0xFF800000> : vector<8xf32>
    %78 = vector.multi_reduction <maximumf>, %77, %cst_38 [1] : vector<8x16xf32> to vector<8xf32>
    %79 = vector.shape_cast %78 : vector<8xf32> to vector<8x1xf32>
    %80 = vector.broadcast %79 : vector<8x1xf32> to vector<8x16xf32>
    %81 = arith.subf %77, %80 : vector<8x16xf32>
    %82 = math.exp %81 : vector<8x16xf32>
    %cst_39 = arith.constant 0.000000e+00 : f32
    %83 = vector.broadcast %cst_39 : f32 to vector<8x16xf32>
    %84 = arith.select %75, %82, %83 : vector<8x16xi1>, vector<8x16xf32>
    %cst_40 = arith.constant dense<0.000000e+00> : vector<8xf32>
    %85 = vector.multi_reduction <add>, %84, %cst_40 [1] : vector<8x16xf32> to vector<8xf32>
    %86 = vector.shape_cast %85 : vector<8xf32> to vector<8x1xf32>
    %87 = tpu.reciprocal %86 {approx = true} : vector<8x1xf32> -> vector<8x1xf32>
    %88 = vector.broadcast %87 : vector<8x1xf32> to vector<8x16xf32>
    %89 = arith.mulf %84, %88 : vector<8x16xf32>
    %cst_41 = arith.constant dense<0.000000e+00> : vector<8x128xf32>
    %90 = tpu.matmul %89, %11, %cst_41 {dimension_numbers = #tpu.dot_dimension_numbers<[1], [0], [0], [1], [0, 0, 1, 1], [], []>} : vector<8x16xf32>, vector<16x128xf32>, vector<8x128xf32> -> vector<8x128xf32>
    %91 = vector.broadcast %19 : vector<1x128xf32> to vector<8x128xf32>
    %92 = arith.addf %90, %91 : vector<8x128xf32>
    %c8 = arith.constant 8 : index
    %c0_42 = arith.constant 0 : index
    %93 = vector.load %arg19[%c8, %c0_42] : memref<16x128xf32, #tpu.memory_space<vmem>>, vector<8x128xf32>
    tpu.vector_store %arg19[%c8, %c0_42], %92 {strides = array<i32>} : memref<16x128xf32, #tpu.memory_space<vmem>>, vector<8x128xf32>,
    %c0_43 = arith.constant 0 : index
    %c0_44 = arith.constant 0 : index
    %94 = vector.load %arg19[%c0_43, %c0_44] : memref<16x128xf32, #tpu.memory_space<vmem>>, vector<16x128xf32>
    %cst_45 = arith.constant dense<0.000000e+00> : vector<128xf32>
    %95 = vector.multi_reduction <add>, %94, %cst_45 [0] : vector<16x128xf32> to vector<128xf32>
    %96 = vector.shape_cast %95 : vector<128xf32> to vector<1x128xf32>
    %cst_46 = arith.constant 1.600000e+01 : f32
    %97 = vector.broadcast %cst_46 : f32 to vector<1x128xf32>
    %98 = arith.divf %96, %97 : vector<1x128xf32>
    %99 = vector.broadcast %98 : vector<1x128xf32> to vector<16x128xf32>
    %100 = arith.subf %94, %99 : vector<16x128xf32>
    %101 = arith.mulf %100, %100 : vector<16x128xf32>
    %cst_47 = arith.constant dense<0.000000e+00> : vector<128xf32>
    %102 = vector.multi_reduction <add>, %101, %cst_47 [0] : vector<16x128xf32> to vector<128xf32>
    %103 = vector.shape_cast %102 : vector<128xf32> to vector<1x128xf32>
    %cst_48 = arith.constant 1.600000e+01 : f32
    %104 = vector.broadcast %cst_48 : f32 to vector<1x128xf32>
    %105 = arith.divf %103, %104 : vector<1x128xf32>
    %106 = vector.broadcast %98 : vector<1x128xf32> to vector<16x128xf32>
    %107 = arith.subf %94, %106 : vector<16x128xf32>
    %cst_49 = arith.constant 9.99999974E-6 : f32
    %108 = vector.broadcast %cst_49 : f32 to vector<1x128xf32>
    %109 = arith.addf %105, %108 : vector<1x128xf32>
    %110 = math.rsqrt %109 : vector<1x128xf32>
    %111 = vector.broadcast %110 : vector<1x128xf32> to vector<16x128xf32>
    %112 = arith.mulf %107, %111 : vector<16x128xf32>
    %c0_50 = arith.constant 0 : index
    %c0_51 = arith.constant 0 : index
    %c0_52 = arith.constant 0 : index
    %113 = vector.load %arg11[%c0_50, %c0_51, %c0_52] : memref<6x1x128xf32, #tpu.memory_space<vmem>>, vector<1x1x128xf32>
    %114 = vector.shape_cast %113 : vector<1x1x128xf32> to vector<1x128xf32>
    %115 = vector.broadcast %114 : vector<1x128xf32> to vector<16x128xf32>
    %116 = arith.mulf %112, %115 : vector<16x128xf32>
    %c0_53 = arith.constant 0 : index
    %c0_54 = arith.constant 0 : index
    %c0_55 = arith.constant 0 : index
    %117 = vector.load %arg12[%c0_53, %c0_54, %c0_55] : memref<6x1x128xf32, #tpu.memory_space<vmem>>, vector<1x1x128xf32>
    %118 = vector.shape_cast %117 : vector<1x1x128xf32> to vector<1x128xf32>
    %119 = vector.broadcast %118 : vector<1x128xf32> to vector<16x128xf32>
    %120 = arith.addf %116, %119 : vector<16x128xf32>
    %cst_56 = arith.constant 0.000000e+00 : f32
    %121 = vector.broadcast %cst_56 : f32 to vector<16x128xf32>
    %122 = arith.cmpf ogt, %120, %121 : vector<16x128xf32>
    %cst_57 = arith.constant 0.00999999977 : f32
    %123 = vector.broadcast %cst_57 : f32 to vector<16x128xf32>
    %124 = arith.mulf %123, %120 : vector<16x128xf32>
    %125 = arith.select %122, %120, %124 : vector<16x128xi1>, vector<16x128xf32>
    %c1 = arith.constant 1 : index
    %c0_58 = arith.constant 0 : index
    %c0_59 = arith.constant 0 : index
    %126 = vector.load %arg6[%c1, %c0_58, %c0_59] : memref<6x128x256xf32, #tpu.memory_space<vmem>>, vector<1x128x256xf32>
    %127 = vector.shape_cast %126 : vector<1x128x256xf32> to vector<128x256xf32>
    %cst_60 = arith.constant dense<0.000000e+00> : vector<16x256xf32>
    %128 = tpu.matmul %125, %127, %cst_60 {dimension_numbers = #tpu.dot_dimension_numbers<[1], [0], [0], [1], [0, 0, 1, 1], [], []>} : vector<16x128xf32>, vector<128x256xf32>, vector<16x256xf32> -> vector<16x256xf32>
    %c1_61 = arith.constant 1 : index
    %c0_62 = arith.constant 0 : index
    %c0_63 = arith.constant 0 : index
    %129 = vector.load %arg7[%c1_61, %c0_62, %c0_63] : memref<6x1x256xf32, #tpu.memory_space<vmem>>, vector<1x1x256xf32>
    %130 = vector.shape_cast %129 : vector<1x1x256xf32> to vector<1x256xf32>
    %131 = vector.broadcast %130 : vector<1x256xf32> to vector<16x256xf32>
    %132 = arith.addf %128, %131 : vector<16x256xf32>
    %133 = vector.extract_strided_slice %132 {offsets = [0, 0], sizes = [16, 128], strides = [1, 1]} : vector<16x256xf32> to vector<16x128xf32>
    %134 = vector.extract_strided_slice %132 {offsets = [0, 128], sizes = [16, 128], strides = [1, 1]} : vector<16x256xf32> to vector<16x128xf32>
    %c1_64 = arith.constant 1 : index
    %c0_65 = arith.constant 0 : index
    %c0_66 = arith.constant 0 : index
    %135 = vector.load %arg8[%c1_64, %c0_65, %c0_66] : memref<6x4x128xf32, #tpu.memory_space<vmem>>, vector<1x4x128xf32>
    %136 = vector.shape_cast %135 : vector<1x4x128xf32> to vector<4x128xf32>
    %c1_67 = arith.constant 1 : index
    %c0_68 = arith.constant 0 : index
    %c0_69 = arith.constant 0 : index
    %137 = vector.load %arg9[%c1_67, %c0_68, %c0_69] : memref<6x1x128xf32, #tpu.memory_space<vmem>>, vector<1x1x128xf32>
    %138 = vector.shape_cast %137 : vector<1x1x128xf32> to vector<1x128xf32>
    %139 = vector.shape_cast %138 : vector<1x128xf32> to vector<1x1x128xf32>
    %c1_70 = arith.constant 1 : index
    %c0_71 = arith.constant 0 : index
    %c0_72 = arith.constant 0 : index
    %140 = vector.load %arg10[%c1_70, %c0_71, %c0_72] : memref<6x1x128xf32, #tpu.memory_space<vmem>>, vector<1x1x128xf32>
    %141 = vector.shape_cast %140 : vector<1x1x128xf32> to vector<1x128xf32>
    %c0_73 = arith.constant 0 : index
    %c0_74 = arith.constant 0 : index
    %142 = vector.load %arg2[%c0_73, %c0_74] : memref<256x4xf32, #tpu.memory_space<vmem>>, vector<128x4xf32>
    %cst_75 = arith.constant dense<0.000000e+00> : vector<128x128xf32>
    %143 = tpu.matmul %142, %136, %cst_75 {dimension_numbers = #tpu.dot_dimension_numbers<[1], [0], [0], [1], [0, 0, 1, 1], [], []>} : vector<128x4xf32>, vector<4x128xf32>, vector<128x128xf32> -> vector<128x128xf32>
    %144 = vector.extract_strided_slice %134 {offsets = [0, 0], sizes = [8, 128], strides = [1, 1]} : vector<16x128xf32> to vector<8x128xf32>
    %145 = vector.shape_cast %144 : vector<8x128xf32> to vector<8x1x128xf32>
    %146 = vector.shape_cast %133 : vector<16x128xf32> to vector<1x16x128xf32>
    %147 = vector.broadcast %145 : vector<8x1x128xf32> to vector<8x16x128xf32>
    %148 = vector.broadcast %146 : vector<1x16x128xf32> to vector<8x16x128xf32>
    %149 = arith.addf %147, %148 : vector<8x16x128xf32>
    %150 = vector.shape_cast %143 : vector<128x128xf32> to vector<8x16x128xf32>
    %151 = arith.addf %149, %150 : vector<8x16x128xf32>
    %cst_76 = arith.constant 0.000000e+00 : f32
    %152 = vector.broadcast %cst_76 : f32 to vector<8x16x128xf32>
    %153 = arith.cmpf ogt, %151, %152 : vector<8x16x128xf32>
    %cst_77 = arith.constant 2.000000e-01 : f32
    %154 = vector.broadcast %cst_77 : f32 to vector<8x16x128xf32>
    %155 = arith.mulf %154, %151 : vector<8x16x128xf32>
    %156 = arith.select %153, %151, %155 : vector<8x16x128xi1>, vector<8x16x128xf32>
    %157 = vector.broadcast %139 : vector<1x1x128xf32> to vector<8x16x128xf32>
    %158 = arith.mulf %156, %157 : vector<8x16x128xf32>
    %cst_78 = arith.constant dense<0.000000e+00> : vector<8x16xf32>
    %159 = vector.multi_reduction <add>, %158, %cst_78 [2] : vector<8x16x128xf32> to vector<8x16xf32>
    %160 = vector.extract_strided_slice %2 {offsets = [0, 0], sizes = [8, 16], strides = [1, 1]} : vector<16x16xi1> to vector<8x16xi1>
    %cst_79 = arith.constant -1.000000e+30 : f32
    %161 = vector.broadcast %cst_79 : f32 to vector<8x16xf32>
    %162 = arith.select %160, %159, %161 : vector<8x16xi1>, vector<8x16xf32>
    %cst_80 = arith.constant dense<0xFF800000> : vector<8xf32>
    %163 = vector.multi_reduction <maximumf>, %162, %cst_80 [1] : vector<8x16xf32> to vector<8xf32>
    %164 = vector.shape_cast %163 : vector<8xf32> to vector<8x1xf32>
    %165 = vector.broadcast %164 : vector<8x1xf32> to vector<8x16xf32>
    %166 = arith.subf %162, %165 : vector<8x16xf32>
    %167 = math.exp %166 : vector<8x16xf32>
    %cst_81 = arith.constant 0.000000e+00 : f32
    %168 = vector.broadcast %cst_81 : f32 to vector<8x16xf32>
    %169 = arith.select %160, %167, %168 : vector<8x16xi1>, vector<8x16xf32>
    %cst_82 = arith.constant dense<0.000000e+00> : vector<8xf32>
    %170 = vector.multi_reduction <add>, %169, %cst_82 [1] : vector<8x16xf32> to vector<8xf32>
    %171 = vector.shape_cast %170 : vector<8xf32> to vector<8x1xf32>
    %172 = tpu.reciprocal %171 {approx = true} : vector<8x1xf32> -> vector<8x1xf32>
    %173 = vector.broadcast %172 : vector<8x1xf32> to vector<8x16xf32>
    %174 = arith.mulf %169, %173 : vector<8x16xf32>
    %cst_83 = arith.constant dense<0.000000e+00> : vector<8x128xf32>
    %175 = tpu.matmul %174, %133, %cst_83 {dimension_numbers = #tpu.dot_dimension_numbers<[1], [0], [0], [1], [0, 0, 1, 1], [], []>} : vector<8x16xf32>, vector<16x128xf32>, vector<8x128xf32> -> vector<8x128xf32>
    %176 = vector.broadcast %141 : vector<1x128xf32> to vector<8x128xf32>
    %177 = arith.addf %175, %176 : vector<8x128xf32>
    %c0_84 = arith.constant 0 : index
    %c0_85 = arith.constant 0 : index
    %178 = vector.load %arg19[%c0_84, %c0_85] : memref<16x128xf32, #tpu.memory_space<vmem>>, vector<8x128xf32>
    tpu.vector_store %arg19[%c0_84, %c0_85], %177 {strides = array<i32>} : memref<16x128xf32, #tpu.memory_space<vmem>>, vector<8x128xf32>,
    %c128_86 = arith.constant 128 : index
    %c0_87 = arith.constant 0 : index
    %179 = vector.load %arg2[%c128_86, %c0_87] : memref<256x4xf32, #tpu.memory_space<vmem>>, vector<128x4xf32>
    %cst_88 = arith.constant dense<0.000000e+00> : vector<128x128xf32>
    %180 = tpu.matmul %179, %136, %cst_88 {dimension_numbers = #tpu.dot_dimension_numbers<[1], [0], [0], [1], [0, 0, 1, 1], [], []>} : vector<128x4xf32>, vector<4x128xf32>, vector<128x128xf32> -> vector<128x128xf32>
    %181 = vector.extract_strided_slice %134 {offsets = [8, 0], sizes = [8, 128], strides = [1, 1]} : vector<16x128xf32> to vector<8x128xf32>
    %182 = vector.shape_cast %181 : vector<8x128xf32> to vector<8x1x128xf32>
    %183 = vector.shape_cast %133 : vector<16x128xf32> to vector<1x16x128xf32>
    %184 = vector.broadcast %182 : vector<8x1x128xf32> to vector<8x16x128xf32>
    %185 = vector.broadcast %183 : vector<1x16x128xf32> to vector<8x16x128xf32>
    %186 = arith.addf %184, %185 : vector<8x16x128xf32>
    %187 = vector.shape_cast %180 : vector<128x128xf32> to vector<8x16x128xf32>
    %188 = arith.addf %186, %187 : vector<8x16x128xf32>
    %cst_89 = arith.constant 0.000000e+00 : f32
    %189 = vector.broadcast %cst_89 : f32 to vector<8x16x128xf32>
    %190 = arith.cmpf ogt, %188, %189 : vector<8x16x128xf32>
    %cst_90 = arith.constant 2.000000e-01 : f32
    %191 = vector.broadcast %cst_90 : f32 to vector<8x16x128xf32>
    %192 = arith.mulf %191, %188 : vector<8x16x128xf32>
    %193 = arith.select %190, %188, %192 : vector<8x16x128xi1>, vector<8x16x128xf32>
    %194 = vector.broadcast %139 : vector<1x1x128xf32> to vector<8x16x128xf32>
    %195 = arith.mulf %193, %194 : vector<8x16x128xf32>
    %cst_91 = arith.constant dense<0.000000e+00> : vector<8x16xf32>
    %196 = vector.multi_reduction <add>, %195, %cst_91 [2] : vector<8x16x128xf32> to vector<8x16xf32>
    %197 = vector.extract_strided_slice %2 {offsets = [8, 0], sizes = [8, 16], strides = [1, 1]} : vector<16x16xi1> to vector<8x16xi1>
    %cst_92 = arith.constant -1.000000e+30 : f32
    %198 = vector.broadcast %cst_92 : f32 to vector<8x16xf32>
    %199 = arith.select %197, %196, %198 : vector<8x16xi1>, vector<8x16xf32>
    %cst_93 = arith.constant dense<0xFF800000> : vector<8xf32>
    %200 = vector.multi_reduction <maximumf>, %199, %cst_93 [1] : vector<8x16xf32> to vector<8xf32>
    %201 = vector.shape_cast %200 : vector<8xf32> to vector<8x1xf32>
    %202 = vector.broadcast %201 : vector<8x1xf32> to vector<8x16xf32>
    %203 = arith.subf %199, %202 : vector<8x16xf32>
    %204 = math.exp %203 : vector<8x16xf32>
    %cst_94 = arith.constant 0.000000e+00 : f32
    %205 = vector.broadcast %cst_94 : f32 to vector<8x16xf32>
    %206 = arith.select %197, %204, %205 : vector<8x16xi1>, vector<8x16xf32>
    %cst_95 = arith.constant dense<0.000000e+00> : vector<8xf32>
    %207 = vector.multi_reduction <add>, %206, %cst_95 [1] : vector<8x16xf32> to vector<8xf32>
    %208 = vector.shape_cast %207 : vector<8xf32> to vector<8x1xf32>
    %209 = tpu.reciprocal %208 {approx = true} : vector<8x1xf32> -> vector<8x1xf32>
    %210 = vector.broadcast %209 : vector<8x1xf32> to vector<8x16xf32>
    %211 = arith.mulf %206, %210 : vector<8x16xf32>
    %cst_96 = arith.constant dense<0.000000e+00> : vector<8x128xf32>
    %212 = tpu.matmul %211, %133, %cst_96 {dimension_numbers = #tpu.dot_dimension_numbers<[1], [0], [0], [1], [0, 0, 1, 1], [], []>} : vector<8x16xf32>, vector<16x128xf32>, vector<8x128xf32> -> vector<8x128xf32>
    %213 = vector.broadcast %141 : vector<1x128xf32> to vector<8x128xf32>
    %214 = arith.addf %212, %213 : vector<8x128xf32>
    %c8_97 = arith.constant 8 : index
    %c0_98 = arith.constant 0 : index
    %215 = vector.load %arg19[%c8_97, %c0_98] : memref<16x128xf32, #tpu.memory_space<vmem>>, vector<8x128xf32>
    tpu.vector_store %arg19[%c8_97, %c0_98], %214 {strides = array<i32>} : memref<16x128xf32, #tpu.memory_space<vmem>>, vector<8x128xf32>,
    %c0_99 = arith.constant 0 : index
    %c0_100 = arith.constant 0 : index
    %216 = vector.load %arg19[%c0_99, %c0_100] : memref<16x128xf32, #tpu.memory_space<vmem>>, vector<16x128xf32>
    %cst_101 = arith.constant dense<0.000000e+00> : vector<128xf32>
    %217 = vector.multi_reduction <add>, %216, %cst_101 [0] : vector<16x128xf32> to vector<128xf32>
    %218 = vector.shape_cast %217 : vector<128xf32> to vector<1x128xf32>
    %cst_102 = arith.constant 1.600000e+01 : f32
    %219 = vector.broadcast %cst_102 : f32 to vector<1x128xf32>
    %220 = arith.divf %218, %219 : vector<1x128xf32>
    %221 = vector.broadcast %220 : vector<1x128xf32> to vector<16x128xf32>
    %222 = arith.subf %216, %221 : vector<16x128xf32>
    %223 = arith.mulf %222, %222 : vector<16x128xf32>
    %cst_103 = arith.constant dense<0.000000e+00> : vector<128xf32>
    %224 = vector.multi_reduction <add>, %223, %cst_103 [0] : vector<16x128xf32> to vector<128xf32>
    %225 = vector.shape_cast %224 : vector<128xf32> to vector<1x128xf32>
    %cst_104 = arith.constant 1.600000e+01 : f32
    %226 = vector.broadcast %cst_104 : f32 to vector<1x128xf32>
    %227 = arith.divf %225, %226 : vector<1x128xf32>
    %228 = vector.broadcast %220 : vector<1x128xf32> to vector<16x128xf32>
    %229 = arith.subf %216, %228 : vector<16x128xf32>
    %cst_105 = arith.constant 9.99999974E-6 : f32
    %230 = vector.broadcast %cst_105 : f32 to vector<1x128xf32>
    %231 = arith.addf %227, %230 : vector<1x128xf32>
    %232 = math.rsqrt %231 : vector<1x128xf32>
    %233 = vector.broadcast %232 : vector<1x128xf32> to vector<16x128xf32>
    %234 = arith.mulf %229, %233 : vector<16x128xf32>
    %c1_106 = arith.constant 1 : index
    %c0_107 = arith.constant 0 : index
    %c0_108 = arith.constant 0 : index
    %235 = vector.load %arg11[%c1_106, %c0_107, %c0_108] : memref<6x1x128xf32, #tpu.memory_space<vmem>>, vector<1x1x128xf32>
    %236 = vector.shape_cast %235 : vector<1x1x128xf32> to vector<1x128xf32>
    %237 = vector.broadcast %236 : vector<1x128xf32> to vector<16x128xf32>
    %238 = arith.mulf %234, %237 : vector<16x128xf32>
    %c1_109 = arith.constant 1 : index
    %c0_110 = arith.constant 0 : index
    %c0_111 = arith.constant 0 : index
    %239 = vector.load %arg12[%c1_109, %c0_110, %c0_111] : memref<6x1x128xf32, #tpu.memory_space<vmem>>, vector<1x1x128xf32>
    %240 = vector.shape_cast %239 : vector<1x1x128xf32> to vector<1x128xf32>
    %241 = vector.broadcast %240 : vector<1x128xf32> to vector<16x128xf32>
    %242 = arith.addf %238, %241 : vector<16x128xf32>
    %cst_112 = arith.constant 0.000000e+00 : f32
    %243 = vector.broadcast %cst_112 : f32 to vector<16x128xf32>
    %244 = arith.cmpf ogt, %242, %243 : vector<16x128xf32>
    %cst_113 = arith.constant 0.00999999977 : f32
    %245 = vector.broadcast %cst_113 : f32 to vector<16x128xf32>
    %246 = arith.mulf %245, %242 : vector<16x128xf32>
    %247 = arith.select %244, %242, %246 : vector<16x128xi1>, vector<16x128xf32>
    %c2 = arith.constant 2 : index
    %c0_114 = arith.constant 0 : index
    %c0_115 = arith.constant 0 : index
    %248 = vector.load %arg6[%c2, %c0_114, %c0_115] : memref<6x128x256xf32, #tpu.memory_space<vmem>>, vector<1x128x256xf32>
    %249 = vector.shape_cast %248 : vector<1x128x256xf32> to vector<128x256xf32>
    %cst_116 = arith.constant dense<0.000000e+00> : vector<16x256xf32>
    %250 = tpu.matmul %247, %249, %cst_116 {dimension_numbers = #tpu.dot_dimension_numbers<[1], [0], [0], [1], [0, 0, 1, 1], [], []>} : vector<16x128xf32>, vector<128x256xf32>, vector<16x256xf32> -> vector<16x256xf32>
    %c2_117 = arith.constant 2 : index
    %c0_118 = arith.constant 0 : index
    %c0_119 = arith.constant 0 : index
    %251 = vector.load %arg7[%c2_117, %c0_118, %c0_119] : memref<6x1x256xf32, #tpu.memory_space<vmem>>, vector<1x1x256xf32>
    %252 = vector.shape_cast %251 : vector<1x1x256xf32> to vector<1x256xf32>
    %253 = vector.broadcast %252 : vector<1x256xf32> to vector<16x256xf32>
    %254 = arith.addf %250, %253 : vector<16x256xf32>
    %255 = vector.extract_strided_slice %254 {offsets = [0, 0], sizes = [16, 128], strides = [1, 1]} : vector<16x256xf32> to vector<16x128xf32>
    %256 = vector.extract_strided_slice %254 {offsets = [0, 128], sizes = [16, 128], strides = [1, 1]} : vector<16x256xf32> to vector<16x128xf32>
    %c2_120 = arith.constant 2 : index
    %c0_121 = arith.constant 0 : index
    %c0_122 = arith.constant 0 : index
    %257 = vector.load %arg8[%c2_120, %c0_121, %c0_122] : memref<6x4x128xf32, #tpu.memory_space<vmem>>, vector<1x4x128xf32>
    %258 = vector.shape_cast %257 : vector<1x4x128xf32> to vector<4x128xf32>
    %c2_123 = arith.constant 2 : index
    %c0_124 = arith.constant 0 : index
    %c0_125 = arith.constant 0 : index
    %259 = vector.load %arg9[%c2_123, %c0_124, %c0_125] : memref<6x1x128xf32, #tpu.memory_space<vmem>>, vector<1x1x128xf32>
    %260 = vector.shape_cast %259 : vector<1x1x128xf32> to vector<1x128xf32>
    %261 = vector.shape_cast %260 : vector<1x128xf32> to vector<1x1x128xf32>
    %c2_126 = arith.constant 2 : index
    %c0_127 = arith.constant 0 : index
    %c0_128 = arith.constant 0 : index
    %262 = vector.load %arg10[%c2_126, %c0_127, %c0_128] : memref<6x1x128xf32, #tpu.memory_space<vmem>>, vector<1x1x128xf32>
    %263 = vector.shape_cast %262 : vector<1x1x128xf32> to vector<1x128xf32>
    %c0_129 = arith.constant 0 : index
    %c0_130 = arith.constant 0 : index
    %264 = vector.load %arg2[%c0_129, %c0_130] : memref<256x4xf32, #tpu.memory_space<vmem>>, vector<128x4xf32>
    %cst_131 = arith.constant dense<0.000000e+00> : vector<128x128xf32>
    %265 = tpu.matmul %264, %258, %cst_131 {dimension_numbers = #tpu.dot_dimension_numbers<[1], [0], [0], [1], [0, 0, 1, 1], [], []>} : vector<128x4xf32>, vector<4x128xf32>, vector<128x128xf32> -> vector<128x128xf32>
    %266 = vector.extract_strided_slice %256 {offsets = [0, 0], sizes = [8, 128], strides = [1, 1]} : vector<16x128xf32> to vector<8x128xf32>
    %267 = vector.shape_cast %266 : vector<8x128xf32> to vector<8x1x128xf32>
    %268 = vector.shape_cast %255 : vector<16x128xf32> to vector<1x16x128xf32>
    %269 = vector.broadcast %267 : vector<8x1x128xf32> to vector<8x16x128xf32>
    %270 = vector.broadcast %268 : vector<1x16x128xf32> to vector<8x16x128xf32>
    %271 = arith.addf %269, %270 : vector<8x16x128xf32>
    %272 = vector.shape_cast %265 : vector<128x128xf32> to vector<8x16x128xf32>
    %273 = arith.addf %271, %272 : vector<8x16x128xf32>
    %cst_132 = arith.constant 0.000000e+00 : f32
    %274 = vector.broadcast %cst_132 : f32 to vector<8x16x128xf32>
    %275 = arith.cmpf ogt, %273, %274 : vector<8x16x128xf32>
    %cst_133 = arith.constant 2.000000e-01 : f32
    %276 = vector.broadcast %cst_133 : f32 to vector<8x16x128xf32>
    %277 = arith.mulf %276, %273 : vector<8x16x128xf32>
    %278 = arith.select %275, %273, %277 : vector<8x16x128xi1>, vector<8x16x128xf32>
    %279 = vector.broadcast %261 : vector<1x1x128xf32> to vector<8x16x128xf32>
    %280 = arith.mulf %278, %279 : vector<8x16x128xf32>
    %cst_134 = arith.constant dense<0.000000e+00> : vector<8x16xf32>
    %281 = vector.multi_reduction <add>, %280, %cst_134 [2] : vector<8x16x128xf32> to vector<8x16xf32>
    %282 = vector.extract_strided_slice %2 {offsets = [0, 0], sizes = [8, 16], strides = [1, 1]} : vector<16x16xi1> to vector<8x16xi1>
    %cst_135 = arith.constant -1.000000e+30 : f32
    %283 = vector.broadcast %cst_135 : f32 to vector<8x16xf32>
    %284 = arith.select %282, %281, %283 : vector<8x16xi1>, vector<8x16xf32>
    %cst_136 = arith.constant dense<0xFF800000> : vector<8xf32>
    %285 = vector.multi_reduction <maximumf>, %284, %cst_136 [1] : vector<8x16xf32> to vector<8xf32>
    %286 = vector.shape_cast %285 : vector<8xf32> to vector<8x1xf32>
    %287 = vector.broadcast %286 : vector<8x1xf32> to vector<8x16xf32>
    %288 = arith.subf %284, %287 : vector<8x16xf32>
    %289 = math.exp %288 : vector<8x16xf32>
    %cst_137 = arith.constant 0.000000e+00 : f32
    %290 = vector.broadcast %cst_137 : f32 to vector<8x16xf32>
    %291 = arith.select %282, %289, %290 : vector<8x16xi1>, vector<8x16xf32>
    %cst_138 = arith.constant dense<0.000000e+00> : vector<8xf32>
    %292 = vector.multi_reduction <add>, %291, %cst_138 [1] : vector<8x16xf32> to vector<8xf32>
    %293 = vector.shape_cast %292 : vector<8xf32> to vector<8x1xf32>
    %294 = tpu.reciprocal %293 {approx = true} : vector<8x1xf32> -> vector<8x1xf32>
    %295 = vector.broadcast %294 : vector<8x1xf32> to vector<8x16xf32>
    %296 = arith.mulf %291, %295 : vector<8x16xf32>
    %cst_139 = arith.constant dense<0.000000e+00> : vector<8x128xf32>
    %297 = tpu.matmul %296, %255, %cst_139 {dimension_numbers = #tpu.dot_dimension_numbers<[1], [0], [0], [1], [0, 0, 1, 1], [], []>} : vector<8x16xf32>, vector<16x128xf32>, vector<8x128xf32> -> vector<8x128xf32>
    %298 = vector.broadcast %263 : vector<1x128xf32> to vector<8x128xf32>
    %299 = arith.addf %297, %298 : vector<8x128xf32>
    %c0_140 = arith.constant 0 : index
    %c0_141 = arith.constant 0 : index
    %300 = vector.load %arg19[%c0_140, %c0_141] : memref<16x128xf32, #tpu.memory_space<vmem>>, vector<8x128xf32>
    tpu.vector_store %arg19[%c0_140, %c0_141], %299 {strides = array<i32>} : memref<16x128xf32, #tpu.memory_space<vmem>>, vector<8x128xf32>,
    %c128_142 = arith.constant 128 : index
    %c0_143 = arith.constant 0 : index
    %301 = vector.load %arg2[%c128_142, %c0_143] : memref<256x4xf32, #tpu.memory_space<vmem>>, vector<128x4xf32>
    %cst_144 = arith.constant dense<0.000000e+00> : vector<128x128xf32>
    %302 = tpu.matmul %301, %258, %cst_144 {dimension_numbers = #tpu.dot_dimension_numbers<[1], [0], [0], [1], [0, 0, 1, 1], [], []>} : vector<128x4xf32>, vector<4x128xf32>, vector<128x128xf32> -> vector<128x128xf32>
    %303 = vector.extract_strided_slice %256 {offsets = [8, 0], sizes = [8, 128], strides = [1, 1]} : vector<16x128xf32> to vector<8x128xf32>
    %304 = vector.shape_cast %303 : vector<8x128xf32> to vector<8x1x128xf32>
    %305 = vector.shape_cast %255 : vector<16x128xf32> to vector<1x16x128xf32>
    %306 = vector.broadcast %304 : vector<8x1x128xf32> to vector<8x16x128xf32>
    %307 = vector.broadcast %305 : vector<1x16x128xf32> to vector<8x16x128xf32>
    %308 = arith.addf %306, %307 : vector<8x16x128xf32>
    %309 = vector.shape_cast %302 : vector<128x128xf32> to vector<8x16x128xf32>
    %310 = arith.addf %308, %309 : vector<8x16x128xf32>
    %cst_145 = arith.constant 0.000000e+00 : f32
    %311 = vector.broadcast %cst_145 : f32 to vector<8x16x128xf32>
    %312 = arith.cmpf ogt, %310, %311 : vector<8x16x128xf32>
    %cst_146 = arith.constant 2.000000e-01 : f32
    %313 = vector.broadcast %cst_146 : f32 to vector<8x16x128xf32>
    %314 = arith.mulf %313, %310 : vector<8x16x128xf32>
    %315 = arith.select %312, %310, %314 : vector<8x16x128xi1>, vector<8x16x128xf32>
    %316 = vector.broadcast %261 : vector<1x1x128xf32> to vector<8x16x128xf32>
    %317 = arith.mulf %315, %316 : vector<8x16x128xf32>
    %cst_147 = arith.constant dense<0.000000e+00> : vector<8x16xf32>
    %318 = vector.multi_reduction <add>, %317, %cst_147 [2] : vector<8x16x128xf32> to vector<8x16xf32>
    %319 = vector.extract_strided_slice %2 {offsets = [8, 0], sizes = [8, 16], strides = [1, 1]} : vector<16x16xi1> to vector<8x16xi1>
    %cst_148 = arith.constant -1.000000e+30 : f32
    %320 = vector.broadcast %cst_148 : f32 to vector<8x16xf32>
    %321 = arith.select %319, %318, %320 : vector<8x16xi1>, vector<8x16xf32>
    %cst_149 = arith.constant dense<0xFF800000> : vector<8xf32>
    %322 = vector.multi_reduction <maximumf>, %321, %cst_149 [1] : vector<8x16xf32> to vector<8xf32>
    %323 = vector.shape_cast %322 : vector<8xf32> to vector<8x1xf32>
    %324 = vector.broadcast %323 : vector<8x1xf32> to vector<8x16xf32>
    %325 = arith.subf %321, %324 : vector<8x16xf32>
    %326 = math.exp %325 : vector<8x16xf32>
    %cst_150 = arith.constant 0.000000e+00 : f32
    %327 = vector.broadcast %cst_150 : f32 to vector<8x16xf32>
    %328 = arith.select %319, %326, %327 : vector<8x16xi1>, vector<8x16xf32>
    %cst_151 = arith.constant dense<0.000000e+00> : vector<8xf32>
    %329 = vector.multi_reduction <add>, %328, %cst_151 [1] : vector<8x16xf32> to vector<8xf32>
    %330 = vector.shape_cast %329 : vector<8xf32> to vector<8x1xf32>
    %331 = tpu.reciprocal %330 {approx = true} : vector<8x1xf32> -> vector<8x1xf32>
    %332 = vector.broadcast %331 : vector<8x1xf32> to vector<8x16xf32>
    %333 = arith.mulf %328, %332 : vector<8x16xf32>
    %cst_152 = arith.constant dense<0.000000e+00> : vector<8x128xf32>
    %334 = tpu.matmul %333, %255, %cst_152 {dimension_numbers = #tpu.dot_dimension_numbers<[1], [0], [0], [1], [0, 0, 1, 1], [], []>} : vector<8x16xf32>, vector<16x128xf32>, vector<8x128xf32> -> vector<8x128xf32>
    %335 = vector.broadcast %263 : vector<1x128xf32> to vector<8x128xf32>
    %336 = arith.addf %334, %335 : vector<8x128xf32>
    %c8_153 = arith.constant 8 : index
    %c0_154 = arith.constant 0 : index
    %337 = vector.load %arg19[%c8_153, %c0_154] : memref<16x128xf32, #tpu.memory_space<vmem>>, vector<8x128xf32>
    tpu.vector_store %arg19[%c8_153, %c0_154], %336 {strides = array<i32>} : memref<16x128xf32, #tpu.memory_space<vmem>>, vector<8x128xf32>,
    %c0_155 = arith.constant 0 : index
    %c0_156 = arith.constant 0 : index
    %338 = vector.load %arg19[%c0_155, %c0_156] : memref<16x128xf32, #tpu.memory_space<vmem>>, vector<16x128xf32>
    %cst_157 = arith.constant dense<0.000000e+00> : vector<128xf32>
    %339 = vector.multi_reduction <add>, %338, %cst_157 [0] : vector<16x128xf32> to vector<128xf32>
    %340 = vector.shape_cast %339 : vector<128xf32> to vector<1x128xf32>
    %cst_158 = arith.constant 1.600000e+01 : f32
    %341 = vector.broadcast %cst_158 : f32 to vector<1x128xf32>
    %342 = arith.divf %340, %341 : vector<1x128xf32>
    %343 = vector.broadcast %342 : vector<1x128xf32> to vector<16x128xf32>
    %344 = arith.subf %338, %343 : vector<16x128xf32>
    %345 = arith.mulf %344, %344 : vector<16x128xf32>
    %cst_159 = arith.constant dense<0.000000e+00> : vector<128xf32>
    %346 = vector.multi_reduction <add>, %345, %cst_159 [0] : vector<16x128xf32> to vector<128xf32>
    %347 = vector.shape_cast %346 : vector<128xf32> to vector<1x128xf32>
    %cst_160 = arith.constant 1.600000e+01 : f32
    %348 = vector.broadcast %cst_160 : f32 to vector<1x128xf32>
    %349 = arith.divf %347, %348 : vector<1x128xf32>
    %350 = vector.broadcast %342 : vector<1x128xf32> to vector<16x128xf32>
    %351 = arith.subf %338, %350 : vector<16x128xf32>
    %cst_161 = arith.constant 9.99999974E-6 : f32
    %352 = vector.broadcast %cst_161 : f32 to vector<1x128xf32>
    %353 = arith.addf %349, %352 : vector<1x128xf32>
    %354 = math.rsqrt %353 : vector<1x128xf32>
    %355 = vector.broadcast %354 : vector<1x128xf32> to vector<16x128xf32>
    %356 = arith.mulf %351, %355 : vector<16x128xf32>
    %c2_162 = arith.constant 2 : index
    %c0_163 = arith.constant 0 : index
    %c0_164 = arith.constant 0 : index
    %357 = vector.load %arg11[%c2_162, %c0_163, %c0_164] : memref<6x1x128xf32, #tpu.memory_space<vmem>>, vector<1x1x128xf32>
    %358 = vector.shape_cast %357 : vector<1x1x128xf32> to vector<1x128xf32>
    %359 = vector.broadcast %358 : vector<1x128xf32> to vector<16x128xf32>
    %360 = arith.mulf %356, %359 : vector<16x128xf32>
    %c2_165 = arith.constant 2 : index
    %c0_166 = arith.constant 0 : index
    %c0_167 = arith.constant 0 : index
    %361 = vector.load %arg12[%c2_165, %c0_166, %c0_167] : memref<6x1x128xf32, #tpu.memory_space<vmem>>, vector<1x1x128xf32>
    %362 = vector.shape_cast %361 : vector<1x1x128xf32> to vector<1x128xf32>
    %363 = vector.broadcast %362 : vector<1x128xf32> to vector<16x128xf32>
    %364 = arith.addf %360, %363 : vector<16x128xf32>
    %cst_168 = arith.constant 0.000000e+00 : f32
    %365 = vector.broadcast %cst_168 : f32 to vector<16x128xf32>
    %366 = arith.cmpf ogt, %364, %365 : vector<16x128xf32>
    %cst_169 = arith.constant 0.00999999977 : f32
    %367 = vector.broadcast %cst_169 : f32 to vector<16x128xf32>
    %368 = arith.mulf %367, %364 : vector<16x128xf32>
    %369 = arith.select %366, %364, %368 : vector<16x128xi1>, vector<16x128xf32>
    %c3 = arith.constant 3 : index
    %c0_170 = arith.constant 0 : index
    %c0_171 = arith.constant 0 : index
    %370 = vector.load %arg6[%c3, %c0_170, %c0_171] : memref<6x128x256xf32, #tpu.memory_space<vmem>>, vector<1x128x256xf32>
    %371 = vector.shape_cast %370 : vector<1x128x256xf32> to vector<128x256xf32>
    %cst_172 = arith.constant dense<0.000000e+00> : vector<16x256xf32>
    %372 = tpu.matmul %369, %371, %cst_172 {dimension_numbers = #tpu.dot_dimension_numbers<[1], [0], [0], [1], [0, 0, 1, 1], [], []>} : vector<16x128xf32>, vector<128x256xf32>, vector<16x256xf32> -> vector<16x256xf32>
    %c3_173 = arith.constant 3 : index
    %c0_174 = arith.constant 0 : index
    %c0_175 = arith.constant 0 : index
    %373 = vector.load %arg7[%c3_173, %c0_174, %c0_175] : memref<6x1x256xf32, #tpu.memory_space<vmem>>, vector<1x1x256xf32>
    %374 = vector.shape_cast %373 : vector<1x1x256xf32> to vector<1x256xf32>
    %375 = vector.broadcast %374 : vector<1x256xf32> to vector<16x256xf32>
    %376 = arith.addf %372, %375 : vector<16x256xf32>
    %377 = vector.extract_strided_slice %376 {offsets = [0, 0], sizes = [16, 128], strides = [1, 1]} : vector<16x256xf32> to vector<16x128xf32>
    %378 = vector.extract_strided_slice %376 {offsets = [0, 128], sizes = [16, 128], strides = [1, 1]} : vector<16x256xf32> to vector<16x128xf32>
    %c3_176 = arith.constant 3 : index
    %c0_177 = arith.constant 0 : index
    %c0_178 = arith.constant 0 : index
    %379 = vector.load %arg8[%c3_176, %c0_177, %c0_178] : memref<6x4x128xf32, #tpu.memory_space<vmem>>, vector<1x4x128xf32>
    %380 = vector.shape_cast %379 : vector<1x4x128xf32> to vector<4x128xf32>
    %c3_179 = arith.constant 3 : index
    %c0_180 = arith.constant 0 : index
    %c0_181 = arith.constant 0 : index
    %381 = vector.load %arg9[%c3_179, %c0_180, %c0_181] : memref<6x1x128xf32, #tpu.memory_space<vmem>>, vector<1x1x128xf32>
    %382 = vector.shape_cast %381 : vector<1x1x128xf32> to vector<1x128xf32>
    %383 = vector.shape_cast %382 : vector<1x128xf32> to vector<1x1x128xf32>
    %c3_182 = arith.constant 3 : index
    %c0_183 = arith.constant 0 : index
    %c0_184 = arith.constant 0 : index
    %384 = vector.load %arg10[%c3_182, %c0_183, %c0_184] : memref<6x1x128xf32, #tpu.memory_space<vmem>>, vector<1x1x128xf32>
    %385 = vector.shape_cast %384 : vector<1x1x128xf32> to vector<1x128xf32>
    %c0_185 = arith.constant 0 : index
    %c0_186 = arith.constant 0 : index
    %386 = vector.load %arg2[%c0_185, %c0_186] : memref<256x4xf32, #tpu.memory_space<vmem>>, vector<128x4xf32>
    %cst_187 = arith.constant dense<0.000000e+00> : vector<128x128xf32>
    %387 = tpu.matmul %386, %380, %cst_187 {dimension_numbers = #tpu.dot_dimension_numbers<[1], [0], [0], [1], [0, 0, 1, 1], [], []>} : vector<128x4xf32>, vector<4x128xf32>, vector<128x128xf32> -> vector<128x128xf32>
    %388 = vector.extract_strided_slice %378 {offsets = [0, 0], sizes = [8, 128], strides = [1, 1]} : vector<16x128xf32> to vector<8x128xf32>
    %389 = vector.shape_cast %388 : vector<8x128xf32> to vector<8x1x128xf32>
    %390 = vector.shape_cast %377 : vector<16x128xf32> to vector<1x16x128xf32>
    %391 = vector.broadcast %389 : vector<8x1x128xf32> to vector<8x16x128xf32>
    %392 = vector.broadcast %390 : vector<1x16x128xf32> to vector<8x16x128xf32>
    %393 = arith.addf %391, %392 : vector<8x16x128xf32>
    %394 = vector.shape_cast %387 : vector<128x128xf32> to vector<8x16x128xf32>
    %395 = arith.addf %393, %394 : vector<8x16x128xf32>
    %cst_188 = arith.constant 0.000000e+00 : f32
    %396 = vector.broadcast %cst_188 : f32 to vector<8x16x128xf32>
    %397 = arith.cmpf ogt, %395, %396 : vector<8x16x128xf32>
    %cst_189 = arith.constant 2.000000e-01 : f32
    %398 = vector.broadcast %cst_189 : f32 to vector<8x16x128xf32>
    %399 = arith.mulf %398, %395 : vector<8x16x128xf32>
    %400 = arith.select %397, %395, %399 : vector<8x16x128xi1>, vector<8x16x128xf32>
    %401 = vector.broadcast %383 : vector<1x1x128xf32> to vector<8x16x128xf32>
    %402 = arith.mulf %400, %401 : vector<8x16x128xf32>
    %cst_190 = arith.constant dense<0.000000e+00> : vector<8x16xf32>
    %403 = vector.multi_reduction <add>, %402, %cst_190 [2] : vector<8x16x128xf32> to vector<8x16xf32>
    %404 = vector.extract_strided_slice %2 {offsets = [0, 0], sizes = [8, 16], strides = [1, 1]} : vector<16x16xi1> to vector<8x16xi1>
    %cst_191 = arith.constant -1.000000e+30 : f32
    %405 = vector.broadcast %cst_191 : f32 to vector<8x16xf32>
    %406 = arith.select %404, %403, %405 : vector<8x16xi1>, vector<8x16xf32>
    %cst_192 = arith.constant dense<0xFF800000> : vector<8xf32>
    %407 = vector.multi_reduction <maximumf>, %406, %cst_192 [1] : vector<8x16xf32> to vector<8xf32>
    %408 = vector.shape_cast %407 : vector<8xf32> to vector<8x1xf32>
    %409 = vector.broadcast %408 : vector<8x1xf32> to vector<8x16xf32>
    %410 = arith.subf %406, %409 : vector<8x16xf32>
    %411 = math.exp %410 : vector<8x16xf32>
    %cst_193 = arith.constant 0.000000e+00 : f32
    %412 = vector.broadcast %cst_193 : f32 to vector<8x16xf32>
    %413 = arith.select %404, %411, %412 : vector<8x16xi1>, vector<8x16xf32>
    %cst_194 = arith.constant dense<0.000000e+00> : vector<8xf32>
    %414 = vector.multi_reduction <add>, %413, %cst_194 [1] : vector<8x16xf32> to vector<8xf32>
    %415 = vector.shape_cast %414 : vector<8xf32> to vector<8x1xf32>
    %416 = tpu.reciprocal %415 {approx = true} : vector<8x1xf32> -> vector<8x1xf32>
    %417 = vector.broadcast %416 : vector<8x1xf32> to vector<8x16xf32>
    %418 = arith.mulf %413, %417 : vector<8x16xf32>
    %cst_195 = arith.constant dense<0.000000e+00> : vector<8x128xf32>
    %419 = tpu.matmul %418, %377, %cst_195 {dimension_numbers = #tpu.dot_dimension_numbers<[1], [0], [0], [1], [0, 0, 1, 1], [], []>} : vector<8x16xf32>, vector<16x128xf32>, vector<8x128xf32> -> vector<8x128xf32>
    %420 = vector.broadcast %385 : vector<1x128xf32> to vector<8x128xf32>
    %421 = arith.addf %419, %420 : vector<8x128xf32>
    %c0_196 = arith.constant 0 : index
    %c0_197 = arith.constant 0 : index
    %422 = vector.load %arg19[%c0_196, %c0_197] : memref<16x128xf32, #tpu.memory_space<vmem>>, vector<8x128xf32>
    tpu.vector_store %arg19[%c0_196, %c0_197], %421 {strides = array<i32>} : memref<16x128xf32, #tpu.memory_space<vmem>>, vector<8x128xf32>,
    %c128_198 = arith.constant 128 : index
    %c0_199 = arith.constant 0 : index
    %423 = vector.load %arg2[%c128_198, %c0_199] : memref<256x4xf32, #tpu.memory_space<vmem>>, vector<128x4xf32>
    %cst_200 = arith.constant dense<0.000000e+00> : vector<128x128xf32>
    %424 = tpu.matmul %423, %380, %cst_200 {dimension_numbers = #tpu.dot_dimension_numbers<[1], [0], [0], [1], [0, 0, 1, 1], [], []>} : vector<128x4xf32>, vector<4x128xf32>, vector<128x128xf32> -> vector<128x128xf32>
    %425 = vector.extract_strided_slice %378 {offsets = [8, 0], sizes = [8, 128], strides = [1, 1]} : vector<16x128xf32> to vector<8x128xf32>
    %426 = vector.shape_cast %425 : vector<8x128xf32> to vector<8x1x128xf32>
    %427 = vector.shape_cast %377 : vector<16x128xf32> to vector<1x16x128xf32>
    %428 = vector.broadcast %426 : vector<8x1x128xf32> to vector<8x16x128xf32>
    %429 = vector.broadcast %427 : vector<1x16x128xf32> to vector<8x16x128xf32>
    %430 = arith.addf %428, %429 : vector<8x16x128xf32>
    %431 = vector.shape_cast %424 : vector<128x128xf32> to vector<8x16x128xf32>
    %432 = arith.addf %430, %431 : vector<8x16x128xf32>
    %cst_201 = arith.constant 0.000000e+00 : f32
    %433 = vector.broadcast %cst_201 : f32 to vector<8x16x128xf32>
    %434 = arith.cmpf ogt, %432, %433 : vector<8x16x128xf32>
    %cst_202 = arith.constant 2.000000e-01 : f32
    %435 = vector.broadcast %cst_202 : f32 to vector<8x16x128xf32>
    %436 = arith.mulf %435, %432 : vector<8x16x128xf32>
    %437 = arith.select %434, %432, %436 : vector<8x16x128xi1>, vector<8x16x128xf32>
    %438 = vector.broadcast %383 : vector<1x1x128xf32> to vector<8x16x128xf32>
    %439 = arith.mulf %437, %438 : vector<8x16x128xf32>
    %cst_203 = arith.constant dense<0.000000e+00> : vector<8x16xf32>
    %440 = vector.multi_reduction <add>, %439, %cst_203 [2] : vector<8x16x128xf32> to vector<8x16xf32>
    %441 = vector.extract_strided_slice %2 {offsets = [8, 0], sizes = [8, 16], strides = [1, 1]} : vector<16x16xi1> to vector<8x16xi1>
    %cst_204 = arith.constant -1.000000e+30 : f32
    %442 = vector.broadcast %cst_204 : f32 to vector<8x16xf32>
    %443 = arith.select %441, %440, %442 : vector<8x16xi1>, vector<8x16xf32>
    %cst_205 = arith.constant dense<0xFF800000> : vector<8xf32>
    %444 = vector.multi_reduction <maximumf>, %443, %cst_205 [1] : vector<8x16xf32> to vector<8xf32>
    %445 = vector.shape_cast %444 : vector<8xf32> to vector<8x1xf32>
    %446 = vector.broadcast %445 : vector<8x1xf32> to vector<8x16xf32>
    %447 = arith.subf %443, %446 : vector<8x16xf32>
    %448 = math.exp %447 : vector<8x16xf32>
    %cst_206 = arith.constant 0.000000e+00 : f32
    %449 = vector.broadcast %cst_206 : f32 to vector<8x16xf32>
    %450 = arith.select %441, %448, %449 : vector<8x16xi1>, vector<8x16xf32>
    %cst_207 = arith.constant dense<0.000000e+00> : vector<8xf32>
    %451 = vector.multi_reduction <add>, %450, %cst_207 [1] : vector<8x16xf32> to vector<8xf32>
    %452 = vector.shape_cast %451 : vector<8xf32> to vector<8x1xf32>
    %453 = tpu.reciprocal %452 {approx = true} : vector<8x1xf32> -> vector<8x1xf32>
    %454 = vector.broadcast %453 : vector<8x1xf32> to vector<8x16xf32>
    %455 = arith.mulf %450, %454 : vector<8x16xf32>
    %cst_208 = arith.constant dense<0.000000e+00> : vector<8x128xf32>
    %456 = tpu.matmul %455, %377, %cst_208 {dimension_numbers = #tpu.dot_dimension_numbers<[1], [0], [0], [1], [0, 0, 1, 1], [], []>} : vector<8x16xf32>, vector<16x128xf32>, vector<8x128xf32> -> vector<8x128xf32>
    %457 = vector.broadcast %385 : vector<1x128xf32> to vector<8x128xf32>
    %458 = arith.addf %456, %457 : vector<8x128xf32>
    %c8_209 = arith.constant 8 : index
    %c0_210 = arith.constant 0 : index
    %459 = vector.load %arg19[%c8_209, %c0_210] : memref<16x128xf32, #tpu.memory_space<vmem>>, vector<8x128xf32>
    tpu.vector_store %arg19[%c8_209, %c0_210], %458 {strides = array<i32>} : memref<16x128xf32, #tpu.memory_space<vmem>>, vector<8x128xf32>,
    %c0_211 = arith.constant 0 : index
    %c0_212 = arith.constant 0 : index
    %460 = vector.load %arg19[%c0_211, %c0_212] : memref<16x128xf32, #tpu.memory_space<vmem>>, vector<16x128xf32>
    %cst_213 = arith.constant dense<0.000000e+00> : vector<128xf32>
    %461 = vector.multi_reduction <add>, %460, %cst_213 [0] : vector<16x128xf32> to vector<128xf32>
    %462 = vector.shape_cast %461 : vector<128xf32> to vector<1x128xf32>
    %cst_214 = arith.constant 1.600000e+01 : f32
    %463 = vector.broadcast %cst_214 : f32 to vector<1x128xf32>
    %464 = arith.divf %462, %463 : vector<1x128xf32>
    %465 = vector.broadcast %464 : vector<1x128xf32> to vector<16x128xf32>
    %466 = arith.subf %460, %465 : vector<16x128xf32>
    %467 = arith.mulf %466, %466 : vector<16x128xf32>
    %cst_215 = arith.constant dense<0.000000e+00> : vector<128xf32>
    %468 = vector.multi_reduction <add>, %467, %cst_215 [0] : vector<16x128xf32> to vector<128xf32>
    %469 = vector.shape_cast %468 : vector<128xf32> to vector<1x128xf32>
    %cst_216 = arith.constant 1.600000e+01 : f32
    %470 = vector.broadcast %cst_216 : f32 to vector<1x128xf32>
    %471 = arith.divf %469, %470 : vector<1x128xf32>
    %472 = vector.broadcast %464 : vector<1x128xf32> to vector<16x128xf32>
    %473 = arith.subf %460, %472 : vector<16x128xf32>
    %cst_217 = arith.constant 9.99999974E-6 : f32
    %474 = vector.broadcast %cst_217 : f32 to vector<1x128xf32>
    %475 = arith.addf %471, %474 : vector<1x128xf32>
    %476 = math.rsqrt %475 : vector<1x128xf32>
    %477 = vector.broadcast %476 : vector<1x128xf32> to vector<16x128xf32>
    %478 = arith.mulf %473, %477 : vector<16x128xf32>
    %c3_218 = arith.constant 3 : index
    %c0_219 = arith.constant 0 : index
    %c0_220 = arith.constant 0 : index
    %479 = vector.load %arg11[%c3_218, %c0_219, %c0_220] : memref<6x1x128xf32, #tpu.memory_space<vmem>>, vector<1x1x128xf32>
    %480 = vector.shape_cast %479 : vector<1x1x128xf32> to vector<1x128xf32>
    %481 = vector.broadcast %480 : vector<1x128xf32> to vector<16x128xf32>
    %482 = arith.mulf %478, %481 : vector<16x128xf32>
    %c3_221 = arith.constant 3 : index
    %c0_222 = arith.constant 0 : index
    %c0_223 = arith.constant 0 : index
    %483 = vector.load %arg12[%c3_221, %c0_222, %c0_223] : memref<6x1x128xf32, #tpu.memory_space<vmem>>, vector<1x1x128xf32>
    %484 = vector.shape_cast %483 : vector<1x1x128xf32> to vector<1x128xf32>
    %485 = vector.broadcast %484 : vector<1x128xf32> to vector<16x128xf32>
    %486 = arith.addf %482, %485 : vector<16x128xf32>
    %cst_224 = arith.constant 0.000000e+00 : f32
    %487 = vector.broadcast %cst_224 : f32 to vector<16x128xf32>
    %488 = arith.cmpf ogt, %486, %487 : vector<16x128xf32>
    %cst_225 = arith.constant 0.00999999977 : f32
    %489 = vector.broadcast %cst_225 : f32 to vector<16x128xf32>
    %490 = arith.mulf %489, %486 : vector<16x128xf32>
    %491 = arith.select %488, %486, %490 : vector<16x128xi1>, vector<16x128xf32>
    %c4 = arith.constant 4 : index
    %c0_226 = arith.constant 0 : index
    %c0_227 = arith.constant 0 : index
    %492 = vector.load %arg6[%c4, %c0_226, %c0_227] : memref<6x128x256xf32, #tpu.memory_space<vmem>>, vector<1x128x256xf32>
    %493 = vector.shape_cast %492 : vector<1x128x256xf32> to vector<128x256xf32>
    %cst_228 = arith.constant dense<0.000000e+00> : vector<16x256xf32>
    %494 = tpu.matmul %491, %493, %cst_228 {dimension_numbers = #tpu.dot_dimension_numbers<[1], [0], [0], [1], [0, 0, 1, 1], [], []>} : vector<16x128xf32>, vector<128x256xf32>, vector<16x256xf32> -> vector<16x256xf32>
    %c4_229 = arith.constant 4 : index
    %c0_230 = arith.constant 0 : index
    %c0_231 = arith.constant 0 : index
    %495 = vector.load %arg7[%c4_229, %c0_230, %c0_231] : memref<6x1x256xf32, #tpu.memory_space<vmem>>, vector<1x1x256xf32>
    %496 = vector.shape_cast %495 : vector<1x1x256xf32> to vector<1x256xf32>
    %497 = vector.broadcast %496 : vector<1x256xf32> to vector<16x256xf32>
    %498 = arith.addf %494, %497 : vector<16x256xf32>
    %499 = vector.extract_strided_slice %498 {offsets = [0, 0], sizes = [16, 128], strides = [1, 1]} : vector<16x256xf32> to vector<16x128xf32>
    %500 = vector.extract_strided_slice %498 {offsets = [0, 128], sizes = [16, 128], strides = [1, 1]} : vector<16x256xf32> to vector<16x128xf32>
    %c4_232 = arith.constant 4 : index
    %c0_233 = arith.constant 0 : index
    %c0_234 = arith.constant 0 : index
    %501 = vector.load %arg8[%c4_232, %c0_233, %c0_234] : memref<6x4x128xf32, #tpu.memory_space<vmem>>, vector<1x4x128xf32>
    %502 = vector.shape_cast %501 : vector<1x4x128xf32> to vector<4x128xf32>
    %c4_235 = arith.constant 4 : index
    %c0_236 = arith.constant 0 : index
    %c0_237 = arith.constant 0 : index
    %503 = vector.load %arg9[%c4_235, %c0_236, %c0_237] : memref<6x1x128xf32, #tpu.memory_space<vmem>>, vector<1x1x128xf32>
    %504 = vector.shape_cast %503 : vector<1x1x128xf32> to vector<1x128xf32>
    %505 = vector.shape_cast %504 : vector<1x128xf32> to vector<1x1x128xf32>
    %c4_238 = arith.constant 4 : index
    %c0_239 = arith.constant 0 : index
    %c0_240 = arith.constant 0 : index
    %506 = vector.load %arg10[%c4_238, %c0_239, %c0_240] : memref<6x1x128xf32, #tpu.memory_space<vmem>>, vector<1x1x128xf32>
    %507 = vector.shape_cast %506 : vector<1x1x128xf32> to vector<1x128xf32>
    %c0_241 = arith.constant 0 : index
    %c0_242 = arith.constant 0 : index
    %508 = vector.load %arg2[%c0_241, %c0_242] : memref<256x4xf32, #tpu.memory_space<vmem>>, vector<128x4xf32>
    %cst_243 = arith.constant dense<0.000000e+00> : vector<128x128xf32>
    %509 = tpu.matmul %508, %502, %cst_243 {dimension_numbers = #tpu.dot_dimension_numbers<[1], [0], [0], [1], [0, 0, 1, 1], [], []>} : vector<128x4xf32>, vector<4x128xf32>, vector<128x128xf32> -> vector<128x128xf32>
    %510 = vector.extract_strided_slice %500 {offsets = [0, 0], sizes = [8, 128], strides = [1, 1]} : vector<16x128xf32> to vector<8x128xf32>
    %511 = vector.shape_cast %510 : vector<8x128xf32> to vector<8x1x128xf32>
    %512 = vector.shape_cast %499 : vector<16x128xf32> to vector<1x16x128xf32>
    %513 = vector.broadcast %511 : vector<8x1x128xf32> to vector<8x16x128xf32>
    %514 = vector.broadcast %512 : vector<1x16x128xf32> to vector<8x16x128xf32>
    %515 = arith.addf %513, %514 : vector<8x16x128xf32>
    %516 = vector.shape_cast %509 : vector<128x128xf32> to vector<8x16x128xf32>
    %517 = arith.addf %515, %516 : vector<8x16x128xf32>
    %cst_244 = arith.constant 0.000000e+00 : f32
    %518 = vector.broadcast %cst_244 : f32 to vector<8x16x128xf32>
    %519 = arith.cmpf ogt, %517, %518 : vector<8x16x128xf32>
    %cst_245 = arith.constant 2.000000e-01 : f32
    %520 = vector.broadcast %cst_245 : f32 to vector<8x16x128xf32>
    %521 = arith.mulf %520, %517 : vector<8x16x128xf32>
    %522 = arith.select %519, %517, %521 : vector<8x16x128xi1>, vector<8x16x128xf32>
    %523 = vector.broadcast %505 : vector<1x1x128xf32> to vector<8x16x128xf32>
    %524 = arith.mulf %522, %523 : vector<8x16x128xf32>
    %cst_246 = arith.constant dense<0.000000e+00> : vector<8x16xf32>
    %525 = vector.multi_reduction <add>, %524, %cst_246 [2] : vector<8x16x128xf32> to vector<8x16xf32>
    %526 = vector.extract_strided_slice %2 {offsets = [0, 0], sizes = [8, 16], strides = [1, 1]} : vector<16x16xi1> to vector<8x16xi1>
    %cst_247 = arith.constant -1.000000e+30 : f32
    %527 = vector.broadcast %cst_247 : f32 to vector<8x16xf32>
    %528 = arith.select %526, %525, %527 : vector<8x16xi1>, vector<8x16xf32>
    %cst_248 = arith.constant dense<0xFF800000> : vector<8xf32>
    %529 = vector.multi_reduction <maximumf>, %528, %cst_248 [1] : vector<8x16xf32> to vector<8xf32>
    %530 = vector.shape_cast %529 : vector<8xf32> to vector<8x1xf32>
    %531 = vector.broadcast %530 : vector<8x1xf32> to vector<8x16xf32>
    %532 = arith.subf %528, %531 : vector<8x16xf32>
    %533 = math.exp %532 : vector<8x16xf32>
    %cst_249 = arith.constant 0.000000e+00 : f32
    %534 = vector.broadcast %cst_249 : f32 to vector<8x16xf32>
    %535 = arith.select %526, %533, %534 : vector<8x16xi1>, vector<8x16xf32>
    %cst_250 = arith.constant dense<0.000000e+00> : vector<8xf32>
    %536 = vector.multi_reduction <add>, %535, %cst_250 [1] : vector<8x16xf32> to vector<8xf32>
    %537 = vector.shape_cast %536 : vector<8xf32> to vector<8x1xf32>
    %538 = tpu.reciprocal %537 {approx = true} : vector<8x1xf32> -> vector<8x1xf32>
    %539 = vector.broadcast %538 : vector<8x1xf32> to vector<8x16xf32>
    %540 = arith.mulf %535, %539 : vector<8x16xf32>
    %cst_251 = arith.constant dense<0.000000e+00> : vector<8x128xf32>
    %541 = tpu.matmul %540, %499, %cst_251 {dimension_numbers = #tpu.dot_dimension_numbers<[1], [0], [0], [1], [0, 0, 1, 1], [], []>} : vector<8x16xf32>, vector<16x128xf32>, vector<8x128xf32> -> vector<8x128xf32>
    %542 = vector.broadcast %507 : vector<1x128xf32> to vector<8x128xf32>
    %543 = arith.addf %541, %542 : vector<8x128xf32>
    %c0_252 = arith.constant 0 : index
    %c0_253 = arith.constant 0 : index
    %544 = vector.load %arg19[%c0_252, %c0_253] : memref<16x128xf32, #tpu.memory_space<vmem>>, vector<8x128xf32>
    tpu.vector_store %arg19[%c0_252, %c0_253], %543 {strides = array<i32>} : memref<16x128xf32, #tpu.memory_space<vmem>>, vector<8x128xf32>,
    %c128_254 = arith.constant 128 : index
    %c0_255 = arith.constant 0 : index
    %545 = vector.load %arg2[%c128_254, %c0_255] : memref<256x4xf32, #tpu.memory_space<vmem>>, vector<128x4xf32>
    %cst_256 = arith.constant dense<0.000000e+00> : vector<128x128xf32>
    %546 = tpu.matmul %545, %502, %cst_256 {dimension_numbers = #tpu.dot_dimension_numbers<[1], [0], [0], [1], [0, 0, 1, 1], [], []>} : vector<128x4xf32>, vector<4x128xf32>, vector<128x128xf32> -> vector<128x128xf32>
    %547 = vector.extract_strided_slice %500 {offsets = [8, 0], sizes = [8, 128], strides = [1, 1]} : vector<16x128xf32> to vector<8x128xf32>
    %548 = vector.shape_cast %547 : vector<8x128xf32> to vector<8x1x128xf32>
    %549 = vector.shape_cast %499 : vector<16x128xf32> to vector<1x16x128xf32>
    %550 = vector.broadcast %548 : vector<8x1x128xf32> to vector<8x16x128xf32>
    %551 = vector.broadcast %549 : vector<1x16x128xf32> to vector<8x16x128xf32>
    %552 = arith.addf %550, %551 : vector<8x16x128xf32>
    %553 = vector.shape_cast %546 : vector<128x128xf32> to vector<8x16x128xf32>
    %554 = arith.addf %552, %553 : vector<8x16x128xf32>
    %cst_257 = arith.constant 0.000000e+00 : f32
    %555 = vector.broadcast %cst_257 : f32 to vector<8x16x128xf32>
    %556 = arith.cmpf ogt, %554, %555 : vector<8x16x128xf32>
    %cst_258 = arith.constant 2.000000e-01 : f32
    %557 = vector.broadcast %cst_258 : f32 to vector<8x16x128xf32>
    %558 = arith.mulf %557, %554 : vector<8x16x128xf32>
    %559 = arith.select %556, %554, %558 : vector<8x16x128xi1>, vector<8x16x128xf32>
    %560 = vector.broadcast %505 : vector<1x1x128xf32> to vector<8x16x128xf32>
    %561 = arith.mulf %559, %560 : vector<8x16x128xf32>
    %cst_259 = arith.constant dense<0.000000e+00> : vector<8x16xf32>
    %562 = vector.multi_reduction <add>, %561, %cst_259 [2] : vector<8x16x128xf32> to vector<8x16xf32>
    %563 = vector.extract_strided_slice %2 {offsets = [8, 0], sizes = [8, 16], strides = [1, 1]} : vector<16x16xi1> to vector<8x16xi1>
    %cst_260 = arith.constant -1.000000e+30 : f32
    %564 = vector.broadcast %cst_260 : f32 to vector<8x16xf32>
    %565 = arith.select %563, %562, %564 : vector<8x16xi1>, vector<8x16xf32>
    %cst_261 = arith.constant dense<0xFF800000> : vector<8xf32>
    %566 = vector.multi_reduction <maximumf>, %565, %cst_261 [1] : vector<8x16xf32> to vector<8xf32>
    %567 = vector.shape_cast %566 : vector<8xf32> to vector<8x1xf32>
    %568 = vector.broadcast %567 : vector<8x1xf32> to vector<8x16xf32>
    %569 = arith.subf %565, %568 : vector<8x16xf32>
    %570 = math.exp %569 : vector<8x16xf32>
    %cst_262 = arith.constant 0.000000e+00 : f32
    %571 = vector.broadcast %cst_262 : f32 to vector<8x16xf32>
    %572 = arith.select %563, %570, %571 : vector<8x16xi1>, vector<8x16xf32>
    %cst_263 = arith.constant dense<0.000000e+00> : vector<8xf32>
    %573 = vector.multi_reduction <add>, %572, %cst_263 [1] : vector<8x16xf32> to vector<8xf32>
    %574 = vector.shape_cast %573 : vector<8xf32> to vector<8x1xf32>
    %575 = tpu.reciprocal %574 {approx = true} : vector<8x1xf32> -> vector<8x1xf32>
    %576 = vector.broadcast %575 : vector<8x1xf32> to vector<8x16xf32>
    %577 = arith.mulf %572, %576 : vector<8x16xf32>
    %cst_264 = arith.constant dense<0.000000e+00> : vector<8x128xf32>
    %578 = tpu.matmul %577, %499, %cst_264 {dimension_numbers = #tpu.dot_dimension_numbers<[1], [0], [0], [1], [0, 0, 1, 1], [], []>} : vector<8x16xf32>, vector<16x128xf32>, vector<8x128xf32> -> vector<8x128xf32>
    %579 = vector.broadcast %507 : vector<1x128xf32> to vector<8x128xf32>
    %580 = arith.addf %578, %579 : vector<8x128xf32>
    %c8_265 = arith.constant 8 : index
    %c0_266 = arith.constant 0 : index
    %581 = vector.load %arg19[%c8_265, %c0_266] : memref<16x128xf32, #tpu.memory_space<vmem>>, vector<8x128xf32>
    tpu.vector_store %arg19[%c8_265, %c0_266], %580 {strides = array<i32>} : memref<16x128xf32, #tpu.memory_space<vmem>>, vector<8x128xf32>,
    %c0_267 = arith.constant 0 : index
    %c0_268 = arith.constant 0 : index
    %582 = vector.load %arg19[%c0_267, %c0_268] : memref<16x128xf32, #tpu.memory_space<vmem>>, vector<16x128xf32>
    %cst_269 = arith.constant dense<0.000000e+00> : vector<128xf32>
    %583 = vector.multi_reduction <add>, %582, %cst_269 [0] : vector<16x128xf32> to vector<128xf32>
    %584 = vector.shape_cast %583 : vector<128xf32> to vector<1x128xf32>
    %cst_270 = arith.constant 1.600000e+01 : f32
    %585 = vector.broadcast %cst_270 : f32 to vector<1x128xf32>
    %586 = arith.divf %584, %585 : vector<1x128xf32>
    %587 = vector.broadcast %586 : vector<1x128xf32> to vector<16x128xf32>
    %588 = arith.subf %582, %587 : vector<16x128xf32>
    %589 = arith.mulf %588, %588 : vector<16x128xf32>
    %cst_271 = arith.constant dense<0.000000e+00> : vector<128xf32>
    %590 = vector.multi_reduction <add>, %589, %cst_271 [0] : vector<16x128xf32> to vector<128xf32>
    %591 = vector.shape_cast %590 : vector<128xf32> to vector<1x128xf32>
    %cst_272 = arith.constant 1.600000e+01 : f32
    %592 = vector.broadcast %cst_272 : f32 to vector<1x128xf32>
    %593 = arith.divf %591, %592 : vector<1x128xf32>
    %594 = vector.broadcast %586 : vector<1x128xf32> to vector<16x128xf32>
    %595 = arith.subf %582, %594 : vector<16x128xf32>
    %cst_273 = arith.constant 9.99999974E-6 : f32
    %596 = vector.broadcast %cst_273 : f32 to vector<1x128xf32>
    %597 = arith.addf %593, %596 : vector<1x128xf32>
    %598 = math.rsqrt %597 : vector<1x128xf32>
    %599 = vector.broadcast %598 : vector<1x128xf32> to vector<16x128xf32>
    %600 = arith.mulf %595, %599 : vector<16x128xf32>
    %c4_274 = arith.constant 4 : index
    %c0_275 = arith.constant 0 : index
    %c0_276 = arith.constant 0 : index
    %601 = vector.load %arg11[%c4_274, %c0_275, %c0_276] : memref<6x1x128xf32, #tpu.memory_space<vmem>>, vector<1x1x128xf32>
    %602 = vector.shape_cast %601 : vector<1x1x128xf32> to vector<1x128xf32>
    %603 = vector.broadcast %602 : vector<1x128xf32> to vector<16x128xf32>
    %604 = arith.mulf %600, %603 : vector<16x128xf32>
    %c4_277 = arith.constant 4 : index
    %c0_278 = arith.constant 0 : index
    %c0_279 = arith.constant 0 : index
    %605 = vector.load %arg12[%c4_277, %c0_278, %c0_279] : memref<6x1x128xf32, #tpu.memory_space<vmem>>, vector<1x1x128xf32>
    %606 = vector.shape_cast %605 : vector<1x1x128xf32> to vector<1x128xf32>
    %607 = vector.broadcast %606 : vector<1x128xf32> to vector<16x128xf32>
    %608 = arith.addf %604, %607 : vector<16x128xf32>
    %cst_280 = arith.constant 0.000000e+00 : f32
    %609 = vector.broadcast %cst_280 : f32 to vector<16x128xf32>
    %610 = arith.cmpf ogt, %608, %609 : vector<16x128xf32>
    %cst_281 = arith.constant 0.00999999977 : f32
    %611 = vector.broadcast %cst_281 : f32 to vector<16x128xf32>
    %612 = arith.mulf %611, %608 : vector<16x128xf32>
    %613 = arith.select %610, %608, %612 : vector<16x128xi1>, vector<16x128xf32>
    %c5 = arith.constant 5 : index
    %c0_282 = arith.constant 0 : index
    %c0_283 = arith.constant 0 : index
    %614 = vector.load %arg6[%c5, %c0_282, %c0_283] : memref<6x128x256xf32, #tpu.memory_space<vmem>>, vector<1x128x256xf32>
    %615 = vector.shape_cast %614 : vector<1x128x256xf32> to vector<128x256xf32>
    %cst_284 = arith.constant dense<0.000000e+00> : vector<16x256xf32>
    %616 = tpu.matmul %613, %615, %cst_284 {dimension_numbers = #tpu.dot_dimension_numbers<[1], [0], [0], [1], [0, 0, 1, 1], [], []>} : vector<16x128xf32>, vector<128x256xf32>, vector<16x256xf32> -> vector<16x256xf32>
    %c5_285 = arith.constant 5 : index
    %c0_286 = arith.constant 0 : index
    %c0_287 = arith.constant 0 : index
    %617 = vector.load %arg7[%c5_285, %c0_286, %c0_287] : memref<6x1x256xf32, #tpu.memory_space<vmem>>, vector<1x1x256xf32>
    %618 = vector.shape_cast %617 : vector<1x1x256xf32> to vector<1x256xf32>
    %619 = vector.broadcast %618 : vector<1x256xf32> to vector<16x256xf32>
    %620 = arith.addf %616, %619 : vector<16x256xf32>
    %621 = vector.extract_strided_slice %620 {offsets = [0, 0], sizes = [16, 128], strides = [1, 1]} : vector<16x256xf32> to vector<16x128xf32>
    %622 = vector.extract_strided_slice %620 {offsets = [0, 128], sizes = [16, 128], strides = [1, 1]} : vector<16x256xf32> to vector<16x128xf32>
    %c5_288 = arith.constant 5 : index
    %c0_289 = arith.constant 0 : index
    %c0_290 = arith.constant 0 : index
    %623 = vector.load %arg8[%c5_288, %c0_289, %c0_290] : memref<6x4x128xf32, #tpu.memory_space<vmem>>, vector<1x4x128xf32>
    %624 = vector.shape_cast %623 : vector<1x4x128xf32> to vector<4x128xf32>
    %c5_291 = arith.constant 5 : index
    %c0_292 = arith.constant 0 : index
    %c0_293 = arith.constant 0 : index
    %625 = vector.load %arg9[%c5_291, %c0_292, %c0_293] : memref<6x1x128xf32, #tpu.memory_space<vmem>>, vector<1x1x128xf32>
    %626 = vector.shape_cast %625 : vector<1x1x128xf32> to vector<1x128xf32>
    %627 = vector.shape_cast %626 : vector<1x128xf32> to vector<1x1x128xf32>
    %c5_294 = arith.constant 5 : index
    %c0_295 = arith.constant 0 : index
    %c0_296 = arith.constant 0 : index
    %628 = vector.load %arg10[%c5_294, %c0_295, %c0_296] : memref<6x1x128xf32, #tpu.memory_space<vmem>>, vector<1x1x128xf32>
    %629 = vector.shape_cast %628 : vector<1x1x128xf32> to vector<1x128xf32>
    %c0_297 = arith.constant 0 : index
    %c0_298 = arith.constant 0 : index
    %630 = vector.load %arg2[%c0_297, %c0_298] : memref<256x4xf32, #tpu.memory_space<vmem>>, vector<128x4xf32>
    %cst_299 = arith.constant dense<0.000000e+00> : vector<128x128xf32>
    %631 = tpu.matmul %630, %624, %cst_299 {dimension_numbers = #tpu.dot_dimension_numbers<[1], [0], [0], [1], [0, 0, 1, 1], [], []>} : vector<128x4xf32>, vector<4x128xf32>, vector<128x128xf32> -> vector<128x128xf32>
    %632 = vector.extract_strided_slice %622 {offsets = [0, 0], sizes = [8, 128], strides = [1, 1]} : vector<16x128xf32> to vector<8x128xf32>
    %633 = vector.shape_cast %632 : vector<8x128xf32> to vector<8x1x128xf32>
    %634 = vector.shape_cast %621 : vector<16x128xf32> to vector<1x16x128xf32>
    %635 = vector.broadcast %633 : vector<8x1x128xf32> to vector<8x16x128xf32>
    %636 = vector.broadcast %634 : vector<1x16x128xf32> to vector<8x16x128xf32>
    %637 = arith.addf %635, %636 : vector<8x16x128xf32>
    %638 = vector.shape_cast %631 : vector<128x128xf32> to vector<8x16x128xf32>
    %639 = arith.addf %637, %638 : vector<8x16x128xf32>
    %cst_300 = arith.constant 0.000000e+00 : f32
    %640 = vector.broadcast %cst_300 : f32 to vector<8x16x128xf32>
    %641 = arith.cmpf ogt, %639, %640 : vector<8x16x128xf32>
    %cst_301 = arith.constant 2.000000e-01 : f32
    %642 = vector.broadcast %cst_301 : f32 to vector<8x16x128xf32>
    %643 = arith.mulf %642, %639 : vector<8x16x128xf32>
    %644 = arith.select %641, %639, %643 : vector<8x16x128xi1>, vector<8x16x128xf32>
    %645 = vector.broadcast %627 : vector<1x1x128xf32> to vector<8x16x128xf32>
    %646 = arith.mulf %644, %645 : vector<8x16x128xf32>
    %cst_302 = arith.constant dense<0.000000e+00> : vector<8x16xf32>
    %647 = vector.multi_reduction <add>, %646, %cst_302 [2] : vector<8x16x128xf32> to vector<8x16xf32>
    %648 = vector.extract_strided_slice %2 {offsets = [0, 0], sizes = [8, 16], strides = [1, 1]} : vector<16x16xi1> to vector<8x16xi1>
    %cst_303 = arith.constant -1.000000e+30 : f32
    %649 = vector.broadcast %cst_303 : f32 to vector<8x16xf32>
    %650 = arith.select %648, %647, %649 : vector<8x16xi1>, vector<8x16xf32>
    %cst_304 = arith.constant dense<0xFF800000> : vector<8xf32>
    %651 = vector.multi_reduction <maximumf>, %650, %cst_304 [1] : vector<8x16xf32> to vector<8xf32>
    %652 = vector.shape_cast %651 : vector<8xf32> to vector<8x1xf32>
    %653 = vector.broadcast %652 : vector<8x1xf32> to vector<8x16xf32>
    %654 = arith.subf %650, %653 : vector<8x16xf32>
    %655 = math.exp %654 : vector<8x16xf32>
    %cst_305 = arith.constant 0.000000e+00 : f32
    %656 = vector.broadcast %cst_305 : f32 to vector<8x16xf32>
    %657 = arith.select %648, %655, %656 : vector<8x16xi1>, vector<8x16xf32>
    %cst_306 = arith.constant dense<0.000000e+00> : vector<8xf32>
    %658 = vector.multi_reduction <add>, %657, %cst_306 [1] : vector<8x16xf32> to vector<8xf32>
    %659 = vector.shape_cast %658 : vector<8xf32> to vector<8x1xf32>
    %660 = tpu.reciprocal %659 {approx = true} : vector<8x1xf32> -> vector<8x1xf32>
    %661 = vector.broadcast %660 : vector<8x1xf32> to vector<8x16xf32>
    %662 = arith.mulf %657, %661 : vector<8x16xf32>
    %cst_307 = arith.constant dense<0.000000e+00> : vector<8x128xf32>
    %663 = tpu.matmul %662, %621, %cst_307 {dimension_numbers = #tpu.dot_dimension_numbers<[1], [0], [0], [1], [0, 0, 1, 1], [], []>} : vector<8x16xf32>, vector<16x128xf32>, vector<8x128xf32> -> vector<8x128xf32>
    %664 = vector.broadcast %629 : vector<1x128xf32> to vector<8x128xf32>
    %665 = arith.addf %663, %664 : vector<8x128xf32>
    %c0_308 = arith.constant 0 : index
    %c0_309 = arith.constant 0 : index
    %666 = vector.load %arg19[%c0_308, %c0_309] : memref<16x128xf32, #tpu.memory_space<vmem>>, vector<8x128xf32>
    tpu.vector_store %arg19[%c0_308, %c0_309], %665 {strides = array<i32>} : memref<16x128xf32, #tpu.memory_space<vmem>>, vector<8x128xf32>,
    %c128_310 = arith.constant 128 : index
    %c0_311 = arith.constant 0 : index
    %667 = vector.load %arg2[%c128_310, %c0_311] : memref<256x4xf32, #tpu.memory_space<vmem>>, vector<128x4xf32>
    %cst_312 = arith.constant dense<0.000000e+00> : vector<128x128xf32>
    %668 = tpu.matmul %667, %624, %cst_312 {dimension_numbers = #tpu.dot_dimension_numbers<[1], [0], [0], [1], [0, 0, 1, 1], [], []>} : vector<128x4xf32>, vector<4x128xf32>, vector<128x128xf32> -> vector<128x128xf32>
    %669 = vector.extract_strided_slice %622 {offsets = [8, 0], sizes = [8, 128], strides = [1, 1]} : vector<16x128xf32> to vector<8x128xf32>
    %670 = vector.shape_cast %669 : vector<8x128xf32> to vector<8x1x128xf32>
    %671 = vector.shape_cast %621 : vector<16x128xf32> to vector<1x16x128xf32>
    %672 = vector.broadcast %670 : vector<8x1x128xf32> to vector<8x16x128xf32>
    %673 = vector.broadcast %671 : vector<1x16x128xf32> to vector<8x16x128xf32>
    %674 = arith.addf %672, %673 : vector<8x16x128xf32>
    %675 = vector.shape_cast %668 : vector<128x128xf32> to vector<8x16x128xf32>
    %676 = arith.addf %674, %675 : vector<8x16x128xf32>
    %cst_313 = arith.constant 0.000000e+00 : f32
    %677 = vector.broadcast %cst_313 : f32 to vector<8x16x128xf32>
    %678 = arith.cmpf ogt, %676, %677 : vector<8x16x128xf32>
    %cst_314 = arith.constant 2.000000e-01 : f32
    %679 = vector.broadcast %cst_314 : f32 to vector<8x16x128xf32>
    %680 = arith.mulf %679, %676 : vector<8x16x128xf32>
    %681 = arith.select %678, %676, %680 : vector<8x16x128xi1>, vector<8x16x128xf32>
    %682 = vector.broadcast %627 : vector<1x1x128xf32> to vector<8x16x128xf32>
    %683 = arith.mulf %681, %682 : vector<8x16x128xf32>
    %cst_315 = arith.constant dense<0.000000e+00> : vector<8x16xf32>
    %684 = vector.multi_reduction <add>, %683, %cst_315 [2] : vector<8x16x128xf32> to vector<8x16xf32>
    %685 = vector.extract_strided_slice %2 {offsets = [8, 0], sizes = [8, 16], strides = [1, 1]} : vector<16x16xi1> to vector<8x16xi1>
    %cst_316 = arith.constant -1.000000e+30 : f32
    %686 = vector.broadcast %cst_316 : f32 to vector<8x16xf32>
    %687 = arith.select %685, %684, %686 : vector<8x16xi1>, vector<8x16xf32>
    %cst_317 = arith.constant dense<0xFF800000> : vector<8xf32>
    %688 = vector.multi_reduction <maximumf>, %687, %cst_317 [1] : vector<8x16xf32> to vector<8xf32>
    %689 = vector.shape_cast %688 : vector<8xf32> to vector<8x1xf32>
    %690 = vector.broadcast %689 : vector<8x1xf32> to vector<8x16xf32>
    %691 = arith.subf %687, %690 : vector<8x16xf32>
    %692 = math.exp %691 : vector<8x16xf32>
    %cst_318 = arith.constant 0.000000e+00 : f32
    %693 = vector.broadcast %cst_318 : f32 to vector<8x16xf32>
    %694 = arith.select %685, %692, %693 : vector<8x16xi1>, vector<8x16xf32>
    %cst_319 = arith.constant dense<0.000000e+00> : vector<8xf32>
    %695 = vector.multi_reduction <add>, %694, %cst_319 [1] : vector<8x16xf32> to vector<8xf32>
    %696 = vector.shape_cast %695 : vector<8xf32> to vector<8x1xf32>
    %697 = tpu.reciprocal %696 {approx = true} : vector<8x1xf32> -> vector<8x1xf32>
    %698 = vector.broadcast %697 : vector<8x1xf32> to vector<8x16xf32>
    %699 = arith.mulf %694, %698 : vector<8x16xf32>
    %cst_320 = arith.constant dense<0.000000e+00> : vector<8x128xf32>
    %700 = tpu.matmul %699, %621, %cst_320 {dimension_numbers = #tpu.dot_dimension_numbers<[1], [0], [0], [1], [0, 0, 1, 1], [], []>} : vector<8x16xf32>, vector<16x128xf32>, vector<8x128xf32> -> vector<8x128xf32>
    %701 = vector.broadcast %629 : vector<1x128xf32> to vector<8x128xf32>
    %702 = arith.addf %700, %701 : vector<8x128xf32>
    %c8_321 = arith.constant 8 : index
    %c0_322 = arith.constant 0 : index
    %703 = vector.load %arg19[%c8_321, %c0_322] : memref<16x128xf32, #tpu.memory_space<vmem>>, vector<8x128xf32>
    tpu.vector_store %arg19[%c8_321, %c0_322], %702 {strides = array<i32>} : memref<16x128xf32, #tpu.memory_space<vmem>>, vector<8x128xf32>,
    %c0_323 = arith.constant 0 : index
    %c0_324 = arith.constant 0 : index
    %704 = vector.load %arg19[%c0_323, %c0_324] : memref<16x128xf32, #tpu.memory_space<vmem>>, vector<16x128xf32>
    %c0_325 = arith.constant 0 : index
    %c0_326 = arith.constant 0 : index
    %705 = vector.load %arg3[%c0_325, %c0_326] : memref<2x16xf32, #tpu.memory_space<vmem>>, vector<2x16xf32>
    %cst_327 = arith.constant dense<0.000000e+00> : vector<2x128xf32>
    %706 = tpu.matmul %705, %704, %cst_327 {dimension_numbers = #tpu.dot_dimension_numbers<[1], [0], [0], [1], [0, 0, 1, 1], [], []>} : vector<2x16xf32>, vector<16x128xf32>, vector<2x128xf32> -> vector<2x128xf32>
    %c0_328 = arith.constant 0 : index
    %c0_329 = arith.constant 0 : index
    %707 = vector.load %arg5[%c0_328, %c0_329] : memref<2x1xf32, #tpu.memory_space<vmem>>, vector<2x1xf32>
    %708 = vector.broadcast %707 : vector<2x1xf32> to vector<2x128xf32>
    %709 = arith.mulf %706, %708 : vector<2x128xf32>
    %c0_330 = arith.constant 0 : index
    %c0_331 = arith.constant 0 : index
    %710 = vector.load %arg4[%c0_330, %c0_331] : memref<16x2xf32, #tpu.memory_space<vmem>>, vector<16x2xf32>
    %711 = vector.extract_strided_slice %710 {offsets = [0, 0], sizes = [16, 1], strides = [1, 1]} : vector<16x2xf32> to vector<16x1xf32>
    %cst_332 = arith.constant 0.000000e+00 : f32
    %712 = vector.broadcast %cst_332 : f32 to vector<16x1xf32>
    %713 = arith.cmpf ogt, %711, %712 : vector<16x1xf32>
    %cst_333 = arith.constant -1.000000e+30 : f32
    %714 = vector.shape_cast %713 : vector<16x1xi1> to vector<16x1xi1>
    %715 = vector.broadcast %714 : vector<16x1xi1> to vector<16x128xi1>
    %716 = vector.broadcast %cst_333 : f32 to vector<16x128xf32>
    %717 = arith.select %715, %704, %716 : vector<16x128xi1>, vector<16x128xf32>
    %cst_334 = arith.constant dense<0xFF800000> : vector<128xf32>
    %718 = vector.multi_reduction <maximumf>, %717, %cst_334 [0] : vector<16x128xf32> to vector<128xf32>
    %719 = vector.shape_cast %718 : vector<128xf32> to vector<1x128xf32>
    %720 = vector.extract_strided_slice %710 {offsets = [0, 1], sizes = [16, 1], strides = [1, 1]} : vector<16x2xf32> to vector<16x1xf32>
    %cst_335 = arith.constant 0.000000e+00 : f32
    %721 = vector.broadcast %cst_335 : f32 to vector<16x1xf32>
    %722 = arith.cmpf ogt, %720, %721 : vector<16x1xf32>
    %cst_336 = arith.constant -1.000000e+30 : f32
    %723 = vector.shape_cast %722 : vector<16x1xi1> to vector<16x1xi1>
    %724 = vector.broadcast %723 : vector<16x1xi1> to vector<16x128xi1>
    %725 = vector.broadcast %cst_336 : f32 to vector<16x128xf32>
    %726 = arith.select %724, %704, %725 : vector<16x128xi1>, vector<16x128xf32>
    %cst_337 = arith.constant dense<0xFF800000> : vector<128xf32>
    %727 = vector.multi_reduction <maximumf>, %726, %cst_337 [0] : vector<16x128xf32> to vector<128xf32>
    %728 = vector.shape_cast %727 : vector<128xf32> to vector<1x128xf32>
    %729 = tpu.concatenate %719, %728 in 0 : vector<1x128xf32>, vector<1x128xf32> -> vector<2x128xf32>
    %c0_338 = arith.constant 0 : index
    %c0_339 = arith.constant 0 : index
    %730 = vector.load %arg18[%c0_338, %c0_339] : memref<2x256xf32, #tpu.memory_space<vmem>>, vector<2x128xf32>
    tpu.vector_store %arg18[%c0_338, %c0_339], %709 {strides = array<i32>} : memref<2x256xf32, #tpu.memory_space<vmem>>, vector<2x128xf32>,
    %c0_340 = arith.constant 0 : index
    %c128_341 = arith.constant 128 : index
    %731 = vector.load %arg18[%c0_340, %c128_341] : memref<2x256xf32, #tpu.memory_space<vmem>>, vector<2x128xf32>
    tpu.vector_store %arg18[%c0_340, %c128_341], %729 {strides = array<i32>} : memref<2x256xf32, #tpu.memory_space<vmem>>, vector<2x128xf32>,
    %c0_342 = arith.constant 0 : index
    %c0_343 = arith.constant 0 : index
    %732 = vector.load %arg13[%c0_342, %c0_343] : memref<256x64xf32, #tpu.memory_space<vmem>>, vector<128x64xf32>
    %cst_344 = arith.constant dense<0.000000e+00> : vector<2x64xf32>
    %733 = tpu.matmul %709, %732, %cst_344 {dimension_numbers = #tpu.dot_dimension_numbers<[1], [0], [0], [1], [0, 0, 1, 1], [], []>} : vector<2x128xf32>, vector<128x64xf32>, vector<2x64xf32> -> vector<2x64xf32>
    %c128_345 = arith.constant 128 : index
    %c0_346 = arith.constant 0 : index
    %734 = vector.load %arg13[%c128_345, %c0_346] : memref<256x64xf32, #tpu.memory_space<vmem>>, vector<128x64xf32>
    %cst_347 = arith.constant dense<0.000000e+00> : vector<2x64xf32>
    %735 = tpu.matmul %729, %734, %cst_347 {dimension_numbers = #tpu.dot_dimension_numbers<[1], [0], [0], [1], [0, 0, 1, 1], [], []>} : vector<2x128xf32>, vector<128x64xf32>, vector<2x64xf32> -> vector<2x64xf32>
    %736 = arith.addf %733, %735 : vector<2x64xf32>
    %c0_348 = arith.constant 0 : index
    %c0_349 = arith.constant 0 : index
    %737 = vector.load %arg14[%c0_348, %c0_349] : memref<1x64xf32, #tpu.memory_space<vmem>>, vector<1x64xf32>
    %738 = vector.broadcast %737 : vector<1x64xf32> to vector<2x64xf32>
    %739 = arith.addf %736, %738 : vector<2x64xf32>
    %cst_350 = arith.constant 0.000000e+00 : f32
    %740 = vector.broadcast %cst_350 : f32 to vector<2x64xf32>
    %741 = arith.cmpf ogt, %739, %740 : vector<2x64xf32>
    %cst_351 = arith.constant 0.00999999977 : f32
    %742 = vector.broadcast %cst_351 : f32 to vector<2x64xf32>
    %743 = arith.mulf %742, %739 : vector<2x64xf32>
    %744 = arith.select %741, %739, %743 : vector<2x64xi1>, vector<2x64xf32>
    %c0_352 = arith.constant 0 : index
    %c0_353 = arith.constant 0 : index
    %745 = vector.load %arg15[%c0_352, %c0_353] : memref<64x3xf32, #tpu.memory_space<vmem>>, vector<64x3xf32>
    %cst_354 = arith.constant dense<0.000000e+00> : vector<2x3xf32>
    %746 = tpu.matmul %744, %745, %cst_354 {dimension_numbers = #tpu.dot_dimension_numbers<[1], [0], [0], [1], [0, 0, 1, 1], [], []>} : vector<2x64xf32>, vector<64x3xf32>, vector<2x3xf32> -> vector<2x3xf32>
    %c0_355 = arith.constant 0 : index
    %c0_356 = arith.constant 0 : index
    %747 = vector.load %arg16[%c0_355, %c0_356] : memref<1x3xf32, #tpu.memory_space<vmem>>, vector<1x3xf32>
    %748 = vector.broadcast %747 : vector<1x3xf32> to vector<2x3xf32>
    %749 = arith.addf %746, %748 : vector<2x3xf32>
    %c0_357 = arith.constant 0 : index
    %c0_358 = arith.constant 0 : index
    %750 = vector.load %arg17[%c0_357, %c0_358] : memref<2x3xf32, #tpu.memory_space<vmem>>, vector<2x3xf32>
    tpu.vector_store %arg17[%c0_357, %c0_358], %749 {strides = array<i32>} : memref<2x3xf32, #tpu.memory_space<vmem>>, vector<2x3xf32>,
    return
  }
}

</mosaic_0001>

<llo_original>
// kernel: forward.1
$region0: #{forward.1}
  #allocation0 [shape = 'u32[]', space=smem, size = 0x4, offset = 0x4, fixed_abs, tag = 'smem constant byte address 0x4 - core index']
  #allocation1 [shape = 'u32[72,128]{1,0:T(1,128)}', space=vmem, size = 0x9000, scoped, tag = 'internal scratch']
  #allocation2 [shape = 'f32[16,128]{1,0:T(8,128)}', space=vmem, size = 0x2000, scoped, tag = 'scratch operand']
  %s0 = inlined_call_operand.vmem [shape: f32[16,128], index: 0, kind: input, shape index: {}]
  %s1 = inlined_call_operand.vmem [shape: f32[16,16], index: 1, kind: input, shape index: {}]
  %s2 = inlined_call_operand.vmem [shape: f32[256,4], index: 2, kind: input, shape index: {}]
  %s3 = inlined_call_operand.vmem [shape: f32[2,16], index: 3, kind: input, shape index: {}]
  %s4 = inlined_call_operand.vmem [shape: f32[16,2], index: 4, kind: input, shape index: {}]
  %s5 = inlined_call_operand.vmem [shape: f32[2,1], index: 5, kind: input, shape index: {}]
  %s6 = inlined_call_operand.hbm [shape: f32[6,128,256], index: 6, kind: input, shape index: {}]
  %s7 = inlined_call_operand.vmem [shape: f32[6,1,256], index: 7, kind: input, shape index: {}]
  %s8 = inlined_call_operand.vmem [shape: f32[6,4,128], index: 8, kind: input, shape index: {}]
  %s9 = inlined_call_operand.vmem [shape: f32[6,1,128], index: 9, kind: input, shape index: {}]
  %s10 = inlined_call_operand.vmem [shape: f32[6,1,128], index: 10, kind: input, shape index: {}]
  %s11 = inlined_call_operand.vmem [shape: f32[6,1,128], index: 11, kind: input, shape index: {}]
  %s12 = inlined_call_operand.vmem [shape: f32[6,1,128], index: 12, kind: input, shape index: {}]
  %s13 = inlined_call_operand.vmem [shape: f32[256,64], index: 13, kind: input, shape index: {}]
  %s14 = inlined_call_operand.vmem [shape: f32[1,64], index: 14, kind: input, shape index: {}]
  %s15 = inlined_call_operand.vmem [shape: f32[64,3], index: 15, kind: input, shape index: {}]
  %s16 = inlined_call_operand.vmem [shape: f32[1,3], index: 16, kind: input, shape index: {}]
  %s17 = inlined_call_operand.hbm [shape: f32[2,3], index: 17, kind: output, shape index: {0}]
  %s18 = inlined_call_operand.hbm [shape: f32[2,256], index: 18, kind: output, shape index: {1}]
  %19 = xla_tuple %s17, %s18
  %s20 = sld [smem:[#allocation0]]
  $region90: #{forward.1} parent=0
    _
  %s22 = ssub.s32 1, %s20
  %s23 = scalar_select 0, %s22, %s20
  $region1: #{forward.1} parent=0
    #allocation3 [shape = 'u8[786432]{0}', space=vmem, size = 0xc0000, scoped, tag = 'input window, operand 6, single buffered']
    #allocation4 [shape = 's32[1]{0}', space=sflag, size = 0x4, scoped, tag = 'scoped memory for forward.1']
    #allocation5 [shape = 's32[1]{0}', space=sflag, size = 0x4, scoped, tag = 'scoped memory for forward.1']
    #allocation6 [shape = 'u8[1024]{0}', space=vmem, size = 0x400, scoped, tag = 'output window, operand 0, single buffered']
    #allocation7 [shape = 'u8[2048]{0}', space=vmem, size = 0x800, scoped, tag = 'output window, operand 1, single buffered']
    #allocation8 [shape = 's32[1]{0}', space=sflag, size = 0x4, scoped, tag = 'scoped memory for forward.1']
    %24 = vsyncpa [#allocation4], 0
    %25 = vsyncpa [#allocation5], 0
    %26 = vsyncpa [#allocation8], 0
    // Predicated region
    $region2: #{forward.1} parent=1 // pred_check
      _
    $region3: #{forward.1} parent=1 // pred_check_branch
      %28 = sbr.rel (0) target = $region5
    $region4: #{forward.1} parent=1 // pred_region
      _
    $region5: #{forward.1} parent=1 // pred_fallthru
      _
    // Predicated region
    $region6: #{forward.1} parent=1 // pred_check
      _
    $region7: #{forward.1} parent=1 // pred_check_branch
      %30 = sbr.rel (0) target = $region9
    $region8: #{forward.1} parent=1 // pred_region
      _
    $region9: #{forward.1} parent=1 // pred_fallthru
      _
    // Predicated region
    $region10: #{forward.1} parent=1 // pred_check
      _
    $region11: #{forward.1} parent=1 // pred_check_branch
      %32 = sbr.rel (0) target = $region13
    $region12: #{forward.1} parent=1 // pred_region
      _
    $region13: #{forward.1} parent=1 // pred_fallthru
      _
    // Predicated region
    $region14: #{forward.1} parent=1 // pred_check
      _
    $region15: #{forward.1} parent=1 // pred_check_branch
      %34 = sbr.rel (0) target = $region17
    $region16: #{forward.1} parent=1 // pred_region
      _
    $region17: #{forward.1} parent=1 // pred_fallthru
      _
    // Predicated region
    $region18: #{forward.1} parent=1 // pred_check
      _
    $region19: #{forward.1} parent=1 // pred_check_branch
      %36 = sbr.rel (0) target = $region21
    $region20: #{forward.1} parent=1 // pred_region
      _
    $region21: #{forward.1} parent=1 // pred_fallthru
      _
    // Predicated region
    $region22: #{forward.1} parent=1 // pred_check
      _
    $region23: #{forward.1} parent=1 // pred_check_branch
      %38 = sbr.rel (0) target = $region25
    $region24: #{forward.1} parent=1 // pred_region
      _
    $region25: #{forward.1} parent=1 // pred_fallthru
      _
    // Predicated region
    $region26: #{forward.1} parent=1 // pred_check
      _
    $region27: #{forward.1} parent=1 // pred_check_branch
      %40 = sbr.rel (0) target = $region29
    $region28: #{forward.1} parent=1 // pred_region
      %42 = vsyncadd [#allocation4], 0
      %s43 = sshll.u32 %s6, 4
      %s44 = int_to_ptr.hbm [resolvable:$true] %s43
      %s45 = sshll.u32 [#allocation3], 4
      %s46 = int_to_ptr.vmem [resolvable:$true] %s45
      %51 = dma.hbm_to_vmem [thread:$0]  %s44, 24576, %s46, [#allocation4], 256, 256, 16
    $region29: #{forward.1} parent=1 // pred_fallthru
      _
    // Predicated region
    $region30: #{forward.1} parent=1 // pred_check
      _
    $region31: #{forward.1} parent=1 // pred_check_branch
      %53 = sbr.rel (0) target = $region33
    $region32: #{forward.1} parent=1 // pred_region
      _
    $region33: #{forward.1} parent=1 // pred_fallthru
      _
    // Predicated region
    $region34: #{forward.1} parent=1 // pred_check
      _
    $region35: #{forward.1} parent=1 // pred_check_branch
      %55 = sbr.rel (0) target = $region37
    $region36: #{forward.1} parent=1 // pred_region
      _
    $region37: #{forward.1} parent=1 // pred_fallthru
      _
    // Predicated region
    $region38: #{forward.1} parent=1 // pred_check
      _
    $region39: #{forward.1} parent=1 // pred_check_branch
      %57 = sbr.rel (0) target = $region41
    $region40: #{forward.1} parent=1 // pred_region
      _
    $region41: #{forward.1} parent=1 // pred_fallthru
      _
    // Predicated region
    $region42: #{forward.1} parent=1 // pred_check
      _
    $region43: #{forward.1} parent=1 // pred_check_branch
      %59 = sbr.rel (0) target = $region45
    $region44: #{forward.1} parent=1 // pred_region
      _
    $region45: #{forward.1} parent=1 // pred_fallthru
      _
    // Predicated region
    $region46: #{forward.1} parent=1 // pred_check
      _
    $region47: #{forward.1} parent=1 // pred_check_branch
      %61 = sbr.rel (0) target = $region49
    $region48: #{forward.1} parent=1 // pred_region
      _
    $region49: #{forward.1} parent=1 // pred_fallthru
      _
    // Predicated region
    $region50: #{forward.1} parent=1 // pred_check
      _
    $region51: #{forward.1} parent=1 // pred_check_branch
      %63 = sbr.rel (0) target = $region53
    $region52: #{forward.1} parent=1 // pred_region
      _
    $region53: #{forward.1} parent=1 // pred_fallthru
      _
    // Predicated region
    $region54: #{forward.1} parent=1 // pred_check
      _
    $region55: #{forward.1} parent=1 // pred_check_branch
      %65 = sbr.rel (0) target = $region57
    $region56: #{forward.1} parent=1 // pred_region
      _
    $region57: #{forward.1} parent=1 // pred_fallthru
      _
    // Predicated region
    $region58: #{forward.1} parent=1 // pred_check
      _
    $region59: #{forward.1} parent=1 // pred_check_branch
      %67 = sbr.rel (0) target = $region61
    $region60: #{forward.1} parent=1 // pred_region
      _
    $region61: #{forward.1} parent=1 // pred_fallthru
      _
    // Predicated region
    $region62: #{forward.1} parent=1 // pred_check
      _
    $region63: #{forward.1} parent=1 // pred_check_branch
      %69 = sbr.rel (0) target = $region65
    $region64: #{forward.1} parent=1 // pred_region
      _
    $region65: #{forward.1} parent=1 // pred_fallthru
      _
    // Predicated region
    $region66: #{forward.1} parent=1 // pred_check
      _
    $region67: #{forward.1} parent=1 // pred_check_branch
      %71 = sbr.rel (0) target = $region69
    $region68: #{forward.1} parent=1 // pred_region
      _
    $region69: #{forward.1} parent=1 // pred_fallthru
      _
    // Predicated region
    $region70: #{forward.1} parent=1 // pred_check
      _
    $region71: #{forward.1} parent=1 // pred_check_branch
      %73 = sbr.rel (0) target = $region73
    $region72: #{forward.1} parent=1 // pred_region
      %75 = dma.done [#allocation4], 24576
    $region73: #{forward.1} parent=1 // pred_fallthru
      _
    %v76 = vld [vmem:[%s1] sm:$0xff]
    %v77 = vld [vmem:[%s1 + $0x8] sm:$0xff]
    %vm78 = vcmp.gt.f32.partialorder %v76, 0.0
    %vm79 = vcmp.gt.f32.partialorder %v77, 0.0
    %v80 = vld [vmem:[%s0] sm:$0xff]
    %v81 = vld [vmem:[%s0 + $0x8] sm:$0xff]
    %v82 = vld [vmem:[#allocation3] sm:$0xff]
    %v83 = vld [vmem:[#allocation3 + $0x8] sm:$0xff]
    %v84 = vld [vmem:[#allocation3 + $0x10] sm:$0xff]
    %v85 = vld [vmem:[#allocation3 + $0x18] sm:$0xff]
    %v86 = vld [vmem:[#allocation3 + $0x20] sm:$0xff]
    %v87 = vld [vmem:[#allocation3 + $0x28] sm:$0xff]
    %v88 = vld [vmem:[#allocation3 + $0x30] sm:$0xff]
    %v89 = vld [vmem:[#allocation3 + $0x38] sm:$0xff]
    %v90 = vld [vmem:[#allocation3 + $0x40] sm:$0xff]
    %v91 = vld [vmem:[#allocation3 + $0x48] sm:$0xff]
    %v92 = vld [vmem:[#allocation3 + $0x50] sm:$0xff]
    %v93 = vld [vmem:[#allocation3 + $0x58] sm:$0xff]
    %v94 = vld [vmem:[#allocation3 + $0x60] sm:$0xff]
    %v95 = vld [vmem:[#allocation3 + $0x68] sm:$0xff]
    %v96 = vld [vmem:[#allocation3 + $0x70] sm:$0xff]
    %v97 = vld [vmem:[#allocation3 + $0x78] sm:$0xff]
    %v98 = vld [vmem:[#allocation3 + $0x80] sm:$0xff]
    %v99 = vld [vmem:[#allocation3 + $0x88] sm:$0xff]
    %v100 = vld [vmem:[#allocation3 + $0x90] sm:$0xff]
    %v101 = vld [vmem:[#allocation3 + $0x98] sm:$0xff]
    %v102 = vld [vmem:[#allocation3 + $0xa0] sm:$0xff]
    %v103 = vld [vmem:[#allocation3 + $0xa8] sm:$0xff]
    %v104 = vld [vmem:[#allocation3 + $0xb0] sm:$0xff]
    %v105 = vld [vmem:[#allocation3 + $0xb8] sm:$0xff]
    %v106 = vld [vmem:[#allocation3 + $0xc0] sm:$0xff]
    %v107 = vld [vmem:[#allocation3 + $0xc8] sm:$0xff]
    %v108 = vld [vmem:[#allocation3 + $0xd0] sm:$0xff]
    %v109 = vld [vmem:[#allocation3 + $0xd8] sm:$0xff]
    %v110 = vld [vmem:[#allocation3 + $0xe0] sm:$0xff]
    %v111 = vld [vmem:[#allocation3 + $0xe8] sm:$0xff]
    %v112 = vld [vmem:[#allocation3 + $0xf0] sm:$0xff]
    %v113 = vld [vmem:[#allocation3 + $0xf8] sm:$0xff]
    %v114 = vld [vmem:[%s7] sm:$0x3]
    %v116 = vperm.slane %v114, 0
    %v117 = vperm.slane %v114, 1
    %120 = vmatpush.msra.mxu0 %v112
    %121 = vmatpush.msra.mxu0 %v110
    %122 = vmatpush.msra.mxu0 %v108
    %123 = vmatpush.msra.mxu0 %v106
    %124 = vmatpush.msra.mxu0 %v104
    %125 = vmatpush.msra.mxu0 %v102
    %126 = vmatpush.msra.mxu0 %v100
    %127 = vmatpush.msra.mxu0 %v98
    %128 = vmatpush.msra.mxu0 %v96
    %129 = vmatpush.msra.mxu0 %v94
    %130 = vmatpush.msra.mxu0 %v92
    %131 = vmatpush.msra.mxu0 %v90
    %132 = vmatpush.msra.mxu0 %v88
    %133 = vmatpush.msra.mxu0 %v86
    %134 = vmatpush.msra.mxu0 %v84
    %135 = vmatpush.msra.mxu0 %v82
    %136 = vmatmul.f32.gmra.mxu0 %v80
    %v137 = vpop.f32.mrf.mxu0
    %v138 = vadd.f32 %v116, %v137
    %139 = vmatmul.f32.gmra.mxu0 %v81
    %v140 = vpop.f32.mrf.mxu0
    %v141 = vadd.f32 %v116, %v140
    %142 = vdwg.mxu0
    %143 = vmatpush.msra.mxu0 %v113
    %144 = vmatpush.msra.mxu0 %v111
    %145 = vmatpush.msra.mxu0 %v109
    %146 = vmatpush.msra.mxu0 %v107
    %147 = vmatpush.msra.mxu0 %v105
    %148 = vmatpush.msra.mxu0 %v103
    %149 = vmatpush.msra.mxu0 %v101
    %150 = vmatpush.msra.mxu0 %v99
    %151 = vmatpush.msra.mxu0 %v97
    %152 = vmatpush.msra.mxu0 %v95
    %153 = vmatpush.msra.mxu0 %v93
    %154 = vmatpush.msra.mxu0 %v91
    %155 = vmatpush.msra.mxu0 %v89
    %156 = vmatpush.msra.mxu0 %v87
    %157 = vmatpush.msra.mxu0 %v85
    %158 = vmatpush.msra.mxu0 %v83
    %159 = vmatmul.f32.gmra.mxu0 %v80
    %v160 = vpop.f32.mrf.mxu0
    %v161 = vadd.f32 %v117, %v160
    %162 = vmatmul.f32.gmra.mxu0 %v81
    %v163 = vpop.f32.mrf.mxu0
    %v164 = vadd.f32 %v117, %v163
    %165 = vdwg.mxu0
    %v166 = vld [vmem:[%s8] sm:$0xf]
    %v167 = vld [vmem:[%s9] sm:$0x1]
    %v168 = vld [vmem:[%s10] sm:$0x1]
    %v169 = vld [vmem:[%s2] sm:$0xff]
    %v170 = vld [vmem:[%s2 + $0x8] sm:$0xff]
    %v171 = vld [vmem:[%s2 + $0x10] sm:$0xff]
    %v172 = vld [vmem:[%s2 + $0x18] sm:$0xff]
    %v173 = vld [vmem:[%s2 + $0x20] sm:$0xff]
    %v174 = vld [vmem:[%s2 + $0x28] sm:$0xff]
    %v175 = vld [vmem:[%s2 + $0x30] sm:$0xff]
    %v176 = vld [vmem:[%s2 + $0x38] sm:$0xff]
    %v177 = vld [vmem:[%s2 + $0x40] sm:$0xff]
    %v178 = vld [vmem:[%s2 + $0x48] sm:$0xff]
    %v179 = vld [vmem:[%s2 + $0x50] sm:$0xff]
    %v180 = vld [vmem:[%s2 + $0x58] sm:$0xff]
    %v181 = vld [vmem:[%s2 + $0x60] sm:$0xff]
    %v182 = vld [vmem:[%s2 + $0x68] sm:$0xff]
    %v183 = vld [vmem:[%s2 + $0x70] sm:$0xff]
    %v184 = vld [vmem:[%s2 + $0x78] sm:$0xff]
    %vm185 = vcmask 31744
    %v187 = vsel %vm185, %v169, 0
    %v190 = vsel %vm185, %v170, 0
    %v193 = vsel %vm185, %v171, 0
    %v196 = vsel %vm185, %v172, 0
    %v199 = vsel %vm185, %v173, 0
    %v202 = vsel %vm185, %v174, 0
    %v205 = vsel %vm185, %v175, 0
    %v208 = vsel %vm185, %v176, 0
    %v211 = vsel %vm185, %v177, 0
    %v214 = vsel %vm185, %v178, 0
    %v217 = vsel %vm185, %v179, 0
    %v220 = vsel %vm185, %v180, 0
    %v223 = vsel %vm185, %v181, 0
    %v226 = vsel %vm185, %v182, 0
    %v229 = vsel %vm185, %v183, 0
    %v232 = vsel %vm185, %v184, 0
    %vm234 = vcmask 1043456
    %v236 = vsel %vm234, %v166, 0
    %238 = vmatpush.msra.mxu0 0.0
    %239 = vmatpush.msra.mxu0 0.0
    %240 = vmatpush.msra.mxu0 0.0
    %241 = vmatpush.msra.mxu0 0.0
    %242 = vmatpush.msra.mxu0 0.0
    %243 = vmatpush.msra.mxu0 0.0
    %244 = vmatpush.msra.mxu0 0.0
    %245 = vmatpush.msra.mxu0 0.0
    %246 = vmatpush.msra.mxu0 0.0
    %247 = vmatpush.msra.mxu0 0.0
    %248 = vmatpush.msra.mxu0 0.0
    %249 = vmatpush.msra.mxu0 0.0
    %250 = vmatpush.msra.mxu0 0.0
    %251 = vmatpush.msra.mxu0 0.0
    %252 = vmatpush.msra.mxu0 0.0
    %253 = vmatpush.msra.mxu0 %v236
    %254 = vmatmul.f32.gmra.mxu0 %v187
    %v255 = vpop.f32.mrf.mxu0
    %v256 = vadd.f32 0.0, %v255
    %257 = vmatmul.f32.gmra.mxu0 %v190
    %v258 = vpop.f32.mrf.mxu0
    %v259 = vadd.f32 0.0, %v258
    %260 = vmatmul.f32.gmra.mxu0 %v193
    %v261 = vpop.f32.mrf.mxu0
    %v262 = vadd.f32 0.0, %v261
    %263 = vmatmul.f32.gmra.mxu0 %v196
    %v264 = vpop.f32.mrf.mxu0
    %v265 = vadd.f32 0.0, %v264
    %266 = vmatmul.f32.gmra.mxu0 %v199
    %v267 = vpop.f32.mrf.mxu0
    %v268 = vadd.f32 0.0, %v267
    %269 = vmatmul.f32.gmra.mxu0 %v202
    %v270 = vpop.f32.mrf.mxu0
    %v271 = vadd.f32 0.0, %v270
    %272 = vmatmul.f32.gmra.mxu0 %v205
    %v273 = vpop.f32.mrf.mxu0
    %v274 = vadd.f32 0.0, %v273
    %275 = vmatmul.f32.gmra.mxu0 %v208
    %v276 = vpop.f32.mrf.mxu0
    %v277 = vadd.f32 0.0, %v276
    %278 = vmatmul.f32.gmra.mxu0 %v211
    %v279 = vpop.f32.mrf.mxu0
    %v280 = vadd.f32 0.0, %v279
    %281 = vmatmul.f32.gmra.mxu0 %v214
    %v282 = vpop.f32.mrf.mxu0
    %v283 = vadd.f32 0.0, %v282
    %284 = vmatmul.f32.gmra.mxu0 %v217
    %v285 = vpop.f32.mrf.mxu0
    %v286 = vadd.f32 0.0, %v285
    %287 = vmatmul.f32.gmra.mxu0 %v220
    %v288 = vpop.f32.mrf.mxu0
    %v289 = vadd.f32 0.0, %v288
    %290 = vmatmul.f32.gmra.mxu0 %v223
    %v291 = vpop.f32.mrf.mxu0
    %v292 = vadd.f32 0.0, %v291
    %293 = vmatmul.f32.gmra.mxu0 %v226
    %v294 = vpop.f32.mrf.mxu0
    %v295 = vadd.f32 0.0, %v294
    %296 = vmatmul.f32.gmra.mxu0 %v229
    %v297 = vpop.f32.mrf.mxu0
    %v298 = vadd.f32 0.0, %v297
    %299 = vmatmul.f32.gmra.mxu0 %v232
    %v300 = vpop.f32.mrf.mxu0
    %v301 = vadd.f32 0.0, %v300
    %302 = vdwg.mxu0
    %v304 = vrot.slane %v161, 1
    %v305 = vrot.slane %v161, 2
    %v306 = vrot.slane %v161, 3
    %v307 = vrot.slane %v161, 4
    %v308 = vrot.slane %v161, 5
    %v309 = vrot.slane %v161, 6
    %v310 = vrot.slane %v161, 7
    %v311 = vperm.slane %v161, 0
    %v312 = vperm.slane %v304, 0
    %v313 = vperm.slane %v305, 0
    %v314 = vperm.slane %v306, 0
    %v315 = vperm.slane %v307, 0
    %v316 = vperm.slane %v308, 0
    %v317 = vperm.slane %v309, 0
    %v318 = vperm.slane %v310, 0
    %v327 = vadd.f32 %v311, %v138
    %v328 = vadd.f32 %v311, %v141
    %v329 = vadd.f32 %v312, %v138
    %v330 = vadd.f32 %v312, %v141
    %v331 = vadd.f32 %v313, %v138
    %v332 = vadd.f32 %v313, %v141
    %v333 = vadd.f32 %v314, %v138
    %v334 = vadd.f32 %v314, %v141
    %v335 = vadd.f32 %v315, %v138
    %v336 = vadd.f32 %v315, %v141
    %v337 = vadd.f32 %v316, %v138
    %v338 = vadd.f32 %v316, %v141
    %v339 = vadd.f32 %v317, %v138
    %v340 = vadd.f32 %v317, %v141
    %v341 = vadd.f32 %v318, %v138
    %v342 = vadd.f32 %v318, %v141
    %v343 = vadd.f32 %v327, %v256
    %v344 = vadd.f32 %v328, %v259
    %v345 = vadd.f32 %v329, %v262
    %v346 = vadd.f32 %v330, %v265
    %v347 = vadd.f32 %v331, %v268
    %v348 = vadd.f32 %v332, %v271
    %v349 = vadd.f32 %v333, %v274
    %v350 = vadd.f32 %v334, %v277
    %v351 = vadd.f32 %v335, %v280
    %v352 = vadd.f32 %v336, %v283
    %v353 = vadd.f32 %v337, %v286
    %v354 = vadd.f32 %v338, %v289
    %v355 = vadd.f32 %v339, %v292
    %v356 = vadd.f32 %v340, %v295
    %v357 = vadd.f32 %v341, %v298
    %v358 = vadd.f32 %v342, %v301
    %vm359 = vcmp.gt.f32.partialorder %v343, 0.0
    %vm360 = vcmp.gt.f32.partialorder %v344, 0.0
    %vm361 = vcmp.gt.f32.partialorder %v345, 0.0
    %vm362 = vcmp.gt.f32.partialorder %v346, 0.0
    %vm363 = vcmp.gt.f32.partialorder %v347, 0.0
    %vm364 = vcmp.gt.f32.partialorder %v348, 0.0
    %vm365 = vcmp.gt.f32.partialorder %v349, 0.0
    %vm366 = vcmp.gt.f32.partialorder %v350, 0.0
    %vm367 = vcmp.gt.f32.partialorder %v351, 0.0
    %vm368 = vcmp.gt.f32.partialorder %v352, 0.0
    %vm369 = vcmp.gt.f32.partialorder %v353, 0.0
    %vm370 = vcmp.gt.f32.partialorder %v354, 0.0
    %vm371 = vcmp.gt.f32.partialorder %v355, 0.0
    %vm372 = vcmp.gt.f32.partialorder %v356, 0.0
    %vm373 = vcmp.gt.f32.partialorder %v357, 0.0
    %vm374 = vcmp.gt.f32.partialorder %v358, 0.0
    %v375 = vmul.f32 %v343, 0.2
    %v376 = vmul.f32 %v344, 0.2
    %v377 = vmul.f32 %v345, 0.2
    %v378 = vmul.f32 %v346, 0.2
    %v379 = vmul.f32 %v347, 0.2
    %v380 = vmul.f32 %v348, 0.2
    %v381 = vmul.f32 %v349, 0.2
    %v382 = vmul.f32 %v350, 0.2
    %v383 = vmul.f32 %v351, 0.2
    %v384 = vmul.f32 %v352, 0.2
    %v385 = vmul.f32 %v353, 0.2
    %v386 = vmul.f32 %v354, 0.2
    %v387 = vmul.f32 %v355, 0.2
    %v388 = vmul.f32 %v356, 0.2
    %v389 = vmul.f32 %v357, 0.2
    %v390 = vmul.f32 %v358, 0.2
    %v391 = vsel %vm359, %v343, %v375
    %v392 = vsel %vm360, %v344, %v376
    %v393 = vsel %vm361, %v345, %v377
    %v394 = vsel %vm362, %v346, %v378
    %v395 = vsel %vm363, %v347, %v379
    %v396 = vsel %vm364, %v348, %v380
    %v397 = vsel %vm365, %v349, %v381
    %v398 = vsel %vm366, %v350, %v382
    %v399 = vsel %vm367, %v351, %v383
    %v400 = vsel %vm368, %v352, %v384
    %v401 = vsel %vm369, %v353, %v385
    %v402 = vsel %vm370, %v354, %v386
    %v403 = vsel %vm371, %v355, %v387
    %v404 = vsel %vm372, %v356, %v388
    %v405 = vsel %vm373, %v357, %v389
    %v406 = vsel %vm374, %v358, %v390
    %v408 = vperm.slane %v167, 0
    %v410 = vmul.f32 %v391, %v408
    %v411 = vmul.f32 %v392, %v408
    %v412 = vmul.f32 %v393, %v408
    %v413 = vmul.f32 %v394, %v408
    %v414 = vmul.f32 %v395, %v408
    %v415 = vmul.f32 %v396, %v408
    %v416 = vmul.f32 %v397, %v408
    %v417 = vmul.f32 %v398, %v408
    %v418 = vmul.f32 %v399, %v408
    %v419 = vmul.f32 %v400, %v408
    %v420 = vmul.f32 %v401, %v408
    %v421 = vmul.f32 %v402, %v408
    %v422 = vmul.f32 %v403, %v408
    %v423 = vmul.f32 %v404, %v408
    %v424 = vmul.f32 %v405, %v408
    %v425 = vmul.f32 %v406, %v408
    %426 = vadd.xlane.f32.xlu0 %v410
    %v427 = vpop.xlane.xlu0 %426
    %428 = vadd.xlane.f32.xlu0 %v411
    %v429 = vpop.xlane.xlu0 %428
    %430 = vadd.xlane.f32.xlu0 %v412
    %v431 = vpop.xlane.xlu0 %430
    %432 = vadd.xlane.f32.xlu0 %v413
    %v433 = vpop.xlane.xlu0 %432
    %434 = vadd.xlane.f32.xlu0 %v414
    %v435 = vpop.xlane.xlu0 %434
    %436 = vadd.xlane.f32.xlu0 %v415
    %v437 = vpop.xlane.xlu0 %436
    %438 = vadd.xlane.f32.xlu0 %v416
    %v439 = vpop.xlane.xlu0 %438
    %440 = vadd.xlane.f32.xlu0 %v417
    %v441 = vpop.xlane.xlu0 %440
    %442 = vadd.xlane.f32.xlu0 %v418
    %v443 = vpop.xlane.xlu0 %442
    %444 = vadd.xlane.f32.xlu0 %v419
    %v445 = vpop.xlane.xlu0 %444
    %446 = vadd.xlane.f32.xlu0 %v420
    %v447 = vpop.xlane.xlu0 %446
    %448 = vadd.xlane.f32.xlu0 %v421
    %v449 = vpop.xlane.xlu0 %448
    %450 = vadd.xlane.f32.xlu0 %v422
    %v451 = vpop.xlane.xlu0 %450
    %452 = vadd.xlane.f32.xlu0 %v423
    %v453 = vpop.xlane.xlu0 %452
    %454 = vadd.xlane.f32.xlu0 %v424
    %v455 = vpop.xlane.xlu0 %454
    %456 = vadd.xlane.f32.xlu0 %v425
    %v457 = vpop.xlane.xlu0 %456
    %v474 = vlaneseq
    %v475 = vand.u32 %v474, 127
    %v476 = vperm.slane %v427, %v475
    %v477 = vadd.s32 %v475, 4294967288
    %v478 = vperm.slane %v429, %v477
    %vm479 = vcmask 130112
    %v480 = vsel %vm479, %v478, %v476
    %v481 = vperm.slane %v431, %v475
    %v482 = vperm.slane %v433, %v477
    %v483 = vsel %vm479, %v482, %v481
    %v484 = vperm.slane %v435, %v475
    %v485 = vperm.slane %v437, %v477
    %v486 = vsel %vm479, %v485, %v484
    %v487 = vperm.slane %v439, %v475
    %v488 = vperm.slane %v441, %v477
    %v489 = vsel %vm479, %v488, %v487
    %v490 = vperm.slane %v443, %v475
    %v491 = vperm.slane %v445, %v477
    %v492 = vsel %vm479, %v491, %v490
    %v493 = vperm.slane %v447, %v475
    %v494 = vperm.slane %v449, %v477
    %v495 = vsel %vm479, %v494, %v493
    %v496 = vperm.slane %v451, %v475
    %v497 = vperm.slane %v453, %v477
    %v498 = vsel %vm479, %v497, %v496
    %v499 = vperm.slane %v455, %v475
    %v500 = vperm.slane %v457, %v477
    %v501 = vsel %vm479, %v500, %v499
    %vm502 = vcmask 1041409
    %v503 = vsel %vm502, %v483, %v480
    %vm504 = vcmask 1042434
    %v505 = vsel %vm504, %v486, %v503
    %vm506 = vcmask 1043459
    %v507 = vsel %vm506, %v489, %v505
    %vm508 = vcmask 1044484
    %v509 = vsel %vm508, %v492, %v507
    %vm510 = vcmask 1045509
    %v511 = vsel %vm510, %v495, %v509
    %vm512 = vcmask 1046534
    %v513 = vsel %vm512, %v498, %v511
    %vm514 = vcmask 1047559
    %v515 = vsel %vm514, %v501, %v513
    %v517 = vsel %vm78, %v515, -1e+30
    %vm518 = vcmask 130048
    %v519 = vsel %vm518, %v517, -inf
    %520 = vmax.xlane.f32.xlu0 %v519
    %v521 = vpop.xlane.xlu0 %520
    %v522 = vsub.f32 %v517, %v521
    %v523 = vmul.f32 %v522, 1.442695
    %v524 = vpow.pop %v523
    %v525 = vsel %vm78, %v524, 0.0
    %v526 = vsel %vm518, %v525, 0.0
    %527 = vadd.xlane.f32.xlu0 %v526
    %v528 = vpop.xlane.xlu0 %527
    %v529 = vrcp.pop %v528
    %v530 = vmul.f32 %v525, %v529
    %v532 = vperm.slane %v168, 0
    %v535 = vsel %vm518, %v530, 0
    %537 = vmatpush.msra.mxu0 0.0
    %538 = vmatpush.msra.mxu0 0.0
    %539 = vmatpush.msra.mxu0 0.0
    %540 = vmatpush.msra.mxu0 0.0
    %541 = vmatpush.msra.mxu0 0.0
    %542 = vmatpush.msra.mxu0 0.0
    %543 = vmatpush.msra.mxu0 0.0
    %544 = vmatpush.msra.mxu0 0.0
    %545 = vmatpush.msra.mxu0 0.0
    %546 = vmatpush.msra.mxu0 0.0
    %547 = vmatpush.msra.mxu0 0.0
    %548 = vmatpush.msra.mxu0 0.0
    %549 = vmatpush.msra.mxu0 0.0
    %550 = vmatpush.msra.mxu0 0.0
    %551 = vmatpush.msra.mxu0 %v141
    %552 = vmatpush.msra.mxu0 %v138
    %553 = vmatmul.f32.gmra.mxu0 %v535
    %v554 = vpop.f32.mrf.mxu0
    %v555 = vadd.f32 %v532, %v554
    %556 = vdwg.mxu0
    %557 = vst [vmem:[#allocation2] sm:$0xff] %v555
    %v558 = vld [vmem:[%s2 + $0x80] sm:$0xff]
    %v559 = vld [vmem:[%s2 + $0x88] sm:$0xff]
    %v560 = vld [vmem:[%s2 + $0x90] sm:$0xff]
    %v561 = vld [vmem:[%s2 + $0x98] sm:$0xff]
    %v562 = vld [vmem:[%s2 + $0xa0] sm:$0xff]
    %v563 = vld [vmem:[%s2 + $0xa8] sm:$0xff]
    %v564 = vld [vmem:[%s2 + $0xb0] sm:$0xff]
    %v565 = vld [vmem:[%s2 + $0xb8] sm:$0xff]
    %v566 = vld [vmem:[%s2 + $0xc0] sm:$0xff]
    %v567 = vld [vmem:[%s2 + $0xc8] sm:$0xff]
    %v568 = vld [vmem:[%s2 + $0xd0] sm:$0xff]
    %v569 = vld [vmem:[%s2 + $0xd8] sm:$0xff]
    %v570 = vld [vmem:[%s2 + $0xe0] sm:$0xff]
    %v571 = vld [vmem:[%s2 + $0xe8] sm:$0xff]
    %v572 = vld [vmem:[%s2 + $0xf0] sm:$0xff]
    %v573 = vld [vmem:[%s2 + $0xf8] sm:$0xff]
    %v575 = vsel %vm185, %v558, 0
    %v578 = vsel %vm185, %v559, 0
    %v581 = vsel %vm185, %v560, 0
    %v584 = vsel %vm185, %v561, 0
    %v587 = vsel %vm185, %v562, 0
    %v590 = vsel %vm185, %v563, 0
    %v593 = vsel %vm185, %v564, 0
    %v596 = vsel %vm185, %v565, 0
    %v599 = vsel %vm185, %v566, 0
    %v602 = vsel %vm185, %v567, 0
    %v605 = vsel %vm185, %v568, 0
    %v608 = vsel %vm185, %v569, 0
    %v611 = vsel %vm185, %v570, 0
    %v614 = vsel %vm185, %v571, 0
    %v617 = vsel %vm185, %v572, 0
    %v620 = vsel %vm185, %v573, 0
    %622 = vmatpush.msra.mxu0 0.0
    %623 = vmatpush.msra.mxu0 0.0
    %624 = vmatpush.msra.mxu0 0.0
    %625 = vmatpush.msra.mxu0 0.0
    %626 = vmatpush.msra.mxu0 0.0
    %627 = vmatpush.msra.mxu0 0.0
    %628 = vmatpush.msra.mxu0 0.0
    %629 = vmatpush.msra.mxu0 0.0
    %630 = vmatpush.msra.mxu0 0.0
    %631 = vmatpush.msra.mxu0 0.0
    %632 = vmatpush.msra.mxu0 0.0
    %633 = vmatpush.msra.mxu0 0.0
    %634 = vmatpush.msra.mxu0 0.0
    %635 = vmatpush.msra.mxu0 0.0
    %636 = vmatpush.msra.mxu0 0.0
    %637 = vmatpush.msra.mxu0 %v236
    %638 = vmatmul.f32.gmra.mxu0 %v575
    %v639 = vpop.f32.mrf.mxu0
    %v640 = vadd.f32 0.0, %v639
    %641 = vmatmul.f32.gmra.mxu0 %v578
    %v642 = vpop.f32.mrf.mxu0
    %v643 = vadd.f32 0.0, %v642
    %644 = vmatmul.f32.gmra.mxu0 %v581
    %v645 = vpop.f32.mrf.mxu0
    %v646 = vadd.f32 0.0, %v645
    %647 = vmatmul.f32.gmra.mxu0 %v584
    %v648 = vpop.f32.mrf.mxu0
    %v649 = vadd.f32 0.0, %v648
    %650 = vmatmul.f32.gmra.mxu0 %v587
    %v651 = vpop.f32.mrf.mxu0
    %v652 = vadd.f32 0.0, %v651
    %653 = vmatmul.f32.gmra.mxu0 %v590
    %v654 = vpop.f32.mrf.mxu0
    %v655 = vadd.f32 0.0, %v654
    %656 = vmatmul.f32.gmra.mxu0 %v593
    %v657 = vpop.f32.mrf.mxu0
    %v658 = vadd.f32 0.0, %v657
    %659 = vmatmul.f32.gmra.mxu0 %v596
    %v660 = vpop.f32.mrf.mxu0
    %v661 = vadd.f32 0.0, %v660
    %662 = vmatmul.f32.gmra.mxu0 %v599
    %v663 = vpop.f32.mrf.mxu0
    %v664 = vadd.f32 0.0, %v663
    %665 = vmatmul.f32.gmra.mxu0 %v602
    %v666 = vpop.f32.mrf.mxu0
    %v667 = vadd.f32 0.0, %v666
    %668 = vmatmul.f32.gmra.mxu0 %v605
    %v669 = vpop.f32.mrf.mxu0
    %v670 = vadd.f32 0.0, %v669
    %671 = vmatmul.f32.gmra.mxu0 %v608
    %v672 = vpop.f32.mrf.mxu0
    %v673 = vadd.f32 0.0, %v672
    %674 = vmatmul.f32.gmra.mxu0 %v611
    %v675 = vpop.f32.mrf.mxu0
    %v676 = vadd.f32 0.0, %v675
    %677 = vmatmul.f32.gmra.mxu0 %v614
    %v678 = vpop.f32.mrf.mxu0
    %v679 = vadd.f32 0.0, %v678
    %680 = vmatmul.f32.gmra.mxu0 %v617
    %v681 = vpop.f32.mrf.mxu0
    %v682 = vadd.f32 0.0, %v681
    %683 = vmatmul.f32.gmra.mxu0 %v620
    %v684 = vpop.f32.mrf.mxu0
    %v685 = vadd.f32 0.0, %v684
    %686 = vdwg.mxu0
    %v688 = vrot.slane %v164, 1
    %v689 = vrot.slane %v164, 2
    %v690 = vrot.slane %v164, 3
    %v691 = vrot.slane %v164, 4
    %v692 = vrot.slane %v164, 5
    %v693 = vrot.slane %v164, 6
    %v694 = vrot.slane %v164, 7
    %v695 = vperm.slane %v164, 0
    %v696 = vperm.slane %v688, 0
    %v697 = vperm.slane %v689, 0
    %v698 = vperm.slane %v690, 0
    %v699 = vperm.slane %v691, 0
    %v700 = vperm.slane %v692, 0
    %v701 = vperm.slane %v693, 0
    %v702 = vperm.slane %v694, 0
    %v711 = vadd.f32 %v695, %v138
    %v712 = vadd.f32 %v695, %v141
    %v713 = vadd.f32 %v696, %v138
    %v714 = vadd.f32 %v696, %v141
    %v715 = vadd.f32 %v697, %v138
    %v716 = vadd.f32 %v697, %v141
    %v717 = vadd.f32 %v698, %v138
    %v718 = vadd.f32 %v698, %v141
    %v719 = vadd.f32 %v699, %v138
    %v720 = vadd.f32 %v699, %v141
    %v721 = vadd.f32 %v700, %v138
    %v722 = vadd.f32 %v700, %v141
    %v723 = vadd.f32 %v701, %v138
    %v724 = vadd.f32 %v701, %v141
    %v725 = vadd.f32 %v702, %v138
    %v726 = vadd.f32 %v702, %v141
    %v727 = vadd.f32 %v711, %v640
    %v728 = vadd.f32 %v712, %v643
    %v729 = vadd.f32 %v713, %v646
    %v730 = vadd.f32 %v714, %v649
    %v731 = vadd.f32 %v715, %v652
    %v732 = vadd.f32 %v716, %v655
    %v733 = vadd.f32 %v717, %v658
    %v734 = vadd.f32 %v718, %v661
    %v735 = vadd.f32 %v719, %v664
    %v736 = vadd.f32 %v720, %v667
    %v737 = vadd.f32 %v721, %v670
    %v738 = vadd.f32 %v722, %v673
    %v739 = vadd.f32 %v723, %v676
    %v740 = vadd.f32 %v724, %v679
    %v741 = vadd.f32 %v725, %v682
    %v742 = vadd.f32 %v726, %v685
    %vm743 = vcmp.gt.f32.partialorder %v727, 0.0
    %vm744 = vcmp.gt.f32.partialorder %v728, 0.0
    %vm745 = vcmp.gt.f32.partialorder %v729, 0.0
    %vm746 = vcmp.gt.f32.partialorder %v730, 0.0
    %vm747 = vcmp.gt.f32.partialorder %v731, 0.0
    %vm748 = vcmp.gt.f32.partialorder %v732, 0.0
    %vm749 = vcmp.gt.f32.partialorder %v733, 0.0
    %vm750 = vcmp.gt.f32.partialorder %v734, 0.0
    %vm751 = vcmp.gt.f32.partialorder %v735, 0.0
    %vm752 = vcmp.gt.f32.partialorder %v736, 0.0
    %vm753 = vcmp.gt.f32.partialorder %v737, 0.0
    %vm754 = vcmp.gt.f32.partialorder %v738, 0.0
    %vm755 = vcmp.gt.f32.partialorder %v739, 0.0
    %vm756 = vcmp.gt.f32.partialorder %v740, 0.0
    %vm757 = vcmp.gt.f32.partialorder %v741, 0.0
    %vm758 = vcmp.gt.f32.partialorder %v742, 0.0
    %v759 = vmul.f32 %v727, 0.2
    %v760 = vmul.f32 %v728, 0.2
    %v761 = vmul.f32 %v729, 0.2
    %v762 = vmul.f32 %v730, 0.2
    %v763 = vmul.f32 %v731, 0.2
    %v764 = vmul.f32 %v732, 0.2
    %v765 = vmul.f32 %v733, 0.2
    %v766 = vmul.f32 %v734, 0.2
    %v767 = vmul.f32 %v735, 0.2
    %v768 = vmul.f32 %v736, 0.2
    %v769 = vmul.f32 %v737, 0.2
    %v770 = vmul.f32 %v738, 0.2
    %v771 = vmul.f32 %v739, 0.2
    %v772 = vmul.f32 %v740, 0.2
    %v773 = vmul.f32 %v741, 0.2
    %v774 = vmul.f32 %v742, 0.2
    %v775 = vsel %vm743, %v727, %v759
    %v776 = vsel %vm744, %v728, %v760
    %v777 = vsel %vm745, %v729, %v761
    %v778 = vsel %vm746, %v730, %v762
    %v779 = vsel %vm747, %v731, %v763
    %v780 = vsel %vm748, %v732, %v764
    %v781 = vsel %vm749, %v733, %v765
    %v782 = vsel %vm750, %v734, %v766
    %v783 = vsel %vm751, %v735, %v767
    %v784 = vsel %vm752, %v736, %v768
    %v785 = vsel %vm753, %v737, %v769
    %v786 = vsel %vm754, %v738, %v770
    %v787 = vsel %vm755, %v739, %v771
    %v788 = vsel %vm756, %v740, %v772
    %v789 = vsel %vm757, %v741, %v773
    %v790 = vsel %vm758, %v742, %v774
    %v791 = vmul.f32 %v775, %v408
    %v792 = vmul.f32 %v776, %v408
    %v793 = vmul.f32 %v777, %v408
    %v794 = vmul.f32 %v778, %v408
    %v795 = vmul.f32 %v779, %v408
    %v796 = vmul.f32 %v780, %v408
    %v797 = vmul.f32 %v781, %v408
    %v798 = vmul.f32 %v782, %v408
    %v799 = vmul.f32 %v783, %v408
    %v800 = vmul.f32 %v784, %v408
    %v801 = vmul.f32 %v785, %v408
    %v802 = vmul.f32 %v786, %v408
    %v803 = vmul.f32 %v787, %v408
    %v804 = vmul.f32 %v788, %v408
    %v805 = vmul.f32 %v789, %v408
    %v806 = vmul.f32 %v790, %v408
    %807 = vadd.xlane.f32.xlu0 %v791
    %v808 = vpop.xlane.xlu0 %807
    %809 = vadd.xlane.f32.xlu0 %v792
    %v810 = vpop.xlane.xlu0 %809
    %811 = vadd.xlane.f32.xlu0 %v793
    %v812 = vpop.xlane.xlu0 %811
    %813 = vadd.xlane.f32.xlu0 %v794
    %v814 = vpop.xlane.xlu0 %813
    %815 = vadd.xlane.f32.xlu0 %v795
    %v816 = vpop.xlane.xlu0 %815
    %817 = vadd.xlane.f32.xlu0 %v796
    %v818 = vpop.xlane.xlu0 %817
    %819 = vadd.xlane.f32.xlu0 %v797
    %v820 = vpop.xlane.xlu0 %819
    %821 = vadd.xlane.f32.xlu0 %v798
    %v822 = vpop.xlane.xlu0 %821
    %823 = vadd.xlane.f32.xlu0 %v799
    %v824 = vpop.xlane.xlu0 %823
    %825 = vadd.xlane.f32.xlu0 %v800
    %v826 = vpop.xlane.xlu0 %825
    %827 = vadd.xlane.f32.xlu0 %v801
    %v828 = vpop.xlane.xlu0 %827
    %829 = vadd.xlane.f32.xlu0 %v802
    %v830 = vpop.xlane.xlu0 %829
    %831 = vadd.xlane.f32.xlu0 %v803
    %v832 = vpop.xlane.xlu0 %831
    %833 = vadd.xlane.f32.xlu0 %v804
    %v834 = vpop.xlane.xlu0 %833
    %835 = vadd.xlane.f32.xlu0 %v805
    %v836 = vpop.xlane.xlu0 %835
    %837 = vadd.xlane.f32.xlu0 %v806
    %v838 = vpop.xlane.xlu0 %837
    %v855 = vperm.slane %v808, %v475
    %v856 = vperm.slane %v810, %v477
    %v857 = vsel %vm479, %v856, %v855
    %v858 = vperm.slane %v812, %v475
    %v859 = vperm.slane %v814, %v477
    %v860 = vsel %vm479, %v859, %v858
    %v861 = vperm.slane %v816, %v475
    %v862 = vperm.slane %v818, %v477
    %v863 = vsel %vm479, %v862, %v861
    %v864 = vperm.slane %v820, %v475
    %v865 = vperm.slane %v822, %v477
    %v866 = vsel %vm479, %v865, %v864
    %v867 = vperm.slane %v824, %v475
    %v868 = vperm.slane %v826, %v477
    %v869 = vsel %vm479, %v868, %v867
    %v870 = vperm.slane %v828, %v475
    %v871 = vperm.slane %v830, %v477
    %v872 = vsel %vm479, %v871, %v870
    %v873 = vperm.slane %v832, %v475
    %v874 = vperm.slane %v834, %v477
    %v875 = vsel %vm479, %v874, %v873
    %v876 = vperm.slane %v836, %v475
    %v877 = vperm.slane %v838, %v477
    %v878 = vsel %vm479, %v877, %v876
    %v879 = vsel %vm502, %v860, %v857
    %v880 = vsel %vm504, %v863, %v879
    %v881 = vsel %vm506, %v866, %v880
    %v882 = vsel %vm508, %v869, %v881
    %v883 = vsel %vm510, %v872, %v882
    %v884 = vsel %vm512, %v875, %v883
    %v885 = vsel %vm514, %v878, %v884
    %v887 = vsel %vm79, %v885, -1e+30
    %v888 = vsel %vm518, %v887, -inf
    %889 = vmax.xlane.f32.xlu0 %v888
    %v890 = vpop.xlane.xlu0 %889
    %v891 = vsub.f32 %v887, %v890
    %v892 = vmul.f32 %v891, 1.442695
    %v893 = vpow.pop %v892
    %v894 = vsel %vm79, %v893, 0.0
    %v895 = vsel %vm518, %v894, 0.0
    %896 = vadd.xlane.f32.xlu0 %v895
    %v897 = vpop.xlane.xlu0 %896
    %v898 = vrcp.pop %v897
    %v899 = vmul.f32 %v894, %v898
    %v901 = vsel %vm518, %v899, 0
    %903 = vmatpush.msra.mxu0 0.0
    %904 = vmatpush.msra.mxu0 0.0
    %905 = vmatpush.msra.mxu0 0.0
    %906 = vmatpush.msra.mxu0 0.0
    %907 = vmatpush.msra.mxu0 0.0
    %908 = vmatpush.msra.mxu0 0.0
    %909 = vmatpush.msra.mxu0 0.0
    %910 = vmatpush.msra.mxu0 0.0
    %911 = vmatpush.msra.mxu0 0.0
    %912 = vmatpush.msra.mxu0 0.0
    %913 = vmatpush.msra.mxu0 0.0
    %914 = vmatpush.msra.mxu0 0.0
    %915 = vmatpush.msra.mxu0 0.0
    %916 = vmatpush.msra.mxu0 0.0
    %917 = vmatpush.msra.mxu0 %v141
    %918 = vmatpush.msra.mxu0 %v138
    %919 = vmatmul.f32.gmra.mxu0 %v901
    %v920 = vpop.f32.mrf.mxu0
    %v921 = vadd.f32 %v532, %v920
    %922 = vdwg.mxu0
    %923 = vst [vmem:[#allocation2 + $0x8] sm:$0xff] %v921
    %v924 = vld [vmem:[#allocation2] sm:$0xff]
    %v925 = vld [vmem:[#allocation2 + $0x8] sm:$0xff]
    %v926 = vadd.f32 %v924, %v925
    %v927 = vrot.slane %v926, 4
    %v928 = vadd.f32 %v926, %v927
    %v929 = vrot.slane %v928, 2
    %v930 = vadd.f32 %v928, %v929
    %v931 = vrot.slane %v930, 1
    %v932 = vadd.f32 %v930, %v931
    %v933 = vrcp.pop 16.0
    %v934 = vmul.f32 16.0, %v933
    %v935 = vsub.f32 1.0, %v934
    %v936 = vmul.f32 %v933, %v935
    %v937 = vadd.f32 %v933, %v936
    %vm938 = vweird.f32 %v933
    %v939 = vsel %vm938, %v933, %v937
    %v940 = vmul.f32 %v932, %v939
    %v941 = vsub.f32 %v924, %v940
    %v942 = vsub.f32 %v925, %v940
    %v943 = vmul.f32 %v941, %v941
    %v944 = vmul.f32 %v942, %v942
    %v945 = vadd.f32 %v943, %v944
    %v946 = vrot.slane %v945, 4
    %v947 = vadd.f32 %v945, %v946
    %v948 = vrot.slane %v947, 2
    %v949 = vadd.f32 %v947, %v948
    %v950 = vrot.slane %v949, 1
    %v951 = vadd.f32 %v949, %v950
    %v952 = vmul.f32 %v951, %v939
    %v953 = vadd.f32 %v952, 1e-05
    %v954 = vrsqrt.pop %v953
    %v955 = vmul.f32 %v954, %v953
    %v956 = vmul.f32 %v955, %v954
    %v957 = vmul.f32 0.5, %v956
    %v958 = vsub.f32 1.5, %v957
    %v959 = vmul.f32 %v954, %v958
    %vm960 = vweird.f32 %v953
    %vm961 = vweird.f32 %v954
    %vm962 = vmor %vm960, %vm961
    %v963 = vsel %vm962, %v954, %v959
    %v964 = vmul.f32 %v941, %v963
    %v965 = vmul.f32 %v942, %v963
    %v966 = vld [vmem:[%s11] sm:$0x1]
    %v968 = vperm.slane %v966, 0
    %v970 = vmul.f32 %v964, %v968
    %v971 = vmul.f32 %v965, %v968
    %v972 = vld [vmem:[%s12] sm:$0x1]
    %v974 = vperm.slane %v972, 0
    %v976 = vadd.f32 %v970, %v974
    %v977 = vadd.f32 %v971, %v974
    %vm978 = vcmp.gt.f32.partialorder %v976, 0.0
    %vm979 = vcmp.gt.f32.partialorder %v977, 0.0
    %v980 = vmul.f32 %v976, 0.01
    %v981 = vmul.f32 %v977, 0.01
    %v982 = vsel %vm978, %v976, %v980
    %v983 = vsel %vm979, %v977, %v981
    %s984 = scalar_lea.vmem [#allocation3], 256
    %v985 = vld [vmem:[%s984] sm:$0xff]
    %v986 = vld [vmem:[%s984 + $0x8] sm:$0xff]
    %v987 = vld [vmem:[%s984 + $0x10] sm:$0xff]
    %v988 = vld [vmem:[%s984 + $0x18] sm:$0xff]
    %v989 = vld [vmem:[%s984 + $0x20] sm:$0xff]
    %v990 = vld [vmem:[%s984 + $0x28] sm:$0xff]
    %v991 = vld [vmem:[%s984 + $0x30] sm:$0xff]
    %v992 = vld [vmem:[%s984 + $0x38] sm:$0xff]
    %v993 = vld [vmem:[%s984 + $0x40] sm:$0xff]
    %v994 = vld [vmem:[%s984 + $0x48] sm:$0xff]
    %v995 = vld [vmem:[%s984 + $0x50] sm:$0xff]
    %v996 = vld [vmem:[%s984 + $0x58] sm:$0xff]
    %v997 = vld [vmem:[%s984 + $0x60] sm:$0xff]
    %v998 = vld [vmem:[%s984 + $0x68] sm:$0xff]
    %v999 = vld [vmem:[%s984 + $0x70] sm:$0xff]
    %v1000 = vld [vmem:[%s984 + $0x78] sm:$0xff]
    %v1001 = vld [vmem:[%s984 + $0x80] sm:$0xff]
    %v1002 = vld [vmem:[%s984 + $0x88] sm:$0xff]
    %v1003 = vld [vmem:[%s984 + $0x90] sm:$0xff]
    %v1004 = vld [vmem:[%s984 + $0x98] sm:$0xff]
    %v1005 = vld [vmem:[%s984 + $0xa0] sm:$0xff]
    %v1006 = vld [vmem:[%s984 + $0xa8] sm:$0xff]
    %v1007 = vld [vmem:[%s984 + $0xb0] sm:$0xff]
    %v1008 = vld [vmem:[%s984 + $0xb8] sm:$0xff]
    %v1009 = vld [vmem:[%s984 + $0xc0] sm:$0xff]
    %v1010 = vld [vmem:[%s984 + $0xc8] sm:$0xff]
    %v1011 = vld [vmem:[%s984 + $0xd0] sm:$0xff]
    %v1012 = vld [vmem:[%s984 + $0xd8] sm:$0xff]
    %v1013 = vld [vmem:[%s984 + $0xe0] sm:$0xff]
    %v1014 = vld [vmem:[%s984 + $0xe8] sm:$0xff]
    %v1015 = vld [vmem:[%s984 + $0xf0] sm:$0xff]
    %v1016 = vld [vmem:[%s984 + $0xf8] sm:$0xff]
    %s1017 = scalar_lea.vmem %s7, 2
    %v1018 = vld [vmem:[%s1017] sm:$0x3]
    %v1020 = vperm.slane %v1018, 0
    %v1021 = vperm.slane %v1018, 1
    %1024 = vmatpush.msra.mxu0 %v1015
    %1025 = vmatpush.msra.mxu0 %v1013
    %1026 = vmatpush.msra.mxu0 %v1011
    %1027 = vmatpush.msra.mxu0 %v1009
    %1028 = vmatpush.msra.mxu0 %v1007
    %1029 = vmatpush.msra.mxu0 %v1005
    %1030 = vmatpush.msra.mxu0 %v1003
    %1031 = vmatpush.msra.mxu0 %v1001
    %1032 = vmatpush.msra.mxu0 %v999
    %1033 = vmatpush.msra.mxu0 %v997
    %1034 = vmatpush.msra.mxu0 %v995
    %1035 = vmatpush.msra.mxu0 %v993
    %1036 = vmatpush.msra.mxu0 %v991
    %1037 = vmatpush.msra.mxu0 %v989
    %1038 = vmatpush.msra.mxu0 %v987
    %1039 = vmatpush.msra.mxu0 %v985
    %1040 = vmatmul.f32.gmra.mxu0 %v982
    %v1041 = vpop.f32.mrf.mxu0
    %v1042 = vadd.f32 %v1020, %v1041
    %1043 = vmatmul.f32.gmra.mxu0 %v983
    %v1044 = vpop.f32.mrf.mxu0
    %v1045 = vadd.f32 %v1020, %v1044
    %1046 = vdwg.mxu0
    %1047 = vmatpush.msra.mxu0 %v1016
    %1048 = vmatpush.msra.mxu0 %v1014
    %1049 = vmatpush.msra.mxu0 %v1012
    %1050 = vmatpush.msra.mxu0 %v1010
    %1051 = vmatpush.msra.mxu0 %v1008
    %1052 = vmatpush.msra.mxu0 %v1006
    %1053 = vmatpush.msra.mxu0 %v1004
    %1054 = vmatpush.msra.mxu0 %v1002
    %1055 = vmatpush.msra.mxu0 %v1000
    %1056 = vmatpush.msra.mxu0 %v998
    %1057 = vmatpush.msra.mxu0 %v996
    %1058 = vmatpush.msra.mxu0 %v994
    %1059 = vmatpush.msra.mxu0 %v992
    %1060 = vmatpush.msra.mxu0 %v990
    %1061 = vmatpush.msra.mxu0 %v988
    %1062 = vmatpush.msra.mxu0 %v986
    %1063 = vmatmul.f32.gmra.mxu0 %v982
    %v1064 = vpop.f32.mrf.mxu0
    %v1065 = vadd.f32 %v1021, %v1064
    %1066 = vmatmul.f32.gmra.mxu0 %v983
    %v1067 = vpop.f32.mrf.mxu0
    %v1068 = vadd.f32 %v1021, %v1067
    %1069 = vdwg.mxu0
    %s1070 = scalar_lea.vmem %s8, 4
    %v1071 = vld [vmem:[%s1070] sm:$0xf]
    %s1072 = scalar_lea.vmem %s9, 1
    %v1073 = vld [vmem:[%s1072] sm:$0x1]
    %s1074 = scalar_lea.vmem %s10, 1
    %v1075 = vld [vmem:[%s1074] sm:$0x1]
    %v1076 = vld [vmem:[%s2] sm:$0xff]
    %v1077 = vld [vmem:[%s2 + $0x8] sm:$0xff]
    %v1078 = vld [vmem:[%s2 + $0x10] sm:$0xff]
    %v1079 = vld [vmem:[%s2 + $0x18] sm:$0xff]
    %v1080 = vld [vmem:[%s2 + $0x20] sm:$0xff]
    %v1081 = vld [vmem:[%s2 + $0x28] sm:$0xff]
    %v1082 = vld [vmem:[%s2 + $0x30] sm:$0xff]
    %v1083 = vld [vmem:[%s2 + $0x38] sm:$0xff]
    %v1084 = vld [vmem:[%s2 + $0x40] sm:$0xff]
    %v1085 = vld [vmem:[%s2 + $0x48] sm:$0xff]
    %v1086 = vld [vmem:[%s2 + $0x50] sm:$0xff]
    %v1087 = vld [vmem:[%s2 + $0x58] sm:$0xff]
    %v1088 = vld [vmem:[%s2 + $0x60] sm:$0xff]
    %v1089 = vld [vmem:[%s2 + $0x68] sm:$0xff]
    %v1090 = vld [vmem:[%s2 + $0x70] sm:$0xff]
    %v1091 = vld [vmem:[%s2 + $0x78] sm:$0xff]
    %v1093 = vsel %vm185, %v1076, 0
    %v1096 = vsel %vm185, %v1077, 0
    %v1099 = vsel %vm185, %v1078, 0
    %v1102 = vsel %vm185, %v1079, 0
    %v1105 = vsel %vm185, %v1080, 0
    %v1108 = vsel %vm185, %v1081, 0
    %v1111 = vsel %vm185, %v1082, 0
    %v1114 = vsel %vm185, %v1083, 0
    %v1117 = vsel %vm185, %v1084, 0
    %v1120 = vsel %vm185, %v1085, 0
    %v1123 = vsel %vm185, %v1086, 0
    %v1126 = vsel %vm185, %v1087, 0
    %v1129 = vsel %vm185, %v1088, 0
    %v1132 = vsel %vm185, %v1089, 0
    %v1135 = vsel %vm185, %v1090, 0
    %v1138 = vsel %vm185, %v1091, 0
    %v1141 = vsel %vm234, %v1071, 0
    %1143 = vmatpush.msra.mxu0 0.0
    %1144 = vmatpush.msra.mxu0 0.0
    %1145 = vmatpush.msra.mxu0 0.0
    %1146 = vmatpush.msra.mxu0 0.0
    %1147 = vmatpush.msra.mxu0 0.0
    %1148 = vmatpush.msra.mxu0 0.0
    %1149 = vmatpush.msra.mxu0 0.0
    %1150 = vmatpush.msra.mxu0 0.0
    %1151 = vmatpush.msra.mxu0 0.0
    %1152 = vmatpush.msra.mxu0 0.0
    %1153 = vmatpush.msra.mxu0 0.0
    %1154 = vmatpush.msra.mxu0 0.0
    %1155 = vmatpush.msra.mxu0 0.0
    %1156 = vmatpush.msra.mxu0 0.0
    %1157 = vmatpush.msra.mxu0 0.0
    %1158 = vmatpush.msra.mxu0 %v1141
    %1159 = vmatmul.f32.gmra.mxu0 %v1093
    %v1160 = vpop.f32.mrf.mxu0
    %v1161 = vadd.f32 0.0, %v1160
    %1162 = vmatmul.f32.gmra.mxu0 %v1096
    %v1163 = vpop.f32.mrf.mxu0
    %v1164 = vadd.f32 0.0, %v1163
    %1165 = vmatmul.f32.gmra.mxu0 %v1099
    %v1166 = vpop.f32.mrf.mxu0
    %v1167 = vadd.f32 0.0, %v1166
    %1168 = vmatmul.f32.gmra.mxu0 %v1102
    %v1169 = vpop.f32.mrf.mxu0
    %v1170 = vadd.f32 0.0, %v1169
    %1171 = vmatmul.f32.gmra.mxu0 %v1105
    %v1172 = vpop.f32.mrf.mxu0
    %v1173 = vadd.f32 0.0, %v1172
    %1174 = vmatmul.f32.gmra.mxu0 %v1108
    %v1175 = vpop.f32.mrf.mxu0
    %v1176 = vadd.f32 0.0, %v1175
    %1177 = vmatmul.f32.gmra.mxu0 %v1111
    %v1178 = vpop.f32.mrf.mxu0
    %v1179 = vadd.f32 0.0, %v1178
    %1180 = vmatmul.f32.gmra.mxu0 %v1114
    %v1181 = vpop.f32.mrf.mxu0
    %v1182 = vadd.f32 0.0, %v1181
    %1183 = vmatmul.f32.gmra.mxu0 %v1117
    %v1184 = vpop.f32.mrf.mxu0
    %v1185 = vadd.f32 0.0, %v1184
    %1186 = vmatmul.f32.gmra.mxu0 %v1120
    %v1187 = vpop.f32.mrf.mxu0
    %v1188 = vadd.f32 0.0, %v1187
    %1189 = vmatmul.f32.gmra.mxu0 %v1123
    %v1190 = vpop.f32.mrf.mxu0
    %v1191 = vadd.f32 0.0, %v1190
    %1192 = vmatmul.f32.gmra.mxu0 %v1126
    %v1193 = vpop.f32.mrf.mxu0
    %v1194 = vadd.f32 0.0, %v1193
    %1195 = vmatmul.f32.gmra.mxu0 %v1129
    %v1196 = vpop.f32.mrf.mxu0
    %v1197 = vadd.f32 0.0, %v1196
    %1198 = vmatmul.f32.gmra.mxu0 %v1132
    %v1199 = vpop.f32.mrf.mxu0
    %v1200 = vadd.f32 0.0, %v1199
    %1201 = vmatmul.f32.gmra.mxu0 %v1135
    %v1202 = vpop.f32.mrf.mxu0
    %v1203 = vadd.f32 0.0, %v1202
    %1204 = vmatmul.f32.gmra.mxu0 %v1138
    %v1205 = vpop.f32.mrf.mxu0
    %v1206 = vadd.f32 0.0, %v1205
    %1207 = vdwg.mxu0
    %v1209 = vrot.slane %v1065, 1
    %v1210 = vrot.slane %v1065, 2
    %v1211 = vrot.slane %v1065, 3
    %v1212 = vrot.slane %v1065, 4
    %v1213 = vrot.slane %v1065, 5
    %v1214 = vrot.slane %v1065, 6
    %v1215 = vrot.slane %v1065, 7
    %v1216 = vperm.slane %v1065, 0
    %v1217 = vperm.slane %v1209, 0
    %v1218 = vperm.slane %v1210, 0
    %v1219 = vperm.slane %v1211, 0
    %v1220 = vperm.slane %v1212, 0
    %v1221 = vperm.slane %v1213, 0
    %v1222 = vperm.slane %v1214, 0
    %v1223 = vperm.slane %v1215, 0
    %v1232 = vadd.f32 %v1216, %v1042
    %v1233 = vadd.f32 %v1216, %v1045
    %v1234 = vadd.f32 %v1217, %v1042
    %v1235 = vadd.f32 %v1217, %v1045
    %v1236 = vadd.f32 %v1218, %v1042
    %v1237 = vadd.f32 %v1218, %v1045
    %v1238 = vadd.f32 %v1219, %v1042
    %v1239 = vadd.f32 %v1219, %v1045
    %v1240 = vadd.f32 %v1220, %v1042
    %v1241 = vadd.f32 %v1220, %v1045
    %v1242 = vadd.f32 %v1221, %v1042
    %v1243 = vadd.f32 %v1221, %v1045
    %v1244 = vadd.f32 %v1222, %v1042
    %v1245 = vadd.f32 %v1222, %v1045
    %v1246 = vadd.f32 %v1223, %v1042
    %v1247 = vadd.f32 %v1223, %v1045
    %v1248 = vadd.f32 %v1232, %v1161
    %v1249 = vadd.f32 %v1233, %v1164
    %v1250 = vadd.f32 %v1234, %v1167
    %v1251 = vadd.f32 %v1235, %v1170
    %v1252 = vadd.f32 %v1236, %v1173
    %v1253 = vadd.f32 %v1237, %v1176
    %v1254 = vadd.f32 %v1238, %v1179
    %v1255 = vadd.f32 %v1239, %v1182
    %v1256 = vadd.f32 %v1240, %v1185
    %v1257 = vadd.f32 %v1241, %v1188
    %v1258 = vadd.f32 %v1242, %v1191
    %v1259 = vadd.f32 %v1243, %v1194
    %v1260 = vadd.f32 %v1244, %v1197
    %v1261 = vadd.f32 %v1245, %v1200
    %v1262 = vadd.f32 %v1246, %v1203
    %v1263 = vadd.f32 %v1247, %v1206
    %vm1264 = vcmp.gt.f32.partialorder %v1248, 0.0
    %vm1265 = vcmp.gt.f32.partialorder %v1249, 0.0
    %vm1266 = vcmp.gt.f32.partialorder %v1250, 0.0
    %vm1267 = vcmp.gt.f32.partialorder %v1251, 0.0
    %vm1268 = vcmp.gt.f32.partialorder %v1252, 0.0
    %vm1269 = vcmp.gt.f32.partialorder %v1253, 0.0
    %vm1270 = vcmp.gt.f32.partialorder %v1254, 0.0
    %vm1271 = vcmp.gt.f32.partialorder %v1255, 0.0
    %vm1272 = vcmp.gt.f32.partialorder %v1256, 0.0
    %vm1273 = vcmp.gt.f32.partialorder %v1257, 0.0
    %vm1274 = vcmp.gt.f32.partialorder %v1258, 0.0
    %vm1275 = vcmp.gt.f32.partialorder %v1259, 0.0
    %vm1276 = vcmp.gt.f32.partialorder %v1260, 0.0
    %vm1277 = vcmp.gt.f32.partialorder %v1261, 0.0
    %vm1278 = vcmp.gt.f32.partialorder %v1262, 0.0
    %vm1279 = vcmp.gt.f32.partialorder %v1263, 0.0
    %v1280 = vmul.f32 %v1248, 0.2
    %v1281 = vmul.f32 %v1249, 0.2
    %v1282 = vmul.f32 %v1250, 0.2
    %v1283 = vmul.f32 %v1251, 0.2
    %v1284 = vmul.f32 %v1252, 0.2
    %v1285 = vmul.f32 %v1253, 0.2
    %v1286 = vmul.f32 %v1254, 0.2
    %v1287 = vmul.f32 %v1255, 0.2
    %v1288 = vmul.f32 %v1256, 0.2
    %v1289 = vmul.f32 %v1257, 0.2
    %v1290 = vmul.f32 %v1258, 0.2
    %v1291 = vmul.f32 %v1259, 0.2
    %v1292 = vmul.f32 %v1260, 0.2
    %v1293 = vmul.f32 %v1261, 0.2
    %v1294 = vmul.f32 %v1262, 0.2
    %v1295 = vmul.f32 %v1263, 0.2
    %v1296 = vsel %vm1264, %v1248, %v1280
    %v1297 = vsel %vm1265, %v1249, %v1281
    %v1298 = vsel %vm1266, %v1250, %v1282
    %v1299 = vsel %vm1267, %v1251, %v1283
    %v1300 = vsel %vm1268, %v1252, %v1284
    %v1301 = vsel %vm1269, %v1253, %v1285
    %v1302 = vsel %vm1270, %v1254, %v1286
    %v1303 = vsel %vm1271, %v1255, %v1287
    %v1304 = vsel %vm1272, %v1256, %v1288
    %v1305 = vsel %vm1273, %v1257, %v1289
    %v1306 = vsel %vm1274, %v1258, %v1290
    %v1307 = vsel %vm1275, %v1259, %v1291
    %v1308 = vsel %vm1276, %v1260, %v1292
    %v1309 = vsel %vm1277, %v1261, %v1293
    %v1310 = vsel %vm1278, %v1262, %v1294
    %v1311 = vsel %vm1279, %v1263, %v1295
    %v1313 = vperm.slane %v1073, 0
    %v1315 = vmul.f32 %v1296, %v1313
    %v1316 = vmul.f32 %v1297, %v1313
    %v1317 = vmul.f32 %v1298, %v1313
    %v1318 = vmul.f32 %v1299, %v1313
    %v1319 = vmul.f32 %v1300, %v1313
    %v1320 = vmul.f32 %v1301, %v1313
    %v1321 = vmul.f32 %v1302, %v1313
    %v1322 = vmul.f32 %v1303, %v1313
    %v1323 = vmul.f32 %v1304, %v1313
    %v1324 = vmul.f32 %v1305, %v1313
    %v1325 = vmul.f32 %v1306, %v1313
    %v1326 = vmul.f32 %v1307, %v1313
    %v1327 = vmul.f32 %v1308, %v1313
    %v1328 = vmul.f32 %v1309, %v1313
    %v1329 = vmul.f32 %v1310, %v1313
    %v1330 = vmul.f32 %v1311, %v1313
    %1331 = vadd.xlane.f32.xlu0 %v1315
    %v1332 = vpop.xlane.xlu0 %1331
    %1333 = vadd.xlane.f32.xlu0 %v1316
    %v1334 = vpop.xlane.xlu0 %1333
    %1335 = vadd.xlane.f32.xlu0 %v1317
    %v1336 = vpop.xlane.xlu0 %1335
    %1337 = vadd.xlane.f32.xlu0 %v1318
    %v1338 = vpop.xlane.xlu0 %1337
    %1339 = vadd.xlane.f32.xlu0 %v1319
    %v1340 = vpop.xlane.xlu0 %1339
    %1341 = vadd.xlane.f32.xlu0 %v1320
    %v1342 = vpop.xlane.xlu0 %1341
    %1343 = vadd.xlane.f32.xlu0 %v1321
    %v1344 = vpop.xlane.xlu0 %1343
    %1345 = vadd.xlane.f32.xlu0 %v1322
    %v1346 = vpop.xlane.xlu0 %1345
    %1347 = vadd.xlane.f32.xlu0 %v1323
    %v1348 = vpop.xlane.xlu0 %1347
    %1349 = vadd.xlane.f32.xlu0 %v1324
    %v1350 = vpop.xlane.xlu0 %1349
    %1351 = vadd.xlane.f32.xlu0 %v1325
    %v1352 = vpop.xlane.xlu0 %1351
    %1353 = vadd.xlane.f32.xlu0 %v1326
    %v1354 = vpop.xlane.xlu0 %1353
    %1355 = vadd.xlane.f32.xlu0 %v1327
    %v1356 = vpop.xlane.xlu0 %1355
    %1357 = vadd.xlane.f32.xlu0 %v1328
    %v1358 = vpop.xlane.xlu0 %1357
    %1359 = vadd.xlane.f32.xlu0 %v1329
    %v1360 = vpop.xlane.xlu0 %1359
    %1361 = vadd.xlane.f32.xlu0 %v1330
    %v1362 = vpop.xlane.xlu0 %1361
    %v1379 = vperm.slane %v1332, %v475
    %v1380 = vperm.slane %v1334, %v477
    %v1381 = vsel %vm479, %v1380, %v1379
    %v1382 = vperm.slane %v1336, %v475
    %v1383 = vperm.slane %v1338, %v477
    %v1384 = vsel %vm479, %v1383, %v1382
    %v1385 = vperm.slane %v1340, %v475
    %v1386 = vperm.slane %v1342, %v477
    %v1387 = vsel %vm479, %v1386, %v1385
    %v1388 = vperm.slane %v1344, %v475
    %v1389 = vperm.slane %v1346, %v477
    %v1390 = vsel %vm479, %v1389, %v1388
    %v1391 = vperm.slane %v1348, %v475
    %v1392 = vperm.slane %v1350, %v477
    %v1393 = vsel %vm479, %v1392, %v1391
    %v1394 = vperm.slane %v1352, %v475
    %v1395 = vperm.slane %v1354, %v477
    %v1396 = vsel %vm479, %v1395, %v1394
    %v1397 = vperm.slane %v1356, %v475
    %v1398 = vperm.slane %v1358, %v477
    %v1399 = vsel %vm479, %v1398, %v1397
    %v1400 = vperm.slane %v1360, %v475
    %v1401 = vperm.slane %v1362, %v477
    %v1402 = vsel %vm479, %v1401, %v1400
    %v1403 = vsel %vm502, %v1384, %v1381
    %v1404 = vsel %vm504, %v1387, %v1403
    %v1405 = vsel %vm506, %v1390, %v1404
    %v1406 = vsel %vm508, %v1393, %v1405
    %v1407 = vsel %vm510, %v1396, %v1406
    %v1408 = vsel %vm512, %v1399, %v1407
    %v1409 = vsel %vm514, %v1402, %v1408
    %v1411 = vsel %vm78, %v1409, -1e+30
    %v1412 = vsel %vm518, %v1411, -inf
    %1413 = vmax.xlane.f32.xlu0 %v1412
    %v1414 = vpop.xlane.xlu0 %1413
    %v1415 = vsub.f32 %v1411, %v1414
    %v1416 = vmul.f32 %v1415, 1.442695
    %v1417 = vpow.pop %v1416
    %v1418 = vsel %vm78, %v1417, 0.0
    %v1419 = vsel %vm518, %v1418, 0.0
    %1420 = vadd.xlane.f32.xlu0 %v1419
    %v1421 = vpop.xlane.xlu0 %1420
    %v1422 = vrcp.pop %v1421
    %v1423 = vmul.f32 %v1418, %v1422
    %v1425 = vperm.slane %v1075, 0
    %v1428 = vsel %vm518, %v1423, 0
    %1430 = vmatpush.msra.mxu0 0.0
    %1431 = vmatpush.msra.mxu0 0.0
    %1432 = vmatpush.msra.mxu0 0.0
    %1433 = vmatpush.msra.mxu0 0.0
    %1434 = vmatpush.msra.mxu0 0.0
    %1435 = vmatpush.msra.mxu0 0.0
    %1436 = vmatpush.msra.mxu0 0.0
    %1437 = vmatpush.msra.mxu0 0.0
    %1438 = vmatpush.msra.mxu0 0.0
    %1439 = vmatpush.msra.mxu0 0.0
    %1440 = vmatpush.msra.mxu0 0.0
    %1441 = vmatpush.msra.mxu0 0.0
    %1442 = vmatpush.msra.mxu0 0.0
    %1443 = vmatpush.msra.mxu0 0.0
    %1444 = vmatpush.msra.mxu0 %v1045
    %1445 = vmatpush.msra.mxu0 %v1042
    %1446 = vmatmul.f32.gmra.mxu0 %v1428
    %v1447 = vpop.f32.mrf.mxu0
    %v1448 = vadd.f32 %v1425, %v1447
    %1449 = vdwg.mxu0
    %1450 = vst [vmem:[#allocation2] sm:$0xff] %v1448
    %v1451 = vld [vmem:[%s2 + $0x80] sm:$0xff]
    %v1452 = vld [vmem:[%s2 + $0x88] sm:$0xff]
    %v1453 = vld [vmem:[%s2 + $0x90] sm:$0xff]
    %v1454 = vld [vmem:[%s2 + $0x98] sm:$0xff]
    %v1455 = vld [vmem:[%s2 + $0xa0] sm:$0xff]
    %v1456 = vld [vmem:[%s2 + $0xa8] sm:$0xff]
    %v1457 = vld [vmem:[%s2 + $0xb0] sm:$0xff]
    %v1458 = vld [vmem:[%s2 + $0xb8] sm:$0xff]
    %v1459 = vld [vmem:[%s2 + $0xc0] sm:$0xff]
    %v1460 = vld [vmem:[%s2 + $0xc8] sm:$0xff]
    %v1461 = vld [vmem:[%s2 + $0xd0] sm:$0xff]
    %v1462 = vld [vmem:[%s2 + $0xd8] sm:$0xff]
    %v1463 = vld [vmem:[%s2 + $0xe0] sm:$0xff]
    %v1464 = vld [vmem:[%s2 + $0xe8] sm:$0xff]
    %v1465 = vld [vmem:[%s2 + $0xf0] sm:$0xff]
    %v1466 = vld [vmem:[%s2 + $0xf8] sm:$0xff]
    %v1468 = vsel %vm185, %v1451, 0
    %v1471 = vsel %vm185, %v1452, 0
    %v1474 = vsel %vm185, %v1453, 0
    %v1477 = vsel %vm185, %v1454, 0
    %v1480 = vsel %vm185, %v1455, 0
    %v1483 = vsel %vm185, %v1456, 0
    %v1486 = vsel %vm185, %v1457, 0
    %v1489 = vsel %vm185, %v1458, 0
    %v1492 = vsel %vm185, %v1459, 0
    %v1495 = vsel %vm185, %v1460, 0
    %v1498 = vsel %vm185, %v1461, 0
    %v1501 = vsel %vm185, %v1462, 0
    %v1504 = vsel %vm185, %v1463, 0
    %v1507 = vsel %vm185, %v1464, 0
    %v1510 = vsel %vm185, %v1465, 0
    %v1513 = vsel %vm185, %v1466, 0
    %1515 = vmatpush.msra.mxu0 0.0
    %1516 = vmatpush.msra.mxu0 0.0
    %1517 = vmatpush.msra.mxu0 0.0
    %1518 = vmatpush.msra.mxu0 0.0
    %1519 = vmatpush.msra.mxu0 0.0
    %1520 = vmatpush.msra.mxu0 0.0
    %1521 = vmatpush.msra.mxu0 0.0
    %1522 = vmatpush.msra.mxu0 0.0
    %1523 = vmatpush.msra.mxu0 0.0
    %1524 = vmatpush.msra.mxu0 0.0
    %1525 = vmatpush.msra.mxu0 0.0
    %1526 = vmatpush.msra.mxu0 0.0
    %1527 = vmatpush.msra.mxu0 0.0
    %1528 = vmatpush.msra.mxu0 0.0
    %1529 = vmatpush.msra.mxu0 0.0
    %1530 = vmatpush.msra.mxu0 %v1141
    %1531 = vmatmul.f32.gmra.mxu0 %v1468
    %v1532 = vpop.f32.mrf.mxu0
    %v1533 = vadd.f32 0.0, %v1532
    %1534 = vmatmul.f32.gmra.mxu0 %v1471
    %v1535 = vpop.f32.mrf.mxu0
    %v1536 = vadd.f32 0.0, %v1535
    %1537 = vmatmul.f32.gmra.mxu0 %v1474
    %v1538 = vpop.f32.mrf.mxu0
    %v1539 = vadd.f32 0.0, %v1538
    %1540 = vmatmul.f32.gmra.mxu0 %v1477
    %v1541 = vpop.f32.mrf.mxu0
    %v1542 = vadd.f32 0.0, %v1541
    %1543 = vmatmul.f32.gmra.mxu0 %v1480
    %v1544 = vpop.f32.mrf.mxu0
    %v1545 = vadd.f32 0.0, %v1544
    %1546 = vmatmul.f32.gmra.mxu0 %v1483
    %v1547 = vpop.f32.mrf.mxu0
    %v1548 = vadd.f32 0.0, %v1547
    %1549 = vmatmul.f32.gmra.mxu0 %v1486
    %v1550 = vpop.f32.mrf.mxu0
    %v1551 = vadd.f32 0.0, %v1550
    %1552 = vmatmul.f32.gmra.mxu0 %v1489
    %v1553 = vpop.f32.mrf.mxu0
    %v1554 = vadd.f32 0.0, %v1553
    %1555 = vmatmul.f32.gmra.mxu0 %v1492
    %v1556 = vpop.f32.mrf.mxu0
    %v1557 = vadd.f32 0.0, %v1556
    %1558 = vmatmul.f32.gmra.mxu0 %v1495
    %v1559 = vpop.f32.mrf.mxu0
    %v1560 = vadd.f32 0.0, %v1559
    %1561 = vmatmul.f32.gmra.mxu0 %v1498
    %v1562 = vpop.f32.mrf.mxu0
    %v1563 = vadd.f32 0.0, %v1562
    %1564 = vmatmul.f32.gmra.mxu0 %v1501
    %v1565 = vpop.f32.mrf.mxu0
    %v1566 = vadd.f32 0.0, %v1565
    %1567 = vmatmul.f32.gmra.mxu0 %v1504
    %v1568 = vpop.f32.mrf.mxu0
    %v1569 = vadd.f32 0.0, %v1568
    %1570 = vmatmul.f32.gmra.mxu0 %v1507
    %v1571 = vpop.f32.mrf.mxu0
    %v1572 = vadd.f32 0.0, %v1571
    %1573 = vmatmul.f32.gmra.mxu0 %v1510
    %v1574 = vpop.f32.mrf.mxu0
    %v1575 = vadd.f32 0.0, %v1574
    %1576 = vmatmul.f32.gmra.mxu0 %v1513
    %v1577 = vpop.f32.mrf.mxu0
    %v1578 = vadd.f32 0.0, %v1577
    %1579 = vdwg.mxu0
    %v1581 = vrot.slane %v1068, 1
    %v1582 = vrot.slane %v1068, 2
    %v1583 = vrot.slane %v1068, 3
    %v1584 = vrot.slane %v1068, 4
    %v1585 = vrot.slane %v1068, 5
    %v1586 = vrot.slane %v1068, 6
    %v1587 = vrot.slane %v1068, 7
    %v1588 = vperm.slane %v1068, 0
    %v1589 = vperm.slane %v1581, 0
    %v1590 = vperm.slane %v1582, 0
    %v1591 = vperm.slane %v1583, 0
    %v1592 = vperm.slane %v1584, 0
    %v1593 = vperm.slane %v1585, 0
    %v1594 = vperm.slane %v1586, 0
    %v1595 = vperm.slane %v1587, 0
    %v1604 = vadd.f32 %v1588, %v1042
    %v1605 = vadd.f32 %v1588, %v1045
    %v1606 = vadd.f32 %v1589, %v1042
    %v1607 = vadd.f32 %v1589, %v1045
    %v1608 = vadd.f32 %v1590, %v1042
    %v1609 = vadd.f32 %v1590, %v1045
    %v1610 = vadd.f32 %v1591, %v1042
    %v1611 = vadd.f32 %v1591, %v1045
    %v1612 = vadd.f32 %v1592, %v1042
    %v1613 = vadd.f32 %v1592, %v1045
    %v1614 = vadd.f32 %v1593, %v1042
    %v1615 = vadd.f32 %v1593, %v1045
    %v1616 = vadd.f32 %v1594, %v1042
    %v1617 = vadd.f32 %v1594, %v1045
    %v1618 = vadd.f32 %v1595, %v1042
    %v1619 = vadd.f32 %v1595, %v1045
    %v1620 = vadd.f32 %v1604, %v1533
    %v1621 = vadd.f32 %v1605, %v1536
    %v1622 = vadd.f32 %v1606, %v1539
    %v1623 = vadd.f32 %v1607, %v1542
    %v1624 = vadd.f32 %v1608, %v1545
    %v1625 = vadd.f32 %v1609, %v1548
    %v1626 = vadd.f32 %v1610, %v1551
    %v1627 = vadd.f32 %v1611, %v1554
    %v1628 = vadd.f32 %v1612, %v1557
    %v1629 = vadd.f32 %v1613, %v1560
    %v1630 = vadd.f32 %v1614, %v1563
    %v1631 = vadd.f32 %v1615, %v1566
    %v1632 = vadd.f32 %v1616, %v1569
    %v1633 = vadd.f32 %v1617, %v1572
    %v1634 = vadd.f32 %v1618, %v1575
    %v1635 = vadd.f32 %v1619, %v1578
    %vm1636 = vcmp.gt.f32.partialorder %v1620, 0.0
    %vm1637 = vcmp.gt.f32.partialorder %v1621, 0.0
    %vm1638 = vcmp.gt.f32.partialorder %v1622, 0.0
    %vm1639 = vcmp.gt.f32.partialorder %v1623, 0.0
    %vm1640 = vcmp.gt.f32.partialorder %v1624, 0.0
    %vm1641 = vcmp.gt.f32.partialorder %v1625, 0.0
    %vm1642 = vcmp.gt.f32.partialorder %v1626, 0.0
    %vm1643 = vcmp.gt.f32.partialorder %v1627, 0.0
    %vm1644 = vcmp.gt.f32.partialorder %v1628, 0.0
    %vm1645 = vcmp.gt.f32.partialorder %v1629, 0.0
    %vm1646 = vcmp.gt.f32.partialorder %v1630, 0.0
    %vm1647 = vcmp.gt.f32.partialorder %v1631, 0.0
    %vm1648 = vcmp.gt.f32.partialorder %v1632, 0.0
    %vm1649 = vcmp.gt.f32.partialorder %v1633, 0.0
    %vm1650 = vcmp.gt.f32.partialorder %v1634, 0.0
    %vm1651 = vcmp.gt.f32.partialorder %v1635, 0.0
    %v1652 = vmul.f32 %v1620, 0.2
    %v1653 = vmul.f32 %v1621, 0.2
    %v1654 = vmul.f32 %v1622, 0.2
    %v1655 = vmul.f32 %v1623, 0.2
    %v1656 = vmul.f32 %v1624, 0.2
    %v1657 = vmul.f32 %v1625, 0.2
    %v1658 = vmul.f32 %v1626, 0.2
    %v1659 = vmul.f32 %v1627, 0.2
    %v1660 = vmul.f32 %v1628, 0.2
    %v1661 = vmul.f32 %v1629, 0.2
    %v1662 = vmul.f32 %v1630, 0.2
    %v1663 = vmul.f32 %v1631, 0.2
    %v1664 = vmul.f32 %v1632, 0.2
    %v1665 = vmul.f32 %v1633, 0.2
    %v1666 = vmul.f32 %v1634, 0.2
    %v1667 = vmul.f32 %v1635, 0.2
    %v1668 = vsel %vm1636, %v1620, %v1652
    %v1669 = vsel %vm1637, %v1621, %v1653
    %v1670 = vsel %vm1638, %v1622, %v1654
    %v1671 = vsel %vm1639, %v1623, %v1655
    %v1672 = vsel %vm1640, %v1624, %v1656
    %v1673 = vsel %vm1641, %v1625, %v1657
    %v1674 = vsel %vm1642, %v1626, %v1658
    %v1675 = vsel %vm1643, %v1627, %v1659
    %v1676 = vsel %vm1644, %v1628, %v1660
    %v1677 = vsel %vm1645, %v1629, %v1661
    %v1678 = vsel %vm1646, %v1630, %v1662
    %v1679 = vsel %vm1647, %v1631, %v1663
    %v1680 = vsel %vm1648, %v1632, %v1664
    %v1681 = vsel %vm1649, %v1633, %v1665
    %v1682 = vsel %vm1650, %v1634, %v1666
    %v1683 = vsel %vm1651, %v1635, %v1667
    %v1684 = vmul.f32 %v1668, %v1313
    %v1685 = vmul.f32 %v1669, %v1313
    %v1686 = vmul.f32 %v1670, %v1313
    %v1687 = vmul.f32 %v1671, %v1313
    %v1688 = vmul.f32 %v1672, %v1313
    %v1689 = vmul.f32 %v1673, %v1313
    %v1690 = vmul.f32 %v1674, %v1313
    %v1691 = vmul.f32 %v1675, %v1313
    %v1692 = vmul.f32 %v1676, %v1313
    %v1693 = vmul.f32 %v1677, %v1313
    %v1694 = vmul.f32 %v1678, %v1313
    %v1695 = vmul.f32 %v1679, %v1313
    %v1696 = vmul.f32 %v1680, %v1313
    %v1697 = vmul.f32 %v1681, %v1313
    %v1698 = vmul.f32 %v1682, %v1313
    %v1699 = vmul.f32 %v1683, %v1313
    %1700 = vadd.xlane.f32.xlu0 %v1684
    %v1701 = vpop.xlane.xlu0 %1700
    %1702 = vadd.xlane.f32.xlu0 %v1685
    %v1703 = vpop.xlane.xlu0 %1702
    %1704 = vadd.xlane.f32.xlu0 %v1686
    %v1705 = vpop.xlane.xlu0 %1704
    %1706 = vadd.xlane.f32.xlu0 %v1687
    %v1707 = vpop.xlane.xlu0 %1706
    %1708 = vadd.xlane.f32.xlu0 %v1688
    %v1709 = vpop.xlane.xlu0 %1708
    %1710 = vadd.xlane.f32.xlu0 %v1689
    %v1711 = vpop.xlane.xlu0 %1710
    %1712 = vadd.xlane.f32.xlu0 %v1690
    %v1713 = vpop.xlane.xlu0 %1712
    %1714 = vadd.xlane.f32.xlu0 %v1691
    %v1715 = vpop.xlane.xlu0 %1714
    %1716 = vadd.xlane.f32.xlu0 %v1692
    %v1717 = vpop.xlane.xlu0 %1716
    %1718 = vadd.xlane.f32.xlu0 %v1693
    %v1719 = vpop.xlane.xlu0 %1718
    %1720 = vadd.xlane.f32.xlu0 %v1694
    %v1721 = vpop.xlane.xlu0 %1720
    %1722 = vadd.xlane.f32.xlu0 %v1695
    %v1723 = vpop.xlane.xlu0 %1722
    %1724 = vadd.xlane.f32.xlu0 %v1696
    %v1725 = vpop.xlane.xlu0 %1724
    %1726 = vadd.xlane.f32.xlu0 %v1697
    %v1727 = vpop.xlane.xlu0 %1726
    %1728 = vadd.xlane.f32.xlu0 %v1698
    %v1729 = vpop.xlane.xlu0 %1728
    %1730 = vadd.xlane.f32.xlu0 %v1699
    %v1731 = vpop.xlane.xlu0 %1730
    %v1748 = vperm.slane %v1701, %v475
    %v1749 = vperm.slane %v1703, %v477
    %v1750 = vsel %vm479, %v1749, %v1748
    %v1751 = vperm.slane %v1705, %v475
    %v1752 = vperm.slane %v1707, %v477
    %v1753 = vsel %vm479, %v1752, %v1751
    %v1754 = vperm.slane %v1709, %v475
    %v1755 = vperm.slane %v1711, %v477
    %v1756 = vsel %vm479, %v1755, %v1754
    %v1757 = vperm.slane %v1713, %v475
    %v1758 = vperm.slane %v1715, %v477
    %v1759 = vsel %vm479, %v1758, %v1757
    %v1760 = vperm.slane %v1717, %v475
    %v1761 = vperm.slane %v1719, %v477
    %v1762 = vsel %vm479, %v1761, %v1760
    %v1763 = vperm.slane %v1721, %v475
    %v1764 = vperm.slane %v1723, %v477
    %v1765 = vsel %vm479, %v1764, %v1763
    %v1766 = vperm.slane %v1725, %v475
    %v1767 = vperm.slane %v1727, %v477
    %v1768 = vsel %vm479, %v1767, %v1766
    %v1769 = vperm.slane %v1729, %v475
    %v1770 = vperm.slane %v1731, %v477
    %v1771 = vsel %vm479, %v1770, %v1769
    %v1772 = vsel %vm502, %v1753, %v1750
    %v1773 = vsel %vm504, %v1756, %v1772
    %v1774 = vsel %vm506, %v1759, %v1773
    %v1775 = vsel %vm508, %v1762, %v1774
    %v1776 = vsel %vm510, %v1765, %v1775
    %v1777 = vsel %vm512, %v1768, %v1776
    %v1778 = vsel %vm514, %v1771, %v1777
    %v1780 = vsel %vm79, %v1778, -1e+30
    %v1781 = vsel %vm518, %v1780, -inf
    %1782 = vmax.xlane.f32.xlu0 %v1781
    %v1783 = vpop.xlane.xlu0 %1782
    %v1784 = vsub.f32 %v1780, %v1783
    %v1785 = vmul.f32 %v1784, 1.442695
    %v1786 = vpow.pop %v1785
    %v1787 = vsel %vm79, %v1786, 0.0
    %v1788 = vsel %vm518, %v1787, 0.0
    %1789 = vadd.xlane.f32.xlu0 %v1788
    %v1790 = vpop.xlane.xlu0 %1789
    %v1791 = vrcp.pop %v1790
    %v1792 = vmul.f32 %v1787, %v1791
    %v1794 = vsel %vm518, %v1792, 0
    %1796 = vmatpush.msra.mxu0 0.0
    %1797 = vmatpush.msra.mxu0 0.0
    %1798 = vmatpush.msra.mxu0 0.0
    %1799 = vmatpush.msra.mxu0 0.0
    %1800 = vmatpush.msra.mxu0 0.0
    %1801 = vmatpush.msra.mxu0 0.0
    %1802 = vmatpush.msra.mxu0 0.0
    %1803 = vmatpush.msra.mxu0 0.0
    %1804 = vmatpush.msra.mxu0 0.0
    %1805 = vmatpush.msra.mxu0 0.0
    %1806 = vmatpush.msra.mxu0 0.0
    %1807 = vmatpush.msra.mxu0 0.0
    %1808 = vmatpush.msra.mxu0 0.0
    %1809 = vmatpush.msra.mxu0 0.0
    %1810 = vmatpush.msra.mxu0 %v1045
    %1811 = vmatpush.msra.mxu0 %v1042
    %1812 = vmatmul.f32.gmra.mxu0 %v1794
    %v1813 = vpop.f32.mrf.mxu0
    %v1814 = vadd.f32 %v1425, %v1813
    %1815 = vdwg.mxu0
    %1816 = vst [vmem:[#allocation2 + $0x8] sm:$0xff] %v1814
    %v1817 = vld [vmem:[#allocation2] sm:$0xff]
    %v1818 = vld [vmem:[#allocation2 + $0x8] sm:$0xff]
    %v1819 = vadd.f32 %v1817, %v1818
    %v1820 = vrot.slane %v1819, 4
    %v1821 = vadd.f32 %v1819, %v1820
    %v1822 = vrot.slane %v1821, 2
    %v1823 = vadd.f32 %v1821, %v1822
    %v1824 = vrot.slane %v1823, 1
    %v1825 = vadd.f32 %v1823, %v1824
    %v1826 = vmul.f32 %v1825, %v939
    %v1827 = vsub.f32 %v1817, %v1826
    %v1828 = vsub.f32 %v1818, %v1826
    %v1829 = vmul.f32 %v1827, %v1827
    %v1830 = vmul.f32 %v1828, %v1828
    %v1831 = vadd.f32 %v1829, %v1830
    %v1832 = vrot.slane %v1831, 4
    %v1833 = vadd.f32 %v1831, %v1832
    %v1834 = vrot.slane %v1833, 2
    %v1835 = vadd.f32 %v1833, %v1834
    %v1836 = vrot.slane %v1835, 1
    %v1837 = vadd.f32 %v1835, %v1836
    %v1838 = vmul.f32 %v1837, %v939
    %v1839 = vadd.f32 %v1838, 1e-05
    %v1840 = vrsqrt.pop %v1839
    %v1841 = vmul.f32 %v1840, %v1839
    %v1842 = vmul.f32 %v1841, %v1840
    %v1843 = vmul.f32 0.5, %v1842
    %v1844 = vsub.f32 1.5, %v1843
    %v1845 = vmul.f32 %v1840, %v1844
    %vm1846 = vweird.f32 %v1839
    %vm1847 = vweird.f32 %v1840
    %vm1848 = vmor %vm1846, %vm1847
    %v1849 = vsel %vm1848, %v1840, %v1845
    %v1850 = vmul.f32 %v1827, %v1849
    %v1851 = vmul.f32 %v1828, %v1849
    %s1852 = scalar_lea.vmem %s11, 1
    %v1853 = vld [vmem:[%s1852] sm:$0x1]
    %v1855 = vperm.slane %v1853, 0
    %v1857 = vmul.f32 %v1850, %v1855
    %v1858 = vmul.f32 %v1851, %v1855
    %s1859 = scalar_lea.vmem %s12, 1
    %v1860 = vld [vmem:[%s1859] sm:$0x1]
    %v1862 = vperm.slane %v1860, 0
    %v1864 = vadd.f32 %v1857, %v1862
    %v1865 = vadd.f32 %v1858, %v1862
    %vm1866 = vcmp.gt.f32.partialorder %v1864, 0.0
    %vm1867 = vcmp.gt.f32.partialorder %v1865, 0.0
    %v1868 = vmul.f32 %v1864, 0.01
    %v1869 = vmul.f32 %v1865, 0.01
    %v1870 = vsel %vm1866, %v1864, %v1868
    %v1871 = vsel %vm1867, %v1865, %v1869
    %s1872 = scalar_lea.vmem [#allocation3], 512
    %v1873 = vld [vmem:[%s1872] sm:$0xff]
    %v1874 = vld [vmem:[%s1872 + $0x8] sm:$0xff]
    %v1875 = vld [vmem:[%s1872 + $0x10] sm:$0xff]
    %v1876 = vld [vmem:[%s1872 + $0x18] sm:$0xff]
    %v1877 = vld [vmem:[%s1872 + $0x20] sm:$0xff]
    %v1878 = vld [vmem:[%s1872 + $0x28] sm:$0xff]
    %v1879 = vld [vmem:[%s1872 + $0x30] sm:$0xff]
    %v1880 = vld [vmem:[%s1872 + $0x38] sm:$0xff]
    %v1881 = vld [vmem:[%s1872 + $0x40] sm:$0xff]
    %v1882 = vld [vmem:[%s1872 + $0x48] sm:$0xff]
    %v1883 = vld [vmem:[%s1872 + $0x50] sm:$0xff]
    %v1884 = vld [vmem:[%s1872 + $0x58] sm:$0xff]
    %v1885 = vld [vmem:[%s1872 + $0x60] sm:$0xff]
    %v1886 = vld [vmem:[%s1872 + $0x68] sm:$0xff]
    %v1887 = vld [vmem:[%s1872 + $0x70] sm:$0xff]
    %v1888 = vld [vmem:[%s1872 + $0x78] sm:$0xff]
    %v1889 = vld [vmem:[%s1872 + $0x80] sm:$0xff]
    %v1890 = vld [vmem:[%s1872 + $0x88] sm:$0xff]
    %v1891 = vld [vmem:[%s1872 + $0x90] sm:$0xff]
    %v1892 = vld [vmem:[%s1872 + $0x98] sm:$0xff]
    %v1893 = vld [vmem:[%s1872 + $0xa0] sm:$0xff]
    %v1894 = vld [vmem:[%s1872 + $0xa8] sm:$0xff]
    %v1895 = vld [vmem:[%s1872 + $0xb0] sm:$0xff]
    %v1896 = vld [vmem:[%s1872 + $0xb8] sm:$0xff]
    %v1897 = vld [vmem:[%s1872 + $0xc0] sm:$0xff]
    %v1898 = vld [vmem:[%s1872 + $0xc8] sm:$0xff]
    %v1899 = vld [vmem:[%s1872 + $0xd0] sm:$0xff]
    %v1900 = vld [vmem:[%s1872 + $0xd8] sm:$0xff]
    %v1901 = vld [vmem:[%s1872 + $0xe0] sm:$0xff]
    %v1902 = vld [vmem:[%s1872 + $0xe8] sm:$0xff]
    %v1903 = vld [vmem:[%s1872 + $0xf0] sm:$0xff]
    %v1904 = vld [vmem:[%s1872 + $0xf8] sm:$0xff]
    %s1905 = scalar_lea.vmem %s7, 4
    %v1906 = vld [vmem:[%s1905] sm:$0x3]
    %v1908 = vperm.slane %v1906, 0
    %v1909 = vperm.slane %v1906, 1
    %1912 = vmatpush.msra.mxu0 %v1903
    %1913 = vmatpush.msra.mxu0 %v1901
    %1914 = vmatpush.msra.mxu0 %v1899
    %1915 = vmatpush.msra.mxu0 %v1897
    %1916 = vmatpush.msra.mxu0 %v1895
    %1917 = vmatpush.msra.mxu0 %v1893
    %1918 = vmatpush.msra.mxu0 %v1891
    %1919 = vmatpush.msra.mxu0 %v1889
    %1920 = vmatpush.msra.mxu0 %v1887
    %1921 = vmatpush.msra.mxu0 %v1885
    %1922 = vmatpush.msra.mxu0 %v1883
    %1923 = vmatpush.msra.mxu0 %v1881
    %1924 = vmatpush.msra.mxu0 %v1879
    %1925 = vmatpush.msra.mxu0 %v1877
    %1926 = vmatpush.msra.mxu0 %v1875
    %1927 = vmatpush.msra.mxu0 %v1873
    %1928 = vmatmul.f32.gmra.mxu0 %v1870
    %v1929 = vpop.f32.mrf.mxu0
    %v1930 = vadd.f32 %v1908, %v1929
    %1931 = vmatmul.f32.gmra.mxu0 %v1871
    %v1932 = vpop.f32.mrf.mxu0
    %v1933 = vadd.f32 %v1908, %v1932
    %1934 = vdwg.mxu0
    %1935 = vmatpush.msra.mxu0 %v1904
    %1936 = vmatpush.msra.mxu0 %v1902
    %1937 = vmatpush.msra.mxu0 %v1900
    %1938 = vmatpush.msra.mxu0 %v1898
    %1939 = vmatpush.msra.mxu0 %v1896
    %1940 = vmatpush.msra.mxu0 %v1894
    %1941 = vmatpush.msra.mxu0 %v1892
    %1942 = vmatpush.msra.mxu0 %v1890
    %1943 = vmatpush.msra.mxu0 %v1888
    %1944 = vmatpush.msra.mxu0 %v1886
    %1945 = vmatpush.msra.mxu0 %v1884
    %1946 = vmatpush.msra.mxu0 %v1882
    %1947 = vmatpush.msra.mxu0 %v1880
    %1948 = vmatpush.msra.mxu0 %v1878
    %1949 = vmatpush.msra.mxu0 %v1876
    %1950 = vmatpush.msra.mxu0 %v1874
    %1951 = vmatmul.f32.gmra.mxu0 %v1870
    %v1952 = vpop.f32.mrf.mxu0
    %v1953 = vadd.f32 %v1909, %v1952
    %1954 = vmatmul.f32.gmra.mxu0 %v1871
    %v1955 = vpop.f32.mrf.mxu0
    %v1956 = vadd.f32 %v1909, %v1955
    %1957 = vdwg.mxu0
    %s1958 = scalar_lea.vmem %s8, 8
    %v1959 = vld [vmem:[%s1958] sm:$0xf]
    %s1960 = scalar_lea.vmem %s9, 2
    %v1961 = vld [vmem:[%s1960] sm:$0x1]
    %s1962 = scalar_lea.vmem %s10, 2
    %v1963 = vld [vmem:[%s1962] sm:$0x1]
    %v1964 = vld [vmem:[%s2] sm:$0xff]
    %v1965 = vld [vmem:[%s2 + $0x8] sm:$0xff]
    %v1966 = vld [vmem:[%s2 + $0x10] sm:$0xff]
    %v1967 = vld [vmem:[%s2 + $0x18] sm:$0xff]
    %v1968 = vld [vmem:[%s2 + $0x20] sm:$0xff]
    %v1969 = vld [vmem:[%s2 + $0x28] sm:$0xff]
    %v1970 = vld [vmem:[%s2 + $0x30] sm:$0xff]
    %v1971 = vld [vmem:[%s2 + $0x38] sm:$0xff]
    %v1972 = vld [vmem:[%s2 + $0x40] sm:$0xff]
    %v1973 = vld [vmem:[%s2 + $0x48] sm:$0xff]
    %v1974 = vld [vmem:[%s2 + $0x50] sm:$0xff]
    %v1975 = vld [vmem:[%s2 + $0x58] sm:$0xff]
    %v1976 = vld [vmem:[%s2 + $0x60] sm:$0xff]
    %v1977 = vld [vmem:[%s2 + $0x68] sm:$0xff]
    %v1978 = vld [vmem:[%s2 + $0x70] sm:$0xff]
    %v1979 = vld [vmem:[%s2 + $0x78] sm:$0xff]
    %v1981 = vsel %vm185, %v1964, 0
    %v1984 = vsel %vm185, %v1965, 0
    %v1987 = vsel %vm185, %v1966, 0
    %v1990 = vsel %vm185, %v1967, 0
    %v1993 = vsel %vm185, %v1968, 0
    %v1996 = vsel %vm185, %v1969, 0
    %v1999 = vsel %vm185, %v1970, 0
    %v2002 = vsel %vm185, %v1971, 0
    %v2005 = vsel %vm185, %v1972, 0
    %v2008 = vsel %vm185, %v1973, 0
    %v2011 = vsel %vm185, %v1974, 0
    %v2014 = vsel %vm185, %v1975, 0
    %v2017 = vsel %vm185, %v1976, 0
    %v2020 = vsel %vm185, %v1977, 0
    %v2023 = vsel %vm185, %v1978, 0
    %v2026 = vsel %vm185, %v1979, 0
    %v2029 = vsel %vm234, %v1959, 0
    %2031 = vmatpush.msra.mxu0 0.0
    %2032 = vmatpush.msra.mxu0 0.0
    %2033 = vmatpush.msra.mxu0 0.0
    %2034 = vmatpush.msra.mxu0 0.0
    %2035 = vmatpush.msra.mxu0 0.0
    %2036 = vmatpush.msra.mxu0 0.0
    %2037 = vmatpush.msra.mxu0 0.0
    %2038 = vmatpush.msra.mxu0 0.0
    %2039 = vmatpush.msra.mxu0 0.0
    %2040 = vmatpush.msra.mxu0 0.0
    %2041 = vmatpush.msra.mxu0 0.0
    %2042 = vmatpush.msra.mxu0 0.0
    %2043 = vmatpush.msra.mxu0 0.0
    %2044 = vmatpush.msra.mxu0 0.0
    %2045 = vmatpush.msra.mxu0 0.0
    %2046 = vmatpush.msra.mxu0 %v2029
    %2047 = vmatmul.f32.gmra.mxu0 %v1981
    %v2048 = vpop.f32.mrf.mxu0
    %v2049 = vadd.f32 0.0, %v2048
    %2050 = vmatmul.f32.gmra.mxu0 %v1984
    %v2051 = vpop.f32.mrf.mxu0
    %v2052 = vadd.f32 0.0, %v2051
    %2053 = vmatmul.f32.gmra.mxu0 %v1987
    %v2054 = vpop.f32.mrf.mxu0
    %v2055 = vadd.f32 0.0, %v2054
    %2056 = vmatmul.f32.gmra.mxu0 %v1990
    %v2057 = vpop.f32.mrf.mxu0
    %v2058 = vadd.f32 0.0, %v2057
    %2059 = vmatmul.f32.gmra.mxu0 %v1993
    %v2060 = vpop.f32.mrf.mxu0
    %v2061 = vadd.f32 0.0, %v2060
    %2062 = vmatmul.f32.gmra.mxu0 %v1996
    %v2063 = vpop.f32.mrf.mxu0
    %v2064 = vadd.f32 0.0, %v2063
    %2065 = vmatmul.f32.gmra.mxu0 %v1999
    %v2066 = vpop.f32.mrf.mxu0
    %v2067 = vadd.f32 0.0, %v2066
    %2068 = vmatmul.f32.gmra.mxu0 %v2002
    %v2069 = vpop.f32.mrf.mxu0
    %v2070 = vadd.f32 0.0, %v2069
    %2071 = vmatmul.f32.gmra.mxu0 %v2005
    %v2072 = vpop.f32.mrf.mxu0
    %v2073 = vadd.f32 0.0, %v2072
    %2074 = vmatmul.f32.gmra.mxu0 %v2008
    %v2075 = vpop.f32.mrf.mxu0
    %v2076 = vadd.f32 0.0, %v2075
    %2077 = vmatmul.f32.gmra.mxu0 %v2011
    %v2078 = vpop.f32.mrf.mxu0
    %v2079 = vadd.f32 0.0, %v2078
    %2080 = vmatmul.f32.gmra.mxu0 %v2014
    %v2081 = vpop.f32.mrf.mxu0
    %v2082 = vadd.f32 0.0, %v2081
    %2083 = vmatmul.f32.gmra.mxu0 %v2017
    %v2084 = vpop.f32.mrf.mxu0
    %v2085 = vadd.f32 0.0, %v2084
    %2086 = vmatmul.f32.gmra.mxu0 %v2020
    %v2087 = vpop.f32.mrf.mxu0
    %v2088 = vadd.f32 0.0, %v2087
    %2089 = vmatmul.f32.gmra.mxu0 %v2023
    %v2090 = vpop.f32.mrf.mxu0
    %v2091 = vadd.f32 0.0, %v2090
    %2092 = vmatmul.f32.gmra.mxu0 %v2026
    %v2093 = vpop.f32.mrf.mxu0
    %v2094 = vadd.f32 0.0, %v2093
    %2095 = vdwg.mxu0
    %v2097 = vrot.slane %v1953, 1
    %v2098 = vrot.slane %v1953, 2
    %v2099 = vrot.slane %v1953, 3
    %v2100 = vrot.slane %v1953, 4
    %v2101 = vrot.slane %v1953, 5
    %v2102 = vrot.slane %v1953, 6
    %v2103 = vrot.slane %v1953, 7
    %v2104 = vperm.slane %v1953, 0
    %v2105 = vperm.slane %v2097, 0
    %v2106 = vperm.slane %v2098, 0
    %v2107 = vperm.slane %v2099, 0
    %v2108 = vperm.slane %v2100, 0
    %v2109 = vperm.slane %v2101, 0
    %v2110 = vperm.slane %v2102, 0
    %v2111 = vperm.slane %v2103, 0
    %v2120 = vadd.f32 %v2104, %v1930
    %v2121 = vadd.f32 %v2104, %v1933
    %v2122 = vadd.f32 %v2105, %v1930
    %v2123 = vadd.f32 %v2105, %v1933
    %v2124 = vadd.f32 %v2106, %v1930
    %v2125 = vadd.f32 %v2106, %v1933
    %v2126 = vadd.f32 %v2107, %v1930
    %v2127 = vadd.f32 %v2107, %v1933
    %v2128 = vadd.f32 %v2108, %v1930
    %v2129 = vadd.f32 %v2108, %v1933
    %v2130 = vadd.f32 %v2109, %v1930
    %v2131 = vadd.f32 %v2109, %v1933
    %v2132 = vadd.f32 %v2110, %v1930
    %v2133 = vadd.f32 %v2110, %v1933
    %v2134 = vadd.f32 %v2111, %v1930
    %v2135 = vadd.f32 %v2111, %v1933
    %v2136 = vadd.f32 %v2120, %v2049
    %v2137 = vadd.f32 %v2121, %v2052
    %v2138 = vadd.f32 %v2122, %v2055
    %v2139 = vadd.f32 %v2123, %v2058
    %v2140 = vadd.f32 %v2124, %v2061
    %v2141 = vadd.f32 %v2125, %v2064
    %v2142 = vadd.f32 %v2126, %v2067
    %v2143 = vadd.f32 %v2127, %v2070
    %v2144 = vadd.f32 %v2128, %v2073
    %v2145 = vadd.f32 %v2129, %v2076
    %v2146 = vadd.f32 %v2130, %v2079
    %v2147 = vadd.f32 %v2131, %v2082
    %v2148 = vadd.f32 %v2132, %v2085
    %v2149 = vadd.f32 %v2133, %v2088
    %v2150 = vadd.f32 %v2134, %v2091
    %v2151 = vadd.f32 %v2135, %v2094
    %vm2152 = vcmp.gt.f32.partialorder %v2136, 0.0
    %vm2153 = vcmp.gt.f32.partialorder %v2137, 0.0
    %vm2154 = vcmp.gt.f32.partialorder %v2138, 0.0
    %vm2155 = vcmp.gt.f32.partialorder %v2139, 0.0
    %vm2156 = vcmp.gt.f32.partialorder %v2140, 0.0
    %vm2157 = vcmp.gt.f32.partialorder %v2141, 0.0
    %vm2158 = vcmp.gt.f32.partialorder %v2142, 0.0
    %vm2159 = vcmp.gt.f32.partialorder %v2143, 0.0
    %vm2160 = vcmp.gt.f32.partialorder %v2144, 0.0
    %vm2161 = vcmp.gt.f32.partialorder %v2145, 0.0
    %vm2162 = vcmp.gt.f32.partialorder %v2146, 0.0
    %vm2163 = vcmp.gt.f32.partialorder %v2147, 0.0
    %vm2164 = vcmp.gt.f32.partialorder %v2148, 0.0
    %vm2165 = vcmp.gt.f32.partialorder %v2149, 0.0
    %vm2166 = vcmp.gt.f32.partialorder %v2150, 0.0
    %vm2167 = vcmp.gt.f32.partialorder %v2151, 0.0
    %v2168 = vmul.f32 %v2136, 0.2
    %v2169 = vmul.f32 %v2137, 0.2
    %v2170 = vmul.f32 %v2138, 0.2
    %v2171 = vmul.f32 %v2139, 0.2
    %v2172 = vmul.f32 %v2140, 0.2
    %v2173 = vmul.f32 %v2141, 0.2
    %v2174 = vmul.f32 %v2142, 0.2
    %v2175 = vmul.f32 %v2143, 0.2
    %v2176 = vmul.f32 %v2144, 0.2
    %v2177 = vmul.f32 %v2145, 0.2
    %v2178 = vmul.f32 %v2146, 0.2
    %v2179 = vmul.f32 %v2147, 0.2
    %v2180 = vmul.f32 %v2148, 0.2
    %v2181 = vmul.f32 %v2149, 0.2
    %v2182 = vmul.f32 %v2150, 0.2
    %v2183 = vmul.f32 %v2151, 0.2
    %v2184 = vsel %vm2152, %v2136, %v2168
    %v2185 = vsel %vm2153, %v2137, %v2169
    %v2186 = vsel %vm2154, %v2138, %v2170
    %v2187 = vsel %vm2155, %v2139, %v2171
    %v2188 = vsel %vm2156, %v2140, %v2172
    %v2189 = vsel %vm2157, %v2141, %v2173
    %v2190 = vsel %vm2158, %v2142, %v2174
    %v2191 = vsel %vm2159, %v2143, %v2175
    %v2192 = vsel %vm2160, %v2144, %v2176
    %v2193 = vsel %vm2161, %v2145, %v2177
    %v2194 = vsel %vm2162, %v2146, %v2178
    %v2195 = vsel %vm2163, %v2147, %v2179
    %v2196 = vsel %vm2164, %v2148, %v2180
    %v2197 = vsel %vm2165, %v2149, %v2181
    %v2198 = vsel %vm2166, %v2150, %v2182
    %v2199 = vsel %vm2167, %v2151, %v2183
    %v2201 = vperm.slane %v1961, 0
    %v2203 = vmul.f32 %v2184, %v2201
    %v2204 = vmul.f32 %v2185, %v2201
    %v2205 = vmul.f32 %v2186, %v2201
    %v2206 = vmul.f32 %v2187, %v2201
    %v2207 = vmul.f32 %v2188, %v2201
    %v2208 = vmul.f32 %v2189, %v2201
    %v2209 = vmul.f32 %v2190, %v2201
    %v2210 = vmul.f32 %v2191, %v2201
    %v2211 = vmul.f32 %v2192, %v2201
    %v2212 = vmul.f32 %v2193, %v2201
    %v2213 = vmul.f32 %v2194, %v2201
    %v2214 = vmul.f32 %v2195, %v2201
    %v2215 = vmul.f32 %v2196, %v2201
    %v2216 = vmul.f32 %v2197, %v2201
    %v2217 = vmul.f32 %v2198, %v2201
    %v2218 = vmul.f32 %v2199, %v2201
    %2219 = vadd.xlane.f32.xlu0 %v2203
    %v2220 = vpop.xlane.xlu0 %2219
    %2221 = vadd.xlane.f32.xlu0 %v2204
    %v2222 = vpop.xlane.xlu0 %2221
    %2223 = vadd.xlane.f32.xlu0 %v2205
    %v2224 = vpop.xlane.xlu0 %2223
    %2225 = vadd.xlane.f32.xlu0 %v2206
    %v2226 = vpop.xlane.xlu0 %2225
    %2227 = vadd.xlane.f32.xlu0 %v2207
    %v2228 = vpop.xlane.xlu0 %2227
    %2229 = vadd.xlane.f32.xlu0 %v2208
    %v2230 = vpop.xlane.xlu0 %2229
    %2231 = vadd.xlane.f32.xlu0 %v2209
    %v2232 = vpop.xlane.xlu0 %2231
    %2233 = vadd.xlane.f32.xlu0 %v2210
    %v2234 = vpop.xlane.xlu0 %2233
    %2235 = vadd.xlane.f32.xlu0 %v2211
    %v2236 = vpop.xlane.xlu0 %2235
    %2237 = vadd.xlane.f32.xlu0 %v2212
    %v2238 = vpop.xlane.xlu0 %2237
    %2239 = vadd.xlane.f32.xlu0 %v2213
    %v2240 = vpop.xlane.xlu0 %2239
    %2241 = vadd.xlane.f32.xlu0 %v2214
    %v2242 = vpop.xlane.xlu0 %2241
    %2243 = vadd.xlane.f32.xlu0 %v2215
    %v2244 = vpop.xlane.xlu0 %2243
    %2245 = vadd.xlane.f32.xlu0 %v2216
    %v2246 = vpop.xlane.xlu0 %2245
    %2247 = vadd.xlane.f32.xlu0 %v2217
    %v2248 = vpop.xlane.xlu0 %2247
    %2249 = vadd.xlane.f32.xlu0 %v2218
    %v2250 = vpop.xlane.xlu0 %2249
    %v2267 = vperm.slane %v2220, %v475
    %v2268 = vperm.slane %v2222, %v477
    %v2269 = vsel %vm479, %v2268, %v2267
    %v2270 = vperm.slane %v2224, %v475
    %v2271 = vperm.slane %v2226, %v477
    %v2272 = vsel %vm479, %v2271, %v2270
    %v2273 = vperm.slane %v2228, %v475
    %v2274 = vperm.slane %v2230, %v477
    %v2275 = vsel %vm479, %v2274, %v2273
    %v2276 = vperm.slane %v2232, %v475
    %v2277 = vperm.slane %v2234, %v477
    %v2278 = vsel %vm479, %v2277, %v2276
    %v2279 = vperm.slane %v2236, %v475
    %v2280 = vperm.slane %v2238, %v477
    %v2281 = vsel %vm479, %v2280, %v2279
    %v2282 = vperm.slane %v2240, %v475
    %v2283 = vperm.slane %v2242, %v477
    %v2284 = vsel %vm479, %v2283, %v2282
    %v2285 = vperm.slane %v2244, %v475
    %v2286 = vperm.slane %v2246, %v477
    %v2287 = vsel %vm479, %v2286, %v2285
    %v2288 = vperm.slane %v2248, %v475
    %v2289 = vperm.slane %v2250, %v477
    %v2290 = vsel %vm479, %v2289, %v2288
    %v2291 = vsel %vm502, %v2272, %v2269
    %v2292 = vsel %vm504, %v2275, %v2291
    %v2293 = vsel %vm506, %v2278, %v2292
    %v2294 = vsel %vm508, %v2281, %v2293
    %v2295 = vsel %vm510, %v2284, %v2294
    %v2296 = vsel %vm512, %v2287, %v2295
    %v2297 = vsel %vm514, %v2290, %v2296
    %v2299 = vsel %vm78, %v2297, -1e+30
    %v2300 = vsel %vm518, %v2299, -inf
    %2301 = vmax.xlane.f32.xlu0 %v2300
    %v2302 = vpop.xlane.xlu0 %2301
    %v2303 = vsub.f32 %v2299, %v2302
    %v2304 = vmul.f32 %v2303, 1.442695
    %v2305 = vpow.pop %v2304
    %v2306 = vsel %vm78, %v2305, 0.0
    %v2307 = vsel %vm518, %v2306, 0.0
    %2308 = vadd.xlane.f32.xlu0 %v2307
    %v2309 = vpop.xlane.xlu0 %2308
    %v2310 = vrcp.pop %v2309
    %v2311 = vmul.f32 %v2306, %v2310
    %v2313 = vperm.slane %v1963, 0
    %v2316 = vsel %vm518, %v2311, 0
    %2318 = vmatpush.msra.mxu0 0.0
    %2319 = vmatpush.msra.mxu0 0.0
    %2320 = vmatpush.msra.mxu0 0.0
    %2321 = vmatpush.msra.mxu0 0.0
    %2322 = vmatpush.msra.mxu0 0.0
    %2323 = vmatpush.msra.mxu0 0.0
    %2324 = vmatpush.msra.mxu0 0.0
    %2325 = vmatpush.msra.mxu0 0.0
    %2326 = vmatpush.msra.mxu0 0.0
    %2327 = vmatpush.msra.mxu0 0.0
    %2328 = vmatpush.msra.mxu0 0.0
    %2329 = vmatpush.msra.mxu0 0.0
    %2330 = vmatpush.msra.mxu0 0.0
    %2331 = vmatpush.msra.mxu0 0.0
    %2332 = vmatpush.msra.mxu0 %v1933
    %2333 = vmatpush.msra.mxu0 %v1930
    %2334 = vmatmul.f32.gmra.mxu0 %v2316
    %v2335 = vpop.f32.mrf.mxu0
    %v2336 = vadd.f32 %v2313, %v2335
    %2337 = vdwg.mxu0
    %2338 = vst [vmem:[#allocation2] sm:$0xff] %v2336
    %v2339 = vld [vmem:[%s2 + $0x80] sm:$0xff]
    %v2340 = vld [vmem:[%s2 + $0x88] sm:$0xff]
    %v2341 = vld [vmem:[%s2 + $0x90] sm:$0xff]
    %v2342 = vld [vmem:[%s2 + $0x98] sm:$0xff]
    %v2343 = vld [vmem:[%s2 + $0xa0] sm:$0xff]
    %v2344 = vld [vmem:[%s2 + $0xa8] sm:$0xff]
    %v2345 = vld [vmem:[%s2 + $0xb0] sm:$0xff]
    %v2346 = vld [vmem:[%s2 + $0xb8] sm:$0xff]
    %v2347 = vld [vmem:[%s2 + $0xc0] sm:$0xff]
    %v2348 = vld [vmem:[%s2 + $0xc8] sm:$0xff]
    %v2349 = vld [vmem:[%s2 + $0xd0] sm:$0xff]
    %v2350 = vld [vmem:[%s2 + $0xd8] sm:$0xff]
    %v2351 = vld [vmem:[%s2 + $0xe0] sm:$0xff]
    %v2352 = vld [vmem:[%s2 + $0xe8] sm:$0xff]
    %v2353 = vld [vmem:[%s2 + $0xf0] sm:$0xff]
    %v2354 = vld [vmem:[%s2 + $0xf8] sm:$0xff]
    %v2356 = vsel %vm185, %v2339, 0
    %v2359 = vsel %vm185, %v2340, 0
    %v2362 = vsel %vm185, %v2341, 0
    %v2365 = vsel %vm185, %v2342, 0
    %v2368 = vsel %vm185, %v2343, 0
    %v2371 = vsel %vm185, %v2344, 0
    %v2374 = vsel %vm185, %v2345, 0
    %v2377 = vsel %vm185, %v2346, 0
    %v2380 = vsel %vm185, %v2347, 0
    %v2383 = vsel %vm185, %v2348, 0
    %v2386 = vsel %vm185, %v2349, 0
    %v2389 = vsel %vm185, %v2350, 0
    %v2392 = vsel %vm185, %v2351, 0
    %v2395 = vsel %vm185, %v2352, 0
    %v2398 = vsel %vm185, %v2353, 0
    %v2401 = vsel %vm185, %v2354, 0
    %2403 = vmatpush.msra.mxu0 0.0
    %2404 = vmatpush.msra.mxu0 0.0
    %2405 = vmatpush.msra.mxu0 0.0
    %2406 = vmatpush.msra.mxu0 0.0
    %2407 = vmatpush.msra.mxu0 0.0
    %2408 = vmatpush.msra.mxu0 0.0
    %2409 = vmatpush.msra.mxu0 0.0
    %2410 = vmatpush.msra.mxu0 0.0
    %2411 = vmatpush.msra.mxu0 0.0
    %2412 = vmatpush.msra.mxu0 0.0
    %2413 = vmatpush.msra.mxu0 0.0
    %2414 = vmatpush.msra.mxu0 0.0
    %2415 = vmatpush.msra.mxu0 0.0
    %2416 = vmatpush.msra.mxu0 0.0
    %2417 = vmatpush.msra.mxu0 0.0
    %2418 = vmatpush.msra.mxu0 %v2029
    %2419 = vmatmul.f32.gmra.mxu0 %v2356
    %v2420 = vpop.f32.mrf.mxu0
    %v2421 = vadd.f32 0.0, %v2420
    %2422 = vmatmul.f32.gmra.mxu0 %v2359
    %v2423 = vpop.f32.mrf.mxu0
    %v2424 = vadd.f32 0.0, %v2423
    %2425 = vmatmul.f32.gmra.mxu0 %v2362
    %v2426 = vpop.f32.mrf.mxu0
    %v2427 = vadd.f32 0.0, %v2426
    %2428 = vmatmul.f32.gmra.mxu0 %v2365
    %v2429 = vpop.f32.mrf.mxu0
    %v2430 = vadd.f32 0.0, %v2429
    %2431 = vmatmul.f32.gmra.mxu0 %v2368
    %v2432 = vpop.f32.mrf.mxu0
    %v2433 = vadd.f32 0.0, %v2432
    %2434 = vmatmul.f32.gmra.mxu0 %v2371
    %v2435 = vpop.f32.mrf.mxu0
    %v2436 = vadd.f32 0.0, %v2435
    %2437 = vmatmul.f32.gmra.mxu0 %v2374
    %v2438 = vpop.f32.mrf.mxu0
    %v2439 = vadd.f32 0.0, %v2438
    %2440 = vmatmul.f32.gmra.mxu0 %v2377
    %v2441 = vpop.f32.mrf.mxu0
    %v2442 = vadd.f32 0.0, %v2441
    %2443 = vmatmul.f32.gmra.mxu0 %v2380
    %v2444 = vpop.f32.mrf.mxu0
    %v2445 = vadd.f32 0.0, %v2444
    %2446 = vmatmul.f32.gmra.mxu0 %v2383
    %v2447 = vpop.f32.mrf.mxu0
    %v2448 = vadd.f32 0.0, %v2447
    %2449 = vmatmul.f32.gmra.mxu0 %v2386
    %v2450 = vpop.f32.mrf.mxu0
    %v2451 = vadd.f32 0.0, %v2450
    %2452 = vmatmul.f32.gmra.mxu0 %v2389
    %v2453 = vpop.f32.mrf.mxu0
    %v2454 = vadd.f32 0.0, %v2453
    %2455 = vmatmul.f32.gmra.mxu0 %v2392
    %v2456 = vpop.f32.mrf.mxu0
    %v2457 = vadd.f32 0.0, %v2456
    %2458 = vmatmul.f32.gmra.mxu0 %v2395
    %v2459 = vpop.f32.mrf.mxu0
    %v2460 = vadd.f32 0.0, %v2459
    %2461 = vmatmul.f32.gmra.mxu0 %v2398
    %v2462 = vpop.f32.mrf.mxu0
    %v2463 = vadd.f32 0.0, %v2462
    %2464 = vmatmul.f32.gmra.mxu0 %v2401
    %v2465 = vpop.f32.mrf.mxu0
    %v2466 = vadd.f32 0.0, %v2465
    %2467 = vdwg.mxu0
    %v2469 = vrot.slane %v1956, 1
    %v2470 = vrot.slane %v1956, 2
    %v2471 = vrot.slane %v1956, 3
    %v2472 = vrot.slane %v1956, 4
    %v2473 = vrot.slane %v1956, 5
    %v2474 = vrot.slane %v1956, 6
    %v2475 = vrot.slane %v1956, 7
    %v2476 = vperm.slane %v1956, 0
    %v2477 = vperm.slane %v2469, 0
    %v2478 = vperm.slane %v2470, 0
    %v2479 = vperm.slane %v2471, 0
    %v2480 = vperm.slane %v2472, 0
    %v2481 = vperm.slane %v2473, 0
    %v2482 = vperm.slane %v2474, 0
    %v2483 = vperm.slane %v2475, 0
    %v2492 = vadd.f32 %v2476, %v1930
    %v2493 = vadd.f32 %v2476, %v1933
    %v2494 = vadd.f32 %v2477, %v1930
    %v2495 = vadd.f32 %v2477, %v1933
    %v2496 = vadd.f32 %v2478, %v1930
    %v2497 = vadd.f32 %v2478, %v1933
    %v2498 = vadd.f32 %v2479, %v1930
    %v2499 = vadd.f32 %v2479, %v1933
    %v2500 = vadd.f32 %v2480, %v1930
    %v2501 = vadd.f32 %v2480, %v1933
    %v2502 = vadd.f32 %v2481, %v1930
    %v2503 = vadd.f32 %v2481, %v1933
    %v2504 = vadd.f32 %v2482, %v1930
    %v2505 = vadd.f32 %v2482, %v1933
    %v2506 = vadd.f32 %v2483, %v1930
    %v2507 = vadd.f32 %v2483, %v1933
    %v2508 = vadd.f32 %v2492, %v2421
    %v2509 = vadd.f32 %v2493, %v2424
    %v2510 = vadd.f32 %v2494, %v2427
    %v2511 = vadd.f32 %v2495, %v2430
    %v2512 = vadd.f32 %v2496, %v2433
    %v2513 = vadd.f32 %v2497, %v2436
    %v2514 = vadd.f32 %v2498, %v2439
    %v2515 = vadd.f32 %v2499, %v2442
    %v2516 = vadd.f32 %v2500, %v2445
    %v2517 = vadd.f32 %v2501, %v2448
    %v2518 = vadd.f32 %v2502, %v2451
    %v2519 = vadd.f32 %v2503, %v2454
    %v2520 = vadd.f32 %v2504, %v2457
    %v2521 = vadd.f32 %v2505, %v2460
    %v2522 = vadd.f32 %v2506, %v2463
    %v2523 = vadd.f32 %v2507, %v2466
    %vm2524 = vcmp.gt.f32.partialorder %v2508, 0.0
    %vm2525 = vcmp.gt.f32.partialorder %v2509, 0.0
    %vm2526 = vcmp.gt.f32.partialorder %v2510, 0.0
    %vm2527 = vcmp.gt.f32.partialorder %v2511, 0.0
    %vm2528 = vcmp.gt.f32.partialorder %v2512, 0.0
    %vm2529 = vcmp.gt.f32.partialorder %v2513, 0.0
    %vm2530 = vcmp.gt.f32.partialorder %v2514, 0.0
    %vm2531 = vcmp.gt.f32.partialorder %v2515, 0.0
    %vm2532 = vcmp.gt.f32.partialorder %v2516, 0.0
    %vm2533 = vcmp.gt.f32.partialorder %v2517, 0.0
    %vm2534 = vcmp.gt.f32.partialorder %v2518, 0.0
    %vm2535 = vcmp.gt.f32.partialorder %v2519, 0.0
    %vm2536 = vcmp.gt.f32.partialorder %v2520, 0.0
    %vm2537 = vcmp.gt.f32.partialorder %v2521, 0.0
    %vm2538 = vcmp.gt.f32.partialorder %v2522, 0.0
    %vm2539 = vcmp.gt.f32.partialorder %v2523, 0.0
    %v2540 = vmul.f32 %v2508, 0.2
    %v2541 = vmul.f32 %v2509, 0.2
    %v2542 = vmul.f32 %v2510, 0.2
    %v2543 = vmul.f32 %v2511, 0.2
    %v2544 = vmul.f32 %v2512, 0.2
    %v2545 = vmul.f32 %v2513, 0.2
    %v2546 = vmul.f32 %v2514, 0.2
    %v2547 = vmul.f32 %v2515, 0.2
    %v2548 = vmul.f32 %v2516, 0.2
    %v2549 = vmul.f32 %v2517, 0.2
    %v2550 = vmul.f32 %v2518, 0.2
    %v2551 = vmul.f32 %v2519, 0.2
    %v2552 = vmul.f32 %v2520, 0.2
    %v2553 = vmul.f32 %v2521, 0.2
    %v2554 = vmul.f32 %v2522, 0.2
    %v2555 = vmul.f32 %v2523, 0.2
    %v2556 = vsel %vm2524, %v2508, %v2540
    %v2557 = vsel %vm2525, %v2509, %v2541
    %v2558 = vsel %vm2526, %v2510, %v2542
    %v2559 = vsel %vm2527, %v2511, %v2543
    %v2560 = vsel %vm2528, %v2512, %v2544
    %v2561 = vsel %vm2529, %v2513, %v2545
    %v2562 = vsel %vm2530, %v2514, %v2546
    %v2563 = vsel %vm2531, %v2515, %v2547
    %v2564 = vsel %vm2532, %v2516, %v2548
    %v2565 = vsel %vm2533, %v2517, %v2549
    %v2566 = vsel %vm2534, %v2518, %v2550
    %v2567 = vsel %vm2535, %v2519, %v2551
    %v2568 = vsel %vm2536, %v2520, %v2552
    %v2569 = vsel %vm2537, %v2521, %v2553
    %v2570 = vsel %vm2538, %v2522, %v2554
    %v2571 = vsel %vm2539, %v2523, %v2555
    %v2572 = vmul.f32 %v2556, %v2201
    %v2573 = vmul.f32 %v2557, %v2201
    %v2574 = vmul.f32 %v2558, %v2201
    %v2575 = vmul.f32 %v2559, %v2201
    %v2576 = vmul.f32 %v2560, %v2201
    %v2577 = vmul.f32 %v2561, %v2201
    %v2578 = vmul.f32 %v2562, %v2201
    %v2579 = vmul.f32 %v2563, %v2201
    %v2580 = vmul.f32 %v2564, %v2201
    %v2581 = vmul.f32 %v2565, %v2201
    %v2582 = vmul.f32 %v2566, %v2201
    %v2583 = vmul.f32 %v2567, %v2201
    %v2584 = vmul.f32 %v2568, %v2201
    %v2585 = vmul.f32 %v2569, %v2201
    %v2586 = vmul.f32 %v2570, %v2201
    %v2587 = vmul.f32 %v2571, %v2201
    %2588 = vadd.xlane.f32.xlu0 %v2572
    %v2589 = vpop.xlane.xlu0 %2588
    %2590 = vadd.xlane.f32.xlu0 %v2573
    %v2591 = vpop.xlane.xlu0 %2590
    %2592 = vadd.xlane.f32.xlu0 %v2574
    %v2593 = vpop.xlane.xlu0 %2592
    %2594 = vadd.xlane.f32.xlu0 %v2575
    %v2595 = vpop.xlane.xlu0 %2594
    %2596 = vadd.xlane.f32.xlu0 %v2576
    %v2597 = vpop.xlane.xlu0 %2596
    %2598 = vadd.xlane.f32.xlu0 %v2577
    %v2599 = vpop.xlane.xlu0 %2598
    %2600 = vadd.xlane.f32.xlu0 %v2578
    %v2601 = vpop.xlane.xlu0 %2600
    %2602 = vadd.xlane.f32.xlu0 %v2579
    %v2603 = vpop.xlane.xlu0 %2602
    %2604 = vadd.xlane.f32.xlu0 %v2580
    %v2605 = vpop.xlane.xlu0 %2604
    %2606 = vadd.xlane.f32.xlu0 %v2581
    %v2607 = vpop.xlane.xlu0 %2606
    %2608 = vadd.xlane.f32.xlu0 %v2582
    %v2609 = vpop.xlane.xlu0 %2608
    %2610 = vadd.xlane.f32.xlu0 %v2583
    %v2611 = vpop.xlane.xlu0 %2610
    %2612 = vadd.xlane.f32.xlu0 %v2584
    %v2613 = vpop.xlane.xlu0 %2612
    %2614 = vadd.xlane.f32.xlu0 %v2585
    %v2615 = vpop.xlane.xlu0 %2614
    %2616 = vadd.xlane.f32.xlu0 %v2586
    %v2617 = vpop.xlane.xlu0 %2616
    %2618 = vadd.xlane.f32.xlu0 %v2587
    %v2619 = vpop.xlane.xlu0 %2618
    %v2636 = vperm.slane %v2589, %v475
    %v2637 = vperm.slane %v2591, %v477
    %v2638 = vsel %vm479, %v2637, %v2636
    %v2639 = vperm.slane %v2593, %v475
    %v2640 = vperm.slane %v2595, %v477
    %v2641 = vsel %vm479, %v2640, %v2639
    %v2642 = vperm.slane %v2597, %v475
    %v2643 = vperm.slane %v2599, %v477
    %v2644 = vsel %vm479, %v2643, %v2642
    %v2645 = vperm.slane %v2601, %v475
    %v2646 = vperm.slane %v2603, %v477
    %v2647 = vsel %vm479, %v2646, %v2645
    %v2648 = vperm.slane %v2605, %v475
    %v2649 = vperm.slane %v2607, %v477
    %v2650 = vsel %vm479, %v2649, %v2648
    %v2651 = vperm.slane %v2609, %v475
    %v2652 = vperm.slane %v2611, %v477
    %v2653 = vsel %vm479, %v2652, %v2651
    %v2654 = vperm.slane %v2613, %v475
    %v2655 = vperm.slane %v2615, %v477
    %v2656 = vsel %vm479, %v2655, %v2654
    %v2657 = vperm.slane %v2617, %v475
    %v2658 = vperm.slane %v2619, %v477
    %v2659 = vsel %vm479, %v2658, %v2657
    %v2660 = vsel %vm502, %v2641, %v2638
    %v2661 = vsel %vm504, %v2644, %v2660
    %v2662 = vsel %vm506, %v2647, %v2661
    %v2663 = vsel %vm508, %v2650, %v2662
    %v2664 = vsel %vm510, %v2653, %v2663
    %v2665 = vsel %vm512, %v2656, %v2664
    %v2666 = vsel %vm514, %v2659, %v2665
    %v2668 = vsel %vm79, %v2666, -1e+30
    %v2669 = vsel %vm518, %v2668, -inf
    %2670 = vmax.xlane.f32.xlu0 %v2669
    %v2671 = vpop.xlane.xlu0 %2670
    %v2672 = vsub.f32 %v2668, %v2671
    %v2673 = vmul.f32 %v2672, 1.442695
    %v2674 = vpow.pop %v2673
    %v2675 = vsel %vm79, %v2674, 0.0
    %v2676 = vsel %vm518, %v2675, 0.0
    %2677 = vadd.xlane.f32.xlu0 %v2676
    %v2678 = vpop.xlane.xlu0 %2677
    %v2679 = vrcp.pop %v2678
    %v2680 = vmul.f32 %v2675, %v2679
    %v2682 = vsel %vm518, %v2680, 0
    %2684 = vmatpush.msra.mxu0 0.0
    %2685 = vmatpush.msra.mxu0 0.0
    %2686 = vmatpush.msra.mxu0 0.0
    %2687 = vmatpush.msra.mxu0 0.0
    %2688 = vmatpush.msra.mxu0 0.0
    %2689 = vmatpush.msra.mxu0 0.0
    %2690 = vmatpush.msra.mxu0 0.0
    %2691 = vmatpush.msra.mxu0 0.0
    %2692 = vmatpush.msra.mxu0 0.0
    %2693 = vmatpush.msra.mxu0 0.0
    %2694 = vmatpush.msra.mxu0 0.0
    %2695 = vmatpush.msra.mxu0 0.0
    %2696 = vmatpush.msra.mxu0 0.0
    %2697 = vmatpush.msra.mxu0 0.0
    %2698 = vmatpush.msra.mxu0 %v1933
    %2699 = vmatpush.msra.mxu0 %v1930
    %2700 = vmatmul.f32.gmra.mxu0 %v2682
    %v2701 = vpop.f32.mrf.mxu0
    %v2702 = vadd.f32 %v2313, %v2701
    %2703 = vdwg.mxu0
    %2704 = vst [vmem:[#allocation2 + $0x8] sm:$0xff] %v2702
    %v2705 = vld [vmem:[#allocation2] sm:$0xff]
    %v2706 = vld [vmem:[#allocation2 + $0x8] sm:$0xff]
    %v2707 = vadd.f32 %v2705, %v2706
    %v2708 = vrot.slane %v2707, 4
    %v2709 = vadd.f32 %v2707, %v2708
    %v2710 = vrot.slane %v2709, 2
    %v2711 = vadd.f32 %v2709, %v2710
    %v2712 = vrot.slane %v2711, 1
    %v2713 = vadd.f32 %v2711, %v2712
    %v2714 = vmul.f32 %v2713, %v939
    %v2715 = vsub.f32 %v2705, %v2714
    %v2716 = vsub.f32 %v2706, %v2714
    %v2717 = vmul.f32 %v2715, %v2715
    %v2718 = vmul.f32 %v2716, %v2716
    %v2719 = vadd.f32 %v2717, %v2718
    %v2720 = vrot.slane %v2719, 4
    %v2721 = vadd.f32 %v2719, %v2720
    %v2722 = vrot.slane %v2721, 2
    %v2723 = vadd.f32 %v2721, %v2722
    %v2724 = vrot.slane %v2723, 1
    %v2725 = vadd.f32 %v2723, %v2724
    %v2726 = vmul.f32 %v2725, %v939
    %v2727 = vadd.f32 %v2726, 1e-05
    %v2728 = vrsqrt.pop %v2727
    %v2729 = vmul.f32 %v2728, %v2727
    %v2730 = vmul.f32 %v2729, %v2728
    %v2731 = vmul.f32 0.5, %v2730
    %v2732 = vsub.f32 1.5, %v2731
    %v2733 = vmul.f32 %v2728, %v2732
    %vm2734 = vweird.f32 %v2727
    %vm2735 = vweird.f32 %v2728
    %vm2736 = vmor %vm2734, %vm2735
    %v2737 = vsel %vm2736, %v2728, %v2733
    %v2738 = vmul.f32 %v2715, %v2737
    %v2739 = vmul.f32 %v2716, %v2737
    %s2740 = scalar_lea.vmem %s11, 2
    %v2741 = vld [vmem:[%s2740] sm:$0x1]
    %v2743 = vperm.slane %v2741, 0
    %v2745 = vmul.f32 %v2738, %v2743
    %v2746 = vmul.f32 %v2739, %v2743
    %s2747 = scalar_lea.vmem %s12, 2
    %v2748 = vld [vmem:[%s2747] sm:$0x1]
    %v2750 = vperm.slane %v2748, 0
    %v2752 = vadd.f32 %v2745, %v2750
    %v2753 = vadd.f32 %v2746, %v2750
    %vm2754 = vcmp.gt.f32.partialorder %v2752, 0.0
    %vm2755 = vcmp.gt.f32.partialorder %v2753, 0.0
    %v2756 = vmul.f32 %v2752, 0.01
    %v2757 = vmul.f32 %v2753, 0.01
    %v2758 = vsel %vm2754, %v2752, %v2756
    %v2759 = vsel %vm2755, %v2753, %v2757
    %s2760 = scalar_lea.vmem [#allocation3], 768
    %v2761 = vld [vmem:[%s2760] sm:$0xff]
    %v2762 = vld [vmem:[%s2760 + $0x8] sm:$0xff]
    %v2763 = vld [vmem:[%s2760 + $0x10] sm:$0xff]
    %v2764 = vld [vmem:[%s2760 + $0x18] sm:$0xff]
    %v2765 = vld [vmem:[%s2760 + $0x20] sm:$0xff]
    %v2766 = vld [vmem:[%s2760 + $0x28] sm:$0xff]
    %v2767 = vld [vmem:[%s2760 + $0x30] sm:$0xff]
    %v2768 = vld [vmem:[%s2760 + $0x38] sm:$0xff]
    %v2769 = vld [vmem:[%s2760 + $0x40] sm:$0xff]
    %v2770 = vld [vmem:[%s2760 + $0x48] sm:$0xff]
    %v2771 = vld [vmem:[%s2760 + $0x50] sm:$0xff]
    %v2772 = vld [vmem:[%s2760 + $0x58] sm:$0xff]
    %v2773 = vld [vmem:[%s2760 + $0x60] sm:$0xff]
    %v2774 = vld [vmem:[%s2760 + $0x68] sm:$0xff]
    %v2775 = vld [vmem:[%s2760 + $0x70] sm:$0xff]
    %v2776 = vld [vmem:[%s2760 + $0x78] sm:$0xff]
    %v2777 = vld [vmem:[%s2760 + $0x80] sm:$0xff]
    %v2778 = vld [vmem:[%s2760 + $0x88] sm:$0xff]
    %v2779 = vld [vmem:[%s2760 + $0x90] sm:$0xff]
    %v2780 = vld [vmem:[%s2760 + $0x98] sm:$0xff]
    %v2781 = vld [vmem:[%s2760 + $0xa0] sm:$0xff]
    %v2782 = vld [vmem:[%s2760 + $0xa8] sm:$0xff]
    %v2783 = vld [vmem:[%s2760 + $0xb0] sm:$0xff]
    %v2784 = vld [vmem:[%s2760 + $0xb8] sm:$0xff]
    %v2785 = vld [vmem:[%s2760 + $0xc0] sm:$0xff]
    %v2786 = vld [vmem:[%s2760 + $0xc8] sm:$0xff]
    %v2787 = vld [vmem:[%s2760 + $0xd0] sm:$0xff]
    %v2788 = vld [vmem:[%s2760 + $0xd8] sm:$0xff]
    %v2789 = vld [vmem:[%s2760 + $0xe0] sm:$0xff]
    %v2790 = vld [vmem:[%s2760 + $0xe8] sm:$0xff]
    %v2791 = vld [vmem:[%s2760 + $0xf0] sm:$0xff]
    %v2792 = vld [vmem:[%s2760 + $0xf8] sm:$0xff]
    %s2793 = scalar_lea.vmem %s7, 6
    %v2794 = vld [vmem:[%s2793] sm:$0x3]
    %v2796 = vperm.slane %v2794, 0
    %v2797 = vperm.slane %v2794, 1
    %2800 = vmatpush.msra.mxu0 %v2791
    %2801 = vmatpush.msra.mxu0 %v2789
    %2802 = vmatpush.msra.mxu0 %v2787
    %2803 = vmatpush.msra.mxu0 %v2785
    %2804 = vmatpush.msra.mxu0 %v2783
    %2805 = vmatpush.msra.mxu0 %v2781
    %2806 = vmatpush.msra.mxu0 %v2779
    %2807 = vmatpush.msra.mxu0 %v2777
    %2808 = vmatpush.msra.mxu0 %v2775
    %2809 = vmatpush.msra.mxu0 %v2773
    %2810 = vmatpush.msra.mxu0 %v2771
    %2811 = vmatpush.msra.mxu0 %v2769
    %2812 = vmatpush.msra.mxu0 %v2767
    %2813 = vmatpush.msra.mxu0 %v2765
    %2814 = vmatpush.msra.mxu0 %v2763
    %2815 = vmatpush.msra.mxu0 %v2761
    %2816 = vmatmul.f32.gmra.mxu0 %v2758
    %v2817 = vpop.f32.mrf.mxu0
    %v2818 = vadd.f32 %v2796, %v2817
    %2819 = vmatmul.f32.gmra.mxu0 %v2759
    %v2820 = vpop.f32.mrf.mxu0
    %v2821 = vadd.f32 %v2796, %v2820
    %2822 = vdwg.mxu0
    %2823 = vmatpush.msra.mxu0 %v2792
    %2824 = vmatpush.msra.mxu0 %v2790
    %2825 = vmatpush.msra.mxu0 %v2788
    %2826 = vmatpush.msra.mxu0 %v2786
    %2827 = vmatpush.msra.mxu0 %v2784
    %2828 = vmatpush.msra.mxu0 %v2782
    %2829 = vmatpush.msra.mxu0 %v2780
    %2830 = vmatpush.msra.mxu0 %v2778
    %2831 = vmatpush.msra.mxu0 %v2776
    %2832 = vmatpush.msra.mxu0 %v2774
    %2833 = vmatpush.msra.mxu0 %v2772
    %2834 = vmatpush.msra.mxu0 %v2770
    %2835 = vmatpush.msra.mxu0 %v2768
    %2836 = vmatpush.msra.mxu0 %v2766
    %2837 = vmatpush.msra.mxu0 %v2764
    %2838 = vmatpush.msra.mxu0 %v2762
    %2839 = vmatmul.f32.gmra.mxu0 %v2758
    %v2840 = vpop.f32.mrf.mxu0
    %v2841 = vadd.f32 %v2797, %v2840
    %2842 = vmatmul.f32.gmra.mxu0 %v2759
    %v2843 = vpop.f32.mrf.mxu0
    %v2844 = vadd.f32 %v2797, %v2843
    %2845 = vdwg.mxu0
    %s2846 = scalar_lea.vmem %s8, 12
    %v2847 = vld [vmem:[%s2846] sm:$0xf]
    %s2848 = scalar_lea.vmem %s9, 3
    %v2849 = vld [vmem:[%s2848] sm:$0x1]
    %s2850 = scalar_lea.vmem %s10, 3
    %v2851 = vld [vmem:[%s2850] sm:$0x1]
    %v2852 = vld [vmem:[%s2] sm:$0xff]
    %v2853 = vld [vmem:[%s2 + $0x8] sm:$0xff]
    %v2854 = vld [vmem:[%s2 + $0x10] sm:$0xff]
    %v2855 = vld [vmem:[%s2 + $0x18] sm:$0xff]
    %v2856 = vld [vmem:[%s2 + $0x20] sm:$0xff]
    %v2857 = vld [vmem:[%s2 + $0x28] sm:$0xff]
    %v2858 = vld [vmem:[%s2 + $0x30] sm:$0xff]
    %v2859 = vld [vmem:[%s2 + $0x38] sm:$0xff]
    %v2860 = vld [vmem:[%s2 + $0x40] sm:$0xff]
    %v2861 = vld [vmem:[%s2 + $0x48] sm:$0xff]
    %v2862 = vld [vmem:[%s2 + $0x50] sm:$0xff]
    %v2863 = vld [vmem:[%s2 + $0x58] sm:$0xff]
    %v2864 = vld [vmem:[%s2 + $0x60] sm:$0xff]
    %v2865 = vld [vmem:[%s2 + $0x68] sm:$0xff]
    %v2866 = vld [vmem:[%s2 + $0x70] sm:$0xff]
    %v2867 = vld [vmem:[%s2 + $0x78] sm:$0xff]
    %v2869 = vsel %vm185, %v2852, 0
    %v2872 = vsel %vm185, %v2853, 0
    %v2875 = vsel %vm185, %v2854, 0
    %v2878 = vsel %vm185, %v2855, 0
    %v2881 = vsel %vm185, %v2856, 0
    %v2884 = vsel %vm185, %v2857, 0
    %v2887 = vsel %vm185, %v2858, 0
    %v2890 = vsel %vm185, %v2859, 0
    %v2893 = vsel %vm185, %v2860, 0
    %v2896 = vsel %vm185, %v2861, 0
    %v2899 = vsel %vm185, %v2862, 0
    %v2902 = vsel %vm185, %v2863, 0
    %v2905 = vsel %vm185, %v2864, 0
    %v2908 = vsel %vm185, %v2865, 0
    %v2911 = vsel %vm185, %v2866, 0
    %v2914 = vsel %vm185, %v2867, 0
    %v2917 = vsel %vm234, %v2847, 0
    %2919 = vmatpush.msra.mxu0 0.0
    %2920 = vmatpush.msra.mxu0 0.0
    %2921 = vmatpush.msra.mxu0 0.0
    %2922 = vmatpush.msra.mxu0 0.0
    %2923 = vmatpush.msra.mxu0 0.0
    %2924 = vmatpush.msra.mxu0 0.0
    %2925 = vmatpush.msra.mxu0 0.0
    %2926 = vmatpush.msra.mxu0 0.0
    %2927 = vmatpush.msra.mxu0 0.0
    %2928 = vmatpush.msra.mxu0 0.0
    %2929 = vmatpush.msra.mxu0 0.0
    %2930 = vmatpush.msra.mxu0 0.0
    %2931 = vmatpush.msra.mxu0 0.0
    %2932 = vmatpush.msra.mxu0 0.0
    %2933 = vmatpush.msra.mxu0 0.0
    %2934 = vmatpush.msra.mxu0 %v2917
    %2935 = vmatmul.f32.gmra.mxu0 %v2869
    %v2936 = vpop.f32.mrf.mxu0
    %v2937 = vadd.f32 0.0, %v2936
    %2938 = vmatmul.f32.gmra.mxu0 %v2872
    %v2939 = vpop.f32.mrf.mxu0
    %v2940 = vadd.f32 0.0, %v2939
    %2941 = vmatmul.f32.gmra.mxu0 %v2875
    %v2942 = vpop.f32.mrf.mxu0
    %v2943 = vadd.f32 0.0, %v2942
    %2944 = vmatmul.f32.gmra.mxu0 %v2878
    %v2945 = vpop.f32.mrf.mxu0
    %v2946 = vadd.f32 0.0, %v2945
    %2947 = vmatmul.f32.gmra.mxu0 %v2881
    %v2948 = vpop.f32.mrf.mxu0
    %v2949 = vadd.f32 0.0, %v2948
    %2950 = vmatmul.f32.gmra.mxu0 %v2884
    %v2951 = vpop.f32.mrf.mxu0
    %v2952 = vadd.f32 0.0, %v2951
    %2953 = vmatmul.f32.gmra.mxu0 %v2887
    %v2954 = vpop.f32.mrf.mxu0
    %v2955 = vadd.f32 0.0, %v2954
    %2956 = vmatmul.f32.gmra.mxu0 %v2890
    %v2957 = vpop.f32.mrf.mxu0
    %v2958 = vadd.f32 0.0, %v2957
    %2959 = vmatmul.f32.gmra.mxu0 %v2893
    %v2960 = vpop.f32.mrf.mxu0
    %v2961 = vadd.f32 0.0, %v2960
    %2962 = vmatmul.f32.gmra.mxu0 %v2896
    %v2963 = vpop.f32.mrf.mxu0
    %v2964 = vadd.f32 0.0, %v2963
    %2965 = vmatmul.f32.gmra.mxu0 %v2899
    %v2966 = vpop.f32.mrf.mxu0
    %v2967 = vadd.f32 0.0, %v2966
    %2968 = vmatmul.f32.gmra.mxu0 %v2902
    %v2969 = vpop.f32.mrf.mxu0
    %v2970 = vadd.f32 0.0, %v2969
    %2971 = vmatmul.f32.gmra.mxu0 %v2905
    %v2972 = vpop.f32.mrf.mxu0
    %v2973 = vadd.f32 0.0, %v2972
    %2974 = vmatmul.f32.gmra.mxu0 %v2908
    %v2975 = vpop.f32.mrf.mxu0
    %v2976 = vadd.f32 0.0, %v2975
    %2977 = vmatmul.f32.gmra.mxu0 %v2911
    %v2978 = vpop.f32.mrf.mxu0
    %v2979 = vadd.f32 0.0, %v2978
    %2980 = vmatmul.f32.gmra.mxu0 %v2914
    %v2981 = vpop.f32.mrf.mxu0
    %v2982 = vadd.f32 0.0, %v2981
    %2983 = vdwg.mxu0
    %v2985 = vrot.slane %v2841, 1
    %v2986 = vrot.slane %v2841, 2
    %v2987 = vrot.slane %v2841, 3
    %v2988 = vrot.slane %v2841, 4
    %v2989 = vrot.slane %v2841, 5
    %v2990 = vrot.slane %v2841, 6
    %v2991 = vrot.slane %v2841, 7
    %v2992 = vperm.slane %v2841, 0
    %v2993 = vperm.slane %v2985, 0
    %v2994 = vperm.slane %v2986, 0
    %v2995 = vperm.slane %v2987, 0
    %v2996 = vperm.slane %v2988, 0
    %v2997 = vperm.slane %v2989, 0
    %v2998 = vperm.slane %v2990, 0
    %v2999 = vperm.slane %v2991, 0
    %v3008 = vadd.f32 %v2992, %v2818
    %v3009 = vadd.f32 %v2992, %v2821
    %v3010 = vadd.f32 %v2993, %v2818
    %v3011 = vadd.f32 %v2993, %v2821
    %v3012 = vadd.f32 %v2994, %v2818
    %v3013 = vadd.f32 %v2994, %v2821
    %v3014 = vadd.f32 %v2995, %v2818
    %v3015 = vadd.f32 %v2995, %v2821
    %v3016 = vadd.f32 %v2996, %v2818
    %v3017 = vadd.f32 %v2996, %v2821
    %v3018 = vadd.f32 %v2997, %v2818
    %v3019 = vadd.f32 %v2997, %v2821
    %v3020 = vadd.f32 %v2998, %v2818
    %v3021 = vadd.f32 %v2998, %v2821
    %v3022 = vadd.f32 %v2999, %v2818
    %v3023 = vadd.f32 %v2999, %v2821
    %v3024 = vadd.f32 %v3008, %v2937
    %v3025 = vadd.f32 %v3009, %v2940
    %v3026 = vadd.f32 %v3010, %v2943
    %v3027 = vadd.f32 %v3011, %v2946
    %v3028 = vadd.f32 %v3012, %v2949
    %v3029 = vadd.f32 %v3013, %v2952
    %v3030 = vadd.f32 %v3014, %v2955
    %v3031 = vadd.f32 %v3015, %v2958
    %v3032 = vadd.f32 %v3016, %v2961
    %v3033 = vadd.f32 %v3017, %v2964
    %v3034 = vadd.f32 %v3018, %v2967
    %v3035 = vadd.f32 %v3019, %v2970
    %v3036 = vadd.f32 %v3020, %v2973
    %v3037 = vadd.f32 %v3021, %v2976
    %v3038 = vadd.f32 %v3022, %v2979
    %v3039 = vadd.f32 %v3023, %v2982
    %vm3040 = vcmp.gt.f32.partialorder %v3024, 0.0
    %vm3041 = vcmp.gt.f32.partialorder %v3025, 0.0
    %vm3042 = vcmp.gt.f32.partialorder %v3026, 0.0
    %vm3043 = vcmp.gt.f32.partialorder %v3027, 0.0
    %vm3044 = vcmp.gt.f32.partialorder %v3028, 0.0
    %vm3045 = vcmp.gt.f32.partialorder %v3029, 0.0
    %vm3046 = vcmp.gt.f32.partialorder %v3030, 0.0
    %vm3047 = vcmp.gt.f32.partialorder %v3031, 0.0
    %vm3048 = vcmp.gt.f32.partialorder %v3032, 0.0
    %vm3049 = vcmp.gt.f32.partialorder %v3033, 0.0
    %vm3050 = vcmp.gt.f32.partialorder %v3034, 0.0
    %vm3051 = vcmp.gt.f32.partialorder %v3035, 0.0
    %vm3052 = vcmp.gt.f32.partialorder %v3036, 0.0
    %vm3053 = vcmp.gt.f32.partialorder %v3037, 0.0
    %vm3054 = vcmp.gt.f32.partialorder %v3038, 0.0
    %vm3055 = vcmp.gt.f32.partialorder %v3039, 0.0
    %v3056 = vmul.f32 %v3024, 0.2
    %v3057 = vmul.f32 %v3025, 0.2
    %v3058 = vmul.f32 %v3026, 0.2
    %v3059 = vmul.f32 %v3027, 0.2
    %v3060 = vmul.f32 %v3028, 0.2
    %v3061 = vmul.f32 %v3029, 0.2
    %v3062 = vmul.f32 %v3030, 0.2
    %v3063 = vmul.f32 %v3031, 0.2
    %v3064 = vmul.f32 %v3032, 0.2
    %v3065 = vmul.f32 %v3033, 0.2
    %v3066 = vmul.f32 %v3034, 0.2
    %v3067 = vmul.f32 %v3035, 0.2
    %v3068 = vmul.f32 %v3036, 0.2
    %v3069 = vmul.f32 %v3037, 0.2
    %v3070 = vmul.f32 %v3038, 0.2
    %v3071 = vmul.f32 %v3039, 0.2
    %v3072 = vsel %vm3040, %v3024, %v3056
    %v3073 = vsel %vm3041, %v3025, %v3057
    %v3074 = vsel %vm3042, %v3026, %v3058
    %v3075 = vsel %vm3043, %v3027, %v3059
    %v3076 = vsel %vm3044, %v3028, %v3060
    %v3077 = vsel %vm3045, %v3029, %v3061
    %v3078 = vsel %vm3046, %v3030, %v3062
    %v3079 = vsel %vm3047, %v3031, %v3063
    %v3080 = vsel %vm3048, %v3032, %v3064
    %v3081 = vsel %vm3049, %v3033, %v3065
    %v3082 = vsel %vm3050, %v3034, %v3066
    %v3083 = vsel %vm3051, %v3035, %v3067
    %v3084 = vsel %vm3052, %v3036, %v3068
    %v3085 = vsel %vm3053, %v3037, %v3069
    %v3086 = vsel %vm3054, %v3038, %v3070
    %v3087 = vsel %vm3055, %v3039, %v3071
    %v3089 = vperm.slane %v2849, 0
    %v3091 = vmul.f32 %v3072, %v3089
    %v3092 = vmul.f32 %v3073, %v3089
    %v3093 = vmul.f32 %v3074, %v3089
    %v3094 = vmul.f32 %v3075, %v3089
    %v3095 = vmul.f32 %v3076, %v3089
    %v3096 = vmul.f32 %v3077, %v3089
    %v3097 = vmul.f32 %v3078, %v3089
    %v3098 = vmul.f32 %v3079, %v3089
    %v3099 = vmul.f32 %v3080, %v3089
    %v3100 = vmul.f32 %v3081, %v3089
    %v3101 = vmul.f32 %v3082, %v3089
    %v3102 = vmul.f32 %v3083, %v3089
    %v3103 = vmul.f32 %v3084, %v3089
    %v3104 = vmul.f32 %v3085, %v3089
    %v3105 = vmul.f32 %v3086, %v3089
    %v3106 = vmul.f32 %v3087, %v3089
    %3107 = vadd.xlane.f32.xlu0 %v3091
    %v3108 = vpop.xlane.xlu0 %3107
    %3109 = vadd.xlane.f32.xlu0 %v3092
    %v3110 = vpop.xlane.xlu0 %3109
    %3111 = vadd.xlane.f32.xlu0 %v3093
    %v3112 = vpop.xlane.xlu0 %3111
    %3113 = vadd.xlane.f32.xlu0 %v3094
    %v3114 = vpop.xlane.xlu0 %3113
    %3115 = vadd.xlane.f32.xlu0 %v3095
    %v3116 = vpop.xlane.xlu0 %3115
    %3117 = vadd.xlane.f32.xlu0 %v3096
    %v3118 = vpop.xlane.xlu0 %3117
    %3119 = vadd.xlane.f32.xlu0 %v3097
    %v3120 = vpop.xlane.xlu0 %3119
    %3121 = vadd.xlane.f32.xlu0 %v3098
    %v3122 = vpop.xlane.xlu0 %3121
    %3123 = vadd.xlane.f32.xlu0 %v3099
    %v3124 = vpop.xlane.xlu0 %3123
    %3125 = vadd.xlane.f32.xlu0 %v3100
    %v3126 = vpop.xlane.xlu0 %3125
    %3127 = vadd.xlane.f32.xlu0 %v3101
    %v3128 = vpop.xlane.xlu0 %3127
    %3129 = vadd.xlane.f32.xlu0 %v3102
    %v3130 = vpop.xlane.xlu0 %3129
    %3131 = vadd.xlane.f32.xlu0 %v3103
    %v3132 = vpop.xlane.xlu0 %3131
    %3133 = vadd.xlane.f32.xlu0 %v3104
    %v3134 = vpop.xlane.xlu0 %3133
    %3135 = vadd.xlane.f32.xlu0 %v3105
    %v3136 = vpop.xlane.xlu0 %3135
    %3137 = vadd.xlane.f32.xlu0 %v3106
    %v3138 = vpop.xlane.xlu0 %3137
    %v3155 = vperm.slane %v3108, %v475
    %v3156 = vperm.slane %v3110, %v477
    %v3157 = vsel %vm479, %v3156, %v3155
    %v3158 = vperm.slane %v3112, %v475
    %v3159 = vperm.slane %v3114, %v477
    %v3160 = vsel %vm479, %v3159, %v3158
    %v3161 = vperm.slane %v3116, %v475
    %v3162 = vperm.slane %v3118, %v477
    %v3163 = vsel %vm479, %v3162, %v3161
    %v3164 = vperm.slane %v3120, %v475
    %v3165 = vperm.slane %v3122, %v477
    %v3166 = vsel %vm479, %v3165, %v3164
    %v3167 = vperm.slane %v3124, %v475
    %v3168 = vperm.slane %v3126, %v477
    %v3169 = vsel %vm479, %v3168, %v3167
    %v3170 = vperm.slane %v3128, %v475
    %v3171 = vperm.slane %v3130, %v477
    %v3172 = vsel %vm479, %v3171, %v3170
    %v3173 = vperm.slane %v3132, %v475
    %v3174 = vperm.slane %v3134, %v477
    %v3175 = vsel %vm479, %v3174, %v3173
    %v3176 = vperm.slane %v3136, %v475
    %v3177 = vperm.slane %v3138, %v477
    %v3178 = vsel %vm479, %v3177, %v3176
    %v3179 = vsel %vm502, %v3160, %v3157
    %v3180 = vsel %vm504, %v3163, %v3179
    %v3181 = vsel %vm506, %v3166, %v3180
    %v3182 = vsel %vm508, %v3169, %v3181
    %v3183 = vsel %vm510, %v3172, %v3182
    %v3184 = vsel %vm512, %v3175, %v3183
    %v3185 = vsel %vm514, %v3178, %v3184
    %v3187 = vsel %vm78, %v3185, -1e+30
    %v3188 = vsel %vm518, %v3187, -inf
    %3189 = vmax.xlane.f32.xlu0 %v3188
    %v3190 = vpop.xlane.xlu0 %3189
    %v3191 = vsub.f32 %v3187, %v3190
    %v3192 = vmul.f32 %v3191, 1.442695
    %v3193 = vpow.pop %v3192
    %v3194 = vsel %vm78, %v3193, 0.0
    %v3195 = vsel %vm518, %v3194, 0.0
    %3196 = vadd.xlane.f32.xlu0 %v3195
    %v3197 = vpop.xlane.xlu0 %3196
    %v3198 = vrcp.pop %v3197
    %v3199 = vmul.f32 %v3194, %v3198
    %v3201 = vperm.slane %v2851, 0
    %v3204 = vsel %vm518, %v3199, 0
    %3206 = vmatpush.msra.mxu0 0.0
    %3207 = vmatpush.msra.mxu0 0.0
    %3208 = vmatpush.msra.mxu0 0.0
    %3209 = vmatpush.msra.mxu0 0.0
    %3210 = vmatpush.msra.mxu0 0.0
    %3211 = vmatpush.msra.mxu0 0.0
    %3212 = vmatpush.msra.mxu0 0.0
    %3213 = vmatpush.msra.mxu0 0.0
    %3214 = vmatpush.msra.mxu0 0.0
    %3215 = vmatpush.msra.mxu0 0.0
    %3216 = vmatpush.msra.mxu0 0.0
    %3217 = vmatpush.msra.mxu0 0.0
    %3218 = vmatpush.msra.mxu0 0.0
    %3219 = vmatpush.msra.mxu0 0.0
    %3220 = vmatpush.msra.mxu0 %v2821
    %3221 = vmatpush.msra.mxu0 %v2818
    %3222 = vmatmul.f32.gmra.mxu0 %v3204
    %v3223 = vpop.f32.mrf.mxu0
    %v3224 = vadd.f32 %v3201, %v3223
    %3225 = vdwg.mxu0
    %3226 = vst [vmem:[#allocation2] sm:$0xff] %v3224
    %v3227 = vld [vmem:[%s2 + $0x80] sm:$0xff]
    %v3228 = vld [vmem:[%s2 + $0x88] sm:$0xff]
    %v3229 = vld [vmem:[%s2 + $0x90] sm:$0xff]
    %v3230 = vld [vmem:[%s2 + $0x98] sm:$0xff]
    %v3231 = vld [vmem:[%s2 + $0xa0] sm:$0xff]
    %v3232 = vld [vmem:[%s2 + $0xa8] sm:$0xff]
    %v3233 = vld [vmem:[%s2 + $0xb0] sm:$0xff]
    %v3234 = vld [vmem:[%s2 + $0xb8] sm:$0xff]
    %v3235 = vld [vmem:[%s2 + $0xc0] sm:$0xff]
    %v3236 = vld [vmem:[%s2 + $0xc8] sm:$0xff]
    %v3237 = vld [vmem:[%s2 + $0xd0] sm:$0xff]
    %v3238 = vld [vmem:[%s2 + $0xd8] sm:$0xff]
    %v3239 = vld [vmem:[%s2 + $0xe0] sm:$0xff]
    %v3240 = vld [vmem:[%s2 + $0xe8] sm:$0xff]
    %v3241 = vld [vmem:[%s2 + $0xf0] sm:$0xff]
    %v3242 = vld [vmem:[%s2 + $0xf8] sm:$0xff]
    %v3244 = vsel %vm185, %v3227, 0
    %v3247 = vsel %vm185, %v3228, 0
    %v3250 = vsel %vm185, %v3229, 0
    %v3253 = vsel %vm185, %v3230, 0
    %v3256 = vsel %vm185, %v3231, 0
    %v3259 = vsel %vm185, %v3232, 0
    %v3262 = vsel %vm185, %v3233, 0
    %v3265 = vsel %vm185, %v3234, 0
    %v3268 = vsel %vm185, %v3235, 0
    %v3271 = vsel %vm185, %v3236, 0
    %v3274 = vsel %vm185, %v3237, 0
    %v3277 = vsel %vm185, %v3238, 0
    %v3280 = vsel %vm185, %v3239, 0
    %v3283 = vsel %vm185, %v3240, 0
    %v3286 = vsel %vm185, %v3241, 0
    %v3289 = vsel %vm185, %v3242, 0
    %3291 = vmatpush.msra.mxu0 0.0
    %3292 = vmatpush.msra.mxu0 0.0
    %3293 = vmatpush.msra.mxu0 0.0
    %3294 = vmatpush.msra.mxu0 0.0
    %3295 = vmatpush.msra.mxu0 0.0
    %3296 = vmatpush.msra.mxu0 0.0
    %3297 = vmatpush.msra.mxu0 0.0
    %3298 = vmatpush.msra.mxu0 0.0
    %3299 = vmatpush.msra.mxu0 0.0
    %3300 = vmatpush.msra.mxu0 0.0
    %3301 = vmatpush.msra.mxu0 0.0
    %3302 = vmatpush.msra.mxu0 0.0
    %3303 = vmatpush.msra.mxu0 0.0
    %3304 = vmatpush.msra.mxu0 0.0
    %3305 = vmatpush.msra.mxu0 0.0
    %3306 = vmatpush.msra.mxu0 %v2917
    %3307 = vmatmul.f32.gmra.mxu0 %v3244
    %v3308 = vpop.f32.mrf.mxu0
    %v3309 = vadd.f32 0.0, %v3308
    %3310 = vmatmul.f32.gmra.mxu0 %v3247
    %v3311 = vpop.f32.mrf.mxu0
    %v3312 = vadd.f32 0.0, %v3311
    %3313 = vmatmul.f32.gmra.mxu0 %v3250
    %v3314 = vpop.f32.mrf.mxu0
    %v3315 = vadd.f32 0.0, %v3314
    %3316 = vmatmul.f32.gmra.mxu0 %v3253
    %v3317 = vpop.f32.mrf.mxu0
    %v3318 = vadd.f32 0.0, %v3317
    %3319 = vmatmul.f32.gmra.mxu0 %v3256
    %v3320 = vpop.f32.mrf.mxu0
    %v3321 = vadd.f32 0.0, %v3320
    %3322 = vmatmul.f32.gmra.mxu0 %v3259
    %v3323 = vpop.f32.mrf.mxu0
    %v3324 = vadd.f32 0.0, %v3323
    %3325 = vmatmul.f32.gmra.mxu0 %v3262
    %v3326 = vpop.f32.mrf.mxu0
    %v3327 = vadd.f32 0.0, %v3326
    %3328 = vmatmul.f32.gmra.mxu0 %v3265
    %v3329 = vpop.f32.mrf.mxu0
    %v3330 = vadd.f32 0.0, %v3329
    %3331 = vmatmul.f32.gmra.mxu0 %v3268
    %v3332 = vpop.f32.mrf.mxu0
    %v3333 = vadd.f32 0.0, %v3332
    %3334 = vmatmul.f32.gmra.mxu0 %v3271
    %v3335 = vpop.f32.mrf.mxu0
    %v3336 = vadd.f32 0.0, %v3335
    %3337 = vmatmul.f32.gmra.mxu0 %v3274
    %v3338 = vpop.f32.mrf.mxu0
    %v3339 = vadd.f32 0.0, %v3338
    %3340 = vmatmul.f32.gmra.mxu0 %v3277
    %v3341 = vpop.f32.mrf.mxu0
    %v3342 = vadd.f32 0.0, %v3341
    %3343 = vmatmul.f32.gmra.mxu0 %v3280
    %v3344 = vpop.f32.mrf.mxu0
    %v3345 = vadd.f32 0.0, %v3344
    %3346 = vmatmul.f32.gmra.mxu0 %v3283
    %v3347 = vpop.f32.mrf.mxu0
    %v3348 = vadd.f32 0.0, %v3347
    %3349 = vmatmul.f32.gmra.mxu0 %v3286
    %v3350 = vpop.f32.mrf.mxu0
    %v3351 = vadd.f32 0.0, %v3350
    %3352 = vmatmul.f32.gmra.mxu0 %v3289
    %v3353 = vpop.f32.mrf.mxu0
    %v3354 = vadd.f32 0.0, %v3353
    %3355 = vdwg.mxu0
    %v3357 = vrot.slane %v2844, 1
    %v3358 = vrot.slane %v2844, 2
    %v3359 = vrot.slane %v2844, 3
    %v3360 = vrot.slane %v2844, 4
    %v3361 = vrot.slane %v2844, 5
    %v3362 = vrot.slane %v2844, 6
    %v3363 = vrot.slane %v2844, 7
    %v3364 = vperm.slane %v2844, 0
    %v3365 = vperm.slane %v3357, 0
    %v3366 = vperm.slane %v3358, 0
    %v3367 = vperm.slane %v3359, 0
    %v3368 = vperm.slane %v3360, 0
    %v3369 = vperm.slane %v3361, 0
    %v3370 = vperm.slane %v3362, 0
    %v3371 = vperm.slane %v3363, 0
    %v3380 = vadd.f32 %v3364, %v2818
    %v3381 = vadd.f32 %v3364, %v2821
    %v3382 = vadd.f32 %v3365, %v2818
    %v3383 = vadd.f32 %v3365, %v2821
    %v3384 = vadd.f32 %v3366, %v2818
    %v3385 = vadd.f32 %v3366, %v2821
    %v3386 = vadd.f32 %v3367, %v2818
    %v3387 = vadd.f32 %v3367, %v2821
    %v3388 = vadd.f32 %v3368, %v2818
    %v3389 = vadd.f32 %v3368, %v2821
    %v3390 = vadd.f32 %v3369, %v2818
    %v3391 = vadd.f32 %v3369, %v2821
    %v3392 = vadd.f32 %v3370, %v2818
    %v3393 = vadd.f32 %v3370, %v2821
    %v3394 = vadd.f32 %v3371, %v2818
    %v3395 = vadd.f32 %v3371, %v2821
    %v3396 = vadd.f32 %v3380, %v3309
    %v3397 = vadd.f32 %v3381, %v3312
    %v3398 = vadd.f32 %v3382, %v3315
    %v3399 = vadd.f32 %v3383, %v3318
    %v3400 = vadd.f32 %v3384, %v3321
    %v3401 = vadd.f32 %v3385, %v3324
    %v3402 = vadd.f32 %v3386, %v3327
    %v3403 = vadd.f32 %v3387, %v3330
    %v3404 = vadd.f32 %v3388, %v3333
    %v3405 = vadd.f32 %v3389, %v3336
    %v3406 = vadd.f32 %v3390, %v3339
    %v3407 = vadd.f32 %v3391, %v3342
    %v3408 = vadd.f32 %v3392, %v3345
    %v3409 = vadd.f32 %v3393, %v3348
    %v3410 = vadd.f32 %v3394, %v3351
    %v3411 = vadd.f32 %v3395, %v3354
    %vm3412 = vcmp.gt.f32.partialorder %v3396, 0.0
    %vm3413 = vcmp.gt.f32.partialorder %v3397, 0.0
    %vm3414 = vcmp.gt.f32.partialorder %v3398, 0.0
    %vm3415 = vcmp.gt.f32.partialorder %v3399, 0.0
    %vm3416 = vcmp.gt.f32.partialorder %v3400, 0.0
    %vm3417 = vcmp.gt.f32.partialorder %v3401, 0.0
    %vm3418 = vcmp.gt.f32.partialorder %v3402, 0.0
    %vm3419 = vcmp.gt.f32.partialorder %v3403, 0.0
    %vm3420 = vcmp.gt.f32.partialorder %v3404, 0.0
    %vm3421 = vcmp.gt.f32.partialorder %v3405, 0.0
    %vm3422 = vcmp.gt.f32.partialorder %v3406, 0.0
    %vm3423 = vcmp.gt.f32.partialorder %v3407, 0.0
    %vm3424 = vcmp.gt.f32.partialorder %v3408, 0.0
    %vm3425 = vcmp.gt.f32.partialorder %v3409, 0.0
    %vm3426 = vcmp.gt.f32.partialorder %v3410, 0.0
    %vm3427 = vcmp.gt.f32.partialorder %v3411, 0.0
    %v3428 = vmul.f32 %v3396, 0.2
    %v3429 = vmul.f32 %v3397, 0.2
    %v3430 = vmul.f32 %v3398, 0.2
    %v3431 = vmul.f32 %v3399, 0.2
    %v3432 = vmul.f32 %v3400, 0.2
    %v3433 = vmul.f32 %v3401, 0.2
    %v3434 = vmul.f32 %v3402, 0.2
    %v3435 = vmul.f32 %v3403, 0.2
    %v3436 = vmul.f32 %v3404, 0.2
    %v3437 = vmul.f32 %v3405, 0.2
    %v3438 = vmul.f32 %v3406, 0.2
    %v3439 = vmul.f32 %v3407, 0.2
    %v3440 = vmul.f32 %v3408, 0.2
    %v3441 = vmul.f32 %v3409, 0.2
    %v3442 = vmul.f32 %v3410, 0.2
    %v3443 = vmul.f32 %v3411, 0.2
    %v3444 = vsel %vm3412, %v3396, %v3428
    %v3445 = vsel %vm3413, %v3397, %v3429
    %v3446 = vsel %vm3414, %v3398, %v3430
    %v3447 = vsel %vm3415, %v3399, %v3431
    %v3448 = vsel %vm3416, %v3400, %v3432
    %v3449 = vsel %vm3417, %v3401, %v3433
    %v3450 = vsel %vm3418, %v3402, %v3434
    %v3451 = vsel %vm3419, %v3403, %v3435
    %v3452 = vsel %vm3420, %v3404, %v3436
    %v3453 = vsel %vm3421, %v3405, %v3437
    %v3454 = vsel %vm3422, %v3406, %v3438
    %v3455 = vsel %vm3423, %v3407, %v3439
    %v3456 = vsel %vm3424, %v3408, %v3440
    %v3457 = vsel %vm3425, %v3409, %v3441
    %v3458 = vsel %vm3426, %v3410, %v3442
    %v3459 = vsel %vm3427, %v3411, %v3443
    %v3460 = vmul.f32 %v3444, %v3089
    %v3461 = vmul.f32 %v3445, %v3089
    %v3462 = vmul.f32 %v3446, %v3089
    %v3463 = vmul.f32 %v3447, %v3089
    %v3464 = vmul.f32 %v3448, %v3089
    %v3465 = vmul.f32 %v3449, %v3089
    %v3466 = vmul.f32 %v3450, %v3089
    %v3467 = vmul.f32 %v3451, %v3089
    %v3468 = vmul.f32 %v3452, %v3089
    %v3469 = vmul.f32 %v3453, %v3089
    %v3470 = vmul.f32 %v3454, %v3089
    %v3471 = vmul.f32 %v3455, %v3089
    %v3472 = vmul.f32 %v3456, %v3089
    %v3473 = vmul.f32 %v3457, %v3089
    %v3474 = vmul.f32 %v3458, %v3089
    %v3475 = vmul.f32 %v3459, %v3089
    %3476 = vadd.xlane.f32.xlu0 %v3460
    %v3477 = vpop.xlane.xlu0 %3476
    %3478 = vadd.xlane.f32.xlu0 %v3461
    %v3479 = vpop.xlane.xlu0 %3478
    %3480 = vadd.xlane.f32.xlu0 %v3462
    %v3481 = vpop.xlane.xlu0 %3480
    %3482 = vadd.xlane.f32.xlu0 %v3463
    %v3483 = vpop.xlane.xlu0 %3482
    %3484 = vadd.xlane.f32.xlu0 %v3464
    %v3485 = vpop.xlane.xlu0 %3484
    %3486 = vadd.xlane.f32.xlu0 %v3465
    %v3487 = vpop.xlane.xlu0 %3486
    %3488 = vadd.xlane.f32.xlu0 %v3466
    %v3489 = vpop.xlane.xlu0 %3488
    %3490 = vadd.xlane.f32.xlu0 %v3467
    %v3491 = vpop.xlane.xlu0 %3490
    %3492 = vadd.xlane.f32.xlu0 %v3468
    %v3493 = vpop.xlane.xlu0 %3492
    %3494 = vadd.xlane.f32.xlu0 %v3469
    %v3495 = vpop.xlane.xlu0 %3494
    %3496 = vadd.xlane.f32.xlu0 %v3470
    %v3497 = vpop.xlane.xlu0 %3496
    %3498 = vadd.xlane.f32.xlu0 %v3471
    %v3499 = vpop.xlane.xlu0 %3498
    %3500 = vadd.xlane.f32.xlu0 %v3472
    %v3501 = vpop.xlane.xlu0 %3500
    %3502 = vadd.xlane.f32.xlu0 %v3473
    %v3503 = vpop.xlane.xlu0 %3502
    %3504 = vadd.xlane.f32.xlu0 %v3474
    %v3505 = vpop.xlane.xlu0 %3504
    %3506 = vadd.xlane.f32.xlu0 %v3475
    %v3507 = vpop.xlane.xlu0 %3506
    %v3524 = vperm.slane %v3477, %v475
    %v3525 = vperm.slane %v3479, %v477
    %v3526 = vsel %vm479, %v3525, %v3524
    %v3527 = vperm.slane %v3481, %v475
    %v3528 = vperm.slane %v3483, %v477
    %v3529 = vsel %vm479, %v3528, %v3527
    %v3530 = vperm.slane %v3485, %v475
    %v3531 = vperm.slane %v3487, %v477
    %v3532 = vsel %vm479, %v3531, %v3530
    %v3533 = vperm.slane %v3489, %v475
    %v3534 = vperm.slane %v3491, %v477
    %v3535 = vsel %vm479, %v3534, %v3533
    %v3536 = vperm.slane %v3493, %v475
    %v3537 = vperm.slane %v3495, %v477
    %v3538 = vsel %vm479, %v3537, %v3536
    %v3539 = vperm.slane %v3497, %v475
    %v3540 = vperm.slane %v3499, %v477
    %v3541 = vsel %vm479, %v3540, %v3539
    %v3542 = vperm.slane %v3501, %v475
    %v3543 = vperm.slane %v3503, %v477
    %v3544 = vsel %vm479, %v3543, %v3542
    %v3545 = vperm.slane %v3505, %v475
    %v3546 = vperm.slane %v3507, %v477
    %v3547 = vsel %vm479, %v3546, %v3545
    %v3548 = vsel %vm502, %v3529, %v3526
    %v3549 = vsel %vm504, %v3532, %v3548
    %v3550 = vsel %vm506, %v3535, %v3549
    %v3551 = vsel %vm508, %v3538, %v3550
    %v3552 = vsel %vm510, %v3541, %v3551
    %v3553 = vsel %vm512, %v3544, %v3552
    %v3554 = vsel %vm514, %v3547, %v3553
    %v3556 = vsel %vm79, %v3554, -1e+30
    %v3557 = vsel %vm518, %v3556, -inf
    %3558 = vmax.xlane.f32.xlu0 %v3557
    %v3559 = vpop.xlane.xlu0 %3558
    %v3560 = vsub.f32 %v3556, %v3559
    %v3561 = vmul.f32 %v3560, 1.442695
    %v3562 = vpow.pop %v3561
    %v3563 = vsel %vm79, %v3562, 0.0
    %v3564 = vsel %vm518, %v3563, 0.0
    %3565 = vadd.xlane.f32.xlu0 %v3564
    %v3566 = vpop.xlane.xlu0 %3565
    %v3567 = vrcp.pop %v3566
    %v3568 = vmul.f32 %v3563, %v3567
    %v3570 = vsel %vm518, %v3568, 0
    %3572 = vmatpush.msra.mxu0 0.0
    %3573 = vmatpush.msra.mxu0 0.0
    %3574 = vmatpush.msra.mxu0 0.0
    %3575 = vmatpush.msra.mxu0 0.0
    %3576 = vmatpush.msra.mxu0 0.0
    %3577 = vmatpush.msra.mxu0 0.0
    %3578 = vmatpush.msra.mxu0 0.0
    %3579 = vmatpush.msra.mxu0 0.0
    %3580 = vmatpush.msra.mxu0 0.0
    %3581 = vmatpush.msra.mxu0 0.0
    %3582 = vmatpush.msra.mxu0 0.0
    %3583 = vmatpush.msra.mxu0 0.0
    %3584 = vmatpush.msra.mxu0 0.0
    %3585 = vmatpush.msra.mxu0 0.0
    %3586 = vmatpush.msra.mxu0 %v2821
    %3587 = vmatpush.msra.mxu0 %v2818
    %3588 = vmatmul.f32.gmra.mxu0 %v3570
    %v3589 = vpop.f32.mrf.mxu0
    %v3590 = vadd.f32 %v3201, %v3589
    %3591 = vdwg.mxu0
    %3592 = vst [vmem:[#allocation2 + $0x8] sm:$0xff] %v3590
    %v3593 = vld [vmem:[#allocation2] sm:$0xff]
    %v3594 = vld [vmem:[#allocation2 + $0x8] sm:$0xff]
    %v3595 = vadd.f32 %v3593, %v3594
    %v3596 = vrot.slane %v3595, 4
    %v3597 = vadd.f32 %v3595, %v3596
    %v3598 = vrot.slane %v3597, 2
    %v3599 = vadd.f32 %v3597, %v3598
    %v3600 = vrot.slane %v3599, 1
    %v3601 = vadd.f32 %v3599, %v3600
    %v3602 = vmul.f32 %v3601, %v939
    %v3603 = vsub.f32 %v3593, %v3602
    %v3604 = vsub.f32 %v3594, %v3602
    %v3605 = vmul.f32 %v3603, %v3603
    %v3606 = vmul.f32 %v3604, %v3604
    %v3607 = vadd.f32 %v3605, %v3606
    %v3608 = vrot.slane %v3607, 4
    %v3609 = vadd.f32 %v3607, %v3608
    %v3610 = vrot.slane %v3609, 2
    %v3611 = vadd.f32 %v3609, %v3610
    %v3612 = vrot.slane %v3611, 1
    %v3613 = vadd.f32 %v3611, %v3612
    %v3614 = vmul.f32 %v3613, %v939
    %v3615 = vadd.f32 %v3614, 1e-05
    %v3616 = vrsqrt.pop %v3615
    %v3617 = vmul.f32 %v3616, %v3615
    %v3618 = vmul.f32 %v3617, %v3616
    %v3619 = vmul.f32 0.5, %v3618
    %v3620 = vsub.f32 1.5, %v3619
    %v3621 = vmul.f32 %v3616, %v3620
    %vm3622 = vweird.f32 %v3615
    %vm3623 = vweird.f32 %v3616
    %vm3624 = vmor %vm3622, %vm3623
    %v3625 = vsel %vm3624, %v3616, %v3621
    %v3626 = vmul.f32 %v3603, %v3625
    %v3627 = vmul.f32 %v3604, %v3625
    %s3628 = scalar_lea.vmem %s11, 3
    %v3629 = vld [vmem:[%s3628] sm:$0x1]
    %v3631 = vperm.slane %v3629, 0
    %v3633 = vmul.f32 %v3626, %v3631
    %v3634 = vmul.f32 %v3627, %v3631
    %s3635 = scalar_lea.vmem %s12, 3
    %v3636 = vld [vmem:[%s3635] sm:$0x1]
    %v3638 = vperm.slane %v3636, 0
    %v3640 = vadd.f32 %v3633, %v3638
    %v3641 = vadd.f32 %v3634, %v3638
    %vm3642 = vcmp.gt.f32.partialorder %v3640, 0.0
    %vm3643 = vcmp.gt.f32.partialorder %v3641, 0.0
    %v3644 = vmul.f32 %v3640, 0.01
    %v3645 = vmul.f32 %v3641, 0.01
    %v3646 = vsel %vm3642, %v3640, %v3644
    %v3647 = vsel %vm3643, %v3641, %v3645
    %s3648 = scalar_lea.vmem [#allocation3], 1024
    %v3649 = vld [vmem:[%s3648] sm:$0xff]
    %v3650 = vld [vmem:[%s3648 + $0x8] sm:$0xff]
    %v3651 = vld [vmem:[%s3648 + $0x10] sm:$0xff]
    %v3652 = vld [vmem:[%s3648 + $0x18] sm:$0xff]
    %v3653 = vld [vmem:[%s3648 + $0x20] sm:$0xff]
    %v3654 = vld [vmem:[%s3648 + $0x28] sm:$0xff]
    %v3655 = vld [vmem:[%s3648 + $0x30] sm:$0xff]
    %v3656 = vld [vmem:[%s3648 + $0x38] sm:$0xff]
    %v3657 = vld [vmem:[%s3648 + $0x40] sm:$0xff]
    %v3658 = vld [vmem:[%s3648 + $0x48] sm:$0xff]
    %v3659 = vld [vmem:[%s3648 + $0x50] sm:$0xff]
    %v3660 = vld [vmem:[%s3648 + $0x58] sm:$0xff]
    %v3661 = vld [vmem:[%s3648 + $0x60] sm:$0xff]
    %v3662 = vld [vmem:[%s3648 + $0x68] sm:$0xff]
    %v3663 = vld [vmem:[%s3648 + $0x70] sm:$0xff]
    %v3664 = vld [vmem:[%s3648 + $0x78] sm:$0xff]
    %v3665 = vld [vmem:[%s3648 + $0x80] sm:$0xff]
    %v3666 = vld [vmem:[%s3648 + $0x88] sm:$0xff]
    %v3667 = vld [vmem:[%s3648 + $0x90] sm:$0xff]
    %v3668 = vld [vmem:[%s3648 + $0x98] sm:$0xff]
    %v3669 = vld [vmem:[%s3648 + $0xa0] sm:$0xff]
    %v3670 = vld [vmem:[%s3648 + $0xa8] sm:$0xff]
    %v3671 = vld [vmem:[%s3648 + $0xb0] sm:$0xff]
    %v3672 = vld [vmem:[%s3648 + $0xb8] sm:$0xff]
    %v3673 = vld [vmem:[%s3648 + $0xc0] sm:$0xff]
    %v3674 = vld [vmem:[%s3648 + $0xc8] sm:$0xff]
    %v3675 = vld [vmem:[%s3648 + $0xd0] sm:$0xff]
    %v3676 = vld [vmem:[%s3648 + $0xd8] sm:$0xff]
    %v3677 = vld [vmem:[%s3648 + $0xe0] sm:$0xff]
    %v3678 = vld [vmem:[%s3648 + $0xe8] sm:$0xff]
    %v3679 = vld [vmem:[%s3648 + $0xf0] sm:$0xff]
    %v3680 = vld [vmem:[%s3648 + $0xf8] sm:$0xff]
    %s3681 = scalar_lea.vmem %s7, 8
    %v3682 = vld [vmem:[%s3681] sm:$0x3]
    %v3684 = vperm.slane %v3682, 0
    %v3685 = vperm.slane %v3682, 1
    %3688 = vmatpush.msra.mxu0 %v3679
    %3689 = vmatpush.msra.mxu0 %v3677
    %3690 = vmatpush.msra.mxu0 %v3675
    %3691 = vmatpush.msra.mxu0 %v3673
    %3692 = vmatpush.msra.mxu0 %v3671
    %3693 = vmatpush.msra.mxu0 %v3669
    %3694 = vmatpush.msra.mxu0 %v3667
    %3695 = vmatpush.msra.mxu0 %v3665
    %3696 = vmatpush.msra.mxu0 %v3663
    %3697 = vmatpush.msra.mxu0 %v3661
    %3698 = vmatpush.msra.mxu0 %v3659
    %3699 = vmatpush.msra.mxu0 %v3657
    %3700 = vmatpush.msra.mxu0 %v3655
    %3701 = vmatpush.msra.mxu0 %v3653
    %3702 = vmatpush.msra.mxu0 %v3651
    %3703 = vmatpush.msra.mxu0 %v3649
    %3704 = vmatmul.f32.gmra.mxu0 %v3646
    %v3705 = vpop.f32.mrf.mxu0
    %v3706 = vadd.f32 %v3684, %v3705
    %3707 = vmatmul.f32.gmra.mxu0 %v3647
    %v3708 = vpop.f32.mrf.mxu0
    %v3709 = vadd.f32 %v3684, %v3708
    %3710 = vdwg.mxu0
    %3711 = vmatpush.msra.mxu0 %v3680
    %3712 = vmatpush.msra.mxu0 %v3678
    %3713 = vmatpush.msra.mxu0 %v3676
    %3714 = vmatpush.msra.mxu0 %v3674
    %3715 = vmatpush.msra.mxu0 %v3672
    %3716 = vmatpush.msra.mxu0 %v3670
    %3717 = vmatpush.msra.mxu0 %v3668
    %3718 = vmatpush.msra.mxu0 %v3666
    %3719 = vmatpush.msra.mxu0 %v3664
    %3720 = vmatpush.msra.mxu0 %v3662
    %3721 = vmatpush.msra.mxu0 %v3660
    %3722 = vmatpush.msra.mxu0 %v3658
    %3723 = vmatpush.msra.mxu0 %v3656
    %3724 = vmatpush.msra.mxu0 %v3654
    %3725 = vmatpush.msra.mxu0 %v3652
    %3726 = vmatpush.msra.mxu0 %v3650
    %3727 = vmatmul.f32.gmra.mxu0 %v3646
    %v3728 = vpop.f32.mrf.mxu0
    %v3729 = vadd.f32 %v3685, %v3728
    %3730 = vmatmul.f32.gmra.mxu0 %v3647
    %v3731 = vpop.f32.mrf.mxu0
    %v3732 = vadd.f32 %v3685, %v3731
    %3733 = vdwg.mxu0
    %s3734 = scalar_lea.vmem %s8, 16
    %v3735 = vld [vmem:[%s3734] sm:$0xf]
    %s3736 = scalar_lea.vmem %s9, 4
    %v3737 = vld [vmem:[%s3736] sm:$0x1]
    %s3738 = scalar_lea.vmem %s10, 4
    %v3739 = vld [vmem:[%s3738] sm:$0x1]
    %v3740 = vld [vmem:[%s2] sm:$0xff]
    %v3741 = vld [vmem:[%s2 + $0x8] sm:$0xff]
    %v3742 = vld [vmem:[%s2 + $0x10] sm:$0xff]
    %v3743 = vld [vmem:[%s2 + $0x18] sm:$0xff]
    %v3744 = vld [vmem:[%s2 + $0x20] sm:$0xff]
    %v3745 = vld [vmem:[%s2 + $0x28] sm:$0xff]
    %v3746 = vld [vmem:[%s2 + $0x30] sm:$0xff]
    %v3747 = vld [vmem:[%s2 + $0x38] sm:$0xff]
    %v3748 = vld [vmem:[%s2 + $0x40] sm:$0xff]
    %v3749 = vld [vmem:[%s2 + $0x48] sm:$0xff]
    %v3750 = vld [vmem:[%s2 + $0x50] sm:$0xff]
    %v3751 = vld [vmem:[%s2 + $0x58] sm:$0xff]
    %v3752 = vld [vmem:[%s2 + $0x60] sm:$0xff]
    %v3753 = vld [vmem:[%s2 + $0x68] sm:$0xff]
    %v3754 = vld [vmem:[%s2 + $0x70] sm:$0xff]
    %v3755 = vld [vmem:[%s2 + $0x78] sm:$0xff]
    %v3757 = vsel %vm185, %v3740, 0
    %v3760 = vsel %vm185, %v3741, 0
    %v3763 = vsel %vm185, %v3742, 0
    %v3766 = vsel %vm185, %v3743, 0
    %v3769 = vsel %vm185, %v3744, 0
    %v3772 = vsel %vm185, %v3745, 0
    %v3775 = vsel %vm185, %v3746, 0
    %v3778 = vsel %vm185, %v3747, 0
    %v3781 = vsel %vm185, %v3748, 0
    %v3784 = vsel %vm185, %v3749, 0
    %v3787 = vsel %vm185, %v3750, 0
    %v3790 = vsel %vm185, %v3751, 0
    %v3793 = vsel %vm185, %v3752, 0
    %v3796 = vsel %vm185, %v3753, 0
    %v3799 = vsel %vm185, %v3754, 0
    %v3802 = vsel %vm185, %v3755, 0
    %v3805 = vsel %vm234, %v3735, 0
    %3807 = vmatpush.msra.mxu0 0.0
    %3808 = vmatpush.msra.mxu0 0.0
    %3809 = vmatpush.msra.mxu0 0.0
    %3810 = vmatpush.msra.mxu0 0.0
    %3811 = vmatpush.msra.mxu0 0.0
    %3812 = vmatpush.msra.mxu0 0.0
    %3813 = vmatpush.msra.mxu0 0.0
    %3814 = vmatpush.msra.mxu0 0.0
    %3815 = vmatpush.msra.mxu0 0.0
    %3816 = vmatpush.msra.mxu0 0.0
    %3817 = vmatpush.msra.mxu0 0.0
    %3818 = vmatpush.msra.mxu0 0.0
    %3819 = vmatpush.msra.mxu0 0.0
    %3820 = vmatpush.msra.mxu0 0.0
    %3821 = vmatpush.msra.mxu0 0.0
    %3822 = vmatpush.msra.mxu0 %v3805
    %3823 = vmatmul.f32.gmra.mxu0 %v3757
    %v3824 = vpop.f32.mrf.mxu0
    %v3825 = vadd.f32 0.0, %v3824
    %3826 = vmatmul.f32.gmra.mxu0 %v3760
    %v3827 = vpop.f32.mrf.mxu0
    %v3828 = vadd.f32 0.0, %v3827
    %3829 = vmatmul.f32.gmra.mxu0 %v3763
    %v3830 = vpop.f32.mrf.mxu0
    %v3831 = vadd.f32 0.0, %v3830
    %3832 = vmatmul.f32.gmra.mxu0 %v3766
    %v3833 = vpop.f32.mrf.mxu0
    %v3834 = vadd.f32 0.0, %v3833
    %3835 = vmatmul.f32.gmra.mxu0 %v3769
    %v3836 = vpop.f32.mrf.mxu0
    %v3837 = vadd.f32 0.0, %v3836
    %3838 = vmatmul.f32.gmra.mxu0 %v3772
    %v3839 = vpop.f32.mrf.mxu0
    %v3840 = vadd.f32 0.0, %v3839
    %3841 = vmatmul.f32.gmra.mxu0 %v3775
    %v3842 = vpop.f32.mrf.mxu0
    %v3843 = vadd.f32 0.0, %v3842
    %3844 = vmatmul.f32.gmra.mxu0 %v3778
    %v3845 = vpop.f32.mrf.mxu0
    %v3846 = vadd.f32 0.0, %v3845
    %3847 = vmatmul.f32.gmra.mxu0 %v3781
    %v3848 = vpop.f32.mrf.mxu0
    %v3849 = vadd.f32 0.0, %v3848
    %3850 = vmatmul.f32.gmra.mxu0 %v3784
    %v3851 = vpop.f32.mrf.mxu0
    %v3852 = vadd.f32 0.0, %v3851
    %3853 = vmatmul.f32.gmra.mxu0 %v3787
    %v3854 = vpop.f32.mrf.mxu0
    %v3855 = vadd.f32 0.0, %v3854
    %3856 = vmatmul.f32.gmra.mxu0 %v3790
    %v3857 = vpop.f32.mrf.mxu0
    %v3858 = vadd.f32 0.0, %v3857
    %3859 = vmatmul.f32.gmra.mxu0 %v3793
    %v3860 = vpop.f32.mrf.mxu0
    %v3861 = vadd.f32 0.0, %v3860
    %3862 = vmatmul.f32.gmra.mxu0 %v3796
    %v3863 = vpop.f32.mrf.mxu0
    %v3864 = vadd.f32 0.0, %v3863
    %3865 = vmatmul.f32.gmra.mxu0 %v3799
    %v3866 = vpop.f32.mrf.mxu0
    %v3867 = vadd.f32 0.0, %v3866
    %3868 = vmatmul.f32.gmra.mxu0 %v3802
    %v3869 = vpop.f32.mrf.mxu0
    %v3870 = vadd.f32 0.0, %v3869
    %3871 = vdwg.mxu0
    %v3873 = vrot.slane %v3729, 1
    %v3874 = vrot.slane %v3729, 2
    %v3875 = vrot.slane %v3729, 3
    %v3876 = vrot.slane %v3729, 4
    %v3877 = vrot.slane %v3729, 5
    %v3878 = vrot.slane %v3729, 6
    %v3879 = vrot.slane %v3729, 7
    %v3880 = vperm.slane %v3729, 0
    %v3881 = vperm.slane %v3873, 0
    %v3882 = vperm.slane %v3874, 0
    %v3883 = vperm.slane %v3875, 0
    %v3884 = vperm.slane %v3876, 0
    %v3885 = vperm.slane %v3877, 0
    %v3886 = vperm.slane %v3878, 0
    %v3887 = vperm.slane %v3879, 0
    %v3896 = vadd.f32 %v3880, %v3706
    %v3897 = vadd.f32 %v3880, %v3709
    %v3898 = vadd.f32 %v3881, %v3706
    %v3899 = vadd.f32 %v3881, %v3709
    %v3900 = vadd.f32 %v3882, %v3706
    %v3901 = vadd.f32 %v3882, %v3709
    %v3902 = vadd.f32 %v3883, %v3706
    %v3903 = vadd.f32 %v3883, %v3709
    %v3904 = vadd.f32 %v3884, %v3706
    %v3905 = vadd.f32 %v3884, %v3709
    %v3906 = vadd.f32 %v3885, %v3706
    %v3907 = vadd.f32 %v3885, %v3709
    %v3908 = vadd.f32 %v3886, %v3706
    %v3909 = vadd.f32 %v3886, %v3709
    %v3910 = vadd.f32 %v3887, %v3706
    %v3911 = vadd.f32 %v3887, %v3709
    %v3912 = vadd.f32 %v3896, %v3825
    %v3913 = vadd.f32 %v3897, %v3828
    %v3914 = vadd.f32 %v3898, %v3831
    %v3915 = vadd.f32 %v3899, %v3834
    %v3916 = vadd.f32 %v3900, %v3837
    %v3917 = vadd.f32 %v3901, %v3840
    %v3918 = vadd.f32 %v3902, %v3843
    %v3919 = vadd.f32 %v3903, %v3846
    %v3920 = vadd.f32 %v3904, %v3849
    %v3921 = vadd.f32 %v3905, %v3852
    %v3922 = vadd.f32 %v3906, %v3855
    %v3923 = vadd.f32 %v3907, %v3858
    %v3924 = vadd.f32 %v3908, %v3861
    %v3925 = vadd.f32 %v3909, %v3864
    %v3926 = vadd.f32 %v3910, %v3867
    %v3927 = vadd.f32 %v3911, %v3870
    %vm3928 = vcmp.gt.f32.partialorder %v3912, 0.0
    %vm3929 = vcmp.gt.f32.partialorder %v3913, 0.0
    %vm3930 = vcmp.gt.f32.partialorder %v3914, 0.0
    %vm3931 = vcmp.gt.f32.partialorder %v3915, 0.0
    %vm3932 = vcmp.gt.f32.partialorder %v3916, 0.0
    %vm3933 = vcmp.gt.f32.partialorder %v3917, 0.0
    %vm3934 = vcmp.gt.f32.partialorder %v3918, 0.0
    %vm3935 = vcmp.gt.f32.partialorder %v3919, 0.0
    %vm3936 = vcmp.gt.f32.partialorder %v3920, 0.0
    %vm3937 = vcmp.gt.f32.partialorder %v3921, 0.0
    %vm3938 = vcmp.gt.f32.partialorder %v3922, 0.0
    %vm3939 = vcmp.gt.f32.partialorder %v3923, 0.0
    %vm3940 = vcmp.gt.f32.partialorder %v3924, 0.0
    %vm3941 = vcmp.gt.f32.partialorder %v3925, 0.0
    %vm3942 = vcmp.gt.f32.partialorder %v3926, 0.0
    %vm3943 = vcmp.gt.f32.partialorder %v3927, 0.0
    %v3944 = vmul.f32 %v3912, 0.2
    %v3945 = vmul.f32 %v3913, 0.2
    %v3946 = vmul.f32 %v3914, 0.2
    %v3947 = vmul.f32 %v3915, 0.2
    %v3948 = vmul.f32 %v3916, 0.2
    %v3949 = vmul.f32 %v3917, 0.2
    %v3950 = vmul.f32 %v3918, 0.2
    %v3951 = vmul.f32 %v3919, 0.2
    %v3952 = vmul.f32 %v3920, 0.2
    %v3953 = vmul.f32 %v3921, 0.2
    %v3954 = vmul.f32 %v3922, 0.2
    %v3955 = vmul.f32 %v3923, 0.2
    %v3956 = vmul.f32 %v3924, 0.2
    %v3957 = vmul.f32 %v3925, 0.2
    %v3958 = vmul.f32 %v3926, 0.2
    %v3959 = vmul.f32 %v3927, 0.2
    %v3960 = vsel %vm3928, %v3912, %v3944
    %v3961 = vsel %vm3929, %v3913, %v3945
    %v3962 = vsel %vm3930, %v3914, %v3946
    %v3963 = vsel %vm3931, %v3915, %v3947
    %v3964 = vsel %vm3932, %v3916, %v3948
    %v3965 = vsel %vm3933, %v3917, %v3949
    %v3966 = vsel %vm3934, %v3918, %v3950
    %v3967 = vsel %vm3935, %v3919, %v3951
    %v3968 = vsel %vm3936, %v3920, %v3952
    %v3969 = vsel %vm3937, %v3921, %v3953
    %v3970 = vsel %vm3938, %v3922, %v3954
    %v3971 = vsel %vm3939, %v3923, %v3955
    %v3972 = vsel %vm3940, %v3924, %v3956
    %v3973 = vsel %vm3941, %v3925, %v3957
    %v3974 = vsel %vm3942, %v3926, %v3958
    %v3975 = vsel %vm3943, %v3927, %v3959
    %v3977 = vperm.slane %v3737, 0
    %v3979 = vmul.f32 %v3960, %v3977
    %v3980 = vmul.f32 %v3961, %v3977
    %v3981 = vmul.f32 %v3962, %v3977
    %v3982 = vmul.f32 %v3963, %v3977
    %v3983 = vmul.f32 %v3964, %v3977
    %v3984 = vmul.f32 %v3965, %v3977
    %v3985 = vmul.f32 %v3966, %v3977
    %v3986 = vmul.f32 %v3967, %v3977
    %v3987 = vmul.f32 %v3968, %v3977
    %v3988 = vmul.f32 %v3969, %v3977
    %v3989 = vmul.f32 %v3970, %v3977
    %v3990 = vmul.f32 %v3971, %v3977
    %v3991 = vmul.f32 %v3972, %v3977
    %v3992 = vmul.f32 %v3973, %v3977
    %v3993 = vmul.f32 %v3974, %v3977
    %v3994 = vmul.f32 %v3975, %v3977
    %3995 = vadd.xlane.f32.xlu0 %v3979
    %v3996 = vpop.xlane.xlu0 %3995
    %3997 = vadd.xlane.f32.xlu0 %v3980
    %v3998 = vpop.xlane.xlu0 %3997
    %3999 = vadd.xlane.f32.xlu0 %v3981
    %v4000 = vpop.xlane.xlu0 %3999
    %4001 = vadd.xlane.f32.xlu0 %v3982
    %v4002 = vpop.xlane.xlu0 %4001
    %4003 = vadd.xlane.f32.xlu0 %v3983
    %v4004 = vpop.xlane.xlu0 %4003
    %4005 = vadd.xlane.f32.xlu0 %v3984
    %v4006 = vpop.xlane.xlu0 %4005
    %4007 = vadd.xlane.f32.xlu0 %v3985
    %v4008 = vpop.xlane.xlu0 %4007
    %4009 = vadd.xlane.f32.xlu0 %v3986
    %v4010 = vpop.xlane.xlu0 %4009
    %4011 = vadd.xlane.f32.xlu0 %v3987
    %v4012 = vpop.xlane.xlu0 %4011
    %4013 = vadd.xlane.f32.xlu0 %v3988
    %v4014 = vpop.xlane.xlu0 %4013
    %4015 = vadd.xlane.f32.xlu0 %v3989
    %v4016 = vpop.xlane.xlu0 %4015
    %4017 = vadd.xlane.f32.xlu0 %v3990
    %v4018 = vpop.xlane.xlu0 %4017
    %4019 = vadd.xlane.f32.xlu0 %v3991
    %v4020 = vpop.xlane.xlu0 %4019
    %4021 = vadd.xlane.f32.xlu0 %v3992
    %v4022 = vpop.xlane.xlu0 %4021
    %4023 = vadd.xlane.f32.xlu0 %v3993
    %v4024 = vpop.xlane.xlu0 %4023
    %4025 = vadd.xlane.f32.xlu0 %v3994
    %v4026 = vpop.xlane.xlu0 %4025
    %v4043 = vperm.slane %v3996, %v475
    %v4044 = vperm.slane %v3998, %v477
    %v4045 = vsel %vm479, %v4044, %v4043
    %v4046 = vperm.slane %v4000, %v475
    %v4047 = vperm.slane %v4002, %v477
    %v4048 = vsel %vm479, %v4047, %v4046
    %v4049 = vperm.slane %v4004, %v475
    %v4050 = vperm.slane %v4006, %v477
    %v4051 = vsel %vm479, %v4050, %v4049
    %v4052 = vperm.slane %v4008, %v475
    %v4053 = vperm.slane %v4010, %v477
    %v4054 = vsel %vm479, %v4053, %v4052
    %v4055 = vperm.slane %v4012, %v475
    %v4056 = vperm.slane %v4014, %v477
    %v4057 = vsel %vm479, %v4056, %v4055
    %v4058 = vperm.slane %v4016, %v475
    %v4059 = vperm.slane %v4018, %v477
    %v4060 = vsel %vm479, %v4059, %v4058
    %v4061 = vperm.slane %v4020, %v475
    %v4062 = vperm.slane %v4022, %v477
    %v4063 = vsel %vm479, %v4062, %v4061
    %v4064 = vperm.slane %v4024, %v475
    %v4065 = vperm.slane %v4026, %v477
    %v4066 = vsel %vm479, %v4065, %v4064
    %v4067 = vsel %vm502, %v4048, %v4045
    %v4068 = vsel %vm504, %v4051, %v4067
    %v4069 = vsel %vm506, %v4054, %v4068
    %v4070 = vsel %vm508, %v4057, %v4069
    %v4071 = vsel %vm510, %v4060, %v4070
    %v4072 = vsel %vm512, %v4063, %v4071
    %v4073 = vsel %vm514, %v4066, %v4072
    %v4075 = vsel %vm78, %v4073, -1e+30
    %v4076 = vsel %vm518, %v4075, -inf
    %4077 = vmax.xlane.f32.xlu0 %v4076
    %v4078 = vpop.xlane.xlu0 %4077
    %v4079 = vsub.f32 %v4075, %v4078
    %v4080 = vmul.f32 %v4079, 1.442695
    %v4081 = vpow.pop %v4080
    %v4082 = vsel %vm78, %v4081, 0.0
    %v4083 = vsel %vm518, %v4082, 0.0
    %4084 = vadd.xlane.f32.xlu0 %v4083
    %v4085 = vpop.xlane.xlu0 %4084
    %v4086 = vrcp.pop %v4085
    %v4087 = vmul.f32 %v4082, %v4086
    %v4089 = vperm.slane %v3739, 0
    %v4092 = vsel %vm518, %v4087, 0
    %4094 = vmatpush.msra.mxu0 0.0
    %4095 = vmatpush.msra.mxu0 0.0
    %4096 = vmatpush.msra.mxu0 0.0
    %4097 = vmatpush.msra.mxu0 0.0
    %4098 = vmatpush.msra.mxu0 0.0
    %4099 = vmatpush.msra.mxu0 0.0
    %4100 = vmatpush.msra.mxu0 0.0
    %4101 = vmatpush.msra.mxu0 0.0
    %4102 = vmatpush.msra.mxu0 0.0
    %4103 = vmatpush.msra.mxu0 0.0
    %4104 = vmatpush.msra.mxu0 0.0
    %4105 = vmatpush.msra.mxu0 0.0
    %4106 = vmatpush.msra.mxu0 0.0
    %4107 = vmatpush.msra.mxu0 0.0
    %4108 = vmatpush.msra.mxu0 %v3709
    %4109 = vmatpush.msra.mxu0 %v3706
    %4110 = vmatmul.f32.gmra.mxu0 %v4092
    %v4111 = vpop.f32.mrf.mxu0
    %v4112 = vadd.f32 %v4089, %v4111
    %4113 = vdwg.mxu0
    %4114 = vst [vmem:[#allocation2] sm:$0xff] %v4112
    %v4115 = vld [vmem:[%s2 + $0x80] sm:$0xff]
    %v4116 = vld [vmem:[%s2 + $0x88] sm:$0xff]
    %v4117 = vld [vmem:[%s2 + $0x90] sm:$0xff]
    %v4118 = vld [vmem:[%s2 + $0x98] sm:$0xff]
    %v4119 = vld [vmem:[%s2 + $0xa0] sm:$0xff]
    %v4120 = vld [vmem:[%s2 + $0xa8] sm:$0xff]
    %v4121 = vld [vmem:[%s2 + $0xb0] sm:$0xff]
    %v4122 = vld [vmem:[%s2 + $0xb8] sm:$0xff]
    %v4123 = vld [vmem:[%s2 + $0xc0] sm:$0xff]
    %v4124 = vld [vmem:[%s2 + $0xc8] sm:$0xff]
    %v4125 = vld [vmem:[%s2 + $0xd0] sm:$0xff]
    %v4126 = vld [vmem:[%s2 + $0xd8] sm:$0xff]
    %v4127 = vld [vmem:[%s2 + $0xe0] sm:$0xff]
    %v4128 = vld [vmem:[%s2 + $0xe8] sm:$0xff]
    %v4129 = vld [vmem:[%s2 + $0xf0] sm:$0xff]
    %v4130 = vld [vmem:[%s2 + $0xf8] sm:$0xff]
    %v4132 = vsel %vm185, %v4115, 0
    %v4135 = vsel %vm185, %v4116, 0
    %v4138 = vsel %vm185, %v4117, 0
    %v4141 = vsel %vm185, %v4118, 0
    %v4144 = vsel %vm185, %v4119, 0
    %v4147 = vsel %vm185, %v4120, 0
    %v4150 = vsel %vm185, %v4121, 0
    %v4153 = vsel %vm185, %v4122, 0
    %v4156 = vsel %vm185, %v4123, 0
    %v4159 = vsel %vm185, %v4124, 0
    %v4162 = vsel %vm185, %v4125, 0
    %v4165 = vsel %vm185, %v4126, 0
    %v4168 = vsel %vm185, %v4127, 0
    %v4171 = vsel %vm185, %v4128, 0
    %v4174 = vsel %vm185, %v4129, 0
    %v4177 = vsel %vm185, %v4130, 0
    %4179 = vmatpush.msra.mxu0 0.0
    %4180 = vmatpush.msra.mxu0 0.0
    %4181 = vmatpush.msra.mxu0 0.0
    %4182 = vmatpush.msra.mxu0 0.0
    %4183 = vmatpush.msra.mxu0 0.0
    %4184 = vmatpush.msra.mxu0 0.0
    %4185 = vmatpush.msra.mxu0 0.0
    %4186 = vmatpush.msra.mxu0 0.0
    %4187 = vmatpush.msra.mxu0 0.0
    %4188 = vmatpush.msra.mxu0 0.0
    %4189 = vmatpush.msra.mxu0 0.0
    %4190 = vmatpush.msra.mxu0 0.0
    %4191 = vmatpush.msra.mxu0 0.0
    %4192 = vmatpush.msra.mxu0 0.0
    %4193 = vmatpush.msra.mxu0 0.0
    %4194 = vmatpush.msra.mxu0 %v3805
    %4195 = vmatmul.f32.gmra.mxu0 %v4132
    %v4196 = vpop.f32.mrf.mxu0
    %v4197 = vadd.f32 0.0, %v4196
    %4198 = vmatmul.f32.gmra.mxu0 %v4135
    %v4199 = vpop.f32.mrf.mxu0
    %v4200 = vadd.f32 0.0, %v4199
    %4201 = vmatmul.f32.gmra.mxu0 %v4138
    %v4202 = vpop.f32.mrf.mxu0
    %v4203 = vadd.f32 0.0, %v4202
    %4204 = vmatmul.f32.gmra.mxu0 %v4141
    %v4205 = vpop.f32.mrf.mxu0
    %v4206 = vadd.f32 0.0, %v4205
    %4207 = vmatmul.f32.gmra.mxu0 %v4144
    %v4208 = vpop.f32.mrf.mxu0
    %v4209 = vadd.f32 0.0, %v4208
    %4210 = vmatmul.f32.gmra.mxu0 %v4147
    %v4211 = vpop.f32.mrf.mxu0
    %v4212 = vadd.f32 0.0, %v4211
    %4213 = vmatmul.f32.gmra.mxu0 %v4150
    %v4214 = vpop.f32.mrf.mxu0
    %v4215 = vadd.f32 0.0, %v4214
    %4216 = vmatmul.f32.gmra.mxu0 %v4153
    %v4217 = vpop.f32.mrf.mxu0
    %v4218 = vadd.f32 0.0, %v4217
    %4219 = vmatmul.f32.gmra.mxu0 %v4156
    %v4220 = vpop.f32.mrf.mxu0
    %v4221 = vadd.f32 0.0, %v4220
    %4222 = vmatmul.f32.gmra.mxu0 %v4159
    %v4223 = vpop.f32.mrf.mxu0
    %v4224 = vadd.f32 0.0, %v4223
    %4225 = vmatmul.f32.gmra.mxu0 %v4162
    %v4226 = vpop.f32.mrf.mxu0
    %v4227 = vadd.f32 0.0, %v4226
    %4228 = vmatmul.f32.gmra.mxu0 %v4165
    %v4229 = vpop.f32.mrf.mxu0
    %v4230 = vadd.f32 0.0, %v4229
    %4231 = vmatmul.f32.gmra.mxu0 %v4168
    %v4232 = vpop.f32.mrf.mxu0
    %v4233 = vadd.f32 0.0, %v4232
    %4234 = vmatmul.f32.gmra.mxu0 %v4171
    %v4235 = vpop.f32.mrf.mxu0
    %v4236 = vadd.f32 0.0, %v4235
    %4237 = vmatmul.f32.gmra.mxu0 %v4174
    %v4238 = vpop.f32.mrf.mxu0
    %v4239 = vadd.f32 0.0, %v4238
    %4240 = vmatmul.f32.gmra.mxu0 %v4177
    %v4241 = vpop.f32.mrf.mxu0
    %v4242 = vadd.f32 0.0, %v4241
    %4243 = vdwg.mxu0
    %v4245 = vrot.slane %v3732, 1
    %v4246 = vrot.slane %v3732, 2
    %v4247 = vrot.slane %v3732, 3
    %v4248 = vrot.slane %v3732, 4
    %v4249 = vrot.slane %v3732, 5
    %v4250 = vrot.slane %v3732, 6
    %v4251 = vrot.slane %v3732, 7
    %v4252 = vperm.slane %v3732, 0
    %v4253 = vperm.slane %v4245, 0
    %v4254 = vperm.slane %v4246, 0
    %v4255 = vperm.slane %v4247, 0
    %v4256 = vperm.slane %v4248, 0
    %v4257 = vperm.slane %v4249, 0
    %v4258 = vperm.slane %v4250, 0
    %v4259 = vperm.slane %v4251, 0
    %v4268 = vadd.f32 %v4252, %v3706
    %v4269 = vadd.f32 %v4252, %v3709
    %v4270 = vadd.f32 %v4253, %v3706
    %v4271 = vadd.f32 %v4253, %v3709
    %v4272 = vadd.f32 %v4254, %v3706
    %v4273 = vadd.f32 %v4254, %v3709
    %v4274 = vadd.f32 %v4255, %v3706
    %v4275 = vadd.f32 %v4255, %v3709
    %v4276 = vadd.f32 %v4256, %v3706
    %v4277 = vadd.f32 %v4256, %v3709
    %v4278 = vadd.f32 %v4257, %v3706
    %v4279 = vadd.f32 %v4257, %v3709
    %v4280 = vadd.f32 %v4258, %v3706
    %v4281 = vadd.f32 %v4258, %v3709
    %v4282 = vadd.f32 %v4259, %v3706
    %v4283 = vadd.f32 %v4259, %v3709
    %v4284 = vadd.f32 %v4268, %v4197
    %v4285 = vadd.f32 %v4269, %v4200
    %v4286 = vadd.f32 %v4270, %v4203
    %v4287 = vadd.f32 %v4271, %v4206
    %v4288 = vadd.f32 %v4272, %v4209
    %v4289 = vadd.f32 %v4273, %v4212
    %v4290 = vadd.f32 %v4274, %v4215
    %v4291 = vadd.f32 %v4275, %v4218
    %v4292 = vadd.f32 %v4276, %v4221
    %v4293 = vadd.f32 %v4277, %v4224
    %v4294 = vadd.f32 %v4278, %v4227
    %v4295 = vadd.f32 %v4279, %v4230
    %v4296 = vadd.f32 %v4280, %v4233
    %v4297 = vadd.f32 %v4281, %v4236
    %v4298 = vadd.f32 %v4282, %v4239
    %v4299 = vadd.f32 %v4283, %v4242
    %vm4300 = vcmp.gt.f32.partialorder %v4284, 0.0
    %vm4301 = vcmp.gt.f32.partialorder %v4285, 0.0
    %vm4302 = vcmp.gt.f32.partialorder %v4286, 0.0
    %vm4303 = vcmp.gt.f32.partialorder %v4287, 0.0
    %vm4304 = vcmp.gt.f32.partialorder %v4288, 0.0
    %vm4305 = vcmp.gt.f32.partialorder %v4289, 0.0
    %vm4306 = vcmp.gt.f32.partialorder %v4290, 0.0
    %vm4307 = vcmp.gt.f32.partialorder %v4291, 0.0
    %vm4308 = vcmp.gt.f32.partialorder %v4292, 0.0
    %vm4309 = vcmp.gt.f32.partialorder %v4293, 0.0
    %vm4310 = vcmp.gt.f32.partialorder %v4294, 0.0
    %vm4311 = vcmp.gt.f32.partialorder %v4295, 0.0
    %vm4312 = vcmp.gt.f32.partialorder %v4296, 0.0
    %vm4313 = vcmp.gt.f32.partialorder %v4297, 0.0
    %vm4314 = vcmp.gt.f32.partialorder %v4298, 0.0
    %vm4315 = vcmp.gt.f32.partialorder %v4299, 0.0
    %v4316 = vmul.f32 %v4284, 0.2
    %v4317 = vmul.f32 %v4285, 0.2
    %v4318 = vmul.f32 %v4286, 0.2
    %v4319 = vmul.f32 %v4287, 0.2
    %v4320 = vmul.f32 %v4288, 0.2
    %v4321 = vmul.f32 %v4289, 0.2
    %v4322 = vmul.f32 %v4290, 0.2
    %v4323 = vmul.f32 %v4291, 0.2
    %v4324 = vmul.f32 %v4292, 0.2
    %v4325 = vmul.f32 %v4293, 0.2
    %v4326 = vmul.f32 %v4294, 0.2
    %v4327 = vmul.f32 %v4295, 0.2
    %v4328 = vmul.f32 %v4296, 0.2
    %v4329 = vmul.f32 %v4297, 0.2
    %v4330 = vmul.f32 %v4298, 0.2
    %v4331 = vmul.f32 %v4299, 0.2
    %v4332 = vsel %vm4300, %v4284, %v4316
    %v4333 = vsel %vm4301, %v4285, %v4317
    %v4334 = vsel %vm4302, %v4286, %v4318
    %v4335 = vsel %vm4303, %v4287, %v4319
    %v4336 = vsel %vm4304, %v4288, %v4320
    %v4337 = vsel %vm4305, %v4289, %v4321
    %v4338 = vsel %vm4306, %v4290, %v4322
    %v4339 = vsel %vm4307, %v4291, %v4323
    %v4340 = vsel %vm4308, %v4292, %v4324
    %v4341 = vsel %vm4309, %v4293, %v4325
    %v4342 = vsel %vm4310, %v4294, %v4326
    %v4343 = vsel %vm4311, %v4295, %v4327
    %v4344 = vsel %vm4312, %v4296, %v4328
    %v4345 = vsel %vm4313, %v4297, %v4329
    %v4346 = vsel %vm4314, %v4298, %v4330
    %v4347 = vsel %vm4315, %v4299, %v4331
    %v4348 = vmul.f32 %v4332, %v3977
    %v4349 = vmul.f32 %v4333, %v3977
    %v4350 = vmul.f32 %v4334, %v3977
    %v4351 = vmul.f32 %v4335, %v3977
    %v4352 = vmul.f32 %v4336, %v3977
    %v4353 = vmul.f32 %v4337, %v3977
    %v4354 = vmul.f32 %v4338, %v3977
    %v4355 = vmul.f32 %v4339, %v3977
    %v4356 = vmul.f32 %v4340, %v3977
    %v4357 = vmul.f32 %v4341, %v3977
    %v4358 = vmul.f32 %v4342, %v3977
    %v4359 = vmul.f32 %v4343, %v3977
    %v4360 = vmul.f32 %v4344, %v3977
    %v4361 = vmul.f32 %v4345, %v3977
    %v4362 = vmul.f32 %v4346, %v3977
    %v4363 = vmul.f32 %v4347, %v3977
    %4364 = vadd.xlane.f32.xlu0 %v4348
    %v4365 = vpop.xlane.xlu0 %4364
    %4366 = vadd.xlane.f32.xlu0 %v4349
    %v4367 = vpop.xlane.xlu0 %4366
    %4368 = vadd.xlane.f32.xlu0 %v4350
    %v4369 = vpop.xlane.xlu0 %4368
    %4370 = vadd.xlane.f32.xlu0 %v4351
    %v4371 = vpop.xlane.xlu0 %4370
    %4372 = vadd.xlane.f32.xlu0 %v4352
    %v4373 = vpop.xlane.xlu0 %4372
    %4374 = vadd.xlane.f32.xlu0 %v4353
    %v4375 = vpop.xlane.xlu0 %4374
    %4376 = vadd.xlane.f32.xlu0 %v4354
    %v4377 = vpop.xlane.xlu0 %4376
    %4378 = vadd.xlane.f32.xlu0 %v4355
    %v4379 = vpop.xlane.xlu0 %4378
    %4380 = vadd.xlane.f32.xlu0 %v4356
    %v4381 = vpop.xlane.xlu0 %4380
    %4382 = vadd.xlane.f32.xlu0 %v4357
    %v4383 = vpop.xlane.xlu0 %4382
    %4384 = vadd.xlane.f32.xlu0 %v4358
    %v4385 = vpop.xlane.xlu0 %4384
    %4386 = vadd.xlane.f32.xlu0 %v4359
    %v4387 = vpop.xlane.xlu0 %4386
    %4388 = vadd.xlane.f32.xlu0 %v4360
    %v4389 = vpop.xlane.xlu0 %4388
    %4390 = vadd.xlane.f32.xlu0 %v4361
    %v4391 = vpop.xlane.xlu0 %4390
    %4392 = vadd.xlane.f32.xlu0 %v4362
    %v4393 = vpop.xlane.xlu0 %4392
    %4394 = vadd.xlane.f32.xlu0 %v4363
    %v4395 = vpop.xlane.xlu0 %4394
    %v4412 = vperm.slane %v4365, %v475
    %v4413 = vperm.slane %v4367, %v477
    %v4414 = vsel %vm479, %v4413, %v4412
    %v4415 = vperm.slane %v4369, %v475
    %v4416 = vperm.slane %v4371, %v477
    %v4417 = vsel %vm479, %v4416, %v4415
    %v4418 = vperm.slane %v4373, %v475
    %v4419 = vperm.slane %v4375, %v477
    %v4420 = vsel %vm479, %v4419, %v4418
    %v4421 = vperm.slane %v4377, %v475
    %v4422 = vperm.slane %v4379, %v477
    %v4423 = vsel %vm479, %v4422, %v4421
    %v4424 = vperm.slane %v4381, %v475
    %v4425 = vperm.slane %v4383, %v477
    %v4426 = vsel %vm479, %v4425, %v4424
    %v4427 = vperm.slane %v4385, %v475
    %v4428 = vperm.slane %v4387, %v477
    %v4429 = vsel %vm479, %v4428, %v4427
    %v4430 = vperm.slane %v4389, %v475
    %v4431 = vperm.slane %v4391, %v477
    %v4432 = vsel %vm479, %v4431, %v4430
    %v4433 = vperm.slane %v4393, %v475
    %v4434 = vperm.slane %v4395, %v477
    %v4435 = vsel %vm479, %v4434, %v4433
    %v4436 = vsel %vm502, %v4417, %v4414
    %v4437 = vsel %vm504, %v4420, %v4436
    %v4438 = vsel %vm506, %v4423, %v4437
    %v4439 = vsel %vm508, %v4426, %v4438
    %v4440 = vsel %vm510, %v4429, %v4439
    %v4441 = vsel %vm512, %v4432, %v4440
    %v4442 = vsel %vm514, %v4435, %v4441
    %v4444 = vsel %vm79, %v4442, -1e+30
    %v4445 = vsel %vm518, %v4444, -inf
    %4446 = vmax.xlane.f32.xlu0 %v4445
    %v4447 = vpop.xlane.xlu0 %4446
    %v4448 = vsub.f32 %v4444, %v4447
    %v4449 = vmul.f32 %v4448, 1.442695
    %v4450 = vpow.pop %v4449
    %v4451 = vsel %vm79, %v4450, 0.0
    %v4452 = vsel %vm518, %v4451, 0.0
    %4453 = vadd.xlane.f32.xlu0 %v4452
    %v4454 = vpop.xlane.xlu0 %4453
    %v4455 = vrcp.pop %v4454
    %v4456 = vmul.f32 %v4451, %v4455
    %v4458 = vsel %vm518, %v4456, 0
    %4460 = vmatpush.msra.mxu0 0.0
    %4461 = vmatpush.msra.mxu0 0.0
    %4462 = vmatpush.msra.mxu0 0.0
    %4463 = vmatpush.msra.mxu0 0.0
    %4464 = vmatpush.msra.mxu0 0.0
    %4465 = vmatpush.msra.mxu0 0.0
    %4466 = vmatpush.msra.mxu0 0.0
    %4467 = vmatpush.msra.mxu0 0.0
    %4468 = vmatpush.msra.mxu0 0.0
    %4469 = vmatpush.msra.mxu0 0.0
    %4470 = vmatpush.msra.mxu0 0.0
    %4471 = vmatpush.msra.mxu0 0.0
    %4472 = vmatpush.msra.mxu0 0.0
    %4473 = vmatpush.msra.mxu0 0.0
    %4474 = vmatpush.msra.mxu0 %v3709
    %4475 = vmatpush.msra.mxu0 %v3706
    %4476 = vmatmul.f32.gmra.mxu0 %v4458
    %v4477 = vpop.f32.mrf.mxu0
    %v4478 = vadd.f32 %v4089, %v4477
    %4479 = vdwg.mxu0
    %4480 = vst [vmem:[#allocation2 + $0x8] sm:$0xff] %v4478
    %v4481 = vld [vmem:[#allocation2] sm:$0xff]
    %v4482 = vld [vmem:[#allocation2 + $0x8] sm:$0xff]
    %v4483 = vadd.f32 %v4481, %v4482
    %v4484 = vrot.slane %v4483, 4
    %v4485 = vadd.f32 %v4483, %v4484
    %v4486 = vrot.slane %v4485, 2
    %v4487 = vadd.f32 %v4485, %v4486
    %v4488 = vrot.slane %v4487, 1
    %v4489 = vadd.f32 %v4487, %v4488
    %v4490 = vmul.f32 %v4489, %v939
    %v4491 = vsub.f32 %v4481, %v4490
    %v4492 = vsub.f32 %v4482, %v4490
    %v4493 = vmul.f32 %v4491, %v4491
    %v4494 = vmul.f32 %v4492, %v4492
    %v4495 = vadd.f32 %v4493, %v4494
    %v4496 = vrot.slane %v4495, 4
    %v4497 = vadd.f32 %v4495, %v4496
    %v4498 = vrot.slane %v4497, 2
    %v4499 = vadd.f32 %v4497, %v4498
    %v4500 = vrot.slane %v4499, 1
    %v4501 = vadd.f32 %v4499, %v4500
    %v4502 = vmul.f32 %v4501, %v939
    %v4503 = vadd.f32 %v4502, 1e-05
    %v4504 = vrsqrt.pop %v4503
    %v4505 = vmul.f32 %v4504, %v4503
    %v4506 = vmul.f32 %v4505, %v4504
    %v4507 = vmul.f32 0.5, %v4506
    %v4508 = vsub.f32 1.5, %v4507
    %v4509 = vmul.f32 %v4504, %v4508
    %vm4510 = vweird.f32 %v4503
    %vm4511 = vweird.f32 %v4504
    %vm4512 = vmor %vm4510, %vm4511
    %v4513 = vsel %vm4512, %v4504, %v4509
    %v4514 = vmul.f32 %v4491, %v4513
    %v4515 = vmul.f32 %v4492, %v4513
    %s4516 = scalar_lea.vmem %s11, 4
    %v4517 = vld [vmem:[%s4516] sm:$0x1]
    %v4519 = vperm.slane %v4517, 0
    %v4521 = vmul.f32 %v4514, %v4519
    %v4522 = vmul.f32 %v4515, %v4519
    %s4523 = scalar_lea.vmem %s12, 4
    %v4524 = vld [vmem:[%s4523] sm:$0x1]
    %v4526 = vperm.slane %v4524, 0
    %v4528 = vadd.f32 %v4521, %v4526
    %v4529 = vadd.f32 %v4522, %v4526
    %vm4530 = vcmp.gt.f32.partialorder %v4528, 0.0
    %vm4531 = vcmp.gt.f32.partialorder %v4529, 0.0
    %v4532 = vmul.f32 %v4528, 0.01
    %v4533 = vmul.f32 %v4529, 0.01
    %v4534 = vsel %vm4530, %v4528, %v4532
    %v4535 = vsel %vm4531, %v4529, %v4533
    %s4536 = scalar_lea.vmem [#allocation3], 1280
    %v4537 = vld [vmem:[%s4536] sm:$0xff]
    %v4538 = vld [vmem:[%s4536 + $0x8] sm:$0xff]
    %v4539 = vld [vmem:[%s4536 + $0x10] sm:$0xff]
    %v4540 = vld [vmem:[%s4536 + $0x18] sm:$0xff]
    %v4541 = vld [vmem:[%s4536 + $0x20] sm:$0xff]
    %v4542 = vld [vmem:[%s4536 + $0x28] sm:$0xff]
    %v4543 = vld [vmem:[%s4536 + $0x30] sm:$0xff]
    %v4544 = vld [vmem:[%s4536 + $0x38] sm:$0xff]
    %v4545 = vld [vmem:[%s4536 + $0x40] sm:$0xff]
    %v4546 = vld [vmem:[%s4536 + $0x48] sm:$0xff]
    %v4547 = vld [vmem:[%s4536 + $0x50] sm:$0xff]
    %v4548 = vld [vmem:[%s4536 + $0x58] sm:$0xff]
    %v4549 = vld [vmem:[%s4536 + $0x60] sm:$0xff]
    %v4550 = vld [vmem:[%s4536 + $0x68] sm:$0xff]
    %v4551 = vld [vmem:[%s4536 + $0x70] sm:$0xff]
    %v4552 = vld [vmem:[%s4536 + $0x78] sm:$0xff]
    %v4553 = vld [vmem:[%s4536 + $0x80] sm:$0xff]
    %v4554 = vld [vmem:[%s4536 + $0x88] sm:$0xff]
    %v4555 = vld [vmem:[%s4536 + $0x90] sm:$0xff]
    %v4556 = vld [vmem:[%s4536 + $0x98] sm:$0xff]
    %v4557 = vld [vmem:[%s4536 + $0xa0] sm:$0xff]
    %v4558 = vld [vmem:[%s4536 + $0xa8] sm:$0xff]
    %v4559 = vld [vmem:[%s4536 + $0xb0] sm:$0xff]
    %v4560 = vld [vmem:[%s4536 + $0xb8] sm:$0xff]
    %v4561 = vld [vmem:[%s4536 + $0xc0] sm:$0xff]
    %v4562 = vld [vmem:[%s4536 + $0xc8] sm:$0xff]
    %v4563 = vld [vmem:[%s4536 + $0xd0] sm:$0xff]
    %v4564 = vld [vmem:[%s4536 + $0xd8] sm:$0xff]
    %v4565 = vld [vmem:[%s4536 + $0xe0] sm:$0xff]
    %v4566 = vld [vmem:[%s4536 + $0xe8] sm:$0xff]
    %v4567 = vld [vmem:[%s4536 + $0xf0] sm:$0xff]
    %v4568 = vld [vmem:[%s4536 + $0xf8] sm:$0xff]
    %s4569 = scalar_lea.vmem %s7, 10
    %v4570 = vld [vmem:[%s4569] sm:$0x3]
    %v4572 = vperm.slane %v4570, 0
    %v4573 = vperm.slane %v4570, 1
    %4576 = vmatpush.msra.mxu0 %v4567
    %4577 = vmatpush.msra.mxu0 %v4565
    %4578 = vmatpush.msra.mxu0 %v4563
    %4579 = vmatpush.msra.mxu0 %v4561
    %4580 = vmatpush.msra.mxu0 %v4559
    %4581 = vmatpush.msra.mxu0 %v4557
    %4582 = vmatpush.msra.mxu0 %v4555
    %4583 = vmatpush.msra.mxu0 %v4553
    %4584 = vmatpush.msra.mxu0 %v4551
    %4585 = vmatpush.msra.mxu0 %v4549
    %4586 = vmatpush.msra.mxu0 %v4547
    %4587 = vmatpush.msra.mxu0 %v4545
    %4588 = vmatpush.msra.mxu0 %v4543
    %4589 = vmatpush.msra.mxu0 %v4541
    %4590 = vmatpush.msra.mxu0 %v4539
    %4591 = vmatpush.msra.mxu0 %v4537
    %4592 = vmatmul.f32.gmra.mxu0 %v4534
    %v4593 = vpop.f32.mrf.mxu0
    %v4594 = vadd.f32 %v4572, %v4593
    %4595 = vmatmul.f32.gmra.mxu0 %v4535
    %v4596 = vpop.f32.mrf.mxu0
    %v4597 = vadd.f32 %v4572, %v4596
    %4598 = vdwg.mxu0
    %4599 = vmatpush.msra.mxu0 %v4568
    %4600 = vmatpush.msra.mxu0 %v4566
    %4601 = vmatpush.msra.mxu0 %v4564
    %4602 = vmatpush.msra.mxu0 %v4562
    %4603 = vmatpush.msra.mxu0 %v4560
    %4604 = vmatpush.msra.mxu0 %v4558
    %4605 = vmatpush.msra.mxu0 %v4556
    %4606 = vmatpush.msra.mxu0 %v4554
    %4607 = vmatpush.msra.mxu0 %v4552
    %4608 = vmatpush.msra.mxu0 %v4550
    %4609 = vmatpush.msra.mxu0 %v4548
    %4610 = vmatpush.msra.mxu0 %v4546
    %4611 = vmatpush.msra.mxu0 %v4544
    %4612 = vmatpush.msra.mxu0 %v4542
    %4613 = vmatpush.msra.mxu0 %v4540
    %4614 = vmatpush.msra.mxu0 %v4538
    %4615 = vmatmul.f32.gmra.mxu0 %v4534
    %v4616 = vpop.f32.mrf.mxu0
    %v4617 = vadd.f32 %v4573, %v4616
    %4618 = vmatmul.f32.gmra.mxu0 %v4535
    %v4619 = vpop.f32.mrf.mxu0
    %v4620 = vadd.f32 %v4573, %v4619
    %4621 = vdwg.mxu0
    %s4622 = scalar_lea.vmem %s8, 20
    %v4623 = vld [vmem:[%s4622] sm:$0xf]
    %s4624 = scalar_lea.vmem %s9, 5
    %v4625 = vld [vmem:[%s4624] sm:$0x1]
    %s4626 = scalar_lea.vmem %s10, 5
    %v4627 = vld [vmem:[%s4626] sm:$0x1]
    %v4628 = vld [vmem:[%s2] sm:$0xff]
    %v4629 = vld [vmem:[%s2 + $0x8] sm:$0xff]
    %v4630 = vld [vmem:[%s2 + $0x10] sm:$0xff]
    %v4631 = vld [vmem:[%s2 + $0x18] sm:$0xff]
    %v4632 = vld [vmem:[%s2 + $0x20] sm:$0xff]
    %v4633 = vld [vmem:[%s2 + $0x28] sm:$0xff]
    %v4634 = vld [vmem:[%s2 + $0x30] sm:$0xff]
    %v4635 = vld [vmem:[%s2 + $0x38] sm:$0xff]
    %v4636 = vld [vmem:[%s2 + $0x40] sm:$0xff]
    %v4637 = vld [vmem:[%s2 + $0x48] sm:$0xff]
    %v4638 = vld [vmem:[%s2 + $0x50] sm:$0xff]
    %v4639 = vld [vmem:[%s2 + $0x58] sm:$0xff]
    %v4640 = vld [vmem:[%s2 + $0x60] sm:$0xff]
    %v4641 = vld [vmem:[%s2 + $0x68] sm:$0xff]
    %v4642 = vld [vmem:[%s2 + $0x70] sm:$0xff]
    %v4643 = vld [vmem:[%s2 + $0x78] sm:$0xff]
    %v4645 = vsel %vm185, %v4628, 0
    %v4648 = vsel %vm185, %v4629, 0
    %v4651 = vsel %vm185, %v4630, 0
    %v4654 = vsel %vm185, %v4631, 0
    %v4657 = vsel %vm185, %v4632, 0
    %v4660 = vsel %vm185, %v4633, 0
    %v4663 = vsel %vm185, %v4634, 0
    %v4666 = vsel %vm185, %v4635, 0
    %v4669 = vsel %vm185, %v4636, 0
    %v4672 = vsel %vm185, %v4637, 0
    %v4675 = vsel %vm185, %v4638, 0
    %v4678 = vsel %vm185, %v4639, 0
    %v4681 = vsel %vm185, %v4640, 0
    %v4684 = vsel %vm185, %v4641, 0
    %v4687 = vsel %vm185, %v4642, 0
    %v4690 = vsel %vm185, %v4643, 0
    %v4693 = vsel %vm234, %v4623, 0
    %4695 = vmatpush.msra.mxu0 0.0
    %4696 = vmatpush.msra.mxu0 0.0
    %4697 = vmatpush.msra.mxu0 0.0
    %4698 = vmatpush.msra.mxu0 0.0
    %4699 = vmatpush.msra.mxu0 0.0
    %4700 = vmatpush.msra.mxu0 0.0
    %4701 = vmatpush.msra.mxu0 0.0
    %4702 = vmatpush.msra.mxu0 0.0
    %4703 = vmatpush.msra.mxu0 0.0
    %4704 = vmatpush.msra.mxu0 0.0
    %4705 = vmatpush.msra.mxu0 0.0
    %4706 = vmatpush.msra.mxu0 0.0
    %4707 = vmatpush.msra.mxu0 0.0
    %4708 = vmatpush.msra.mxu0 0.0
    %4709 = vmatpush.msra.mxu0 0.0
    %4710 = vmatpush.msra.mxu0 %v4693
    %4711 = vmatmul.f32.gmra.mxu0 %v4645
    %v4712 = vpop.f32.mrf.mxu0
    %v4713 = vadd.f32 0.0, %v4712
    %4714 = vmatmul.f32.gmra.mxu0 %v4648
    %v4715 = vpop.f32.mrf.mxu0
    %v4716 = vadd.f32 0.0, %v4715
    %4717 = vmatmul.f32.gmra.mxu0 %v4651
    %v4718 = vpop.f32.mrf.mxu0
    %v4719 = vadd.f32 0.0, %v4718
    %4720 = vmatmul.f32.gmra.mxu0 %v4654
    %v4721 = vpop.f32.mrf.mxu0
    %v4722 = vadd.f32 0.0, %v4721
    %4723 = vmatmul.f32.gmra.mxu0 %v4657
    %v4724 = vpop.f32.mrf.mxu0
    %v4725 = vadd.f32 0.0, %v4724
    %4726 = vmatmul.f32.gmra.mxu0 %v4660
    %v4727 = vpop.f32.mrf.mxu0
    %v4728 = vadd.f32 0.0, %v4727
    %4729 = vmatmul.f32.gmra.mxu0 %v4663
    %v4730 = vpop.f32.mrf.mxu0
    %v4731 = vadd.f32 0.0, %v4730
    %4732 = vmatmul.f32.gmra.mxu0 %v4666
    %v4733 = vpop.f32.mrf.mxu0
    %v4734 = vadd.f32 0.0, %v4733
    %4735 = vmatmul.f32.gmra.mxu0 %v4669
    %v4736 = vpop.f32.mrf.mxu0
    %v4737 = vadd.f32 0.0, %v4736
    %4738 = vmatmul.f32.gmra.mxu0 %v4672
    %v4739 = vpop.f32.mrf.mxu0
    %v4740 = vadd.f32 0.0, %v4739
    %4741 = vmatmul.f32.gmra.mxu0 %v4675
    %v4742 = vpop.f32.mrf.mxu0
    %v4743 = vadd.f32 0.0, %v4742
    %4744 = vmatmul.f32.gmra.mxu0 %v4678
    %v4745 = vpop.f32.mrf.mxu0
    %v4746 = vadd.f32 0.0, %v4745
    %4747 = vmatmul.f32.gmra.mxu0 %v4681
    %v4748 = vpop.f32.mrf.mxu0
    %v4749 = vadd.f32 0.0, %v4748
    %4750 = vmatmul.f32.gmra.mxu0 %v4684
    %v4751 = vpop.f32.mrf.mxu0
    %v4752 = vadd.f32 0.0, %v4751
    %4753 = vmatmul.f32.gmra.mxu0 %v4687
    %v4754 = vpop.f32.mrf.mxu0
    %v4755 = vadd.f32 0.0, %v4754
    %4756 = vmatmul.f32.gmra.mxu0 %v4690
    %v4757 = vpop.f32.mrf.mxu0
    %v4758 = vadd.f32 0.0, %v4757
    %4759 = vdwg.mxu0
    %v4761 = vrot.slane %v4617, 1
    %v4762 = vrot.slane %v4617, 2
    %v4763 = vrot.slane %v4617, 3
    %v4764 = vrot.slane %v4617, 4
    %v4765 = vrot.slane %v4617, 5
    %v4766 = vrot.slane %v4617, 6
    %v4767 = vrot.slane %v4617, 7
    %v4768 = vperm.slane %v4617, 0
    %v4769 = vperm.slane %v4761, 0
    %v4770 = vperm.slane %v4762, 0
    %v4771 = vperm.slane %v4763, 0
    %v4772 = vperm.slane %v4764, 0
    %v4773 = vperm.slane %v4765, 0
    %v4774 = vperm.slane %v4766, 0
    %v4775 = vperm.slane %v4767, 0
    %v4784 = vadd.f32 %v4768, %v4594
    %v4785 = vadd.f32 %v4768, %v4597
    %v4786 = vadd.f32 %v4769, %v4594
    %v4787 = vadd.f32 %v4769, %v4597
    %v4788 = vadd.f32 %v4770, %v4594
    %v4789 = vadd.f32 %v4770, %v4597
    %v4790 = vadd.f32 %v4771, %v4594
    %v4791 = vadd.f32 %v4771, %v4597
    %v4792 = vadd.f32 %v4772, %v4594
    %v4793 = vadd.f32 %v4772, %v4597
    %v4794 = vadd.f32 %v4773, %v4594
    %v4795 = vadd.f32 %v4773, %v4597
    %v4796 = vadd.f32 %v4774, %v4594
    %v4797 = vadd.f32 %v4774, %v4597
    %v4798 = vadd.f32 %v4775, %v4594
    %v4799 = vadd.f32 %v4775, %v4597
    %v4800 = vadd.f32 %v4784, %v4713
    %v4801 = vadd.f32 %v4785, %v4716
    %v4802 = vadd.f32 %v4786, %v4719
    %v4803 = vadd.f32 %v4787, %v4722
    %v4804 = vadd.f32 %v4788, %v4725
    %v4805 = vadd.f32 %v4789, %v4728
    %v4806 = vadd.f32 %v4790, %v4731
    %v4807 = vadd.f32 %v4791, %v4734
    %v4808 = vadd.f32 %v4792, %v4737
    %v4809 = vadd.f32 %v4793, %v4740
    %v4810 = vadd.f32 %v4794, %v4743
    %v4811 = vadd.f32 %v4795, %v4746
    %v4812 = vadd.f32 %v4796, %v4749
    %v4813 = vadd.f32 %v4797, %v4752
    %v4814 = vadd.f32 %v4798, %v4755
    %v4815 = vadd.f32 %v4799, %v4758
    %vm4816 = vcmp.gt.f32.partialorder %v4800, 0.0
    %vm4817 = vcmp.gt.f32.partialorder %v4801, 0.0
    %vm4818 = vcmp.gt.f32.partialorder %v4802, 0.0
    %vm4819 = vcmp.gt.f32.partialorder %v4803, 0.0
    %vm4820 = vcmp.gt.f32.partialorder %v4804, 0.0
    %vm4821 = vcmp.gt.f32.partialorder %v4805, 0.0
    %vm4822 = vcmp.gt.f32.partialorder %v4806, 0.0
    %vm4823 = vcmp.gt.f32.partialorder %v4807, 0.0
    %vm4824 = vcmp.gt.f32.partialorder %v4808, 0.0
    %vm4825 = vcmp.gt.f32.partialorder %v4809, 0.0
    %vm4826 = vcmp.gt.f32.partialorder %v4810, 0.0
    %vm4827 = vcmp.gt.f32.partialorder %v4811, 0.0
    %vm4828 = vcmp.gt.f32.partialorder %v4812, 0.0
    %vm4829 = vcmp.gt.f32.partialorder %v4813, 0.0
    %vm4830 = vcmp.gt.f32.partialorder %v4814, 0.0
    %vm4831 = vcmp.gt.f32.partialorder %v4815, 0.0
    %v4832 = vmul.f32 %v4800, 0.2
    %v4833 = vmul.f32 %v4801, 0.2
    %v4834 = vmul.f32 %v4802, 0.2
    %v4835 = vmul.f32 %v4803, 0.2
    %v4836 = vmul.f32 %v4804, 0.2
    %v4837 = vmul.f32 %v4805, 0.2
    %v4838 = vmul.f32 %v4806, 0.2
    %v4839 = vmul.f32 %v4807, 0.2
    %v4840 = vmul.f32 %v4808, 0.2
    %v4841 = vmul.f32 %v4809, 0.2
    %v4842 = vmul.f32 %v4810, 0.2
    %v4843 = vmul.f32 %v4811, 0.2
    %v4844 = vmul.f32 %v4812, 0.2
    %v4845 = vmul.f32 %v4813, 0.2
    %v4846 = vmul.f32 %v4814, 0.2
    %v4847 = vmul.f32 %v4815, 0.2
    %v4848 = vsel %vm4816, %v4800, %v4832
    %v4849 = vsel %vm4817, %v4801, %v4833
    %v4850 = vsel %vm4818, %v4802, %v4834
    %v4851 = vsel %vm4819, %v4803, %v4835
    %v4852 = vsel %vm4820, %v4804, %v4836
    %v4853 = vsel %vm4821, %v4805, %v4837
    %v4854 = vsel %vm4822, %v4806, %v4838
    %v4855 = vsel %vm4823, %v4807, %v4839
    %v4856 = vsel %vm4824, %v4808, %v4840
    %v4857 = vsel %vm4825, %v4809, %v4841
    %v4858 = vsel %vm4826, %v4810, %v4842
    %v4859 = vsel %vm4827, %v4811, %v4843
    %v4860 = vsel %vm4828, %v4812, %v4844
    %v4861 = vsel %vm4829, %v4813, %v4845
    %v4862 = vsel %vm4830, %v4814, %v4846
    %v4863 = vsel %vm4831, %v4815, %v4847
    %v4865 = vperm.slane %v4625, 0
    %v4867 = vmul.f32 %v4848, %v4865
    %v4868 = vmul.f32 %v4849, %v4865
    %v4869 = vmul.f32 %v4850, %v4865
    %v4870 = vmul.f32 %v4851, %v4865
    %v4871 = vmul.f32 %v4852, %v4865
    %v4872 = vmul.f32 %v4853, %v4865
    %v4873 = vmul.f32 %v4854, %v4865
    %v4874 = vmul.f32 %v4855, %v4865
    %v4875 = vmul.f32 %v4856, %v4865
    %v4876 = vmul.f32 %v4857, %v4865
    %v4877 = vmul.f32 %v4858, %v4865
    %v4878 = vmul.f32 %v4859, %v4865
    %v4879 = vmul.f32 %v4860, %v4865
    %v4880 = vmul.f32 %v4861, %v4865
    %v4881 = vmul.f32 %v4862, %v4865
    %v4882 = vmul.f32 %v4863, %v4865
    %4883 = vadd.xlane.f32.xlu0 %v4867
    %v4884 = vpop.xlane.xlu0 %4883
    %4885 = vadd.xlane.f32.xlu0 %v4868
    %v4886 = vpop.xlane.xlu0 %4885
    %4887 = vadd.xlane.f32.xlu0 %v4869
    %v4888 = vpop.xlane.xlu0 %4887
    %4889 = vadd.xlane.f32.xlu0 %v4870
    %v4890 = vpop.xlane.xlu0 %4889
    %4891 = vadd.xlane.f32.xlu0 %v4871
    %v4892 = vpop.xlane.xlu0 %4891
    %4893 = vadd.xlane.f32.xlu0 %v4872
    %v4894 = vpop.xlane.xlu0 %4893
    %4895 = vadd.xlane.f32.xlu0 %v4873
    %v4896 = vpop.xlane.xlu0 %4895
    %4897 = vadd.xlane.f32.xlu0 %v4874
    %v4898 = vpop.xlane.xlu0 %4897
    %4899 = vadd.xlane.f32.xlu0 %v4875
    %v4900 = vpop.xlane.xlu0 %4899
    %4901 = vadd.xlane.f32.xlu0 %v4876
    %v4902 = vpop.xlane.xlu0 %4901
    %4903 = vadd.xlane.f32.xlu0 %v4877
    %v4904 = vpop.xlane.xlu0 %4903
    %4905 = vadd.xlane.f32.xlu0 %v4878
    %v4906 = vpop.xlane.xlu0 %4905
    %4907 = vadd.xlane.f32.xlu0 %v4879
    %v4908 = vpop.xlane.xlu0 %4907
    %4909 = vadd.xlane.f32.xlu0 %v4880
    %v4910 = vpop.xlane.xlu0 %4909
    %4911 = vadd.xlane.f32.xlu0 %v4881
    %v4912 = vpop.xlane.xlu0 %4911
    %4913 = vadd.xlane.f32.xlu0 %v4882
    %v4914 = vpop.xlane.xlu0 %4913
    %v4931 = vperm.slane %v4884, %v475
    %v4932 = vperm.slane %v4886, %v477
    %v4933 = vsel %vm479, %v4932, %v4931
    %v4934 = vperm.slane %v4888, %v475
    %v4935 = vperm.slane %v4890, %v477
    %v4936 = vsel %vm479, %v4935, %v4934
    %v4937 = vperm.slane %v4892, %v475
    %v4938 = vperm.slane %v4894, %v477
    %v4939 = vsel %vm479, %v4938, %v4937
    %v4940 = vperm.slane %v4896, %v475
    %v4941 = vperm.slane %v4898, %v477
    %v4942 = vsel %vm479, %v4941, %v4940
    %v4943 = vperm.slane %v4900, %v475
    %v4944 = vperm.slane %v4902, %v477
    %v4945 = vsel %vm479, %v4944, %v4943
    %v4946 = vperm.slane %v4904, %v475
    %v4947 = vperm.slane %v4906, %v477
    %v4948 = vsel %vm479, %v4947, %v4946
    %v4949 = vperm.slane %v4908, %v475
    %v4950 = vperm.slane %v4910, %v477
    %v4951 = vsel %vm479, %v4950, %v4949
    %v4952 = vperm.slane %v4912, %v475
    %v4953 = vperm.slane %v4914, %v477
    %v4954 = vsel %vm479, %v4953, %v4952
    %v4955 = vsel %vm502, %v4936, %v4933
    %v4956 = vsel %vm504, %v4939, %v4955
    %v4957 = vsel %vm506, %v4942, %v4956
    %v4958 = vsel %vm508, %v4945, %v4957
    %v4959 = vsel %vm510, %v4948, %v4958
    %v4960 = vsel %vm512, %v4951, %v4959
    %v4961 = vsel %vm514, %v4954, %v4960
    %v4963 = vsel %vm78, %v4961, -1e+30
    %v4964 = vsel %vm518, %v4963, -inf
    %4965 = vmax.xlane.f32.xlu0 %v4964
    %v4966 = vpop.xlane.xlu0 %4965
    %v4967 = vsub.f32 %v4963, %v4966
    %v4968 = vmul.f32 %v4967, 1.442695
    %v4969 = vpow.pop %v4968
    %v4970 = vsel %vm78, %v4969, 0.0
    %v4971 = vsel %vm518, %v4970, 0.0
    %4972 = vadd.xlane.f32.xlu0 %v4971
    %v4973 = vpop.xlane.xlu0 %4972
    %v4974 = vrcp.pop %v4973
    %v4975 = vmul.f32 %v4970, %v4974
    %v4977 = vperm.slane %v4627, 0
    %v4980 = vsel %vm518, %v4975, 0
    %4982 = vmatpush.msra.mxu0 0.0
    %4983 = vmatpush.msra.mxu0 0.0
    %4984 = vmatpush.msra.mxu0 0.0
    %4985 = vmatpush.msra.mxu0 0.0
    %4986 = vmatpush.msra.mxu0 0.0
    %4987 = vmatpush.msra.mxu0 0.0
    %4988 = vmatpush.msra.mxu0 0.0
    %4989 = vmatpush.msra.mxu0 0.0
    %4990 = vmatpush.msra.mxu0 0.0
    %4991 = vmatpush.msra.mxu0 0.0
    %4992 = vmatpush.msra.mxu0 0.0
    %4993 = vmatpush.msra.mxu0 0.0
    %4994 = vmatpush.msra.mxu0 0.0
    %4995 = vmatpush.msra.mxu0 0.0
    %4996 = vmatpush.msra.mxu0 %v4597
    %4997 = vmatpush.msra.mxu0 %v4594
    %4998 = vmatmul.f32.gmra.mxu0 %v4980
    %v4999 = vpop.f32.mrf.mxu0
    %v5000 = vadd.f32 %v4977, %v4999
    %5001 = vdwg.mxu0
    %5002 = vst [vmem:[#allocation2] sm:$0xff] %v5000
    %v5003 = vld [vmem:[%s2 + $0x80] sm:$0xff]
    %v5004 = vld [vmem:[%s2 + $0x88] sm:$0xff]
    %v5005 = vld [vmem:[%s2 + $0x90] sm:$0xff]
    %v5006 = vld [vmem:[%s2 + $0x98] sm:$0xff]
    %v5007 = vld [vmem:[%s2 + $0xa0] sm:$0xff]
    %v5008 = vld [vmem:[%s2 + $0xa8] sm:$0xff]
    %v5009 = vld [vmem:[%s2 + $0xb0] sm:$0xff]
    %v5010 = vld [vmem:[%s2 + $0xb8] sm:$0xff]
    %v5011 = vld [vmem:[%s2 + $0xc0] sm:$0xff]
    %v5012 = vld [vmem:[%s2 + $0xc8] sm:$0xff]
    %v5013 = vld [vmem:[%s2 + $0xd0] sm:$0xff]
    %v5014 = vld [vmem:[%s2 + $0xd8] sm:$0xff]
    %v5015 = vld [vmem:[%s2 + $0xe0] sm:$0xff]
    %v5016 = vld [vmem:[%s2 + $0xe8] sm:$0xff]
    %v5017 = vld [vmem:[%s2 + $0xf0] sm:$0xff]
    %v5018 = vld [vmem:[%s2 + $0xf8] sm:$0xff]
    %v5020 = vsel %vm185, %v5003, 0
    %v5023 = vsel %vm185, %v5004, 0
    %v5026 = vsel %vm185, %v5005, 0
    %v5029 = vsel %vm185, %v5006, 0
    %v5032 = vsel %vm185, %v5007, 0
    %v5035 = vsel %vm185, %v5008, 0
    %v5038 = vsel %vm185, %v5009, 0
    %v5041 = vsel %vm185, %v5010, 0
    %v5044 = vsel %vm185, %v5011, 0
    %v5047 = vsel %vm185, %v5012, 0
    %v5050 = vsel %vm185, %v5013, 0
    %v5053 = vsel %vm185, %v5014, 0
    %v5056 = vsel %vm185, %v5015, 0
    %v5059 = vsel %vm185, %v5016, 0
    %v5062 = vsel %vm185, %v5017, 0
    %v5065 = vsel %vm185, %v5018, 0
    %5067 = vmatpush.msra.mxu0 0.0
    %5068 = vmatpush.msra.mxu0 0.0
    %5069 = vmatpush.msra.mxu0 0.0
    %5070 = vmatpush.msra.mxu0 0.0
    %5071 = vmatpush.msra.mxu0 0.0
    %5072 = vmatpush.msra.mxu0 0.0
    %5073 = vmatpush.msra.mxu0 0.0
    %5074 = vmatpush.msra.mxu0 0.0
    %5075 = vmatpush.msra.mxu0 0.0
    %5076 = vmatpush.msra.mxu0 0.0
    %5077 = vmatpush.msra.mxu0 0.0
    %5078 = vmatpush.msra.mxu0 0.0
    %5079 = vmatpush.msra.mxu0 0.0
    %5080 = vmatpush.msra.mxu0 0.0
    %5081 = vmatpush.msra.mxu0 0.0
    %5082 = vmatpush.msra.mxu0 %v4693
    %5083 = vmatmul.f32.gmra.mxu0 %v5020
    %v5084 = vpop.f32.mrf.mxu0
    %v5085 = vadd.f32 0.0, %v5084
    %5086 = vmatmul.f32.gmra.mxu0 %v5023
    %v5087 = vpop.f32.mrf.mxu0
    %v5088 = vadd.f32 0.0, %v5087
    %5089 = vmatmul.f32.gmra.mxu0 %v5026
    %v5090 = vpop.f32.mrf.mxu0
    %v5091 = vadd.f32 0.0, %v5090
    %5092 = vmatmul.f32.gmra.mxu0 %v5029
    %v5093 = vpop.f32.mrf.mxu0
    %v5094 = vadd.f32 0.0, %v5093
    %5095 = vmatmul.f32.gmra.mxu0 %v5032
    %v5096 = vpop.f32.mrf.mxu0
    %v5097 = vadd.f32 0.0, %v5096
    %5098 = vmatmul.f32.gmra.mxu0 %v5035
    %v5099 = vpop.f32.mrf.mxu0
    %v5100 = vadd.f32 0.0, %v5099
    %5101 = vmatmul.f32.gmra.mxu0 %v5038
    %v5102 = vpop.f32.mrf.mxu0
    %v5103 = vadd.f32 0.0, %v5102
    %5104 = vmatmul.f32.gmra.mxu0 %v5041
    %v5105 = vpop.f32.mrf.mxu0
    %v5106 = vadd.f32 0.0, %v5105
    %5107 = vmatmul.f32.gmra.mxu0 %v5044
    %v5108 = vpop.f32.mrf.mxu0
    %v5109 = vadd.f32 0.0, %v5108
    %5110 = vmatmul.f32.gmra.mxu0 %v5047
    %v5111 = vpop.f32.mrf.mxu0
    %v5112 = vadd.f32 0.0, %v5111
    %5113 = vmatmul.f32.gmra.mxu0 %v5050
    %v5114 = vpop.f32.mrf.mxu0
    %v5115 = vadd.f32 0.0, %v5114
    %5116 = vmatmul.f32.gmra.mxu0 %v5053
    %v5117 = vpop.f32.mrf.mxu0
    %v5118 = vadd.f32 0.0, %v5117
    %5119 = vmatmul.f32.gmra.mxu0 %v5056
    %v5120 = vpop.f32.mrf.mxu0
    %v5121 = vadd.f32 0.0, %v5120
    %5122 = vmatmul.f32.gmra.mxu0 %v5059
    %v5123 = vpop.f32.mrf.mxu0
    %v5124 = vadd.f32 0.0, %v5123
    %5125 = vmatmul.f32.gmra.mxu0 %v5062
    %v5126 = vpop.f32.mrf.mxu0
    %v5127 = vadd.f32 0.0, %v5126
    %5128 = vmatmul.f32.gmra.mxu0 %v5065
    %v5129 = vpop.f32.mrf.mxu0
    %v5130 = vadd.f32 0.0, %v5129
    %5131 = vdwg.mxu0
    %v5133 = vrot.slane %v4620, 1
    %v5134 = vrot.slane %v4620, 2
    %v5135 = vrot.slane %v4620, 3
    %v5136 = vrot.slane %v4620, 4
    %v5137 = vrot.slane %v4620, 5
    %v5138 = vrot.slane %v4620, 6
    %v5139 = vrot.slane %v4620, 7
    %v5140 = vperm.slane %v4620, 0
    %v5141 = vperm.slane %v5133, 0
    %v5142 = vperm.slane %v5134, 0
    %v5143 = vperm.slane %v5135, 0
    %v5144 = vperm.slane %v5136, 0
    %v5145 = vperm.slane %v5137, 0
    %v5146 = vperm.slane %v5138, 0
    %v5147 = vperm.slane %v5139, 0
    %v5156 = vadd.f32 %v5140, %v4594
    %v5157 = vadd.f32 %v5140, %v4597
    %v5158 = vadd.f32 %v5141, %v4594
    %v5159 = vadd.f32 %v5141, %v4597
    %v5160 = vadd.f32 %v5142, %v4594
    %v5161 = vadd.f32 %v5142, %v4597
    %v5162 = vadd.f32 %v5143, %v4594
    %v5163 = vadd.f32 %v5143, %v4597
    %v5164 = vadd.f32 %v5144, %v4594
    %v5165 = vadd.f32 %v5144, %v4597
    %v5166 = vadd.f32 %v5145, %v4594
    %v5167 = vadd.f32 %v5145, %v4597
    %v5168 = vadd.f32 %v5146, %v4594
    %v5169 = vadd.f32 %v5146, %v4597
    %v5170 = vadd.f32 %v5147, %v4594
    %v5171 = vadd.f32 %v5147, %v4597
    %v5172 = vadd.f32 %v5156, %v5085
    %v5173 = vadd.f32 %v5157, %v5088
    %v5174 = vadd.f32 %v5158, %v5091
    %v5175 = vadd.f32 %v5159, %v5094
    %v5176 = vadd.f32 %v5160, %v5097
    %v5177 = vadd.f32 %v5161, %v5100
    %v5178 = vadd.f32 %v5162, %v5103
    %v5179 = vadd.f32 %v5163, %v5106
    %v5180 = vadd.f32 %v5164, %v5109
    %v5181 = vadd.f32 %v5165, %v5112
    %v5182 = vadd.f32 %v5166, %v5115
    %v5183 = vadd.f32 %v5167, %v5118
    %v5184 = vadd.f32 %v5168, %v5121
    %v5185 = vadd.f32 %v5169, %v5124
    %v5186 = vadd.f32 %v5170, %v5127
    %v5187 = vadd.f32 %v5171, %v5130
    %vm5188 = vcmp.gt.f32.partialorder %v5172, 0.0
    %vm5189 = vcmp.gt.f32.partialorder %v5173, 0.0
    %vm5190 = vcmp.gt.f32.partialorder %v5174, 0.0
    %vm5191 = vcmp.gt.f32.partialorder %v5175, 0.0
    %vm5192 = vcmp.gt.f32.partialorder %v5176, 0.0
    %vm5193 = vcmp.gt.f32.partialorder %v5177, 0.0
    %vm5194 = vcmp.gt.f32.partialorder %v5178, 0.0
    %vm5195 = vcmp.gt.f32.partialorder %v5179, 0.0
    %vm5196 = vcmp.gt.f32.partialorder %v5180, 0.0
    %vm5197 = vcmp.gt.f32.partialorder %v5181, 0.0
    %vm5198 = vcmp.gt.f32.partialorder %v5182, 0.0
    %vm5199 = vcmp.gt.f32.partialorder %v5183, 0.0
    %vm5200 = vcmp.gt.f32.partialorder %v5184, 0.0
    %vm5201 = vcmp.gt.f32.partialorder %v5185, 0.0
    %vm5202 = vcmp.gt.f32.partialorder %v5186, 0.0
    %vm5203 = vcmp.gt.f32.partialorder %v5187, 0.0
    %v5204 = vmul.f32 %v5172, 0.2
    %v5205 = vmul.f32 %v5173, 0.2
    %v5206 = vmul.f32 %v5174, 0.2
    %v5207 = vmul.f32 %v5175, 0.2
    %v5208 = vmul.f32 %v5176, 0.2
    %v5209 = vmul.f32 %v5177, 0.2
    %v5210 = vmul.f32 %v5178, 0.2
    %v5211 = vmul.f32 %v5179, 0.2
    %v5212 = vmul.f32 %v5180, 0.2
    %v5213 = vmul.f32 %v5181, 0.2
    %v5214 = vmul.f32 %v5182, 0.2
    %v5215 = vmul.f32 %v5183, 0.2
    %v5216 = vmul.f32 %v5184, 0.2
    %v5217 = vmul.f32 %v5185, 0.2
    %v5218 = vmul.f32 %v5186, 0.2
    %v5219 = vmul.f32 %v5187, 0.2
    %v5220 = vsel %vm5188, %v5172, %v5204
    %v5221 = vsel %vm5189, %v5173, %v5205
    %v5222 = vsel %vm5190, %v5174, %v5206
    %v5223 = vsel %vm5191, %v5175, %v5207
    %v5224 = vsel %vm5192, %v5176, %v5208
    %v5225 = vsel %vm5193, %v5177, %v5209
    %v5226 = vsel %vm5194, %v5178, %v5210
    %v5227 = vsel %vm5195, %v5179, %v5211
    %v5228 = vsel %vm5196, %v5180, %v5212
    %v5229 = vsel %vm5197, %v5181, %v5213
    %v5230 = vsel %vm5198, %v5182, %v5214
    %v5231 = vsel %vm5199, %v5183, %v5215
    %v5232 = vsel %vm5200, %v5184, %v5216
    %v5233 = vsel %vm5201, %v5185, %v5217
    %v5234 = vsel %vm5202, %v5186, %v5218
    %v5235 = vsel %vm5203, %v5187, %v5219
    %v5236 = vmul.f32 %v5220, %v4865
    %v5237 = vmul.f32 %v5221, %v4865
    %v5238 = vmul.f32 %v5222, %v4865
    %v5239 = vmul.f32 %v5223, %v4865
    %v5240 = vmul.f32 %v5224, %v4865
    %v5241 = vmul.f32 %v5225, %v4865
    %v5242 = vmul.f32 %v5226, %v4865
    %v5243 = vmul.f32 %v5227, %v4865
    %v5244 = vmul.f32 %v5228, %v4865
    %v5245 = vmul.f32 %v5229, %v4865
    %v5246 = vmul.f32 %v5230, %v4865
    %v5247 = vmul.f32 %v5231, %v4865
    %v5248 = vmul.f32 %v5232, %v4865
    %v5249 = vmul.f32 %v5233, %v4865
    %v5250 = vmul.f32 %v5234, %v4865
    %v5251 = vmul.f32 %v5235, %v4865
    %5252 = vadd.xlane.f32.xlu0 %v5236
    %v5253 = vpop.xlane.xlu0 %5252
    %5254 = vadd.xlane.f32.xlu0 %v5237
    %v5255 = vpop.xlane.xlu0 %5254
    %5256 = vadd.xlane.f32.xlu0 %v5238
    %v5257 = vpop.xlane.xlu0 %5256
    %5258 = vadd.xlane.f32.xlu0 %v5239
    %v5259 = vpop.xlane.xlu0 %5258
    %5260 = vadd.xlane.f32.xlu0 %v5240
    %v5261 = vpop.xlane.xlu0 %5260
    %5262 = vadd.xlane.f32.xlu0 %v5241
    %v5263 = vpop.xlane.xlu0 %5262
    %5264 = vadd.xlane.f32.xlu0 %v5242
    %v5265 = vpop.xlane.xlu0 %5264
    %5266 = vadd.xlane.f32.xlu0 %v5243
    %v5267 = vpop.xlane.xlu0 %5266
    %5268 = vadd.xlane.f32.xlu0 %v5244
    %v5269 = vpop.xlane.xlu0 %5268
    %5270 = vadd.xlane.f32.xlu0 %v5245
    %v5271 = vpop.xlane.xlu0 %5270
    %5272 = vadd.xlane.f32.xlu0 %v5246
    %v5273 = vpop.xlane.xlu0 %5272
    %5274 = vadd.xlane.f32.xlu0 %v5247
    %v5275 = vpop.xlane.xlu0 %5274
    %5276 = vadd.xlane.f32.xlu0 %v5248
    %v5277 = vpop.xlane.xlu0 %5276
    %5278 = vadd.xlane.f32.xlu0 %v5249
    %v5279 = vpop.xlane.xlu0 %5278
    %5280 = vadd.xlane.f32.xlu0 %v5250
    %v5281 = vpop.xlane.xlu0 %5280
    %5282 = vadd.xlane.f32.xlu0 %v5251
    %v5283 = vpop.xlane.xlu0 %5282
    %v5300 = vperm.slane %v5253, %v475
    %v5301 = vperm.slane %v5255, %v477
    %v5302 = vsel %vm479, %v5301, %v5300
    %v5303 = vperm.slane %v5257, %v475
    %v5304 = vperm.slane %v5259, %v477
    %v5305 = vsel %vm479, %v5304, %v5303
    %v5306 = vperm.slane %v5261, %v475
    %v5307 = vperm.slane %v5263, %v477
    %v5308 = vsel %vm479, %v5307, %v5306
    %v5309 = vperm.slane %v5265, %v475
    %v5310 = vperm.slane %v5267, %v477
    %v5311 = vsel %vm479, %v5310, %v5309
    %v5312 = vperm.slane %v5269, %v475
    %v5313 = vperm.slane %v5271, %v477
    %v5314 = vsel %vm479, %v5313, %v5312
    %v5315 = vperm.slane %v5273, %v475
    %v5316 = vperm.slane %v5275, %v477
    %v5317 = vsel %vm479, %v5316, %v5315
    %v5318 = vperm.slane %v5277, %v475
    %v5319 = vperm.slane %v5279, %v477
    %v5320 = vsel %vm479, %v5319, %v5318
    %v5321 = vperm.slane %v5281, %v475
    %v5322 = vperm.slane %v5283, %v477
    %v5323 = vsel %vm479, %v5322, %v5321
    %v5324 = vsel %vm502, %v5305, %v5302
    %v5325 = vsel %vm504, %v5308, %v5324
    %v5326 = vsel %vm506, %v5311, %v5325
    %v5327 = vsel %vm508, %v5314, %v5326
    %v5328 = vsel %vm510, %v5317, %v5327
    %v5329 = vsel %vm512, %v5320, %v5328
    %v5330 = vsel %vm514, %v5323, %v5329
    %v5332 = vsel %vm79, %v5330, -1e+30
    %v5333 = vsel %vm518, %v5332, -inf
    %5334 = vmax.xlane.f32.xlu0 %v5333
    %v5335 = vpop.xlane.xlu0 %5334
    %v5336 = vsub.f32 %v5332, %v5335
    %v5337 = vmul.f32 %v5336, 1.442695
    %v5338 = vpow.pop %v5337
    %v5339 = vsel %vm79, %v5338, 0.0
    %v5340 = vsel %vm518, %v5339, 0.0
    %5341 = vadd.xlane.f32.xlu0 %v5340
    %v5342 = vpop.xlane.xlu0 %5341
    %v5343 = vrcp.pop %v5342
    %v5344 = vmul.f32 %v5339, %v5343
    %v5346 = vsel %vm518, %v5344, 0
    %5348 = vmatpush.msra.mxu0 0.0
    %5349 = vmatpush.msra.mxu0 0.0
    %5350 = vmatpush.msra.mxu0 0.0
    %5351 = vmatpush.msra.mxu0 0.0
    %5352 = vmatpush.msra.mxu0 0.0
    %5353 = vmatpush.msra.mxu0 0.0
    %5354 = vmatpush.msra.mxu0 0.0
    %5355 = vmatpush.msra.mxu0 0.0
    %5356 = vmatpush.msra.mxu0 0.0
    %5357 = vmatpush.msra.mxu0 0.0
    %5358 = vmatpush.msra.mxu0 0.0
    %5359 = vmatpush.msra.mxu0 0.0
    %5360 = vmatpush.msra.mxu0 0.0
    %5361 = vmatpush.msra.mxu0 0.0
    %5362 = vmatpush.msra.mxu0 %v4597
    %5363 = vmatpush.msra.mxu0 %v4594
    %5364 = vmatmul.f32.gmra.mxu0 %v5346
    %v5365 = vpop.f32.mrf.mxu0
    %v5366 = vadd.f32 %v4977, %v5365
    %5367 = vdwg.mxu0
    %5368 = vst [vmem:[#allocation2 + $0x8] sm:$0xff] %v5366
    %v5369 = vld [vmem:[#allocation2] sm:$0xff]
    %v5370 = vld [vmem:[#allocation2 + $0x8] sm:$0xff]
    %v5371 = vld [vmem:[%s3] sm:$0x3]
    %v5373 = vsel %vm518, %v5371, 0
    %5375 = vmatpush.msra.mxu0 0.0
    %5376 = vmatpush.msra.mxu0 0.0
    %5377 = vmatpush.msra.mxu0 0.0
    %5378 = vmatpush.msra.mxu0 0.0
    %5379 = vmatpush.msra.mxu0 0.0
    %5380 = vmatpush.msra.mxu0 0.0
    %5381 = vmatpush.msra.mxu0 0.0
    %5382 = vmatpush.msra.mxu0 0.0
    %5383 = vmatpush.msra.mxu0 0.0
    %5384 = vmatpush.msra.mxu0 0.0
    %5385 = vmatpush.msra.mxu0 0.0
    %5386 = vmatpush.msra.mxu0 0.0
    %5387 = vmatpush.msra.mxu0 0.0
    %5388 = vmatpush.msra.mxu0 0.0
    %5389 = vmatpush.msra.mxu0 %v5370
    %5390 = vmatpush.msra.mxu0 %v5369
    %5391 = vmatmul.f32.gmra.mxu0 %v5373
    %v5392 = vpop.f32.mrf.mxu0
    %v5393 = vadd.f32 0.0, %v5392
    %5394 = vdwg.mxu0
    %v5395 = vld [vmem:[%s5] sm:$0x3]
    %5397 = vset.pattern.permute.xlu0 0
    %5398 = vperm.xlu0 %5397, %v5395
    %v5399 = vpop.permute.xlu0 %5398
    %v5401 = vmul.f32 %v5393, %v5399
    %v5402 = vld [vmem:[%s4] sm:$0xff]
    %v5403 = vld [vmem:[%s4 + $0x8] sm:$0xff]
    %vm5404 = vcmp.gt.f32.partialorder %v5402, 0.0
    %vm5405 = vcmp.gt.f32.partialorder %v5403, 0.0
    %v5406 = vsel %vm5404, 1, 0
    %v5407 = vsel %vm5405, 1, 0
    %5408 = vset.pattern.permute.xlu0 0
    %5409 = vperm.xlu0 %5408, %v5406
    %v5410 = vpop.permute.xlu0 %5409
    %5411 = vset.pattern.permute.xlu0 0
    %5412 = vperm.xlu0 %5411, %v5407
    %v5413 = vpop.permute.xlu0 %5412
    %vm5414 = vcmp.eq.s32.totalorder %v5410, 1
    %vm5415 = vcmp.eq.s32.totalorder %v5413, 1
    %v5416 = vsel %vm5414, %v5369, -1e+30
    %v5417 = vsel %vm5415, %v5370, -1e+30
    %v5418 = vmax.f32 %v5416, %v5417
    %v5419 = vrot.slane %v5418, 4
    %v5420 = vmax.f32 %v5418, %v5419
    %v5421 = vrot.slane %v5420, 2
    %v5422 = vmax.f32 %v5420, %v5421
    %v5423 = vrot.slane %v5422, 1
    %v5424 = vmax.f32 %v5422, %v5423
    %5425 = vset.pattern.permute.xlu0 1
    %5426 = vperm.xlu0 %5425, %v5406
    %v5427 = vpop.permute.xlu0 %5426
    %5428 = vset.pattern.permute.xlu0 1
    %5429 = vperm.xlu0 %5428, %v5407
    %v5430 = vpop.permute.xlu0 %5429
    %vm5431 = vcmp.eq.s32.totalorder %v5427, 1
    %vm5432 = vcmp.eq.s32.totalorder %v5430, 1
    %v5433 = vsel %vm5431, %v5369, -1e+30
    %v5434 = vsel %vm5432, %v5370, -1e+30
    %v5435 = vmax.f32 %v5433, %v5434
    %v5436 = vrot.slane %v5435, 4
    %v5437 = vmax.f32 %v5435, %v5436
    %v5438 = vrot.slane %v5437, 2
    %v5439 = vmax.f32 %v5437, %v5438
    %v5440 = vrot.slane %v5439, 1
    %v5441 = vmax.f32 %v5439, %v5440
    %vm5442 = vcmask 1040384
    %v5443 = vsel %vm5442, %v5424, %v5441
    %5444 = vst [vmem:[#allocation7] sm:$0x3] %v5401
    %5445 = vst [vmem:[#allocation7 + $0x2] sm:$0x3] %v5443
    %v5446 = vld [vmem:[%s13] sm:$0xff]
    %v5447 = vld [vmem:[%s13 + $0x8] sm:$0xff]
    %v5448 = vld [vmem:[%s13 + $0x10] sm:$0xff]
    %v5449 = vld [vmem:[%s13 + $0x18] sm:$0xff]
    %v5450 = vld [vmem:[%s13 + $0x20] sm:$0xff]
    %v5451 = vld [vmem:[%s13 + $0x28] sm:$0xff]
    %v5452 = vld [vmem:[%s13 + $0x30] sm:$0xff]
    %v5453 = vld [vmem:[%s13 + $0x38] sm:$0xff]
    %v5454 = vld [vmem:[%s13 + $0x40] sm:$0xff]
    %v5455 = vld [vmem:[%s13 + $0x48] sm:$0xff]
    %v5456 = vld [vmem:[%s13 + $0x50] sm:$0xff]
    %v5457 = vld [vmem:[%s13 + $0x58] sm:$0xff]
    %v5458 = vld [vmem:[%s13 + $0x60] sm:$0xff]
    %v5459 = vld [vmem:[%s13 + $0x68] sm:$0xff]
    %v5460 = vld [vmem:[%s13 + $0x70] sm:$0xff]
    %v5461 = vld [vmem:[%s13 + $0x78] sm:$0xff]
    %v5462 = vld [vmem:[%s13 + $0x80] sm:$0xff]
    %v5463 = vld [vmem:[%s13 + $0x88] sm:$0xff]
    %v5464 = vld [vmem:[%s13 + $0x90] sm:$0xff]
    %v5465 = vld [vmem:[%s13 + $0x98] sm:$0xff]
    %v5466 = vld [vmem:[%s13 + $0xa0] sm:$0xff]
    %v5467 = vld [vmem:[%s13 + $0xa8] sm:$0xff]
    %v5468 = vld [vmem:[%s13 + $0xb0] sm:$0xff]
    %v5469 = vld [vmem:[%s13 + $0xb8] sm:$0xff]
    %v5470 = vld [vmem:[%s13 + $0xc0] sm:$0xff]
    %v5471 = vld [vmem:[%s13 + $0xc8] sm:$0xff]
    %v5472 = vld [vmem:[%s13 + $0xd0] sm:$0xff]
    %v5473 = vld [vmem:[%s13 + $0xd8] sm:$0xff]
    %v5474 = vld [vmem:[%s13 + $0xe0] sm:$0xff]
    %v5475 = vld [vmem:[%s13 + $0xe8] sm:$0xff]
    %v5476 = vld [vmem:[%s13 + $0xf0] sm:$0xff]
    %v5477 = vld [vmem:[%s13 + $0xf8] sm:$0xff]
    %5478 = vmatpush.msra.mxu0 %v5477
    %5479 = vmatpush.msra.mxu0 %v5476
    %5480 = vmatpush.msra.mxu0 %v5475
    %5481 = vmatpush.msra.mxu0 %v5474
    %5482 = vmatpush.msra.mxu0 %v5473
    %5483 = vmatpush.msra.mxu0 %v5472
    %5484 = vmatpush.msra.mxu0 %v5471
    %5485 = vmatpush.msra.mxu0 %v5470
    %5486 = vmatpush.msra.mxu0 %v5469
    %5487 = vmatpush.msra.mxu0 %v5468
    %5488 = vmatpush.msra.mxu0 %v5467
    %5489 = vmatpush.msra.mxu0 %v5466
    %5490 = vmatpush.msra.mxu0 %v5465
    %5491 = vmatpush.msra.mxu0 %v5464
    %5492 = vmatpush.msra.mxu0 %v5463
    %5493 = vmatpush.msra.mxu0 %v5462
    %5494 = vmatmul.f32.gmra.mxu0 %v5443
    %v5495 = vpop.f32.mrf.mxu0
    %v5496 = vadd.f32 0.0, %v5495
    %5497 = vdwg.mxu0
    %5498 = vmatpush.msra.mxu0 %v5461
    %5499 = vmatpush.msra.mxu0 %v5460
    %5500 = vmatpush.msra.mxu0 %v5459
    %5501 = vmatpush.msra.mxu0 %v5458
    %5502 = vmatpush.msra.mxu0 %v5457
    %5503 = vmatpush.msra.mxu0 %v5456
    %5504 = vmatpush.msra.mxu0 %v5455
    %5505 = vmatpush.msra.mxu0 %v5454
    %5506 = vmatpush.msra.mxu0 %v5453
    %5507 = vmatpush.msra.mxu0 %v5452
    %5508 = vmatpush.msra.mxu0 %v5451
    %5509 = vmatpush.msra.mxu0 %v5450
    %5510 = vmatpush.msra.mxu0 %v5449
    %5511 = vmatpush.msra.mxu0 %v5448
    %5512 = vmatpush.msra.mxu0 %v5447
    %5513 = vmatpush.msra.mxu0 %v5446
    %5514 = vmatmul.f32.gmra.mxu0 %v5401
    %v5515 = vpop.f32.mrf.mxu0
    %v5516 = vadd.f32 %v5496, %v5515
    %5517 = vdwg.mxu0
    %v5518 = vld [vmem:[%s14] sm:$0x1]
    %v5520 = vperm.slane %v5518, 0
    %v5522 = vadd.f32 %v5516, %v5520
    %vm5523 = vcmp.gt.f32.partialorder %v5522, 0.0
    %v5524 = vmul.f32 %v5522, 0.01
    %v5525 = vsel %vm5523, %v5522, %v5524
    %v5526 = vld [vmem:[%s15] sm:$0xff]
    %v5527 = vld [vmem:[%s15 + $0x8] sm:$0xff]
    %v5528 = vld [vmem:[%s15 + $0x10] sm:$0xff]
    %v5529 = vld [vmem:[%s15 + $0x18] sm:$0xff]
    %v5530 = vld [vmem:[%s15 + $0x20] sm:$0xff]
    %v5531 = vld [vmem:[%s15 + $0x28] sm:$0xff]
    %v5532 = vld [vmem:[%s15 + $0x30] sm:$0xff]
    %v5533 = vld [vmem:[%s15 + $0x38] sm:$0xff]
    %v5534 = vld [vmem:[%s16] sm:$0x1]
    %v5536 = vperm.slane %v5534, 0
    %vm5538 = vcmask 523264
    %v5540 = vsel %vm5538, %v5525, 0
    %5542 = vmatpush.msra.mxu0 0.0
    %5543 = vmatpush.msra.mxu0 0.0
    %5544 = vmatpush.msra.mxu0 0.0
    %5545 = vmatpush.msra.mxu0 0.0
    %5546 = vmatpush.msra.mxu0 0.0
    %5547 = vmatpush.msra.mxu0 0.0
    %5548 = vmatpush.msra.mxu0 0.0
    %5549 = vmatpush.msra.mxu0 0.0
    %5550 = vmatpush.msra.mxu0 %v5533
    %5551 = vmatpush.msra.mxu0 %v5532
    %5552 = vmatpush.msra.mxu0 %v5531
    %5553 = vmatpush.msra.mxu0 %v5530
    %5554 = vmatpush.msra.mxu0 %v5529
    %5555 = vmatpush.msra.mxu0 %v5528
    %5556 = vmatpush.msra.mxu0 %v5527
    %5557 = vmatpush.msra.mxu0 %v5526
    %5558 = vmatmul.f32.gmra.mxu0 %v5540
    %v5559 = vpop.f32.mrf.mxu0
    %v5560 = vadd.f32 %v5536, %v5559
    %5561 = vdwg.mxu0
    %vm5562 = vcmask 17408
    %5563 = vst.msk [vmem:[#allocation6] sm:$0x3] %vm5562, %v5560
    // Predicated region
    $region74: #{forward.1} parent=1 // pred_check
      _
    $region75: #{forward.1} parent=1 // pred_check_branch
      %5565 = sbr.rel (0) target = $region77
    $region76: #{forward.1} parent=1 // pred_region
      %5567 = vsyncadd [#allocation5], 0
      %s5569 = sshll.u32 [#allocation6], 4
      %s5570 = int_to_ptr.vmem [resolvable:$true] %s5569
      %s5571 = sshll.u32 %s17, 4
      %s5572 = int_to_ptr.hbm [resolvable:$true] %s5571
      %5574 = dma.vmem_to_hbm [thread:$0]  %s5570, 32, %s5572, [#allocation5]
    $region77: #{forward.1} parent=1 // pred_fallthru
      _
    // Predicated region
    $region78: #{forward.1} parent=1 // pred_check
      _
    $region79: #{forward.1} parent=1 // pred_check_branch
      %5576 = sbr.rel (0) target = $region81
    $region80: #{forward.1} parent=1 // pred_region
      %5578 = vsyncadd [#allocation8], 0
      %s5580 = sshll.u32 [#allocation7], 4
      %s5581 = int_to_ptr.vmem [resolvable:$true] %s5580
      %s5582 = sshll.u32 %s18, 4
      %s5583 = int_to_ptr.hbm [resolvable:$true] %s5582
      %5585 = dma.vmem_to_hbm [thread:$0]  %s5581, 64, %s5583, [#allocation8]
    $region81: #{forward.1} parent=1 // pred_fallthru
      _
    // Predicated region
    $region82: #{forward.1} parent=1 // pred_check
      _
    $region83: #{forward.1} parent=1 // pred_check_branch
      %5587 = sbr.rel (0) target = $region85
    $region84: #{forward.1} parent=1 // pred_region
      %5589 = dma.done [#allocation5], 32
    $region85: #{forward.1} parent=1 // pred_fallthru
      _
    // Predicated region
    $region86: #{forward.1} parent=1 // pred_check
      _
    $region87: #{forward.1} parent=1 // pred_check_branch
      %5591 = sbr.rel (0) target = $region89
    $region88: #{forward.1} parent=1 // pred_region
      %5593 = dma.done [#allocation8], 64
    $region89: #{forward.1} parent=1 // pred_fallthru
      _
    %5594 = vsyncpa [#allocation4], 1
    %5595 = vsyncpa [#allocation5], 1
    %5596 = vsyncpa [#allocation8], 1

</llo_original>
